<compile_context>
chip_gen: v7x
topology: tpu7x:2x2x1
jax: 0.10.0
libtpu: 0.0.40
codegen_flags: <defaults>
</compile_context>

<pallas_src>
import functools

import numpy as np
import jax
import jax.numpy as jnp
from jax import lax
from jax.experimental import pallas as pl
from jax.experimental.pallas import tpu as pltpu


# ----------------------------------------------------------------------------
# helpers
# ----------------------------------------------------------------------------
def _softmax_last(e):
    """Numerically stable softmax over the last axis (f32, approx reciprocal)."""
    m = jnp.max(e, axis=-1, keepdims=True)
    p = jnp.exp(e - m)
    return p * pl.reciprocal(jnp.sum(p, axis=-1, keepdims=True), approx=True)


def _map_pad(W):
    """Lane padding (multiple of 128) covering the max 11x11 conv flat shift."""
    return ((5 * W + 5 + 127) // 128) * 128


# ----------------------------------------------------------------------------
# fused Positioning kernel (one batch element per grid step)
# ----------------------------------------------------------------------------
def _positioning_kernel(scalars_ref, x_ref, wq_ref, bq_ref, wk_ref, bk_ref,
                        wv_ref, bv_ref, wmap_ref,
                        sab_ref, comb_ref, g_ref, t_ref,
                        *, H, W, pad, use_channel_attn):
    f32 = jnp.float32
    bf16 = jnp.bfloat16
    N = H * W

    gamma_ca = scalars_ref[0]          # SMEM scalars
    gamma_sa = scalars_ref[1]
    map_bias = scalars_ref[2]

    x = x_ref[...].astype(f32)                                   # (C, N)

    # ---------------- CA_Block: channel attention -------------------------
    if use_channel_attn:
        xb = x.astype(bf16)
        # energy[i, j] = sum_n x[i, n] * x[j, n]   (x @ x^T, no transpose)
        energy = lax.dot_general(xb, xb, (((1,), (1,)), ((), ())),
                                 preferred_element_type=f32)     # (C, C)
        attn = _softmax_last(energy)
        out = jnp.dot(attn.astype(bf16), xb,
                      preferred_element_type=f32)                # (C, N)
        x = gamma_ca * out + x

    # ---------------- SA_Block: spatial attention --------------------------
    xb = x.astype(bf16)
    q = jnp.dot(wq_ref[...].astype(bf16), xb, preferred_element_type=f32) + bq_ref[...]
    k = jnp.dot(wk_ref[...].astype(bf16), xb, preferred_element_type=f32) + bk_ref[...]
    v = jnp.dot(wv_ref[...].astype(bf16), xb, preferred_element_type=f32) + bv_ref[...]

    # energy[n, m] = sum_c q[c, n] * k[c, m]   (q^T k, no transpose)
    energy = lax.dot_general(q.astype(bf16), k.astype(bf16),
                             (((0,), (0,)), ((), ())),
                             preferred_element_type=f32)          # (N, N)
    attn = _softmax_last(energy)
    # out[c, n] = sum_m v[c, m] * attn[n, m]   (v @ attn^T, no transpose)
    out = lax.dot_general(v.astype(bf16), attn.astype(bf16),
                          (((1,), (1,)), ((), ())),
                          preferred_element_type=f32)             # (C, N)
    sab = gamma_sa * out + x
    sab_ref[...] = sab

    # ---------------- 11x11 map conv (stride 1, pad 5) ---------------------
    # One M=121 MXU matmul: T[r, n] = sum_c w[c, ky, kx] * sab[c, n],  r = ky*11+kx
    T = jnp.dot(wmap_ref[...].astype(bf16), sab.astype(bf16),
                preferred_element_type=f32)                       # (121, N)

    # Write T into a lane-zero-padded scratch so spatial shifts become plain
    # offset row loads; out-of-image rows read the zero pad automatically.
    t_ref[...] = jnp.zeros(t_ref.shape, f32)
    t_ref[:, pad:pad + N] = T

    ww = lax.broadcasted_iota(jnp.int32, (1, N), 1) % W           # column index
    w_masks = [jnp.logical_and(ww + (kx - 5) >= 0, ww + (kx - 5) < W)
               for kx in range(11)]

    g = jnp.full((1, N), map_bias, dtype=f32)
    for ky in range(11):
        dy = ky - 5
        for kx in range(11):
            r = ky * 11 + kx
            delta = dy * W + (kx - 5)                             # flat-index shift
            row = t_ref[pl.ds(r, 1), pl.ds(pad + delta, N)]       # (1, N), h handled by pad
            g = g + jnp.where(w_masks[kx], row, 0.0)

    g_ref[...] = g                                                # global_sab
    comb_ref[...] = sab + g                                       # sab + global_sab


# ----------------------------------------------------------------------------
# pallas_call wrapper (= Positioning.forward)
# ----------------------------------------------------------------------------
def positioning_forward(x, params, use_channel_attn=True):
    B, C, H, W = x.shape
    N = H * W
    pad = _map_pad(W)
    Cq = params["sa_wq"].shape[0]

    x_flat = x.reshape(B, C, N).astype(jnp.float32)
    # map conv weight (1, C, 11, 11) -> (121, C) with row index r = ky*11 + kx
    w2d = jnp.transpose(params["map_w"][0], (1, 2, 0)).reshape(11 * 11, C)
    scalars = jnp.stack([params["ca_gamma"], params["sa_gamma"],
                         params["map_b"]]).astype(jnp.float32)    # (3,) -> SMEM

    kernel = functools.partial(_positioning_kernel, H=H, W=W, pad=pad,
                               use_channel_attn=use_channel_attn)

    sab_flat, comb_flat, g_flat = pl.pallas_call(
        kernel,
        out_shape=(
            jax.ShapeDtypeStruct((B, C, N), jnp.float32),   # sab
            jax.ShapeDtypeStruct((B, C, N), jnp.float32),   # sab + global_sab
            jax.ShapeDtypeStruct((B, 1, N), jnp.float32),   # global_sab
        ),
        grid=(B,),
        in_specs=[
            pl.BlockSpec(memory_space=pltpu.MemorySpace.SMEM),    # gammas + map bias
            pl.BlockSpec((None, C, N), lambda b: (b, 0, 0)),      # x
            pl.BlockSpec((Cq, C), lambda b: (0, 0)),              # wq
            pl.BlockSpec((Cq, 1), lambda b: (0, 0)),              # bq
            pl.BlockSpec((Cq, C), lambda b: (0, 0)),              # wk
            pl.BlockSpec((Cq, 1), lambda b: (0, 0)),              # bk
            pl.BlockSpec((C, C), lambda b: (0, 0)),               # wv
            pl.BlockSpec((C, 1), lambda b: (0, 0)),               # bv
            pl.BlockSpec((121, C), lambda b: (0, 0)),             # map weight (121, C)
        ],
        out_specs=(
            pl.BlockSpec((None, C, N), lambda b: (b, 0, 0)),
            pl.BlockSpec((None, C, N), lambda b: (b, 0, 0)),
            pl.BlockSpec((None, 1, N), lambda b: (b, 0, 0)),
        ),
        scratch_shapes=[pltpu.VMEM((121, N + 2 * pad), jnp.float32)],
        compiler_params=pltpu.CompilerParams(
            dimension_semantics=("parallel",),
            vmem_limit_bytes=64 * 1024 * 1024,
        ),
    )(scalars, x_flat, params["sa_wq"], params["sa_bq"],
      params["sa_wk"], params["sa_bk"], params["sa_wv"], params["sa_bv"], w2d)

    sab = sab_flat.reshape(B, C, H, W)
    sab_plus_global = comb_flat.reshape(B, C, H, W)
    global_sab = g_flat.reshape(B, 1, H, W)
    return sab, sab_plus_global, global_sab


# ----------------------------------------------------------------------------
# Parameter init (deterministic, mirrors the PyTorch module's shapes)
# ----------------------------------------------------------------------------
def init_positioning_params(key, channel):
    Cq = max(channel // 8, 1)
    ks = jax.random.split(key, 6)
    s = 0.05
    return {
        "ca_gamma": jnp.ones((), jnp.float32),                    # CA_Block.gamma = ones(1)
        "sa_wq": s * jax.random.normal(ks[0], (Cq, channel), jnp.float32),
        "sa_bq": s * jax.random.normal(ks[1], (Cq, 1), jnp.float32),
        "sa_wk": s * jax.random.normal(ks[2], (Cq, channel), jnp.float32),
        "sa_bk": s * jax.random.normal(ks[3], (Cq, 1), jnp.float32),
        "sa_wv": s * jax.random.normal(ks[4], (channel, channel), jnp.float32),
        "sa_bv": s * jax.random.normal(ks[5], (channel, 1), jnp.float32),
        "sa_gamma": jnp.ones((), jnp.float32),                    # SA_Block.gamma = ones(1)
        "map_w": s * jax.random.normal(jax.random.fold_in(key, 7),
                                       (1, channel, 11, 11), jnp.float32),
        "map_b": s * jax.random.normal(jax.random.fold_in(key, 8),
                                       (), jnp.float32),
    }


class AllPositioningPallas:
    """Pallas version of AllPositioning.forward (routes to per-layer Positioning)."""

    # small, script-local channel sizes standing in for 1280/640/320
    layer_channels = {
        "up_blocks_1_attentions_2_transformer_blocks_0_attn2": 32,
        "up_blocks_2_attentions_2_transformer_blocks_0_attn2": 16,
        "up_blocks_3_attentions_2_transformer_blocks_0_attn2": 8,
    }

    def __init__(self, use_channel_attn, key):
        self.use_channel_attn = use_channel_attn
        self.params = {}
        for i, (name, ch) in enumerate(self.layer_channels.items()):
            self.params[name] = init_positioning_params(jax.random.fold_in(key, i), ch)

    def forward(self, x, layer_name):
        return positioning_forward(x, self.params[layer_name],
                                   use_channel_attn=self.use_channel_attn)


# ----------------------------------------------------------------------------
# Pure-JAX reference (for a correctness sanity check)
# ----------------------------------------------------------------------------
def positioning_reference(x, params, use_channel_attn=True):
    hp = jax.lax.Precision.HIGHEST
    B, C, H, W = x.shape
    N = H * W
    xf = x.reshape(B, C, N).astype(jnp.float32)
    if use_channel_attn:
        energy = jnp.einsum("bcn,bdn->bcd", xf, xf, precision=hp)
        attn = jax.nn.softmax(energy, axis=-1)
        out = jnp.einsum("bcd,bdn->bcn", attn, xf, precision=hp)
        xf = params["ca_gamma"] * out + xf
    q = jnp.einsum("qc,bcn->bqn", params["sa_wq"], xf, precision=hp) + params["sa_bq"][None]
    k = jnp.einsum("qc,bcn->bqn", params["sa_wk"], xf, precision=hp) + params["sa_bk"][None]
    v = jnp.einsum("vc,bcn->bvn", params["sa_wv"], xf, precision=hp) + params["sa_bv"][None]
    energy = jnp.einsum("bqn,bqm->bnm", q, k, precision=hp)
    attn = jax.nn.softmax(energy, axis=-1)
    out = jnp.einsum("bcm,bnm->bcn", v, attn, precision=hp)
    sab = (params["sa_gamma"] * out + xf).reshape(B, C, H, W)
    g = jax.lax.conv_general_dilated(
        sab, params["map_w"], (1, 1), [(5, 5), (5, 5)],
        dimension_numbers=("NCHW", "OIHW", "NCHW"), precision=hp,
    ) + params["map_b"]
    return sab, sab + g, g


# ----------------------------------------------------------------------------
if __name__ == "__main__":
    key = jax.random.PRNGKey(0)
    k_x, k_p = jax.random.split(key)

    model = AllPositioningPallas(use_channel_attn=True, key=k_p)

    layer = "up_blocks_1_attentions_2_transformer_blocks_0_attn2"
    B, C, H, W = 2, model.layer_channels[layer], 16, 16   # N = 256 (lane-dense)
    x = jax.random.normal(k_x, (B, C, H, W), jnp.float32)

    fwd = jax.jit(functools.partial(model.forward, layer_name=layer))
    sab, sab_plus, global_sab = jax.block_until_ready(fwd(x))

    # sanity check against a pure-JAX f32 reference.  The kernel uses bf16 MXU
    # operands (f32 accumulation), so the conv outputs (121*C-term sums) get a
    # slightly looser absolute tolerance.
    r_sab, r_plus, r_g = positioning_reference(x, model.params[layer], True)
    np.testing.assert_allclose(np.asarray(sab), np.asarray(r_sab), rtol=5e-2, atol=5e-2)
    np.testing.assert_allclose(np.asarray(global_sab), np.asarray(r_g), rtol=5e-2, atol=1e-1)
    np.testing.assert_allclose(np.asarray(sab_plus), np.asarray(r_plus), rtol=5e-2, atol=1e-1)

    assert sab.shape == (B, C, H, W)
    assert sab_plus.shape == (B, C, H, W)
    assert global_sab.shape == (B, 1, H, W)
    assert bool(jnp.all(jnp.isfinite(sab_plus)))

    print("KERNEL_OK")
</pallas_src>

<mosaic_0001>
module attributes {stable_mosaic.version = 11 : i64} {
  func.func @_positioning_kernel(%arg0: i32, %arg1: memref<3xf32, #tpu.memory_space<smem>>, %arg2: memref<1x32x256xf32, #tpu.memory_space<vmem>>, %arg3: memref<4x32xf32, #tpu.memory_space<vmem>>, %arg4: memref<4x1xf32, #tpu.memory_space<vmem>>, %arg5: memref<4x32xf32, #tpu.memory_space<vmem>>, %arg6: memref<4x1xf32, #tpu.memory_space<vmem>>, %arg7: memref<32x32xf32, #tpu.memory_space<vmem>>, %arg8: memref<32x1xf32, #tpu.memory_space<vmem>>, %arg9: memref<121x32xf32, #tpu.memory_space<vmem>>, %arg10: memref<1x32x256xf32, #tpu.memory_space<vmem>>, %arg11: memref<1x32x256xf32, #tpu.memory_space<vmem>>, %arg12: memref<1x1x256xf32, #tpu.memory_space<vmem>>, %arg13: memref<121x512xf32, #tpu.memory_space<vmem>>) attributes {dimension_semantics = [#tpu.dimension_semantics<parallel>], iteration_bounds = array<i64: 2>, scalar_prefetch = 0 : i64, scratch_operands = 1 : i64, tpu.core_type = #tpu.core_type<tc>, window_params = [{transform_indices = @transform_0, window_bounds = array<i64: 3>}, {transform_indices = @transform_1, window_bounds = array<i64: 1, 32, 256>}, {pipeline_mode = #tpu.pipeline_mode<synchronous>, transform_indices = @transform_2, window_bounds = array<i64: 4, 32>}, {pipeline_mode = #tpu.pipeline_mode<synchronous>, transform_indices = @transform_3, window_bounds = array<i64: 4, 1>}, {pipeline_mode = #tpu.pipeline_mode<synchronous>, transform_indices = @transform_4, window_bounds = array<i64: 4, 32>}, {pipeline_mode = #tpu.pipeline_mode<synchronous>, transform_indices = @transform_5, window_bounds = array<i64: 4, 1>}, {pipeline_mode = #tpu.pipeline_mode<synchronous>, transform_indices = @transform_6, window_bounds = array<i64: 32, 32>}, {pipeline_mode = #tpu.pipeline_mode<synchronous>, transform_indices = @transform_7, window_bounds = array<i64: 32, 1>}, {pipeline_mode = #tpu.pipeline_mode<synchronous>, transform_indices = @transform_8, window_bounds = array<i64: 121, 32>}, {transform_indices = @transform_9, window_bounds = array<i64: 1, 32, 256>}, {transform_indices = @transform_10, window_bounds = array<i64: 1, 32, 256>}, {transform_indices = @transform_11, window_bounds = array<i64: 1, 1, 256>}]} {
    %c0 = arith.constant 0 : index
    %0 = memref.load %arg1[%c0] : memref<3xf32, #tpu.memory_space<smem>>
    %c1 = arith.constant 1 : index
    %1 = memref.load %arg1[%c1] : memref<3xf32, #tpu.memory_space<smem>>
    %c2 = arith.constant 2 : index
    %2 = memref.load %arg1[%c2] : memref<3xf32, #tpu.memory_space<smem>>
    %c0_0 = arith.constant 0 : index
    %c0_1 = arith.constant 0 : index
    %c0_2 = arith.constant 0 : index
    %3 = vector.load %arg2[%c0_0, %c0_1, %c0_2] : memref<1x32x256xf32, #tpu.memory_space<vmem>>, vector<1x32x256xf32>
    %4 = vector.shape_cast %3 : vector<1x32x256xf32> to vector<32x256xf32>
    %5 = arith.truncf %4 : vector<32x256xf32> to vector<32x256xbf16>
    %cst = arith.constant dense<0.000000e+00> : vector<32x32xf32>
    %6 = tpu.matmul %5, %5, %cst {dimension_numbers = #tpu.dot_dimension_numbers<[1], [1], [0], [0], [0, 0, 1, 0], [], []>} : vector<32x256xbf16>, vector<32x256xbf16>, vector<32x32xf32> -> vector<32x32xf32>
    %cst_3 = arith.constant dense<0xFF800000> : vector<32xf32>
    %7 = vector.multi_reduction <maximumf>, %6, %cst_3 [1] : vector<32x32xf32> to vector<32xf32>
    %8 = vector.shape_cast %7 : vector<32xf32> to vector<32x1xf32>
    %9 = vector.broadcast %8 : vector<32x1xf32> to vector<32x32xf32>
    %10 = arith.subf %6, %9 : vector<32x32xf32>
    %11 = math.exp %10 : vector<32x32xf32>
    %cst_4 = arith.constant dense<0.000000e+00> : vector<32xf32>
    %12 = vector.multi_reduction <add>, %11, %cst_4 [1] : vector<32x32xf32> to vector<32xf32>
    %13 = vector.shape_cast %12 : vector<32xf32> to vector<32x1xf32>
    %14 = tpu.reciprocal %13 {approx = true} : vector<32x1xf32> -> vector<32x1xf32>
    %15 = vector.broadcast %14 : vector<32x1xf32> to vector<32x32xf32>
    %16 = arith.mulf %11, %15 : vector<32x32xf32>
    %17 = arith.truncf %16 : vector<32x32xf32> to vector<32x32xbf16>
    %cst_5 = arith.constant dense<0.000000e+00> : vector<32x256xf32>
    %18 = tpu.matmul %17, %5, %cst_5 {dimension_numbers = #tpu.dot_dimension_numbers<[1], [0], [0], [1], [0, 0, 1, 1], [], []>} : vector<32x32xbf16>, vector<32x256xbf16>, vector<32x256xf32> -> vector<32x256xf32>
    %19 = vector.broadcast %0 : f32 to vector<32x256xf32>
    %20 = arith.mulf %19, %18 : vector<32x256xf32>
    %21 = arith.addf %20, %4 : vector<32x256xf32>
    %22 = arith.truncf %21 : vector<32x256xf32> to vector<32x256xbf16>
    %c0_6 = arith.constant 0 : index
    %c0_7 = arith.constant 0 : index
    %23 = vector.load %arg3[%c0_6, %c0_7] : memref<4x32xf32, #tpu.memory_space<vmem>>, vector<4x32xf32>
    %24 = arith.truncf %23 : vector<4x32xf32> to vector<4x32xbf16>
    %cst_8 = arith.constant dense<0.000000e+00> : vector<4x256xf32>
    %25 = tpu.matmul %24, %22, %cst_8 {dimension_numbers = #tpu.dot_dimension_numbers<[1], [0], [0], [1], [0, 0, 1, 1], [], []>} : vector<4x32xbf16>, vector<32x256xbf16>, vector<4x256xf32> -> vector<4x256xf32>
    %c0_9 = arith.constant 0 : index
    %c0_10 = arith.constant 0 : index
    %26 = vector.load %arg4[%c0_9, %c0_10] : memref<4x1xf32, #tpu.memory_space<vmem>>, vector<4x1xf32>
    %27 = vector.broadcast %26 : vector<4x1xf32> to vector<4x256xf32>
    %28 = arith.addf %25, %27 : vector<4x256xf32>
    %c0_11 = arith.constant 0 : index
    %c0_12 = arith.constant 0 : index
    %29 = vector.load %arg5[%c0_11, %c0_12] : memref<4x32xf32, #tpu.memory_space<vmem>>, vector<4x32xf32>
    %30 = arith.truncf %29 : vector<4x32xf32> to vector<4x32xbf16>
    %cst_13 = arith.constant dense<0.000000e+00> : vector<4x256xf32>
    %31 = tpu.matmul %30, %22, %cst_13 {dimension_numbers = #tpu.dot_dimension_numbers<[1], [0], [0], [1], [0, 0, 1, 1], [], []>} : vector<4x32xbf16>, vector<32x256xbf16>, vector<4x256xf32> -> vector<4x256xf32>
    %c0_14 = arith.constant 0 : index
    %c0_15 = arith.constant 0 : index
    %32 = vector.load %arg6[%c0_14, %c0_15] : memref<4x1xf32, #tpu.memory_space<vmem>>, vector<4x1xf32>
    %33 = vector.broadcast %32 : vector<4x1xf32> to vector<4x256xf32>
    %34 = arith.addf %31, %33 : vector<4x256xf32>
    %c0_16 = arith.constant 0 : index
    %c0_17 = arith.constant 0 : index
    %35 = vector.load %arg7[%c0_16, %c0_17] : memref<32x32xf32, #tpu.memory_space<vmem>>, vector<32x32xf32>
    %36 = arith.truncf %35 : vector<32x32xf32> to vector<32x32xbf16>
    %cst_18 = arith.constant dense<0.000000e+00> : vector<32x256xf32>
    %37 = tpu.matmul %36, %22, %cst_18 {dimension_numbers = #tpu.dot_dimension_numbers<[1], [0], [0], [1], [0, 0, 1, 1], [], []>} : vector<32x32xbf16>, vector<32x256xbf16>, vector<32x256xf32> -> vector<32x256xf32>
    %c0_19 = arith.constant 0 : index
    %c0_20 = arith.constant 0 : index
    %38 = vector.load %arg8[%c0_19, %c0_20] : memref<32x1xf32, #tpu.memory_space<vmem>>, vector<32x1xf32>
    %39 = vector.broadcast %38 : vector<32x1xf32> to vector<32x256xf32>
    %40 = arith.addf %37, %39 : vector<32x256xf32>
    %41 = arith.truncf %28 : vector<4x256xf32> to vector<4x256xbf16>
    %42 = arith.truncf %34 : vector<4x256xf32> to vector<4x256xbf16>
    %cst_21 = arith.constant dense<0.000000e+00> : vector<256x256xf32>
    %43 = tpu.matmul %41, %42, %cst_21 {dimension_numbers = #tpu.dot_dimension_numbers<[0], [0], [1], [1], [0, 1, 1, 1], [], []>} : vector<4x256xbf16>, vector<4x256xbf16>, vector<256x256xf32> -> vector<256x256xf32>
    %cst_22 = arith.constant dense<0xFF800000> : vector<256xf32>
    %44 = vector.multi_reduction <maximumf>, %43, %cst_22 [1] : vector<256x256xf32> to vector<256xf32>
    %45 = vector.shape_cast %44 : vector<256xf32> to vector<256x1xf32>
    %46 = vector.broadcast %45 : vector<256x1xf32> to vector<256x256xf32>
    %47 = arith.subf %43, %46 : vector<256x256xf32>
    %48 = math.exp %47 : vector<256x256xf32>
    %cst_23 = arith.constant dense<0.000000e+00> : vector<256xf32>
    %49 = vector.multi_reduction <add>, %48, %cst_23 [1] : vector<256x256xf32> to vector<256xf32>
    %50 = vector.shape_cast %49 : vector<256xf32> to vector<256x1xf32>
    %51 = tpu.reciprocal %50 {approx = true} : vector<256x1xf32> -> vector<256x1xf32>
    %52 = vector.broadcast %51 : vector<256x1xf32> to vector<256x256xf32>
    %53 = arith.mulf %48, %52 : vector<256x256xf32>
    %54 = arith.truncf %40 : vector<32x256xf32> to vector<32x256xbf16>
    %55 = arith.truncf %53 : vector<256x256xf32> to vector<256x256xbf16>
    %cst_24 = arith.constant dense<0.000000e+00> : vector<32x256xf32>
    %56 = tpu.matmul %54, %55, %cst_24 {dimension_numbers = #tpu.dot_dimension_numbers<[1], [1], [0], [0], [0, 0, 1, 0], [], []>} : vector<32x256xbf16>, vector<256x256xbf16>, vector<32x256xf32> -> vector<32x256xf32>
    %57 = vector.broadcast %1 : f32 to vector<32x256xf32>
    %58 = arith.mulf %57, %56 : vector<32x256xf32>
    %59 = arith.addf %58, %21 : vector<32x256xf32>
    %c0_25 = arith.constant 0 : index
    %c0_26 = arith.constant 0 : index
    %c0_27 = arith.constant 0 : index
    %60 = vector.load %arg10[%c0_25, %c0_26, %c0_27] : memref<1x32x256xf32, #tpu.memory_space<vmem>>, vector<1x32x256xf32>
    %61 = vector.shape_cast %60 : vector<1x32x256xf32> to vector<32x256xf32>
    %62 = vector.shape_cast %59 : vector<32x256xf32> to vector<1x32x256xf32>
    tpu.vector_store %arg10[%c0_25, %c0_26, %c0_27], %62 {strides = array<i32>} : memref<1x32x256xf32, #tpu.memory_space<vmem>>, vector<1x32x256xf32>,
    %c0_28 = arith.constant 0 : index
    %c0_29 = arith.constant 0 : index
    %63 = vector.load %arg9[%c0_28, %c0_29] : memref<121x32xf32, #tpu.memory_space<vmem>>, vector<121x32xf32>
    %64 = arith.truncf %63 : vector<121x32xf32> to vector<121x32xbf16>
    %65 = arith.truncf %59 : vector<32x256xf32> to vector<32x256xbf16>
    %cst_30 = arith.constant dense<0.000000e+00> : vector<121x256xf32>
    %66 = tpu.matmul %64, %65, %cst_30 {dimension_numbers = #tpu.dot_dimension_numbers<[1], [0], [0], [1], [0, 0, 1, 1], [], []>} : vector<121x32xbf16>, vector<32x256xbf16>, vector<121x256xf32> -> vector<121x256xf32>
    %cst_31 = arith.constant 0.000000e+00 : f32
    %67 = vector.broadcast %cst_31 : f32 to vector<121x512xf32>
    %c0_32 = arith.constant 0 : index
    %c0_33 = arith.constant 0 : index
    %68 = vector.load %arg13[%c0_32, %c0_33] : memref<121x512xf32, #tpu.memory_space<vmem>>, vector<121x512xf32>
    tpu.vector_store %arg13[%c0_32, %c0_33], %67 {strides = array<i32>} : memref<121x512xf32, #tpu.memory_space<vmem>>, vector<121x512xf32>,
    %c0_34 = arith.constant 0 : index
    %c128 = arith.constant 128 : index
    %69 = vector.load %arg13[%c0_34, %c128] : memref<121x512xf32, #tpu.memory_space<vmem>>, vector<121x256xf32>
    tpu.vector_store %arg13[%c0_34, %c128], %66 {strides = array<i32>} : memref<121x512xf32, #tpu.memory_space<vmem>>, vector<121x256xf32>,
    %70 = tpu.iota {dimensions = array<i32: 1>} : vector<1x256xi32>
    %c16_i32 = arith.constant 16 : i32
    %c0_i32 = arith.constant 0 : i32
    %71 = arith.cmpi eq, %c16_i32, %c0_i32 : i32
    %c1_i32 = arith.constant 1 : i32
    %72 = arith.select %71, %c1_i32, %c16_i32 : i32
    %73 = vector.broadcast %72 : i32 to vector<1x256xi32>
    %74 = arith.remsi %70, %73 : vector<1x256xi32>
    %c0_i32_35 = arith.constant 0 : i32
    %75 = vector.broadcast %c0_i32_35 : i32 to vector<1x256xi32>
    %76 = arith.cmpi ne, %74, %75 : vector<1x256xi32>
    %c0_i32_36 = arith.constant 0 : i32
    %77 = vector.broadcast %c0_i32_36 : i32 to vector<1x256xi32>
    %78 = arith.cmpi slt, %74, %77 : vector<1x256xi32>
    %c0_i32_37 = arith.constant 0 : i32
    %79 = arith.cmpi slt, %72, %c0_i32_37 : i32
    %80 = vector.broadcast %79 : i1 to vector<1x256xi1>
    %81 = vector.broadcast %80 : vector<1x256xi1> to vector<1x256xi1>
    %82 = arith.xori %78, %81 : vector<1x256xi1>
    %83 = arith.andi %82, %76 : vector<1x256xi1>
    %84 = vector.broadcast %72 : i32 to vector<1x256xi32>
    %85 = arith.addi %74, %84 : vector<1x256xi32>
    %86 = arith.select %83, %85, %74 : vector<1x256xi1>, vector<1x256xi32>
    %c-5_i32 = arith.constant -5 : i32
    %87 = vector.broadcast %c-5_i32 : i32 to vector<1x256xi32>
    %88 = arith.addi %86, %87 : vector<1x256xi32>
    %c0_i32_38 = arith.constant 0 : i32
    %89 = vector.broadcast %c0_i32_38 : i32 to vector<1x256xi32>
    %90 = arith.cmpi sge, %88, %89 : vector<1x256xi32>
    %c-5_i32_39 = arith.constant -5 : i32
    %91 = vector.broadcast %c-5_i32_39 : i32 to vector<1x256xi32>
    %92 = arith.addi %86, %91 : vector<1x256xi32>
    %c16_i32_40 = arith.constant 16 : i32
    %93 = vector.broadcast %c16_i32_40 : i32 to vector<1x256xi32>
    %94 = arith.cmpi slt, %92, %93 : vector<1x256xi32>
    %95 = arith.andi %90, %94 : vector<1x256xi1>
    %c-4_i32 = arith.constant -4 : i32
    %96 = vector.broadcast %c-4_i32 : i32 to vector<1x256xi32>
    %97 = arith.addi %86, %96 : vector<1x256xi32>
    %c0_i32_41 = arith.constant 0 : i32
    %98 = vector.broadcast %c0_i32_41 : i32 to vector<1x256xi32>
    %99 = arith.cmpi sge, %97, %98 : vector<1x256xi32>
    %c-4_i32_42 = arith.constant -4 : i32
    %100 = vector.broadcast %c-4_i32_42 : i32 to vector<1x256xi32>
    %101 = arith.addi %86, %100 : vector<1x256xi32>
    %c16_i32_43 = arith.constant 16 : i32
    %102 = vector.broadcast %c16_i32_43 : i32 to vector<1x256xi32>
    %103 = arith.cmpi slt, %101, %102 : vector<1x256xi32>
    %104 = arith.andi %99, %103 : vector<1x256xi1>
    %c-3_i32 = arith.constant -3 : i32
    %105 = vector.broadcast %c-3_i32 : i32 to vector<1x256xi32>
    %106 = arith.addi %86, %105 : vector<1x256xi32>
    %c0_i32_44 = arith.constant 0 : i32
    %107 = vector.broadcast %c0_i32_44 : i32 to vector<1x256xi32>
    %108 = arith.cmpi sge, %106, %107 : vector<1x256xi32>
    %c-3_i32_45 = arith.constant -3 : i32
    %109 = vector.broadcast %c-3_i32_45 : i32 to vector<1x256xi32>
    %110 = arith.addi %86, %109 : vector<1x256xi32>
    %c16_i32_46 = arith.constant 16 : i32
    %111 = vector.broadcast %c16_i32_46 : i32 to vector<1x256xi32>
    %112 = arith.cmpi slt, %110, %111 : vector<1x256xi32>
    %113 = arith.andi %108, %112 : vector<1x256xi1>
    %c-2_i32 = arith.constant -2 : i32
    %114 = vector.broadcast %c-2_i32 : i32 to vector<1x256xi32>
    %115 = arith.addi %86, %114 : vector<1x256xi32>
    %c0_i32_47 = arith.constant 0 : i32
    %116 = vector.broadcast %c0_i32_47 : i32 to vector<1x256xi32>
    %117 = arith.cmpi sge, %115, %116 : vector<1x256xi32>
    %c-2_i32_48 = arith.constant -2 : i32
    %118 = vector.broadcast %c-2_i32_48 : i32 to vector<1x256xi32>
    %119 = arith.addi %86, %118 : vector<1x256xi32>
    %c16_i32_49 = arith.constant 16 : i32
    %120 = vector.broadcast %c16_i32_49 : i32 to vector<1x256xi32>
    %121 = arith.cmpi slt, %119, %120 : vector<1x256xi32>
    %122 = arith.andi %117, %121 : vector<1x256xi1>
    %c-1_i32 = arith.constant -1 : i32
    %123 = vector.broadcast %c-1_i32 : i32 to vector<1x256xi32>
    %124 = arith.addi %86, %123 : vector<1x256xi32>
    %c0_i32_50 = arith.constant 0 : i32
    %125 = vector.broadcast %c0_i32_50 : i32 to vector<1x256xi32>
    %126 = arith.cmpi sge, %124, %125 : vector<1x256xi32>
    %c-1_i32_51 = arith.constant -1 : i32
    %127 = vector.broadcast %c-1_i32_51 : i32 to vector<1x256xi32>
    %128 = arith.addi %86, %127 : vector<1x256xi32>
    %c16_i32_52 = arith.constant 16 : i32
    %129 = vector.broadcast %c16_i32_52 : i32 to vector<1x256xi32>
    %130 = arith.cmpi slt, %128, %129 : vector<1x256xi32>
    %131 = arith.andi %126, %130 : vector<1x256xi1>
    %c0_i32_53 = arith.constant 0 : i32
    %132 = vector.broadcast %c0_i32_53 : i32 to vector<1x256xi32>
    %133 = arith.addi %86, %132 : vector<1x256xi32>
    %c0_i32_54 = arith.constant 0 : i32
    %134 = vector.broadcast %c0_i32_54 : i32 to vector<1x256xi32>
    %135 = arith.cmpi sge, %133, %134 : vector<1x256xi32>
    %c0_i32_55 = arith.constant 0 : i32
    %136 = vector.broadcast %c0_i32_55 : i32 to vector<1x256xi32>
    %137 = arith.addi %86, %136 : vector<1x256xi32>
    %c16_i32_56 = arith.constant 16 : i32
    %138 = vector.broadcast %c16_i32_56 : i32 to vector<1x256xi32>
    %139 = arith.cmpi slt, %137, %138 : vector<1x256xi32>
    %140 = arith.andi %135, %139 : vector<1x256xi1>
    %c1_i32_57 = arith.constant 1 : i32
    %141 = vector.broadcast %c1_i32_57 : i32 to vector<1x256xi32>
    %142 = arith.addi %86, %141 : vector<1x256xi32>
    %c0_i32_58 = arith.constant 0 : i32
    %143 = vector.broadcast %c0_i32_58 : i32 to vector<1x256xi32>
    %144 = arith.cmpi sge, %142, %143 : vector<1x256xi32>
    %c1_i32_59 = arith.constant 1 : i32
    %145 = vector.broadcast %c1_i32_59 : i32 to vector<1x256xi32>
    %146 = arith.addi %86, %145 : vector<1x256xi32>
    %c16_i32_60 = arith.constant 16 : i32
    %147 = vector.broadcast %c16_i32_60 : i32 to vector<1x256xi32>
    %148 = arith.cmpi slt, %146, %147 : vector<1x256xi32>
    %149 = arith.andi %144, %148 : vector<1x256xi1>
    %c2_i32 = arith.constant 2 : i32
    %150 = vector.broadcast %c2_i32 : i32 to vector<1x256xi32>
    %151 = arith.addi %86, %150 : vector<1x256xi32>
    %c0_i32_61 = arith.constant 0 : i32
    %152 = vector.broadcast %c0_i32_61 : i32 to vector<1x256xi32>
    %153 = arith.cmpi sge, %151, %152 : vector<1x256xi32>
    %c2_i32_62 = arith.constant 2 : i32
    %154 = vector.broadcast %c2_i32_62 : i32 to vector<1x256xi32>
    %155 = arith.addi %86, %154 : vector<1x256xi32>
    %c16_i32_63 = arith.constant 16 : i32
    %156 = vector.broadcast %c16_i32_63 : i32 to vector<1x256xi32>
    %157 = arith.cmpi slt, %155, %156 : vector<1x256xi32>
    %158 = arith.andi %153, %157 : vector<1x256xi1>
    %c3_i32 = arith.constant 3 : i32
    %159 = vector.broadcast %c3_i32 : i32 to vector<1x256xi32>
    %160 = arith.addi %86, %159 : vector<1x256xi32>
    %c0_i32_64 = arith.constant 0 : i32
    %161 = vector.broadcast %c0_i32_64 : i32 to vector<1x256xi32>
    %162 = arith.cmpi sge, %160, %161 : vector<1x256xi32>
    %c3_i32_65 = arith.constant 3 : i32
    %163 = vector.broadcast %c3_i32_65 : i32 to vector<1x256xi32>
    %164 = arith.addi %86, %163 : vector<1x256xi32>
    %c16_i32_66 = arith.constant 16 : i32
    %165 = vector.broadcast %c16_i32_66 : i32 to vector<1x256xi32>
    %166 = arith.cmpi slt, %164, %165 : vector<1x256xi32>
    %167 = arith.andi %162, %166 : vector<1x256xi1>
    %c4_i32 = arith.constant 4 : i32
    %168 = vector.broadcast %c4_i32 : i32 to vector<1x256xi32>
    %169 = arith.addi %86, %168 : vector<1x256xi32>
    %c0_i32_67 = arith.constant 0 : i32
    %170 = vector.broadcast %c0_i32_67 : i32 to vector<1x256xi32>
    %171 = arith.cmpi sge, %169, %170 : vector<1x256xi32>
    %c4_i32_68 = arith.constant 4 : i32
    %172 = vector.broadcast %c4_i32_68 : i32 to vector<1x256xi32>
    %173 = arith.addi %86, %172 : vector<1x256xi32>
    %c16_i32_69 = arith.constant 16 : i32
    %174 = vector.broadcast %c16_i32_69 : i32 to vector<1x256xi32>
    %175 = arith.cmpi slt, %173, %174 : vector<1x256xi32>
    %176 = arith.andi %171, %175 : vector<1x256xi1>
    %c5_i32 = arith.constant 5 : i32
    %177 = vector.broadcast %c5_i32 : i32 to vector<1x256xi32>
    %178 = arith.addi %86, %177 : vector<1x256xi32>
    %c0_i32_70 = arith.constant 0 : i32
    %179 = vector.broadcast %c0_i32_70 : i32 to vector<1x256xi32>
    %180 = arith.cmpi sge, %178, %179 : vector<1x256xi32>
    %c5_i32_71 = arith.constant 5 : i32
    %181 = vector.broadcast %c5_i32_71 : i32 to vector<1x256xi32>
    %182 = arith.addi %86, %181 : vector<1x256xi32>
    %c16_i32_72 = arith.constant 16 : i32
    %183 = vector.broadcast %c16_i32_72 : i32 to vector<1x256xi32>
    %184 = arith.cmpi slt, %182, %183 : vector<1x256xi32>
    %185 = arith.andi %180, %184 : vector<1x256xi1>
    %186 = vector.broadcast %2 : f32 to vector<1x256xf32>
    %c0_73 = arith.constant 0 : index
    %c43 = arith.constant 43 : index
    %187 = vector.load %arg13[%c0_73, %c43] : memref<121x512xf32, #tpu.memory_space<vmem>>, vector<1x256xf32>
    %cst_74 = arith.constant 0.000000e+00 : f32
    %188 = vector.broadcast %cst_74 : f32 to vector<1x256xf32>
    %189 = arith.select %95, %187, %188 : vector<1x256xi1>, vector<1x256xf32>
    %190 = arith.addf %186, %189 : vector<1x256xf32>
    %c1_75 = arith.constant 1 : index
    %c44 = arith.constant 44 : index
    %191 = vector.load %arg13[%c1_75, %c44] : memref<121x512xf32, #tpu.memory_space<vmem>>, vector<1x256xf32>
    %cst_76 = arith.constant 0.000000e+00 : f32
    %192 = vector.broadcast %cst_76 : f32 to vector<1x256xf32>
    %193 = arith.select %104, %191, %192 : vector<1x256xi1>, vector<1x256xf32>
    %194 = arith.addf %190, %193 : vector<1x256xf32>
    %c2_77 = arith.constant 2 : index
    %c45 = arith.constant 45 : index
    %195 = vector.load %arg13[%c2_77, %c45] : memref<121x512xf32, #tpu.memory_space<vmem>>, vector<1x256xf32>
    %cst_78 = arith.constant 0.000000e+00 : f32
    %196 = vector.broadcast %cst_78 : f32 to vector<1x256xf32>
    %197 = arith.select %113, %195, %196 : vector<1x256xi1>, vector<1x256xf32>
    %198 = arith.addf %194, %197 : vector<1x256xf32>
    %c3 = arith.constant 3 : index
    %c46 = arith.constant 46 : index
    %199 = vector.load %arg13[%c3, %c46] : memref<121x512xf32, #tpu.memory_space<vmem>>, vector<1x256xf32>
    %cst_79 = arith.constant 0.000000e+00 : f32
    %200 = vector.broadcast %cst_79 : f32 to vector<1x256xf32>
    %201 = arith.select %122, %199, %200 : vector<1x256xi1>, vector<1x256xf32>
    %202 = arith.addf %198, %201 : vector<1x256xf32>
    %c4 = arith.constant 4 : index
    %c47 = arith.constant 47 : index
    %203 = vector.load %arg13[%c4, %c47] : memref<121x512xf32, #tpu.memory_space<vmem>>, vector<1x256xf32>
    %cst_80 = arith.constant 0.000000e+00 : f32
    %204 = vector.broadcast %cst_80 : f32 to vector<1x256xf32>
    %205 = arith.select %131, %203, %204 : vector<1x256xi1>, vector<1x256xf32>
    %206 = arith.addf %202, %205 : vector<1x256xf32>
    %c5 = arith.constant 5 : index
    %c48 = arith.constant 48 : index
    %207 = vector.load %arg13[%c5, %c48] : memref<121x512xf32, #tpu.memory_space<vmem>>, vector<1x256xf32>
    %cst_81 = arith.constant 0.000000e+00 : f32
    %208 = vector.broadcast %cst_81 : f32 to vector<1x256xf32>
    %209 = arith.select %140, %207, %208 : vector<1x256xi1>, vector<1x256xf32>
    %210 = arith.addf %206, %209 : vector<1x256xf32>
    %c6 = arith.constant 6 : index
    %c49 = arith.constant 49 : index
    %211 = vector.load %arg13[%c6, %c49] : memref<121x512xf32, #tpu.memory_space<vmem>>, vector<1x256xf32>
    %cst_82 = arith.constant 0.000000e+00 : f32
    %212 = vector.broadcast %cst_82 : f32 to vector<1x256xf32>
    %213 = arith.select %149, %211, %212 : vector<1x256xi1>, vector<1x256xf32>
    %214 = arith.addf %210, %213 : vector<1x256xf32>
    %c7 = arith.constant 7 : index
    %c50 = arith.constant 50 : index
    %215 = vector.load %arg13[%c7, %c50] : memref<121x512xf32, #tpu.memory_space<vmem>>, vector<1x256xf32>
    %cst_83 = arith.constant 0.000000e+00 : f32
    %216 = vector.broadcast %cst_83 : f32 to vector<1x256xf32>
    %217 = arith.select %158, %215, %216 : vector<1x256xi1>, vector<1x256xf32>
    %218 = arith.addf %214, %217 : vector<1x256xf32>
    %c8 = arith.constant 8 : index
    %c51 = arith.constant 51 : index
    %219 = vector.load %arg13[%c8, %c51] : memref<121x512xf32, #tpu.memory_space<vmem>>, vector<1x256xf32>
    %cst_84 = arith.constant 0.000000e+00 : f32
    %220 = vector.broadcast %cst_84 : f32 to vector<1x256xf32>
    %221 = arith.select %167, %219, %220 : vector<1x256xi1>, vector<1x256xf32>
    %222 = arith.addf %218, %221 : vector<1x256xf32>
    %c9 = arith.constant 9 : index
    %c52 = arith.constant 52 : index
    %223 = vector.load %arg13[%c9, %c52] : memref<121x512xf32, #tpu.memory_space<vmem>>, vector<1x256xf32>
    %cst_85 = arith.constant 0.000000e+00 : f32
    %224 = vector.broadcast %cst_85 : f32 to vector<1x256xf32>
    %225 = arith.select %176, %223, %224 : vector<1x256xi1>, vector<1x256xf32>
    %226 = arith.addf %222, %225 : vector<1x256xf32>
    %c10 = arith.constant 10 : index
    %c53 = arith.constant 53 : index
    %227 = vector.load %arg13[%c10, %c53] : memref<121x512xf32, #tpu.memory_space<vmem>>, vector<1x256xf32>
    %cst_86 = arith.constant 0.000000e+00 : f32
    %228 = vector.broadcast %cst_86 : f32 to vector<1x256xf32>
    %229 = arith.select %185, %227, %228 : vector<1x256xi1>, vector<1x256xf32>
    %230 = arith.addf %226, %229 : vector<1x256xf32>
    %c11 = arith.constant 11 : index
    %c59 = arith.constant 59 : index
    %231 = vector.load %arg13[%c11, %c59] : memref<121x512xf32, #tpu.memory_space<vmem>>, vector<1x256xf32>
    %cst_87 = arith.constant 0.000000e+00 : f32
    %232 = vector.broadcast %cst_87 : f32 to vector<1x256xf32>
    %233 = arith.select %95, %231, %232 : vector<1x256xi1>, vector<1x256xf32>
    %234 = arith.addf %230, %233 : vector<1x256xf32>
    %c12 = arith.constant 12 : index
    %c60 = arith.constant 60 : index
    %235 = vector.load %arg13[%c12, %c60] : memref<121x512xf32, #tpu.memory_space<vmem>>, vector<1x256xf32>
    %cst_88 = arith.constant 0.000000e+00 : f32
    %236 = vector.broadcast %cst_88 : f32 to vector<1x256xf32>
    %237 = arith.select %104, %235, %236 : vector<1x256xi1>, vector<1x256xf32>
    %238 = arith.addf %234, %237 : vector<1x256xf32>
    %c13 = arith.constant 13 : index
    %c61 = arith.constant 61 : index
    %239 = vector.load %arg13[%c13, %c61] : memref<121x512xf32, #tpu.memory_space<vmem>>, vector<1x256xf32>
    %cst_89 = arith.constant 0.000000e+00 : f32
    %240 = vector.broadcast %cst_89 : f32 to vector<1x256xf32>
    %241 = arith.select %113, %239, %240 : vector<1x256xi1>, vector<1x256xf32>
    %242 = arith.addf %238, %241 : vector<1x256xf32>
    %c14 = arith.constant 14 : index
    %c62 = arith.constant 62 : index
    %243 = vector.load %arg13[%c14, %c62] : memref<121x512xf32, #tpu.memory_space<vmem>>, vector<1x256xf32>
    %cst_90 = arith.constant 0.000000e+00 : f32
    %244 = vector.broadcast %cst_90 : f32 to vector<1x256xf32>
    %245 = arith.select %122, %243, %244 : vector<1x256xi1>, vector<1x256xf32>
    %246 = arith.addf %242, %245 : vector<1x256xf32>
    %c15 = arith.constant 15 : index
    %c63 = arith.constant 63 : index
    %247 = vector.load %arg13[%c15, %c63] : memref<121x512xf32, #tpu.memory_space<vmem>>, vector<1x256xf32>
    %cst_91 = arith.constant 0.000000e+00 : f32
    %248 = vector.broadcast %cst_91 : f32 to vector<1x256xf32>
    %249 = arith.select %131, %247, %248 : vector<1x256xi1>, vector<1x256xf32>
    %250 = arith.addf %246, %249 : vector<1x256xf32>
    %c16 = arith.constant 16 : index
    %c64 = arith.constant 64 : index
    %251 = vector.load %arg13[%c16, %c64] : memref<121x512xf32, #tpu.memory_space<vmem>>, vector<1x256xf32>
    %cst_92 = arith.constant 0.000000e+00 : f32
    %252 = vector.broadcast %cst_92 : f32 to vector<1x256xf32>
    %253 = arith.select %140, %251, %252 : vector<1x256xi1>, vector<1x256xf32>
    %254 = arith.addf %250, %253 : vector<1x256xf32>
    %c17 = arith.constant 17 : index
    %c65 = arith.constant 65 : index
    %255 = vector.load %arg13[%c17, %c65] : memref<121x512xf32, #tpu.memory_space<vmem>>, vector<1x256xf32>
    %cst_93 = arith.constant 0.000000e+00 : f32
    %256 = vector.broadcast %cst_93 : f32 to vector<1x256xf32>
    %257 = arith.select %149, %255, %256 : vector<1x256xi1>, vector<1x256xf32>
    %258 = arith.addf %254, %257 : vector<1x256xf32>
    %c18 = arith.constant 18 : index
    %c66 = arith.constant 66 : index
    %259 = vector.load %arg13[%c18, %c66] : memref<121x512xf32, #tpu.memory_space<vmem>>, vector<1x256xf32>
    %cst_94 = arith.constant 0.000000e+00 : f32
    %260 = vector.broadcast %cst_94 : f32 to vector<1x256xf32>
    %261 = arith.select %158, %259, %260 : vector<1x256xi1>, vector<1x256xf32>
    %262 = arith.addf %258, %261 : vector<1x256xf32>
    %c19 = arith.constant 19 : index
    %c67 = arith.constant 67 : index
    %263 = vector.load %arg13[%c19, %c67] : memref<121x512xf32, #tpu.memory_space<vmem>>, vector<1x256xf32>
    %cst_95 = arith.constant 0.000000e+00 : f32
    %264 = vector.broadcast %cst_95 : f32 to vector<1x256xf32>
    %265 = arith.select %167, %263, %264 : vector<1x256xi1>, vector<1x256xf32>
    %266 = arith.addf %262, %265 : vector<1x256xf32>
    %c20 = arith.constant 20 : index
    %c68 = arith.constant 68 : index
    %267 = vector.load %arg13[%c20, %c68] : memref<121x512xf32, #tpu.memory_space<vmem>>, vector<1x256xf32>
    %cst_96 = arith.constant 0.000000e+00 : f32
    %268 = vector.broadcast %cst_96 : f32 to vector<1x256xf32>
    %269 = arith.select %176, %267, %268 : vector<1x256xi1>, vector<1x256xf32>
    %270 = arith.addf %266, %269 : vector<1x256xf32>
    %c21 = arith.constant 21 : index
    %c69 = arith.constant 69 : index
    %271 = vector.load %arg13[%c21, %c69] : memref<121x512xf32, #tpu.memory_space<vmem>>, vector<1x256xf32>
    %cst_97 = arith.constant 0.000000e+00 : f32
    %272 = vector.broadcast %cst_97 : f32 to vector<1x256xf32>
    %273 = arith.select %185, %271, %272 : vector<1x256xi1>, vector<1x256xf32>
    %274 = arith.addf %270, %273 : vector<1x256xf32>
    %c22 = arith.constant 22 : index
    %c75 = arith.constant 75 : index
    %275 = vector.load %arg13[%c22, %c75] : memref<121x512xf32, #tpu.memory_space<vmem>>, vector<1x256xf32>
    %cst_98 = arith.constant 0.000000e+00 : f32
    %276 = vector.broadcast %cst_98 : f32 to vector<1x256xf32>
    %277 = arith.select %95, %275, %276 : vector<1x256xi1>, vector<1x256xf32>
    %278 = arith.addf %274, %277 : vector<1x256xf32>
    %c23 = arith.constant 23 : index
    %c76 = arith.constant 76 : index
    %279 = vector.load %arg13[%c23, %c76] : memref<121x512xf32, #tpu.memory_space<vmem>>, vector<1x256xf32>
    %cst_99 = arith.constant 0.000000e+00 : f32
    %280 = vector.broadcast %cst_99 : f32 to vector<1x256xf32>
    %281 = arith.select %104, %279, %280 : vector<1x256xi1>, vector<1x256xf32>
    %282 = arith.addf %278, %281 : vector<1x256xf32>
    %c24 = arith.constant 24 : index
    %c77 = arith.constant 77 : index
    %283 = vector.load %arg13[%c24, %c77] : memref<121x512xf32, #tpu.memory_space<vmem>>, vector<1x256xf32>
    %cst_100 = arith.constant 0.000000e+00 : f32
    %284 = vector.broadcast %cst_100 : f32 to vector<1x256xf32>
    %285 = arith.select %113, %283, %284 : vector<1x256xi1>, vector<1x256xf32>
    %286 = arith.addf %282, %285 : vector<1x256xf32>
    %c25 = arith.constant 25 : index
    %c78 = arith.constant 78 : index
    %287 = vector.load %arg13[%c25, %c78] : memref<121x512xf32, #tpu.memory_space<vmem>>, vector<1x256xf32>
    %cst_101 = arith.constant 0.000000e+00 : f32
    %288 = vector.broadcast %cst_101 : f32 to vector<1x256xf32>
    %289 = arith.select %122, %287, %288 : vector<1x256xi1>, vector<1x256xf32>
    %290 = arith.addf %286, %289 : vector<1x256xf32>
    %c26 = arith.constant 26 : index
    %c79 = arith.constant 79 : index
    %291 = vector.load %arg13[%c26, %c79] : memref<121x512xf32, #tpu.memory_space<vmem>>, vector<1x256xf32>
    %cst_102 = arith.constant 0.000000e+00 : f32
    %292 = vector.broadcast %cst_102 : f32 to vector<1x256xf32>
    %293 = arith.select %131, %291, %292 : vector<1x256xi1>, vector<1x256xf32>
    %294 = arith.addf %290, %293 : vector<1x256xf32>
    %c27 = arith.constant 27 : index
    %c80 = arith.constant 80 : index
    %295 = vector.load %arg13[%c27, %c80] : memref<121x512xf32, #tpu.memory_space<vmem>>, vector<1x256xf32>
    %cst_103 = arith.constant 0.000000e+00 : f32
    %296 = vector.broadcast %cst_103 : f32 to vector<1x256xf32>
    %297 = arith.select %140, %295, %296 : vector<1x256xi1>, vector<1x256xf32>
    %298 = arith.addf %294, %297 : vector<1x256xf32>
    %c28 = arith.constant 28 : index
    %c81 = arith.constant 81 : index
    %299 = vector.load %arg13[%c28, %c81] : memref<121x512xf32, #tpu.memory_space<vmem>>, vector<1x256xf32>
    %cst_104 = arith.constant 0.000000e+00 : f32
    %300 = vector.broadcast %cst_104 : f32 to vector<1x256xf32>
    %301 = arith.select %149, %299, %300 : vector<1x256xi1>, vector<1x256xf32>
    %302 = arith.addf %298, %301 : vector<1x256xf32>
    %c29 = arith.constant 29 : index
    %c82 = arith.constant 82 : index
    %303 = vector.load %arg13[%c29, %c82] : memref<121x512xf32, #tpu.memory_space<vmem>>, vector<1x256xf32>
    %cst_105 = arith.constant 0.000000e+00 : f32
    %304 = vector.broadcast %cst_105 : f32 to vector<1x256xf32>
    %305 = arith.select %158, %303, %304 : vector<1x256xi1>, vector<1x256xf32>
    %306 = arith.addf %302, %305 : vector<1x256xf32>
    %c30 = arith.constant 30 : index
    %c83 = arith.constant 83 : index
    %307 = vector.load %arg13[%c30, %c83] : memref<121x512xf32, #tpu.memory_space<vmem>>, vector<1x256xf32>
    %cst_106 = arith.constant 0.000000e+00 : f32
    %308 = vector.broadcast %cst_106 : f32 to vector<1x256xf32>
    %309 = arith.select %167, %307, %308 : vector<1x256xi1>, vector<1x256xf32>
    %310 = arith.addf %306, %309 : vector<1x256xf32>
    %c31 = arith.constant 31 : index
    %c84 = arith.constant 84 : index
    %311 = vector.load %arg13[%c31, %c84] : memref<121x512xf32, #tpu.memory_space<vmem>>, vector<1x256xf32>
    %cst_107 = arith.constant 0.000000e+00 : f32
    %312 = vector.broadcast %cst_107 : f32 to vector<1x256xf32>
    %313 = arith.select %176, %311, %312 : vector<1x256xi1>, vector<1x256xf32>
    %314 = arith.addf %310, %313 : vector<1x256xf32>
    %c32 = arith.constant 32 : index
    %c85 = arith.constant 85 : index
    %315 = vector.load %arg13[%c32, %c85] : memref<121x512xf32, #tpu.memory_space<vmem>>, vector<1x256xf32>
    %cst_108 = arith.constant 0.000000e+00 : f32
    %316 = vector.broadcast %cst_108 : f32 to vector<1x256xf32>
    %317 = arith.select %185, %315, %316 : vector<1x256xi1>, vector<1x256xf32>
    %318 = arith.addf %314, %317 : vector<1x256xf32>
    %c33 = arith.constant 33 : index
    %c91 = arith.constant 91 : index
    %319 = vector.load %arg13[%c33, %c91] : memref<121x512xf32, #tpu.memory_space<vmem>>, vector<1x256xf32>
    %cst_109 = arith.constant 0.000000e+00 : f32
    %320 = vector.broadcast %cst_109 : f32 to vector<1x256xf32>
    %321 = arith.select %95, %319, %320 : vector<1x256xi1>, vector<1x256xf32>
    %322 = arith.addf %318, %321 : vector<1x256xf32>
    %c34 = arith.constant 34 : index
    %c92 = arith.constant 92 : index
    %323 = vector.load %arg13[%c34, %c92] : memref<121x512xf32, #tpu.memory_space<vmem>>, vector<1x256xf32>
    %cst_110 = arith.constant 0.000000e+00 : f32
    %324 = vector.broadcast %cst_110 : f32 to vector<1x256xf32>
    %325 = arith.select %104, %323, %324 : vector<1x256xi1>, vector<1x256xf32>
    %326 = arith.addf %322, %325 : vector<1x256xf32>
    %c35 = arith.constant 35 : index
    %c93 = arith.constant 93 : index
    %327 = vector.load %arg13[%c35, %c93] : memref<121x512xf32, #tpu.memory_space<vmem>>, vector<1x256xf32>
    %cst_111 = arith.constant 0.000000e+00 : f32
    %328 = vector.broadcast %cst_111 : f32 to vector<1x256xf32>
    %329 = arith.select %113, %327, %328 : vector<1x256xi1>, vector<1x256xf32>
    %330 = arith.addf %326, %329 : vector<1x256xf32>
    %c36 = arith.constant 36 : index
    %c94 = arith.constant 94 : index
    %331 = vector.load %arg13[%c36, %c94] : memref<121x512xf32, #tpu.memory_space<vmem>>, vector<1x256xf32>
    %cst_112 = arith.constant 0.000000e+00 : f32
    %332 = vector.broadcast %cst_112 : f32 to vector<1x256xf32>
    %333 = arith.select %122, %331, %332 : vector<1x256xi1>, vector<1x256xf32>
    %334 = arith.addf %330, %333 : vector<1x256xf32>
    %c37 = arith.constant 37 : index
    %c95 = arith.constant 95 : index
    %335 = vector.load %arg13[%c37, %c95] : memref<121x512xf32, #tpu.memory_space<vmem>>, vector<1x256xf32>
    %cst_113 = arith.constant 0.000000e+00 : f32
    %336 = vector.broadcast %cst_113 : f32 to vector<1x256xf32>
    %337 = arith.select %131, %335, %336 : vector<1x256xi1>, vector<1x256xf32>
    %338 = arith.addf %334, %337 : vector<1x256xf32>
    %c38 = arith.constant 38 : index
    %c96 = arith.constant 96 : index
    %339 = vector.load %arg13[%c38, %c96] : memref<121x512xf32, #tpu.memory_space<vmem>>, vector<1x256xf32>
    %cst_114 = arith.constant 0.000000e+00 : f32
    %340 = vector.broadcast %cst_114 : f32 to vector<1x256xf32>
    %341 = arith.select %140, %339, %340 : vector<1x256xi1>, vector<1x256xf32>
    %342 = arith.addf %338, %341 : vector<1x256xf32>
    %c39 = arith.constant 39 : index
    %c97 = arith.constant 97 : index
    %343 = vector.load %arg13[%c39, %c97] : memref<121x512xf32, #tpu.memory_space<vmem>>, vector<1x256xf32>
    %cst_115 = arith.constant 0.000000e+00 : f32
    %344 = vector.broadcast %cst_115 : f32 to vector<1x256xf32>
    %345 = arith.select %149, %343, %344 : vector<1x256xi1>, vector<1x256xf32>
    %346 = arith.addf %342, %345 : vector<1x256xf32>
    %c40 = arith.constant 40 : index
    %c98 = arith.constant 98 : index
    %347 = vector.load %arg13[%c40, %c98] : memref<121x512xf32, #tpu.memory_space<vmem>>, vector<1x256xf32>
    %cst_116 = arith.constant 0.000000e+00 : f32
    %348 = vector.broadcast %cst_116 : f32 to vector<1x256xf32>
    %349 = arith.select %158, %347, %348 : vector<1x256xi1>, vector<1x256xf32>
    %350 = arith.addf %346, %349 : vector<1x256xf32>
    %c41 = arith.constant 41 : index
    %c99 = arith.constant 99 : index
    %351 = vector.load %arg13[%c41, %c99] : memref<121x512xf32, #tpu.memory_space<vmem>>, vector<1x256xf32>
    %cst_117 = arith.constant 0.000000e+00 : f32
    %352 = vector.broadcast %cst_117 : f32 to vector<1x256xf32>
    %353 = arith.select %167, %351, %352 : vector<1x256xi1>, vector<1x256xf32>
    %354 = arith.addf %350, %353 : vector<1x256xf32>
    %c42 = arith.constant 42 : index
    %c100 = arith.constant 100 : index
    %355 = vector.load %arg13[%c42, %c100] : memref<121x512xf32, #tpu.memory_space<vmem>>, vector<1x256xf32>
    %cst_118 = arith.constant 0.000000e+00 : f32
    %356 = vector.broadcast %cst_118 : f32 to vector<1x256xf32>
    %357 = arith.select %176, %355, %356 : vector<1x256xi1>, vector<1x256xf32>
    %358 = arith.addf %354, %357 : vector<1x256xf32>
    %c43_119 = arith.constant 43 : index
    %c101 = arith.constant 101 : index
    %359 = vector.load %arg13[%c43_119, %c101] : memref<121x512xf32, #tpu.memory_space<vmem>>, vector<1x256xf32>
    %cst_120 = arith.constant 0.000000e+00 : f32
    %360 = vector.broadcast %cst_120 : f32 to vector<1x256xf32>
    %361 = arith.select %185, %359, %360 : vector<1x256xi1>, vector<1x256xf32>
    %362 = arith.addf %358, %361 : vector<1x256xf32>
    %c44_121 = arith.constant 44 : index
    %c107 = arith.constant 107 : index
    %363 = vector.load %arg13[%c44_121, %c107] : memref<121x512xf32, #tpu.memory_space<vmem>>, vector<1x256xf32>
    %cst_122 = arith.constant 0.000000e+00 : f32
    %364 = vector.broadcast %cst_122 : f32 to vector<1x256xf32>
    %365 = arith.select %95, %363, %364 : vector<1x256xi1>, vector<1x256xf32>
    %366 = arith.addf %362, %365 : vector<1x256xf32>
    %c45_123 = arith.constant 45 : index
    %c108 = arith.constant 108 : index
    %367 = vector.load %arg13[%c45_123, %c108] : memref<121x512xf32, #tpu.memory_space<vmem>>, vector<1x256xf32>
    %cst_124 = arith.constant 0.000000e+00 : f32
    %368 = vector.broadcast %cst_124 : f32 to vector<1x256xf32>
    %369 = arith.select %104, %367, %368 : vector<1x256xi1>, vector<1x256xf32>
    %370 = arith.addf %366, %369 : vector<1x256xf32>
    %c46_125 = arith.constant 46 : index
    %c109 = arith.constant 109 : index
    %371 = vector.load %arg13[%c46_125, %c109] : memref<121x512xf32, #tpu.memory_space<vmem>>, vector<1x256xf32>
    %cst_126 = arith.constant 0.000000e+00 : f32
    %372 = vector.broadcast %cst_126 : f32 to vector<1x256xf32>
    %373 = arith.select %113, %371, %372 : vector<1x256xi1>, vector<1x256xf32>
    %374 = arith.addf %370, %373 : vector<1x256xf32>
    %c47_127 = arith.constant 47 : index
    %c110 = arith.constant 110 : index
    %375 = vector.load %arg13[%c47_127, %c110] : memref<121x512xf32, #tpu.memory_space<vmem>>, vector<1x256xf32>
    %cst_128 = arith.constant 0.000000e+00 : f32
    %376 = vector.broadcast %cst_128 : f32 to vector<1x256xf32>
    %377 = arith.select %122, %375, %376 : vector<1x256xi1>, vector<1x256xf32>
    %378 = arith.addf %374, %377 : vector<1x256xf32>
    %c48_129 = arith.constant 48 : index
    %c111 = arith.constant 111 : index
    %379 = vector.load %arg13[%c48_129, %c111] : memref<121x512xf32, #tpu.memory_space<vmem>>, vector<1x256xf32>
    %cst_130 = arith.constant 0.000000e+00 : f32
    %380 = vector.broadcast %cst_130 : f32 to vector<1x256xf32>
    %381 = arith.select %131, %379, %380 : vector<1x256xi1>, vector<1x256xf32>
    %382 = arith.addf %378, %381 : vector<1x256xf32>
    %c49_131 = arith.constant 49 : index
    %c112 = arith.constant 112 : index
    %383 = vector.load %arg13[%c49_131, %c112] : memref<121x512xf32, #tpu.memory_space<vmem>>, vector<1x256xf32>
    %cst_132 = arith.constant 0.000000e+00 : f32
    %384 = vector.broadcast %cst_132 : f32 to vector<1x256xf32>
    %385 = arith.select %140, %383, %384 : vector<1x256xi1>, vector<1x256xf32>
    %386 = arith.addf %382, %385 : vector<1x256xf32>
    %c50_133 = arith.constant 50 : index
    %c113 = arith.constant 113 : index
    %387 = vector.load %arg13[%c50_133, %c113] : memref<121x512xf32, #tpu.memory_space<vmem>>, vector<1x256xf32>
    %cst_134 = arith.constant 0.000000e+00 : f32
    %388 = vector.broadcast %cst_134 : f32 to vector<1x256xf32>
    %389 = arith.select %149, %387, %388 : vector<1x256xi1>, vector<1x256xf32>
    %390 = arith.addf %386, %389 : vector<1x256xf32>
    %c51_135 = arith.constant 51 : index
    %c114 = arith.constant 114 : index
    %391 = vector.load %arg13[%c51_135, %c114] : memref<121x512xf32, #tpu.memory_space<vmem>>, vector<1x256xf32>
    %cst_136 = arith.constant 0.000000e+00 : f32
    %392 = vector.broadcast %cst_136 : f32 to vector<1x256xf32>
    %393 = arith.select %158, %391, %392 : vector<1x256xi1>, vector<1x256xf32>
    %394 = arith.addf %390, %393 : vector<1x256xf32>
    %c52_137 = arith.constant 52 : index
    %c115 = arith.constant 115 : index
    %395 = vector.load %arg13[%c52_137, %c115] : memref<121x512xf32, #tpu.memory_space<vmem>>, vector<1x256xf32>
    %cst_138 = arith.constant 0.000000e+00 : f32
    %396 = vector.broadcast %cst_138 : f32 to vector<1x256xf32>
    %397 = arith.select %167, %395, %396 : vector<1x256xi1>, vector<1x256xf32>
    %398 = arith.addf %394, %397 : vector<1x256xf32>
    %c53_139 = arith.constant 53 : index
    %c116 = arith.constant 116 : index
    %399 = vector.load %arg13[%c53_139, %c116] : memref<121x512xf32, #tpu.memory_space<vmem>>, vector<1x256xf32>
    %cst_140 = arith.constant 0.000000e+00 : f32
    %400 = vector.broadcast %cst_140 : f32 to vector<1x256xf32>
    %401 = arith.select %176, %399, %400 : vector<1x256xi1>, vector<1x256xf32>
    %402 = arith.addf %398, %401 : vector<1x256xf32>
    %c54 = arith.constant 54 : index
    %c117 = arith.constant 117 : index
    %403 = vector.load %arg13[%c54, %c117] : memref<121x512xf32, #tpu.memory_space<vmem>>, vector<1x256xf32>
    %cst_141 = arith.constant 0.000000e+00 : f32
    %404 = vector.broadcast %cst_141 : f32 to vector<1x256xf32>
    %405 = arith.select %185, %403, %404 : vector<1x256xi1>, vector<1x256xf32>
    %406 = arith.addf %402, %405 : vector<1x256xf32>
    %c55 = arith.constant 55 : index
    %c123 = arith.constant 123 : index
    %407 = vector.load %arg13[%c55, %c123] : memref<121x512xf32, #tpu.memory_space<vmem>>, vector<1x256xf32>
    %cst_142 = arith.constant 0.000000e+00 : f32
    %408 = vector.broadcast %cst_142 : f32 to vector<1x256xf32>
    %409 = arith.select %95, %407, %408 : vector<1x256xi1>, vector<1x256xf32>
    %410 = arith.addf %406, %409 : vector<1x256xf32>
    %c56 = arith.constant 56 : index
    %c124 = arith.constant 124 : index
    %411 = vector.load %arg13[%c56, %c124] : memref<121x512xf32, #tpu.memory_space<vmem>>, vector<1x256xf32>
    %cst_143 = arith.constant 0.000000e+00 : f32
    %412 = vector.broadcast %cst_143 : f32 to vector<1x256xf32>
    %413 = arith.select %104, %411, %412 : vector<1x256xi1>, vector<1x256xf32>
    %414 = arith.addf %410, %413 : vector<1x256xf32>
    %c57 = arith.constant 57 : index
    %c125 = arith.constant 125 : index
    %415 = vector.load %arg13[%c57, %c125] : memref<121x512xf32, #tpu.memory_space<vmem>>, vector<1x256xf32>
    %cst_144 = arith.constant 0.000000e+00 : f32
    %416 = vector.broadcast %cst_144 : f32 to vector<1x256xf32>
    %417 = arith.select %113, %415, %416 : vector<1x256xi1>, vector<1x256xf32>
    %418 = arith.addf %414, %417 : vector<1x256xf32>
    %c58 = arith.constant 58 : index
    %c126 = arith.constant 126 : index
    %419 = vector.load %arg13[%c58, %c126] : memref<121x512xf32, #tpu.memory_space<vmem>>, vector<1x256xf32>
    %cst_145 = arith.constant 0.000000e+00 : f32
    %420 = vector.broadcast %cst_145 : f32 to vector<1x256xf32>
    %421 = arith.select %122, %419, %420 : vector<1x256xi1>, vector<1x256xf32>
    %422 = arith.addf %418, %421 : vector<1x256xf32>
    %c59_146 = arith.constant 59 : index
    %c127 = arith.constant 127 : index
    %423 = vector.load %arg13[%c59_146, %c127] : memref<121x512xf32, #tpu.memory_space<vmem>>, vector<1x256xf32>
    %cst_147 = arith.constant 0.000000e+00 : f32
    %424 = vector.broadcast %cst_147 : f32 to vector<1x256xf32>
    %425 = arith.select %131, %423, %424 : vector<1x256xi1>, vector<1x256xf32>
    %426 = arith.addf %422, %425 : vector<1x256xf32>
    %c60_148 = arith.constant 60 : index
    %c128_149 = arith.constant 128 : index
    %427 = vector.load %arg13[%c60_148, %c128_149] : memref<121x512xf32, #tpu.memory_space<vmem>>, vector<1x256xf32>
    %cst_150 = arith.constant 0.000000e+00 : f32
    %428 = vector.broadcast %cst_150 : f32 to vector<1x256xf32>
    %429 = arith.select %140, %427, %428 : vector<1x256xi1>, vector<1x256xf32>
    %430 = arith.addf %426, %429 : vector<1x256xf32>
    %c61_151 = arith.constant 61 : index
    %c129 = arith.constant 129 : index
    %431 = vector.load %arg13[%c61_151, %c129] : memref<121x512xf32, #tpu.memory_space<vmem>>, vector<1x256xf32>
    %cst_152 = arith.constant 0.000000e+00 : f32
    %432 = vector.broadcast %cst_152 : f32 to vector<1x256xf32>
    %433 = arith.select %149, %431, %432 : vector<1x256xi1>, vector<1x256xf32>
    %434 = arith.addf %430, %433 : vector<1x256xf32>
    %c62_153 = arith.constant 62 : index
    %c130 = arith.constant 130 : index
    %435 = vector.load %arg13[%c62_153, %c130] : memref<121x512xf32, #tpu.memory_space<vmem>>, vector<1x256xf32>
    %cst_154 = arith.constant 0.000000e+00 : f32
    %436 = vector.broadcast %cst_154 : f32 to vector<1x256xf32>
    %437 = arith.select %158, %435, %436 : vector<1x256xi1>, vector<1x256xf32>
    %438 = arith.addf %434, %437 : vector<1x256xf32>
    %c63_155 = arith.constant 63 : index
    %c131 = arith.constant 131 : index
    %439 = vector.load %arg13[%c63_155, %c131] : memref<121x512xf32, #tpu.memory_space<vmem>>, vector<1x256xf32>
    %cst_156 = arith.constant 0.000000e+00 : f32
    %440 = vector.broadcast %cst_156 : f32 to vector<1x256xf32>
    %441 = arith.select %167, %439, %440 : vector<1x256xi1>, vector<1x256xf32>
    %442 = arith.addf %438, %441 : vector<1x256xf32>
    %c64_157 = arith.constant 64 : index
    %c132 = arith.constant 132 : index
    %443 = vector.load %arg13[%c64_157, %c132] : memref<121x512xf32, #tpu.memory_space<vmem>>, vector<1x256xf32>
    %cst_158 = arith.constant 0.000000e+00 : f32
    %444 = vector.broadcast %cst_158 : f32 to vector<1x256xf32>
    %445 = arith.select %176, %443, %444 : vector<1x256xi1>, vector<1x256xf32>
    %446 = arith.addf %442, %445 : vector<1x256xf32>
    %c65_159 = arith.constant 65 : index
    %c133 = arith.constant 133 : index
    %447 = vector.load %arg13[%c65_159, %c133] : memref<121x512xf32, #tpu.memory_space<vmem>>, vector<1x256xf32>
    %cst_160 = arith.constant 0.000000e+00 : f32
    %448 = vector.broadcast %cst_160 : f32 to vector<1x256xf32>
    %449 = arith.select %185, %447, %448 : vector<1x256xi1>, vector<1x256xf32>
    %450 = arith.addf %446, %449 : vector<1x256xf32>
    %c66_161 = arith.constant 66 : index
    %c139 = arith.constant 139 : index
    %451 = vector.load %arg13[%c66_161, %c139] : memref<121x512xf32, #tpu.memory_space<vmem>>, vector<1x256xf32>
    %cst_162 = arith.constant 0.000000e+00 : f32
    %452 = vector.broadcast %cst_162 : f32 to vector<1x256xf32>
    %453 = arith.select %95, %451, %452 : vector<1x256xi1>, vector<1x256xf32>
    %454 = arith.addf %450, %453 : vector<1x256xf32>
    %c67_163 = arith.constant 67 : index
    %c140 = arith.constant 140 : index
    %455 = vector.load %arg13[%c67_163, %c140] : memref<121x512xf32, #tpu.memory_space<vmem>>, vector<1x256xf32>
    %cst_164 = arith.constant 0.000000e+00 : f32
    %456 = vector.broadcast %cst_164 : f32 to vector<1x256xf32>
    %457 = arith.select %104, %455, %456 : vector<1x256xi1>, vector<1x256xf32>
    %458 = arith.addf %454, %457 : vector<1x256xf32>
    %c68_165 = arith.constant 68 : index
    %c141 = arith.constant 141 : index
    %459 = vector.load %arg13[%c68_165, %c141] : memref<121x512xf32, #tpu.memory_space<vmem>>, vector<1x256xf32>
    %cst_166 = arith.constant 0.000000e+00 : f32
    %460 = vector.broadcast %cst_166 : f32 to vector<1x256xf32>
    %461 = arith.select %113, %459, %460 : vector<1x256xi1>, vector<1x256xf32>
    %462 = arith.addf %458, %461 : vector<1x256xf32>
    %c69_167 = arith.constant 69 : index
    %c142 = arith.constant 142 : index
    %463 = vector.load %arg13[%c69_167, %c142] : memref<121x512xf32, #tpu.memory_space<vmem>>, vector<1x256xf32>
    %cst_168 = arith.constant 0.000000e+00 : f32
    %464 = vector.broadcast %cst_168 : f32 to vector<1x256xf32>
    %465 = arith.select %122, %463, %464 : vector<1x256xi1>, vector<1x256xf32>
    %466 = arith.addf %462, %465 : vector<1x256xf32>
    %c70 = arith.constant 70 : index
    %c143 = arith.constant 143 : index
    %467 = vector.load %arg13[%c70, %c143] : memref<121x512xf32, #tpu.memory_space<vmem>>, vector<1x256xf32>
    %cst_169 = arith.constant 0.000000e+00 : f32
    %468 = vector.broadcast %cst_169 : f32 to vector<1x256xf32>
    %469 = arith.select %131, %467, %468 : vector<1x256xi1>, vector<1x256xf32>
    %470 = arith.addf %466, %469 : vector<1x256xf32>
    %c71 = arith.constant 71 : index
    %c144 = arith.constant 144 : index
    %471 = vector.load %arg13[%c71, %c144] : memref<121x512xf32, #tpu.memory_space<vmem>>, vector<1x256xf32>
    %cst_170 = arith.constant 0.000000e+00 : f32
    %472 = vector.broadcast %cst_170 : f32 to vector<1x256xf32>
    %473 = arith.select %140, %471, %472 : vector<1x256xi1>, vector<1x256xf32>
    %474 = arith.addf %470, %473 : vector<1x256xf32>
    %c72 = arith.constant 72 : index
    %c145 = arith.constant 145 : index
    %475 = vector.load %arg13[%c72, %c145] : memref<121x512xf32, #tpu.memory_space<vmem>>, vector<1x256xf32>
    %cst_171 = arith.constant 0.000000e+00 : f32
    %476 = vector.broadcast %cst_171 : f32 to vector<1x256xf32>
    %477 = arith.select %149, %475, %476 : vector<1x256xi1>, vector<1x256xf32>
    %478 = arith.addf %474, %477 : vector<1x256xf32>
    %c73 = arith.constant 73 : index
    %c146 = arith.constant 146 : index
    %479 = vector.load %arg13[%c73, %c146] : memref<121x512xf32, #tpu.memory_space<vmem>>, vector<1x256xf32>
    %cst_172 = arith.constant 0.000000e+00 : f32
    %480 = vector.broadcast %cst_172 : f32 to vector<1x256xf32>
    %481 = arith.select %158, %479, %480 : vector<1x256xi1>, vector<1x256xf32>
    %482 = arith.addf %478, %481 : vector<1x256xf32>
    %c74 = arith.constant 74 : index
    %c147 = arith.constant 147 : index
    %483 = vector.load %arg13[%c74, %c147] : memref<121x512xf32, #tpu.memory_space<vmem>>, vector<1x256xf32>
    %cst_173 = arith.constant 0.000000e+00 : f32
    %484 = vector.broadcast %cst_173 : f32 to vector<1x256xf32>
    %485 = arith.select %167, %483, %484 : vector<1x256xi1>, vector<1x256xf32>
    %486 = arith.addf %482, %485 : vector<1x256xf32>
    %c75_174 = arith.constant 75 : index
    %c148 = arith.constant 148 : index
    %487 = vector.load %arg13[%c75_174, %c148] : memref<121x512xf32, #tpu.memory_space<vmem>>, vector<1x256xf32>
    %cst_175 = arith.constant 0.000000e+00 : f32
    %488 = vector.broadcast %cst_175 : f32 to vector<1x256xf32>
    %489 = arith.select %176, %487, %488 : vector<1x256xi1>, vector<1x256xf32>
    %490 = arith.addf %486, %489 : vector<1x256xf32>
    %c76_176 = arith.constant 76 : index
    %c149 = arith.constant 149 : index
    %491 = vector.load %arg13[%c76_176, %c149] : memref<121x512xf32, #tpu.memory_space<vmem>>, vector<1x256xf32>
    %cst_177 = arith.constant 0.000000e+00 : f32
    %492 = vector.broadcast %cst_177 : f32 to vector<1x256xf32>
    %493 = arith.select %185, %491, %492 : vector<1x256xi1>, vector<1x256xf32>
    %494 = arith.addf %490, %493 : vector<1x256xf32>
    %c77_178 = arith.constant 77 : index
    %c155 = arith.constant 155 : index
    %495 = vector.load %arg13[%c77_178, %c155] : memref<121x512xf32, #tpu.memory_space<vmem>>, vector<1x256xf32>
    %cst_179 = arith.constant 0.000000e+00 : f32
    %496 = vector.broadcast %cst_179 : f32 to vector<1x256xf32>
    %497 = arith.select %95, %495, %496 : vector<1x256xi1>, vector<1x256xf32>
    %498 = arith.addf %494, %497 : vector<1x256xf32>
    %c78_180 = arith.constant 78 : index
    %c156 = arith.constant 156 : index
    %499 = vector.load %arg13[%c78_180, %c156] : memref<121x512xf32, #tpu.memory_space<vmem>>, vector<1x256xf32>
    %cst_181 = arith.constant 0.000000e+00 : f32
    %500 = vector.broadcast %cst_181 : f32 to vector<1x256xf32>
    %501 = arith.select %104, %499, %500 : vector<1x256xi1>, vector<1x256xf32>
    %502 = arith.addf %498, %501 : vector<1x256xf32>
    %c79_182 = arith.constant 79 : index
    %c157 = arith.constant 157 : index
    %503 = vector.load %arg13[%c79_182, %c157] : memref<121x512xf32, #tpu.memory_space<vmem>>, vector<1x256xf32>
    %cst_183 = arith.constant 0.000000e+00 : f32
    %504 = vector.broadcast %cst_183 : f32 to vector<1x256xf32>
    %505 = arith.select %113, %503, %504 : vector<1x256xi1>, vector<1x256xf32>
    %506 = arith.addf %502, %505 : vector<1x256xf32>
    %c80_184 = arith.constant 80 : index
    %c158 = arith.constant 158 : index
    %507 = vector.load %arg13[%c80_184, %c158] : memref<121x512xf32, #tpu.memory_space<vmem>>, vector<1x256xf32>
    %cst_185 = arith.constant 0.000000e+00 : f32
    %508 = vector.broadcast %cst_185 : f32 to vector<1x256xf32>
    %509 = arith.select %122, %507, %508 : vector<1x256xi1>, vector<1x256xf32>
    %510 = arith.addf %506, %509 : vector<1x256xf32>
    %c81_186 = arith.constant 81 : index
    %c159 = arith.constant 159 : index
    %511 = vector.load %arg13[%c81_186, %c159] : memref<121x512xf32, #tpu.memory_space<vmem>>, vector<1x256xf32>
    %cst_187 = arith.constant 0.000000e+00 : f32
    %512 = vector.broadcast %cst_187 : f32 to vector<1x256xf32>
    %513 = arith.select %131, %511, %512 : vector<1x256xi1>, vector<1x256xf32>
    %514 = arith.addf %510, %513 : vector<1x256xf32>
    %c82_188 = arith.constant 82 : index
    %c160 = arith.constant 160 : index
    %515 = vector.load %arg13[%c82_188, %c160] : memref<121x512xf32, #tpu.memory_space<vmem>>, vector<1x256xf32>
    %cst_189 = arith.constant 0.000000e+00 : f32
    %516 = vector.broadcast %cst_189 : f32 to vector<1x256xf32>
    %517 = arith.select %140, %515, %516 : vector<1x256xi1>, vector<1x256xf32>
    %518 = arith.addf %514, %517 : vector<1x256xf32>
    %c83_190 = arith.constant 83 : index
    %c161 = arith.constant 161 : index
    %519 = vector.load %arg13[%c83_190, %c161] : memref<121x512xf32, #tpu.memory_space<vmem>>, vector<1x256xf32>
    %cst_191 = arith.constant 0.000000e+00 : f32
    %520 = vector.broadcast %cst_191 : f32 to vector<1x256xf32>
    %521 = arith.select %149, %519, %520 : vector<1x256xi1>, vector<1x256xf32>
    %522 = arith.addf %518, %521 : vector<1x256xf32>
    %c84_192 = arith.constant 84 : index
    %c162 = arith.constant 162 : index
    %523 = vector.load %arg13[%c84_192, %c162] : memref<121x512xf32, #tpu.memory_space<vmem>>, vector<1x256xf32>
    %cst_193 = arith.constant 0.000000e+00 : f32
    %524 = vector.broadcast %cst_193 : f32 to vector<1x256xf32>
    %525 = arith.select %158, %523, %524 : vector<1x256xi1>, vector<1x256xf32>
    %526 = arith.addf %522, %525 : vector<1x256xf32>
    %c85_194 = arith.constant 85 : index
    %c163 = arith.constant 163 : index
    %527 = vector.load %arg13[%c85_194, %c163] : memref<121x512xf32, #tpu.memory_space<vmem>>, vector<1x256xf32>
    %cst_195 = arith.constant 0.000000e+00 : f32
    %528 = vector.broadcast %cst_195 : f32 to vector<1x256xf32>
    %529 = arith.select %167, %527, %528 : vector<1x256xi1>, vector<1x256xf32>
    %530 = arith.addf %526, %529 : vector<1x256xf32>
    %c86 = arith.constant 86 : index
    %c164 = arith.constant 164 : index
    %531 = vector.load %arg13[%c86, %c164] : memref<121x512xf32, #tpu.memory_space<vmem>>, vector<1x256xf32>
    %cst_196 = arith.constant 0.000000e+00 : f32
    %532 = vector.broadcast %cst_196 : f32 to vector<1x256xf32>
    %533 = arith.select %176, %531, %532 : vector<1x256xi1>, vector<1x256xf32>
    %534 = arith.addf %530, %533 : vector<1x256xf32>
    %c87 = arith.constant 87 : index
    %c165 = arith.constant 165 : index
    %535 = vector.load %arg13[%c87, %c165] : memref<121x512xf32, #tpu.memory_space<vmem>>, vector<1x256xf32>
    %cst_197 = arith.constant 0.000000e+00 : f32
    %536 = vector.broadcast %cst_197 : f32 to vector<1x256xf32>
    %537 = arith.select %185, %535, %536 : vector<1x256xi1>, vector<1x256xf32>
    %538 = arith.addf %534, %537 : vector<1x256xf32>
    %c88 = arith.constant 88 : index
    %c171 = arith.constant 171 : index
    %539 = vector.load %arg13[%c88, %c171] : memref<121x512xf32, #tpu.memory_space<vmem>>, vector<1x256xf32>
    %cst_198 = arith.constant 0.000000e+00 : f32
    %540 = vector.broadcast %cst_198 : f32 to vector<1x256xf32>
    %541 = arith.select %95, %539, %540 : vector<1x256xi1>, vector<1x256xf32>
    %542 = arith.addf %538, %541 : vector<1x256xf32>
    %c89 = arith.constant 89 : index
    %c172 = arith.constant 172 : index
    %543 = vector.load %arg13[%c89, %c172] : memref<121x512xf32, #tpu.memory_space<vmem>>, vector<1x256xf32>
    %cst_199 = arith.constant 0.000000e+00 : f32
    %544 = vector.broadcast %cst_199 : f32 to vector<1x256xf32>
    %545 = arith.select %104, %543, %544 : vector<1x256xi1>, vector<1x256xf32>
    %546 = arith.addf %542, %545 : vector<1x256xf32>
    %c90 = arith.constant 90 : index
    %c173 = arith.constant 173 : index
    %547 = vector.load %arg13[%c90, %c173] : memref<121x512xf32, #tpu.memory_space<vmem>>, vector<1x256xf32>
    %cst_200 = arith.constant 0.000000e+00 : f32
    %548 = vector.broadcast %cst_200 : f32 to vector<1x256xf32>
    %549 = arith.select %113, %547, %548 : vector<1x256xi1>, vector<1x256xf32>
    %550 = arith.addf %546, %549 : vector<1x256xf32>
    %c91_201 = arith.constant 91 : index
    %c174 = arith.constant 174 : index
    %551 = vector.load %arg13[%c91_201, %c174] : memref<121x512xf32, #tpu.memory_space<vmem>>, vector<1x256xf32>
    %cst_202 = arith.constant 0.000000e+00 : f32
    %552 = vector.broadcast %cst_202 : f32 to vector<1x256xf32>
    %553 = arith.select %122, %551, %552 : vector<1x256xi1>, vector<1x256xf32>
    %554 = arith.addf %550, %553 : vector<1x256xf32>
    %c92_203 = arith.constant 92 : index
    %c175 = arith.constant 175 : index
    %555 = vector.load %arg13[%c92_203, %c175] : memref<121x512xf32, #tpu.memory_space<vmem>>, vector<1x256xf32>
    %cst_204 = arith.constant 0.000000e+00 : f32
    %556 = vector.broadcast %cst_204 : f32 to vector<1x256xf32>
    %557 = arith.select %131, %555, %556 : vector<1x256xi1>, vector<1x256xf32>
    %558 = arith.addf %554, %557 : vector<1x256xf32>
    %c93_205 = arith.constant 93 : index
    %c176 = arith.constant 176 : index
    %559 = vector.load %arg13[%c93_205, %c176] : memref<121x512xf32, #tpu.memory_space<vmem>>, vector<1x256xf32>
    %cst_206 = arith.constant 0.000000e+00 : f32
    %560 = vector.broadcast %cst_206 : f32 to vector<1x256xf32>
    %561 = arith.select %140, %559, %560 : vector<1x256xi1>, vector<1x256xf32>
    %562 = arith.addf %558, %561 : vector<1x256xf32>
    %c94_207 = arith.constant 94 : index
    %c177 = arith.constant 177 : index
    %563 = vector.load %arg13[%c94_207, %c177] : memref<121x512xf32, #tpu.memory_space<vmem>>, vector<1x256xf32>
    %cst_208 = arith.constant 0.000000e+00 : f32
    %564 = vector.broadcast %cst_208 : f32 to vector<1x256xf32>
    %565 = arith.select %149, %563, %564 : vector<1x256xi1>, vector<1x256xf32>
    %566 = arith.addf %562, %565 : vector<1x256xf32>
    %c95_209 = arith.constant 95 : index
    %c178 = arith.constant 178 : index
    %567 = vector.load %arg13[%c95_209, %c178] : memref<121x512xf32, #tpu.memory_space<vmem>>, vector<1x256xf32>
    %cst_210 = arith.constant 0.000000e+00 : f32
    %568 = vector.broadcast %cst_210 : f32 to vector<1x256xf32>
    %569 = arith.select %158, %567, %568 : vector<1x256xi1>, vector<1x256xf32>
    %570 = arith.addf %566, %569 : vector<1x256xf32>
    %c96_211 = arith.constant 96 : index
    %c179 = arith.constant 179 : index
    %571 = vector.load %arg13[%c96_211, %c179] : memref<121x512xf32, #tpu.memory_space<vmem>>, vector<1x256xf32>
    %cst_212 = arith.constant 0.000000e+00 : f32
    %572 = vector.broadcast %cst_212 : f32 to vector<1x256xf32>
    %573 = arith.select %167, %571, %572 : vector<1x256xi1>, vector<1x256xf32>
    %574 = arith.addf %570, %573 : vector<1x256xf32>
    %c97_213 = arith.constant 97 : index
    %c180 = arith.constant 180 : index
    %575 = vector.load %arg13[%c97_213, %c180] : memref<121x512xf32, #tpu.memory_space<vmem>>, vector<1x256xf32>
    %cst_214 = arith.constant 0.000000e+00 : f32
    %576 = vector.broadcast %cst_214 : f32 to vector<1x256xf32>
    %577 = arith.select %176, %575, %576 : vector<1x256xi1>, vector<1x256xf32>
    %578 = arith.addf %574, %577 : vector<1x256xf32>
    %c98_215 = arith.constant 98 : index
    %c181 = arith.constant 181 : index
    %579 = vector.load %arg13[%c98_215, %c181] : memref<121x512xf32, #tpu.memory_space<vmem>>, vector<1x256xf32>
    %cst_216 = arith.constant 0.000000e+00 : f32
    %580 = vector.broadcast %cst_216 : f32 to vector<1x256xf32>
    %581 = arith.select %185, %579, %580 : vector<1x256xi1>, vector<1x256xf32>
    %582 = arith.addf %578, %581 : vector<1x256xf32>
    %c99_217 = arith.constant 99 : index
    %c187 = arith.constant 187 : index
    %583 = vector.load %arg13[%c99_217, %c187] : memref<121x512xf32, #tpu.memory_space<vmem>>, vector<1x256xf32>
    %cst_218 = arith.constant 0.000000e+00 : f32
    %584 = vector.broadcast %cst_218 : f32 to vector<1x256xf32>
    %585 = arith.select %95, %583, %584 : vector<1x256xi1>, vector<1x256xf32>
    %586 = arith.addf %582, %585 : vector<1x256xf32>
    %c100_219 = arith.constant 100 : index
    %c188 = arith.constant 188 : index
    %587 = vector.load %arg13[%c100_219, %c188] : memref<121x512xf32, #tpu.memory_space<vmem>>, vector<1x256xf32>
    %cst_220 = arith.constant 0.000000e+00 : f32
    %588 = vector.broadcast %cst_220 : f32 to vector<1x256xf32>
    %589 = arith.select %104, %587, %588 : vector<1x256xi1>, vector<1x256xf32>
    %590 = arith.addf %586, %589 : vector<1x256xf32>
    %c101_221 = arith.constant 101 : index
    %c189 = arith.constant 189 : index
    %591 = vector.load %arg13[%c101_221, %c189] : memref<121x512xf32, #tpu.memory_space<vmem>>, vector<1x256xf32>
    %cst_222 = arith.constant 0.000000e+00 : f32
    %592 = vector.broadcast %cst_222 : f32 to vector<1x256xf32>
    %593 = arith.select %113, %591, %592 : vector<1x256xi1>, vector<1x256xf32>
    %594 = arith.addf %590, %593 : vector<1x256xf32>
    %c102 = arith.constant 102 : index
    %c190 = arith.constant 190 : index
    %595 = vector.load %arg13[%c102, %c190] : memref<121x512xf32, #tpu.memory_space<vmem>>, vector<1x256xf32>
    %cst_223 = arith.constant 0.000000e+00 : f32
    %596 = vector.broadcast %cst_223 : f32 to vector<1x256xf32>
    %597 = arith.select %122, %595, %596 : vector<1x256xi1>, vector<1x256xf32>
    %598 = arith.addf %594, %597 : vector<1x256xf32>
    %c103 = arith.constant 103 : index
    %c191 = arith.constant 191 : index
    %599 = vector.load %arg13[%c103, %c191] : memref<121x512xf32, #tpu.memory_space<vmem>>, vector<1x256xf32>
    %cst_224 = arith.constant 0.000000e+00 : f32
    %600 = vector.broadcast %cst_224 : f32 to vector<1x256xf32>
    %601 = arith.select %131, %599, %600 : vector<1x256xi1>, vector<1x256xf32>
    %602 = arith.addf %598, %601 : vector<1x256xf32>
    %c104 = arith.constant 104 : index
    %c192 = arith.constant 192 : index
    %603 = vector.load %arg13[%c104, %c192] : memref<121x512xf32, #tpu.memory_space<vmem>>, vector<1x256xf32>
    %cst_225 = arith.constant 0.000000e+00 : f32
    %604 = vector.broadcast %cst_225 : f32 to vector<1x256xf32>
    %605 = arith.select %140, %603, %604 : vector<1x256xi1>, vector<1x256xf32>
    %606 = arith.addf %602, %605 : vector<1x256xf32>
    %c105 = arith.constant 105 : index
    %c193 = arith.constant 193 : index
    %607 = vector.load %arg13[%c105, %c193] : memref<121x512xf32, #tpu.memory_space<vmem>>, vector<1x256xf32>
    %cst_226 = arith.constant 0.000000e+00 : f32
    %608 = vector.broadcast %cst_226 : f32 to vector<1x256xf32>
    %609 = arith.select %149, %607, %608 : vector<1x256xi1>, vector<1x256xf32>
    %610 = arith.addf %606, %609 : vector<1x256xf32>
    %c106 = arith.constant 106 : index
    %c194 = arith.constant 194 : index
    %611 = vector.load %arg13[%c106, %c194] : memref<121x512xf32, #tpu.memory_space<vmem>>, vector<1x256xf32>
    %cst_227 = arith.constant 0.000000e+00 : f32
    %612 = vector.broadcast %cst_227 : f32 to vector<1x256xf32>
    %613 = arith.select %158, %611, %612 : vector<1x256xi1>, vector<1x256xf32>
    %614 = arith.addf %610, %613 : vector<1x256xf32>
    %c107_228 = arith.constant 107 : index
    %c195 = arith.constant 195 : index
    %615 = vector.load %arg13[%c107_228, %c195] : memref<121x512xf32, #tpu.memory_space<vmem>>, vector<1x256xf32>
    %cst_229 = arith.constant 0.000000e+00 : f32
    %616 = vector.broadcast %cst_229 : f32 to vector<1x256xf32>
    %617 = arith.select %167, %615, %616 : vector<1x256xi1>, vector<1x256xf32>
    %618 = arith.addf %614, %617 : vector<1x256xf32>
    %c108_230 = arith.constant 108 : index
    %c196 = arith.constant 196 : index
    %619 = vector.load %arg13[%c108_230, %c196] : memref<121x512xf32, #tpu.memory_space<vmem>>, vector<1x256xf32>
    %cst_231 = arith.constant 0.000000e+00 : f32
    %620 = vector.broadcast %cst_231 : f32 to vector<1x256xf32>
    %621 = arith.select %176, %619, %620 : vector<1x256xi1>, vector<1x256xf32>
    %622 = arith.addf %618, %621 : vector<1x256xf32>
    %c109_232 = arith.constant 109 : index
    %c197 = arith.constant 197 : index
    %623 = vector.load %arg13[%c109_232, %c197] : memref<121x512xf32, #tpu.memory_space<vmem>>, vector<1x256xf32>
    %cst_233 = arith.constant 0.000000e+00 : f32
    %624 = vector.broadcast %cst_233 : f32 to vector<1x256xf32>
    %625 = arith.select %185, %623, %624 : vector<1x256xi1>, vector<1x256xf32>
    %626 = arith.addf %622, %625 : vector<1x256xf32>
    %c110_234 = arith.constant 110 : index
    %c203 = arith.constant 203 : index
    %627 = vector.load %arg13[%c110_234, %c203] : memref<121x512xf32, #tpu.memory_space<vmem>>, vector<1x256xf32>
    %cst_235 = arith.constant 0.000000e+00 : f32
    %628 = vector.broadcast %cst_235 : f32 to vector<1x256xf32>
    %629 = arith.select %95, %627, %628 : vector<1x256xi1>, vector<1x256xf32>
    %630 = arith.addf %626, %629 : vector<1x256xf32>
    %c111_236 = arith.constant 111 : index
    %c204 = arith.constant 204 : index
    %631 = vector.load %arg13[%c111_236, %c204] : memref<121x512xf32, #tpu.memory_space<vmem>>, vector<1x256xf32>
    %cst_237 = arith.constant 0.000000e+00 : f32
    %632 = vector.broadcast %cst_237 : f32 to vector<1x256xf32>
    %633 = arith.select %104, %631, %632 : vector<1x256xi1>, vector<1x256xf32>
    %634 = arith.addf %630, %633 : vector<1x256xf32>
    %c112_238 = arith.constant 112 : index
    %c205 = arith.constant 205 : index
    %635 = vector.load %arg13[%c112_238, %c205] : memref<121x512xf32, #tpu.memory_space<vmem>>, vector<1x256xf32>
    %cst_239 = arith.constant 0.000000e+00 : f32
    %636 = vector.broadcast %cst_239 : f32 to vector<1x256xf32>
    %637 = arith.select %113, %635, %636 : vector<1x256xi1>, vector<1x256xf32>
    %638 = arith.addf %634, %637 : vector<1x256xf32>
    %c113_240 = arith.constant 113 : index
    %c206 = arith.constant 206 : index
    %639 = vector.load %arg13[%c113_240, %c206] : memref<121x512xf32, #tpu.memory_space<vmem>>, vector<1x256xf32>
    %cst_241 = arith.constant 0.000000e+00 : f32
    %640 = vector.broadcast %cst_241 : f32 to vector<1x256xf32>
    %641 = arith.select %122, %639, %640 : vector<1x256xi1>, vector<1x256xf32>
    %642 = arith.addf %638, %641 : vector<1x256xf32>
    %c114_242 = arith.constant 114 : index
    %c207 = arith.constant 207 : index
    %643 = vector.load %arg13[%c114_242, %c207] : memref<121x512xf32, #tpu.memory_space<vmem>>, vector<1x256xf32>
    %cst_243 = arith.constant 0.000000e+00 : f32
    %644 = vector.broadcast %cst_243 : f32 to vector<1x256xf32>
    %645 = arith.select %131, %643, %644 : vector<1x256xi1>, vector<1x256xf32>
    %646 = arith.addf %642, %645 : vector<1x256xf32>
    %c115_244 = arith.constant 115 : index
    %c208 = arith.constant 208 : index
    %647 = vector.load %arg13[%c115_244, %c208] : memref<121x512xf32, #tpu.memory_space<vmem>>, vector<1x256xf32>
    %cst_245 = arith.constant 0.000000e+00 : f32
    %648 = vector.broadcast %cst_245 : f32 to vector<1x256xf32>
    %649 = arith.select %140, %647, %648 : vector<1x256xi1>, vector<1x256xf32>
    %650 = arith.addf %646, %649 : vector<1x256xf32>
    %c116_246 = arith.constant 116 : index
    %c209 = arith.constant 209 : index
    %651 = vector.load %arg13[%c116_246, %c209] : memref<121x512xf32, #tpu.memory_space<vmem>>, vector<1x256xf32>
    %cst_247 = arith.constant 0.000000e+00 : f32
    %652 = vector.broadcast %cst_247 : f32 to vector<1x256xf32>
    %653 = arith.select %149, %651, %652 : vector<1x256xi1>, vector<1x256xf32>
    %654 = arith.addf %650, %653 : vector<1x256xf32>
    %c117_248 = arith.constant 117 : index
    %c210 = arith.constant 210 : index
    %655 = vector.load %arg13[%c117_248, %c210] : memref<121x512xf32, #tpu.memory_space<vmem>>, vector<1x256xf32>
    %cst_249 = arith.constant 0.000000e+00 : f32
    %656 = vector.broadcast %cst_249 : f32 to vector<1x256xf32>
    %657 = arith.select %158, %655, %656 : vector<1x256xi1>, vector<1x256xf32>
    %658 = arith.addf %654, %657 : vector<1x256xf32>
    %c118 = arith.constant 118 : index
    %c211 = arith.constant 211 : index
    %659 = vector.load %arg13[%c118, %c211] : memref<121x512xf32, #tpu.memory_space<vmem>>, vector<1x256xf32>
    %cst_250 = arith.constant 0.000000e+00 : f32
    %660 = vector.broadcast %cst_250 : f32 to vector<1x256xf32>
    %661 = arith.select %167, %659, %660 : vector<1x256xi1>, vector<1x256xf32>
    %662 = arith.addf %658, %661 : vector<1x256xf32>
    %c119 = arith.constant 119 : index
    %c212 = arith.constant 212 : index
    %663 = vector.load %arg13[%c119, %c212] : memref<121x512xf32, #tpu.memory_space<vmem>>, vector<1x256xf32>
    %cst_251 = arith.constant 0.000000e+00 : f32
    %664 = vector.broadcast %cst_251 : f32 to vector<1x256xf32>
    %665 = arith.select %176, %663, %664 : vector<1x256xi1>, vector<1x256xf32>
    %666 = arith.addf %662, %665 : vector<1x256xf32>
    %c120 = arith.constant 120 : index
    %c213 = arith.constant 213 : index
    %667 = vector.load %arg13[%c120, %c213] : memref<121x512xf32, #tpu.memory_space<vmem>>, vector<1x256xf32>
    %cst_252 = arith.constant 0.000000e+00 : f32
    %668 = vector.broadcast %cst_252 : f32 to vector<1x256xf32>
    %669 = arith.select %185, %667, %668 : vector<1x256xi1>, vector<1x256xf32>
    %670 = arith.addf %666, %669 : vector<1x256xf32>
    %c0_253 = arith.constant 0 : index
    %c0_254 = arith.constant 0 : index
    %c0_255 = arith.constant 0 : index
    %671 = vector.load %arg12[%c0_253, %c0_254, %c0_255] : memref<1x1x256xf32, #tpu.memory_space<vmem>>, vector<1x1x256xf32>
    %672 = vector.shape_cast %671 : vector<1x1x256xf32> to vector<1x256xf32>
    %673 = vector.shape_cast %670 : vector<1x256xf32> to vector<1x1x256xf32>
    tpu.vector_store %arg12[%c0_253, %c0_254, %c0_255], %673 {strides = array<i32>} : memref<1x1x256xf32, #tpu.memory_space<vmem>>, vector<1x1x256xf32>,
    %674 = vector.broadcast %670 : vector<1x256xf32> to vector<32x256xf32>
    %675 = arith.addf %59, %674 : vector<32x256xf32>
    %c0_256 = arith.constant 0 : index
    %c0_257 = arith.constant 0 : index
    %c0_258 = arith.constant 0 : index
    %676 = vector.load %arg11[%c0_256, %c0_257, %c0_258] : memref<1x32x256xf32, #tpu.memory_space<vmem>>, vector<1x32x256xf32>
    %677 = vector.shape_cast %676 : vector<1x32x256xf32> to vector<32x256xf32>
    %678 = vector.shape_cast %675 : vector<32x256xf32> to vector<1x32x256xf32>
    tpu.vector_store %arg11[%c0_256, %c0_257, %c0_258], %678 {strides = array<i32>} : memref<1x32x256xf32, #tpu.memory_space<vmem>>, vector<1x32x256xf32>,
    return
  }
  func.func @transform_0(%arg0: i32) -> i32 {
    %c0_i32 = arith.constant 0 : i32
    %c0_i32_0 = arith.constant 0 : i32
    return %c0_i32 : i32
  }
  func.func @transform_1(%arg0: i32) -> (i32, i32, i32) {
    %c0_i32 = arith.constant 0 : i32
    %c0_i32_0 = arith.constant 0 : i32
    %c0_i32_1 = arith.constant 0 : i32
    return %arg0, %c0_i32, %c0_i32_0 : i32, i32, i32
  }
  func.func @transform_2(%arg0: i32) -> (i32, i32) {
    %c0_i32 = arith.constant 0 : i32
    %c0_i32_0 = arith.constant 0 : i32
    %c0_i32_1 = arith.constant 0 : i32
    return %c0_i32, %c0_i32_0 : i32, i32
  }
  func.func @transform_3(%arg0: i32) -> (i32, i32) {
    %c0_i32 = arith.constant 0 : i32
    %c0_i32_0 = arith.constant 0 : i32
    %c0_i32_1 = arith.constant 0 : i32
    return %c0_i32, %c0_i32_0 : i32, i32
  }
  func.func @transform_4(%arg0: i32) -> (i32, i32) {
    %c0_i32 = arith.constant 0 : i32
    %c0_i32_0 = arith.constant 0 : i32
    %c0_i32_1 = arith.constant 0 : i32
    return %c0_i32, %c0_i32_0 : i32, i32
  }
  func.func @transform_5(%arg0: i32) -> (i32, i32) {
    %c0_i32 = arith.constant 0 : i32
    %c0_i32_0 = arith.constant 0 : i32
    %c0_i32_1 = arith.constant 0 : i32
    return %c0_i32, %c0_i32_0 : i32, i32
  }
  func.func @transform_6(%arg0: i32) -> (i32, i32) {
    %c0_i32 = arith.constant 0 : i32
    %c0_i32_0 = arith.constant 0 : i32
    %c0_i32_1 = arith.constant 0 : i32
    return %c0_i32, %c0_i32_0 : i32, i32
  }
  func.func @transform_7(%arg0: i32) -> (i32, i32) {
    %c0_i32 = arith.constant 0 : i32
    %c0_i32_0 = arith.constant 0 : i32
    %c0_i32_1 = arith.constant 0 : i32
    return %c0_i32, %c0_i32_0 : i32, i32
  }
  func.func @transform_8(%arg0: i32) -> (i32, i32) {
    %c0_i32 = arith.constant 0 : i32
    %c0_i32_0 = arith.constant 0 : i32
    %c0_i32_1 = arith.constant 0 : i32
    return %c0_i32, %c0_i32_0 : i32, i32
  }
  func.func @transform_9(%arg0: i32) -> (i32, i32, i32) {
    %c0_i32 = arith.constant 0 : i32
    %c0_i32_0 = arith.constant 0 : i32
    %c0_i32_1 = arith.constant 0 : i32
    return %arg0, %c0_i32, %c0_i32_0 : i32, i32, i32
  }
  func.func @transform_10(%arg0: i32) -> (i32, i32, i32) {
    %c0_i32 = arith.constant 0 : i32
    %c0_i32_0 = arith.constant 0 : i32
    %c0_i32_1 = arith.constant 0 : i32
    return %arg0, %c0_i32, %c0_i32_0 : i32, i32, i32
  }
  func.func @transform_11(%arg0: i32) -> (i32, i32, i32) {
    %c0_i32 = arith.constant 0 : i32
    %c0_i32_0 = arith.constant 0 : i32
    %c0_i32_1 = arith.constant 0 : i32
    return %arg0, %c0_i32, %c0_i32_0 : i32, i32, i32
  }
}

</mosaic_0001>

<llo_original>
// kernel: forward.1
$region0: #{forward.1}
  #allocation0 [shape = 'u32[]', space=smem, size = 0x4, offset = 0x4, fixed_abs, tag = 'smem constant byte address 0x4 - core index']
  #allocation1 [shape = 'u32[144,128]{1,0:T(1,128)}', space=vmem, size = 0x12000, scoped, tag = 'internal scratch']
  #allocation2 [shape = 'f32[121,512]{1,0:T(8,128)}', space=vmem, size = 0x40000, scoped, tag = 'scratch operand']
  %s0 = inlined_call_operand.hbm [shape: f32[3], index: 0, kind: input, shape index: {}]
  %s1 = inlined_call_operand.hbm [shape: f32[2,32,256], index: 1, kind: input, shape index: {}]
  %s2 = inlined_call_operand.hbm [shape: f32[4,32], index: 2, kind: input, shape index: {}]
  %s3 = inlined_call_operand.hbm [shape: f32[4,1], index: 3, kind: input, shape index: {}]
  %s4 = inlined_call_operand.hbm [shape: f32[4,32], index: 4, kind: input, shape index: {}]
  %s5 = inlined_call_operand.hbm [shape: f32[4,1], index: 5, kind: input, shape index: {}]
  %s6 = inlined_call_operand.hbm [shape: f32[32,32], index: 6, kind: input, shape index: {}]
  %s7 = inlined_call_operand.hbm [shape: f32[32,1], index: 7, kind: input, shape index: {}]
  %s8 = inlined_call_operand.hbm [shape: f32[121,32], index: 8, kind: input, shape index: {}]
  %s9 = inlined_call_operand.hbm [shape: f32[2,32,256], index: 9, kind: output, shape index: {0}]
  %s10 = inlined_call_operand.hbm [shape: f32[2,32,256], index: 10, kind: output, shape index: {1}]
  %s11 = inlined_call_operand.hbm [shape: f32[2,1,256], index: 11, kind: output, shape index: {2}]
  %12 = xla_tuple %s9, %s10, %s11
  %s13 = sld [smem:[#allocation0]]
  $region121: #{forward.1} parent=0
    _
  %s15 = ssub.s32 1, %s13
  %s16 = scalar_select 0, %s15, %s13
  $region1: #{forward.1} parent=0
    #allocation3 [shape = 'u8[512]{0}', space=smem, size = 0x200, scoped, tag = 'input window, operand 0, single buffered']
    #allocation4 [shape = 's32[2]{0}', space=sflag, size = 0x8, scoped, tag = 'scoped memory for forward.1']
    #allocation5 [shape = 's32[2]{0}', space=sflag, size = 0x8, scoped, tag = 'scoped memory for forward.1']
    #allocation6 [shape = 's32[2]{0}', space=sflag, size = 0x8, scoped, tag = 'scoped memory for forward.1']
    #allocation7 [shape = 'u8[65536]{0}', space=vmem, size = 0x10000, scoped, tag = 'input window, operand 1']
    #allocation8 [shape = 'u8[2048]{0}', space=vmem, size = 0x800, scoped, tag = 'input window, operand 2, single buffered']
    #allocation9 [shape = 's32[1]{0}', space=sflag, size = 0x4, scoped, tag = 'scoped memory for forward.1']
    #allocation10 [shape = 'u8[2048]{0}', space=vmem, size = 0x800, scoped, tag = 'input window, operand 3, single buffered']
    #allocation11 [shape = 'u8[2048]{0}', space=vmem, size = 0x800, scoped, tag = 'input window, operand 4, single buffered']
    #allocation12 [shape = 's32[1]{0}', space=sflag, size = 0x4, scoped, tag = 'scoped memory for forward.1']
    #allocation13 [shape = 'u8[2048]{0}', space=vmem, size = 0x800, scoped, tag = 'input window, operand 5, single buffered']
    #allocation14 [shape = 'u8[16384]{0}', space=vmem, size = 0x4000, scoped, tag = 'input window, operand 6, single buffered']
    #allocation15 [shape = 's32[1]{0}', space=sflag, size = 0x4, scoped, tag = 'scoped memory for forward.1']
    #allocation16 [shape = 'u8[16384]{0}', space=vmem, size = 0x4000, scoped, tag = 'input window, operand 7, single buffered']
    #allocation17 [shape = 'u8[65536]{0}', space=vmem, size = 0x10000, scoped, tag = 'input window, operand 8, single buffered']
    #allocation18 [shape = 's32[1]{0}', space=sflag, size = 0x4, scoped, tag = 'scoped memory for forward.1']
    #allocation19 [shape = 'u8[65536]{0}', space=vmem, size = 0x10000, scoped, tag = 'output window, operand 0']
    #allocation20 [shape = 'u8[65536]{0}', space=vmem, size = 0x10000, scoped, tag = 'output window, operand 1']
    #allocation21 [shape = 's32[2]{0}', space=sflag, size = 0x8, scoped, tag = 'scoped memory for forward.1']
    #allocation22 [shape = 'u8[2048]{0}', space=vmem, size = 0x800, scoped, tag = 'output window, operand 2']
    %17 = vsyncpa [#allocation6], 0
    %18 = vsyncpa [#allocation4], 0
    %s19 = scalar_lea.sflag [#allocation4], 1
    %20 = vsyncpa %s19, 0
    %21 = vsyncpa [#allocation9], 0
    %22 = vsyncpa [#allocation12], 0
    %23 = vsyncpa [#allocation15], 0
    %24 = vsyncpa [#allocation18], 0
    %25 = vsyncpa [#allocation5], 0
    %s26 = scalar_lea.sflag [#allocation5], 1
    %27 = vsyncpa %s26, 0
    %28 = vsyncpa [#allocation21], 0
    %s29 = scalar_lea.sflag [#allocation21], 1
    %30 = vsyncpa %s29, 0
    loop: start=0, step=1, limit=4
    $region2: #{forward.1} parent=1 // loop_pre_header
      _
    $region3: #{forward.1} parent=1 // loop_header
      %s32 = sphi 0, %s36
      %p33 = scmp.ge.s32.totalorder %s32, 4
      %s40 = sphi 0, %s40
      %s42 = sphi 0, %s40
      %s43 = sphi 0, %s42
      %s57 = sphi 0, %s43
      %s63 = sphi 0, %s65
      %s66 = sphi 0, %s63
      %s67 = sphi 0, %s66
      %s83 = sphi 0, %s67
      %s87 = sphi 0, %s87
      %s89 = sphi 0, %s87
      %s90 = sphi 0, %s89
      %s104 = sphi 0, %s90
      %s108 = sphi 0, %s108
      %s110 = sphi 0, %s108
      %s111 = sphi 0, %s110
      %s125 = sphi 0, %s111
      %s129 = sphi 0, %s129
      %s131 = sphi 0, %s129
      %s132 = sphi 0, %s131
      %s146 = sphi 0, %s132
      %s150 = sphi 0, %s150
      %s152 = sphi 0, %s150
      %s153 = sphi 0, %s152
      %s167 = sphi 0, %s153
      %s171 = sphi 0, %s171
      %s173 = sphi 0, %s171
      %s174 = sphi 0, %s173
      %s188 = sphi 0, %s174
      %s192 = sphi 0, %s192
      %s194 = sphi 0, %s192
      %s195 = sphi 0, %s194
      %s209 = sphi 0, %s195
      %s213 = sphi 0, %s213
      %s215 = sphi 0, %s213
      %s216 = sphi 0, %s215
      %s230 = sphi 0, %s216
      %s236 = sphi 0, %s238
      %s239 = sphi 0, %s236
      %s240 = sphi 0, %s239
      %s256 = sphi 0, %s240
      %s262 = sphi 0, %s264
      %s265 = sphi 0, %s262
      %s266 = sphi 0, %s265
      %s282 = sphi 0, %s266
      %s288 = sphi 0, %s290
      %s291 = sphi 0, %s288
      %s292 = sphi 0, %s291
      %s308 = sphi 0, %s292
    $region4: #{forward.1} parent=1 // loop_header_branch
      %35 = sbr.rel (%p33) target = $region8
    $region5: #{forward.1} parent=1 // loop_body
      %s37 = ssub.s32 %s32, 1
      %s38 = ssub.s32 %s32, 2
      %s39 = sadd.s32 %s32, 1
      %s41 = sadd.s32 %s40, 1
      %p44 = scmp.eq.s32.totalorder %s32, 1
      %p45 = scmp.ne.s32.totalorder %s40, %s42
      %p46 = scmp.eq.s32.totalorder %s32, 0
      %p47 = por %p45, %p46
      %p48 = scmp.ne.s32.totalorder %s40, %s42
      %p49 = scmp.eq.s32.totalorder %s37, 1
      %p50 = por %p48, %p49
      %p51 = scmp.ne.s32.totalorder %s42, %s43
      %p52 = scmp.eq.s32.totalorder %s37, 0
      %p53 = por %p51, %p52
      %p54 = scmp.ne.s32.totalorder %s42, %s43
      %p55 = scmp.eq.s32.totalorder %s38, 1
      %p56 = por %p54, %p55
      %p58 = scmp.ne.s32.totalorder %s43, %s57
      %p59 = scmp.eq.s32.totalorder %s38, 0
      %p60 = por %p58, %p59
      %s61 = ssub.s32 %s32, %s39
      %p62 = scmp.eq.s32.totalorder %s61, 0
      %s64 = sadd.s32 %s63, 1
      %s65 = scalar_select %p62, %s63, %s64
      %p68 = pneg %p62
      %p69 = scmp.eq.s32.totalorder %s32, 1
      %p70 = por %p68, %p69
      %p71 = scmp.ne.s32.totalorder %s63, %s66
      %p72 = scmp.eq.s32.totalorder %s32, 0
      %p73 = por %p71, %p72
      %p74 = scmp.ne.s32.totalorder %s63, %s66
      %p75 = scmp.eq.s32.totalorder %s37, 1
      %p76 = por %p74, %p75
      %p77 = scmp.ne.s32.totalorder %s66, %s67
      %p78 = scmp.eq.s32.totalorder %s37, 0
      %p79 = por %p77, %p78
      %p80 = scmp.ne.s32.totalorder %s66, %s67
      %p81 = scmp.eq.s32.totalorder %s38, 1
      %p82 = por %p80, %p81
      %p84 = scmp.ne.s32.totalorder %s67, %s83
      %p85 = scmp.eq.s32.totalorder %s38, 0
      %p86 = por %p84, %p85
      %s88 = sadd.s32 %s87, 1
      %p91 = scmp.eq.s32.totalorder %s32, 1
      %p92 = scmp.ne.s32.totalorder %s87, %s89
      %p93 = scmp.eq.s32.totalorder %s32, 0
      %p94 = por %p92, %p93
      %p95 = scmp.ne.s32.totalorder %s87, %s89
      %p96 = scmp.eq.s32.totalorder %s37, 1
      %p97 = por %p95, %p96
      %p98 = scmp.ne.s32.totalorder %s89, %s90
      %p99 = scmp.eq.s32.totalorder %s37, 0
      %p100 = por %p98, %p99
      %p101 = scmp.ne.s32.totalorder %s89, %s90
      %p102 = scmp.eq.s32.totalorder %s38, 1
      %p103 = por %p101, %p102
      %p105 = scmp.ne.s32.totalorder %s90, %s104
      %p106 = scmp.eq.s32.totalorder %s38, 0
      %p107 = por %p105, %p106
      %s109 = sadd.s32 %s108, 1
      %p112 = scmp.eq.s32.totalorder %s32, 1
      %p113 = scmp.ne.s32.totalorder %s108, %s110
      %p114 = scmp.eq.s32.totalorder %s32, 0
      %p115 = por %p113, %p114
      %p116 = scmp.ne.s32.totalorder %s108, %s110
      %p117 = scmp.eq.s32.totalorder %s37, 1
      %p118 = por %p116, %p117
      %p119 = scmp.ne.s32.totalorder %s110, %s111
      %p120 = scmp.eq.s32.totalorder %s37, 0
      %p121 = por %p119, %p120
      %p122 = scmp.ne.s32.totalorder %s110, %s111
      %p123 = scmp.eq.s32.totalorder %s38, 1
      %p124 = por %p122, %p123
      %p126 = scmp.ne.s32.totalorder %s111, %s125
      %p127 = scmp.eq.s32.totalorder %s38, 0
      %p128 = por %p126, %p127
      %s130 = sadd.s32 %s129, 1
      %p133 = scmp.eq.s32.totalorder %s32, 1
      %p134 = scmp.ne.s32.totalorder %s129, %s131
      %p135 = scmp.eq.s32.totalorder %s32, 0
      %p136 = por %p134, %p135
      %p137 = scmp.ne.s32.totalorder %s129, %s131
      %p138 = scmp.eq.s32.totalorder %s37, 1
      %p139 = por %p137, %p138
      %p140 = scmp.ne.s32.totalorder %s131, %s132
      %p141 = scmp.eq.s32.totalorder %s37, 0
      %p142 = por %p140, %p141
      %p143 = scmp.ne.s32.totalorder %s131, %s132
      %p144 = scmp.eq.s32.totalorder %s38, 1
      %p145 = por %p143, %p144
      %p147 = scmp.ne.s32.totalorder %s132, %s146
      %p148 = scmp.eq.s32.totalorder %s38, 0
      %p149 = por %p147, %p148
      %s151 = sadd.s32 %s150, 1
      %p154 = scmp.eq.s32.totalorder %s32, 1
      %p155 = scmp.ne.s32.totalorder %s150, %s152
      %p156 = scmp.eq.s32.totalorder %s32, 0
      %p157 = por %p155, %p156
      %p158 = scmp.ne.s32.totalorder %s150, %s152
      %p159 = scmp.eq.s32.totalorder %s37, 1
      %p160 = por %p158, %p159
      %p161 = scmp.ne.s32.totalorder %s152, %s153
      %p162 = scmp.eq.s32.totalorder %s37, 0
      %p163 = por %p161, %p162
      %p164 = scmp.ne.s32.totalorder %s152, %s153
      %p165 = scmp.eq.s32.totalorder %s38, 1
      %p166 = por %p164, %p165
      %p168 = scmp.ne.s32.totalorder %s153, %s167
      %p169 = scmp.eq.s32.totalorder %s38, 0
      %p170 = por %p168, %p169
      %s172 = sadd.s32 %s171, 1
      %p175 = scmp.eq.s32.totalorder %s32, 1
      %p176 = scmp.ne.s32.totalorder %s171, %s173
      %p177 = scmp.eq.s32.totalorder %s32, 0
      %p178 = por %p176, %p177
      %p179 = scmp.ne.s32.totalorder %s171, %s173
      %p180 = scmp.eq.s32.totalorder %s37, 1
      %p181 = por %p179, %p180
      %p182 = scmp.ne.s32.totalorder %s173, %s174
      %p183 = scmp.eq.s32.totalorder %s37, 0
      %p184 = por %p182, %p183
      %p185 = scmp.ne.s32.totalorder %s173, %s174
      %p186 = scmp.eq.s32.totalorder %s38, 1
      %p187 = por %p185, %p186
      %p189 = scmp.ne.s32.totalorder %s174, %s188
      %p190 = scmp.eq.s32.totalorder %s38, 0
      %p191 = por %p189, %p190
      %s193 = sadd.s32 %s192, 1
      %p196 = scmp.eq.s32.totalorder %s32, 1
      %p197 = scmp.ne.s32.totalorder %s192, %s194
      %p198 = scmp.eq.s32.totalorder %s32, 0
      %p199 = por %p197, %p198
      %p200 = scmp.ne.s32.totalorder %s192, %s194
      %p201 = scmp.eq.s32.totalorder %s37, 1
      %p202 = por %p200, %p201
      %p203 = scmp.ne.s32.totalorder %s194, %s195
      %p204 = scmp.eq.s32.totalorder %s37, 0
      %p205 = por %p203, %p204
      %p206 = scmp.ne.s32.totalorder %s194, %s195
      %p207 = scmp.eq.s32.totalorder %s38, 1
      %p208 = por %p206, %p207
      %p210 = scmp.ne.s32.totalorder %s195, %s209
      %p211 = scmp.eq.s32.totalorder %s38, 0
      %p212 = por %p210, %p211
      %s214 = sadd.s32 %s213, 1
      %p217 = scmp.eq.s32.totalorder %s32, 1
      %p218 = scmp.ne.s32.totalorder %s213, %s215
      %p219 = scmp.eq.s32.totalorder %s32, 0
      %p220 = por %p218, %p219
      %p221 = scmp.ne.s32.totalorder %s213, %s215
      %p222 = scmp.eq.s32.totalorder %s37, 1
      %p223 = por %p221, %p222
      %p224 = scmp.ne.s32.totalorder %s215, %s216
      %p225 = scmp.eq.s32.totalorder %s37, 0
      %p226 = por %p224, %p225
      %p227 = scmp.ne.s32.totalorder %s215, %s216
      %p228 = scmp.eq.s32.totalorder %s38, 1
      %p229 = por %p227, %p228
      %p231 = scmp.ne.s32.totalorder %s216, %s230
      %p232 = scmp.eq.s32.totalorder %s38, 0
      %p233 = por %p231, %p232
      %s234 = ssub.s32 %s32, %s39
      %p235 = scmp.eq.s32.totalorder %s234, 0
      %s237 = sadd.s32 %s236, 1
      %s238 = scalar_select %p235, %s236, %s237
      %p241 = pneg %p235
      %p242 = scmp.eq.s32.totalorder %s32, 1
      %p243 = por %p241, %p242
      %p244 = scmp.ne.s32.totalorder %s236, %s239
      %p245 = scmp.eq.s32.totalorder %s32, 0
      %p246 = por %p244, %p245
      %p247 = scmp.ne.s32.totalorder %s236, %s239
      %p248 = scmp.eq.s32.totalorder %s37, 1
      %p249 = por %p247, %p248
      %p250 = scmp.ne.s32.totalorder %s239, %s240
      %p251 = scmp.eq.s32.totalorder %s37, 0
      %p252 = por %p250, %p251
      %p253 = scmp.ne.s32.totalorder %s239, %s240
      %p254 = scmp.eq.s32.totalorder %s38, 1
      %p255 = por %p253, %p254
      %p257 = scmp.ne.s32.totalorder %s240, %s256
      %p258 = scmp.eq.s32.totalorder %s38, 0
      %p259 = por %p257, %p258
      %s260 = ssub.s32 %s32, %s39
      %p261 = scmp.eq.s32.totalorder %s260, 0
      %s263 = sadd.s32 %s262, 1
      %s264 = scalar_select %p261, %s262, %s263
      %p267 = pneg %p261
      %p268 = scmp.eq.s32.totalorder %s32, 1
      %p269 = por %p267, %p268
      %p270 = scmp.ne.s32.totalorder %s262, %s265
      %p271 = scmp.eq.s32.totalorder %s32, 0
      %p272 = por %p270, %p271
      %p273 = scmp.ne.s32.totalorder %s262, %s265
      %p274 = scmp.eq.s32.totalorder %s37, 1
      %p275 = por %p273, %p274
      %p276 = scmp.ne.s32.totalorder %s265, %s266
      %p277 = scmp.eq.s32.totalorder %s37, 0
      %p278 = por %p276, %p277
      %p279 = scmp.ne.s32.totalorder %s265, %s266
      %p280 = scmp.eq.s32.totalorder %s38, 1
      %p281 = por %p279, %p280
      %p283 = scmp.ne.s32.totalorder %s266, %s282
      %p284 = scmp.eq.s32.totalorder %s38, 0
      %p285 = por %p283, %p284
      %s286 = ssub.s32 %s32, %s39
      %p287 = scmp.eq.s32.totalorder %s286, 0
      %s289 = sadd.s32 %s288, 1
      %s290 = scalar_select %p287, %s288, %s289
      %p293 = pneg %p287
      %p294 = scmp.eq.s32.totalorder %s32, 1
      %p295 = por %p293, %p294
      %p296 = scmp.ne.s32.totalorder %s288, %s291
      %p297 = scmp.eq.s32.totalorder %s32, 0
      %p298 = por %p296, %p297
      %p299 = scmp.ne.s32.totalorder %s288, %s291
      %p300 = scmp.eq.s32.totalorder %s37, 1
      %p301 = por %p299, %p300
      %p302 = scmp.ne.s32.totalorder %s291, %s292
      %p303 = scmp.eq.s32.totalorder %s37, 0
      %p304 = por %p302, %p303
      %p305 = scmp.ne.s32.totalorder %s291, %s292
      %p306 = scmp.eq.s32.totalorder %s38, 1
      %p307 = por %p305, %p306
      %p309 = scmp.ne.s32.totalorder %s292, %s308
      %p310 = scmp.eq.s32.totalorder %s38, 0
      %p311 = por %p309, %p310
      %p312 = scmp.le.s32.totalorder 1, %s32
      %p313 = scmp.lt.s32.totalorder %s32, 3
      %p314 = pnand %p312, %p313
      %p315 = pneg %p314
      // Predicated region
      $region9: #{forward.1} parent=5 // pred_check
        _
      $region10: #{forward.1} parent=5 // pred_check_branch
        %317 = sbr.rel (%p314) target = $region12
      $region11: #{forward.1} parent=5 // pred_region
        %s318 = ssub.s32 %s32, 1
        // Predicated region
        $region13: #{forward.1} parent=11 // pred_check
          %p319 = pneg %p53
        $region14: #{forward.1} parent=11 // pred_check_branch
          %321 = sbr.rel (%p319) target = $region16
        $region15: #{forward.1} parent=11 // pred_region
          %s323 = ssub.s32 16, 16
          %324 = vsyncadd [#allocation6], %s323
          %327 = dma.hbm_to_smem %s0, 16, [#allocation3], [#allocation6]
        $region16: #{forward.1} parent=11 // pred_fallthru
          _
        // Predicated region
        $region17: #{forward.1} parent=11 // pred_check
          %p328 = pneg %p100
        $region18: #{forward.1} parent=11 // pred_check_branch
          %330 = sbr.rel (%p328) target = $region20
        $region19: #{forward.1} parent=11 // pred_region
          %s332 = ssub.s32 64, 64
          %333 = vsyncadd [#allocation9], %s332
          %s335 = sshll.u32 [#allocation8], 4
          %s336 = int_to_ptr.vmem [resolvable:$true] %s335
          %338 = dma.hbm_to_vmem [thread:$0]  %s2, 64, %s336, [#allocation9]
        $region20: #{forward.1} parent=11 // pred_fallthru
          _
        // Predicated region
        $region21: #{forward.1} parent=11 // pred_check
          %p339 = pneg %p121
        $region22: #{forward.1} parent=11 // pred_check_branch
          %341 = sbr.rel (%p339) target = $region24
        $region23: #{forward.1} parent=11 // pred_region
          %s343 = ssub.s32 64, 64
          %344 = vsyncadd [#allocation9], %s343
          %s346 = sshll.u32 [#allocation10], 4
          %s347 = int_to_ptr.vmem [resolvable:$true] %s346
          %349 = dma.hbm_to_vmem [thread:$0]  %s3, 64, %s347, [#allocation9]
        $region24: #{forward.1} parent=11 // pred_fallthru
          _
        // Predicated region
        $region25: #{forward.1} parent=11 // pred_check
          %p350 = pneg %p142
        $region26: #{forward.1} parent=11 // pred_check_branch
          %352 = sbr.rel (%p350) target = $region28
        $region27: #{forward.1} parent=11 // pred_region
          %s354 = ssub.s32 64, 64
          %355 = vsyncadd [#allocation12], %s354
          %s357 = sshll.u32 [#allocation11], 4
          %s358 = int_to_ptr.vmem [resolvable:$true] %s357
          %360 = dma.hbm_to_vmem [thread:$0]  %s4, 64, %s358, [#allocation12]
        $region28: #{forward.1} parent=11 // pred_fallthru
          _
        // Predicated region
        $region29: #{forward.1} parent=11 // pred_check
          %p361 = pneg %p163
        $region30: #{forward.1} parent=11 // pred_check_branch
          %363 = sbr.rel (%p361) target = $region32
        $region31: #{forward.1} parent=11 // pred_region
          %s365 = ssub.s32 64, 64
          %366 = vsyncadd [#allocation12], %s365
          %s368 = sshll.u32 [#allocation13], 4
          %s369 = int_to_ptr.vmem [resolvable:$true] %s368
          %371 = dma.hbm_to_vmem [thread:$0]  %s5, 64, %s369, [#allocation12]
        $region32: #{forward.1} parent=11 // pred_fallthru
          _
        // Predicated region
        $region33: #{forward.1} parent=11 // pred_check
          %p372 = pneg %p184
        $region34: #{forward.1} parent=11 // pred_check_branch
          %374 = sbr.rel (%p372) target = $region36
        $region35: #{forward.1} parent=11 // pred_region
          %s376 = ssub.s32 512, 512
          %377 = vsyncadd [#allocation15], %s376
          %s378 = sshll.u32 [#allocation14], 4
          %s379 = int_to_ptr.vmem [resolvable:$true] %s378
          %384 = dma.hbm_to_vmem [thread:$0]  %s6, 512, %s379, [#allocation15], 128, 128, 8
        $region36: #{forward.1} parent=11 // pred_fallthru
          _
        // Predicated region
        $region37: #{forward.1} parent=11 // pred_check
          %p385 = pneg %p205
        $region38: #{forward.1} parent=11 // pred_check_branch
          %387 = sbr.rel (%p385) target = $region40
        $region39: #{forward.1} parent=11 // pred_region
          %s389 = ssub.s32 512, 512
          %390 = vsyncadd [#allocation15], %s389
          %s391 = sshll.u32 [#allocation16], 4
          %s392 = int_to_ptr.vmem [resolvable:$true] %s391
          %397 = dma.hbm_to_vmem [thread:$0]  %s7, 512, %s392, [#allocation15], 128, 128, 8
        $region40: #{forward.1} parent=11 // pred_fallthru
          _
        // Predicated region
        $region41: #{forward.1} parent=11 // pred_check
          %p398 = pneg %p226
        $region42: #{forward.1} parent=11 // pred_check_branch
          %400 = sbr.rel (%p398) target = $region44
        $region43: #{forward.1} parent=11 // pred_region
          %s402 = ssub.s32 2048, 2048
          %403 = vsyncadd [#allocation18], %s402
          %s404 = sshll.u32 [#allocation17], 4
          %s405 = int_to_ptr.vmem [resolvable:$true] %s404
          %410 = dma.hbm_to_vmem [thread:$0]  %s8, 2048, %s405, [#allocation18], 128, 128, 8
        $region44: #{forward.1} parent=11 // pred_fallthru
          _
      $region12: #{forward.1} parent=5 // pred_fallthru
        _
      %p411 = scmp.lt.s32.totalorder %s32, 2
      // Predicated region
      $region45: #{forward.1} parent=5 // pred_check
        %p412 = pneg %p411
      $region46: #{forward.1} parent=5 // pred_check_branch
        %414 = sbr.rel (%p412) target = $region48
      $region47: #{forward.1} parent=5 // pred_region
        // Predicated region
        $region49: #{forward.1} parent=47 // pred_check
          %p415 = pneg %p73
        $region50: #{forward.1} parent=47 // pred_check_branch
          %417 = sbr.rel (%p415) target = $region52
        $region51: #{forward.1} parent=47 // pred_region
          %s418 = sand.u32 %s63, 1
          %s419 = scalar_lea.sflag [#allocation4], %s418
          %s420 = sand.u32 %s63, 1
          %s421 = smul.addr %s420, 64
          %s422 = scalar_lea.vmem [#allocation7], %s421
          %s424 = ssub.s32 1024, 1024
          %425 = vsyncadd %s419, %s424
          %s426 = smul.addr %s32, 8
          %s427 = smul.addr %s426, 128
          %s428 = scalar_lea.hbm %s1, %s427
          %s429 = sshll.u32 %s422, 4
          %s430 = int_to_ptr.vmem [resolvable:$true] %s429
          %435 = dma.hbm_to_vmem [thread:$0]  %s428, 1024, %s430, %s419, 256, 256, 16
        $region52: #{forward.1} parent=47 // pred_fallthru
          _
      $region48: #{forward.1} parent=5 // pred_fallthru
        _
      %p436 = scmp.le.s32.totalorder 1, %s32
      %p437 = scmp.lt.s32.totalorder %s32, 3
      %p438 = pnand %p436, %p437
      %p439 = pneg %p438
      // Predicated region
      $region53: #{forward.1} parent=5 // pred_check
        _
      $region54: #{forward.1} parent=5 // pred_check_branch
        %441 = sbr.rel (%p438) target = $region56
      $region55: #{forward.1} parent=5 // pred_region
        %s442 = ssub.s32 %s32, 1
        // Predicated region
        $region57: #{forward.1} parent=55 // pred_check
          %p443 = pneg %p53
        $region58: #{forward.1} parent=55 // pred_check_branch
          %445 = sbr.rel (%p443) target = $region60
        $region59: #{forward.1} parent=55 // pred_region
          %446 = dma.done [#allocation6], 16
        $region60: #{forward.1} parent=55 // pred_fallthru
          _
        %s447 = sand.u32 %s66, 1
        %s448 = scalar_lea.sflag [#allocation4], %s447
        %s449 = sand.u32 %s66, 1
        %s450 = smul.addr %s449, 64
        %s451 = scalar_lea.vmem [#allocation7], %s450
        // Predicated region
        $region61: #{forward.1} parent=55 // pred_check
          %p452 = pneg %p79
        $region62: #{forward.1} parent=55 // pred_check_branch
          %454 = sbr.rel (%p452) target = $region64
        $region63: #{forward.1} parent=55 // pred_region
          %455 = dma.done %s448, 1024
        $region64: #{forward.1} parent=55 // pred_fallthru
          _
        // Predicated region
        $region65: #{forward.1} parent=55 // pred_check
          %p456 = pneg %p100
        $region66: #{forward.1} parent=55 // pred_check_branch
          %458 = sbr.rel (%p456) target = $region68
        $region67: #{forward.1} parent=55 // pred_region
          %459 = dma.done [#allocation9], 64
        $region68: #{forward.1} parent=55 // pred_fallthru
          _
        // Predicated region
        $region69: #{forward.1} parent=55 // pred_check
          %p460 = pneg %p121
        $region70: #{forward.1} parent=55 // pred_check_branch
          %462 = sbr.rel (%p460) target = $region72
        $region71: #{forward.1} parent=55 // pred_region
          %463 = dma.done [#allocation9], 64
        $region72: #{forward.1} parent=55 // pred_fallthru
          _
        // Predicated region
        $region73: #{forward.1} parent=55 // pred_check
          %p464 = pneg %p142
        $region74: #{forward.1} parent=55 // pred_check_branch
          %466 = sbr.rel (%p464) target = $region76
        $region75: #{forward.1} parent=55 // pred_region
          %467 = dma.done [#allocation12], 64
        $region76: #{forward.1} parent=55 // pred_fallthru
          _
        // Predicated region
        $region77: #{forward.1} parent=55 // pred_check
          %p468 = pneg %p163
        $region78: #{forward.1} parent=55 // pred_check_branch
          %470 = sbr.rel (%p468) target = $region80
        $region79: #{forward.1} parent=55 // pred_region
          %471 = dma.done [#allocation12], 64
        $region80: #{forward.1} parent=55 // pred_fallthru
          _
        // Predicated region
        $region81: #{forward.1} parent=55 // pred_check
          %p472 = pneg %p184
        $region82: #{forward.1} parent=55 // pred_check_branch
          %474 = sbr.rel (%p472) target = $region84
        $region83: #{forward.1} parent=55 // pred_region
          %475 = dma.done [#allocation15], 512
        $region84: #{forward.1} parent=55 // pred_fallthru
          _
        // Predicated region
        $region85: #{forward.1} parent=55 // pred_check
          %p476 = pneg %p205
        $region86: #{forward.1} parent=55 // pred_check_branch
          %478 = sbr.rel (%p476) target = $region88
        $region87: #{forward.1} parent=55 // pred_region
          %479 = dma.done [#allocation15], 512
        $region88: #{forward.1} parent=55 // pred_fallthru
          _
        // Predicated region
        $region89: #{forward.1} parent=55 // pred_check
          %p480 = pneg %p226
        $region90: #{forward.1} parent=55 // pred_check_branch
          %482 = sbr.rel (%p480) target = $region92
        $region91: #{forward.1} parent=55 // pred_region
          %483 = dma.done [#allocation18], 2048
        $region92: #{forward.1} parent=55 // pred_fallthru
          _
        %484 = sfence
        %p485 = pneg %p53
        %p486 = pneg %p50
        %s487 = sand.u32 %s66, 1
        %s488 = scalar_lea.sflag [#allocation4], %s487
        %s489 = sand.u32 %s66, 1
        %s490 = smul.addr %s489, 64
        %s491 = scalar_lea.vmem [#allocation7], %s490
        %p492 = pneg %p79
        %p493 = pneg %p76
        %p494 = pneg %p100
        %p495 = pneg %p97
        %p496 = pneg %p121
        %p497 = pneg %p118
        %p498 = pneg %p142
        %p499 = pneg %p139
        %p500 = pneg %p163
        %p501 = pneg %p160
        %p502 = pneg %p184
        %p503 = pneg %p181
        %p504 = pneg %p205
        %p505 = pneg %p202
        %p506 = pneg %p226
        %p507 = pneg %p223
        %p508 = pneg %p252
        %p509 = pneg %p249
        %s510 = sand.u32 %s239, 1
        %s511 = scalar_lea.sflag [#allocation5], %s510
        %s512 = sand.u32 %s239, 1
        %s513 = smul.addr %s512, 64
        %s514 = scalar_lea.vmem [#allocation19], %s513
        %p515 = pneg %p278
        %p516 = pneg %p275
        %s517 = sand.u32 %s37, 1
        %s518 = scalar_lea.sflag [#allocation21], %s517
        %s519 = sand.u32 %s265, 1
        %s520 = smul.addr %s519, 64
        %s521 = scalar_lea.vmem [#allocation20], %s520
        %p522 = pneg %p304
        %p523 = pneg %p301
        %s524 = sand.u32 %s37, 1
        %s525 = scalar_lea.sflag [#allocation21], %s524
        %s526 = sand.u32 %s291, 1
        %s527 = smul.addr %s526, 2
        %s528 = scalar_lea.vmem [#allocation22], %s527
        %s530 = sld [smem:[#allocation3]]
        %s531 = sld [smem:[#allocation3 + $0x1]]
        %s532 = sld [smem:[#allocation3 + $0x2]]
        %v533 = vld [vmem:[%s451] sm:$0xff]
        %v534 = vld [vmem:[%s451 + $0x8] sm:$0xff]
        %v535 = vld [vmem:[%s451 + $0x10] sm:$0xff]
        %v536 = vld [vmem:[%s451 + $0x18] sm:$0xff]
        %v537 = vld [vmem:[%s451 + $0x20] sm:$0xff]
        %v538 = vld [vmem:[%s451 + $0x28] sm:$0xff]
        %v539 = vld [vmem:[%s451 + $0x30] sm:$0xff]
        %v540 = vld [vmem:[%s451 + $0x38] sm:$0xff]
        %v541 = vpack.c.bf16 %v535, %v533
        %v542 = vpack.c.bf16 %v536, %v534
        %v543 = vpack.c.bf16 %v539, %v537
        %v544 = vpack.c.bf16 %v540, %v538
        %545 = vmatprep.subr.bf16.mxu0 %v542
        %546 = vmatpush1.bf16.xpose.msra.mxu0 %v541
        %547 = vmatprep.subr.bf16.mxu0 %v544
        %548 = vmatpush1.bf16.xpose.msra.mxu0 %v543
        %549 = vmatprep.subr.bf16.mxu0 0
        %550 = vmatpush1.bf16.xpose.msra.mxu0 0
        %551 = vmatprep.subr.bf16.mxu0 0
        %552 = vmatpush1.bf16.xpose.msra.mxu0 0
        %553 = vmatprep.subr.bf16.mxu0 0
        %554 = vmatpush1.bf16.xpose.msra.mxu0 0
        %555 = vmatprep.subr.bf16.mxu0 0
        %556 = vmatpush1.bf16.xpose.msra.mxu0 0
        %557 = vmatprep.subr.bf16.mxu0 0
        %558 = vmatpush1.bf16.xpose.msra.mxu0 0
        %559 = vmatprep.subr.bf16.mxu0 0
        %560 = vmatpush1.bf16.xpose.msra.mxu0 0
        %561 = vmatprep.subr.bf16.mxu0 0
        %562 = vmatpush1.bf16.xpose.msra.mxu0 0
        %563 = vmatprep.subr.bf16.mxu0 0
        %564 = vmatpush1.bf16.xpose.msra.mxu0 0
        %565 = vmatprep.subr.bf16.mxu0 0
        %566 = vmatpush1.bf16.xpose.msra.mxu0 0
        %567 = vmatprep.subr.bf16.mxu0 0
        %568 = vmatpush1.bf16.xpose.msra.mxu0 0
        %569 = vmatprep.subr.bf16.mxu0 0
        %570 = vmatpush1.bf16.xpose.msra.mxu0 0
        %571 = vmatprep.subr.bf16.mxu0 0
        %572 = vmatpush1.bf16.xpose.msra.mxu0 0
        %573 = vmatprep.subr.bf16.mxu0 0
        %574 = vmatpush1.bf16.xpose.msra.mxu0 0
        %575 = vmatprep.subr.bf16.mxu0 0
        %576 = vmatpush1.bf16.xpose.msra.mxu0 0
        %577 = vmatprep.mubr.bf16.mxu0 %v542
        %578 = vmatmul.mubr.bf16.gmra.mrb[0].mxu0 %v541
        %v579 = vpop.f32.mrb[0].mxu0
        %v580 = vadd.f32 0.0, %v579
        %v581 = vpop.f32.mrb[0].mxu0
        %v582 = vpop.f32.mrb[0].mxu0
        %v583 = vadd.f32 0.0, %v582
        %v584 = vpop.f32.mrb[0].mxu0
        %585 = vmatprep.mubr.bf16.mxu0 %v544
        %586 = vmatmul.mubr.bf16.gmra.mrb[0].mxu0 %v543
        %v587 = vpop.f32.mrb[0].mxu0
        %v588 = vadd.f32 0.0, %v587
        %v589 = vpop.f32.mrb[0].mxu0
        %v590 = vpop.f32.mrb[0].mxu0
        %v591 = vadd.f32 0.0, %v590
        %v592 = vpop.f32.mrb[0].mxu0
        %593 = vdwg.mxu0
        %vm594 = vcmask 261120
        %v595 = vsel %vm594, %v580, -inf
        %596 = vmax.xlane.f32.xlu0 %v595
        %v597 = vpop.xlane.xlu0 %596
        %v598 = vsel %vm594, %v583, -inf
        %599 = vmax.xlane.f32.xlu0 %v598
        %v600 = vpop.xlane.xlu0 %599
        %v601 = vsel %vm594, %v588, -inf
        %602 = vmax.xlane.f32.xlu0 %v601
        %v603 = vpop.xlane.xlu0 %602
        %v604 = vsel %vm594, %v591, -inf
        %605 = vmax.xlane.f32.xlu0 %v604
        %v606 = vpop.xlane.xlu0 %605
        %v607 = vsub.f32 %v580, %v597
        %v608 = vsub.f32 %v583, %v600
        %v609 = vsub.f32 %v588, %v603
        %v610 = vsub.f32 %v591, %v606
        %v611 = vmul.f32 %v607, 1.442695
        %v612 = vpow.pop %v611
        %v613 = vmul.f32 %v608, 1.442695
        %v614 = vpow.pop %v613
        %v615 = vmul.f32 %v609, 1.442695
        %v616 = vpow.pop %v615
        %v617 = vmul.f32 %v610, 1.442695
        %v618 = vpow.pop %v617
        %v619 = vsel %vm594, %v612, 0.0
        %620 = vadd.xlane.f32.xlu0 %v619
        %v621 = vpop.xlane.xlu0 %620
        %v622 = vsel %vm594, %v614, 0.0
        %623 = vadd.xlane.f32.xlu0 %v622
        %v624 = vpop.xlane.xlu0 %623
        %v625 = vsel %vm594, %v616, 0.0
        %626 = vadd.xlane.f32.xlu0 %v625
        %v627 = vpop.xlane.xlu0 %626
        %v628 = vsel %vm594, %v618, 0.0
        %629 = vadd.xlane.f32.xlu0 %v628
        %v630 = vpop.xlane.xlu0 %629
        %v631 = vrcp.pop %v621
        %v632 = vrcp.pop %v624
        %v633 = vrcp.pop %v627
        %v634 = vrcp.pop %v630
        %v635 = vmul.f32 %v612, %v631
        %v636 = vmul.f32 %v614, %v632
        %v637 = vmul.f32 %v616, %v633
        %v638 = vmul.f32 %v618, %v634
        %v639 = vpack.c.bf16 %v636, %v635
        %v640 = vpack.c.bf16 %v638, %v637
        %v642 = vsel %vm594, %v639, 0
        %v645 = vsel %vm594, %v640, 0
        %647 = vmatprep.subr.bf16.mxu0 %v542
        %648 = vmatpush1.bf16.msra.mxu0 %v541
        %649 = vmatprep.subr.bf16.mxu0 %v544
        %650 = vmatpush1.bf16.msra.mxu0 %v543
        %651 = vmatprep.subr.bf16.mxu0 0
        %652 = vmatpush1.bf16.msra.mxu0 0
        %653 = vmatprep.subr.bf16.mxu0 0
        %654 = vmatpush1.bf16.msra.mxu0 0
        %655 = vmatprep.subr.bf16.mxu0 0
        %656 = vmatpush1.bf16.msra.mxu0 0
        %657 = vmatprep.subr.bf16.mxu0 0
        %658 = vmatpush1.bf16.msra.mxu0 0
        %659 = vmatprep.subr.bf16.mxu0 0
        %660 = vmatpush1.bf16.msra.mxu0 0
        %661 = vmatprep.subr.bf16.mxu0 0
        %662 = vmatpush1.bf16.msra.mxu0 0
        %663 = vmatprep.subr.bf16.mxu0 0
        %664 = vmatpush1.bf16.msra.mxu0 0
        %665 = vmatprep.subr.bf16.mxu0 0
        %666 = vmatpush1.bf16.msra.mxu0 0
        %667 = vmatprep.subr.bf16.mxu0 0
        %668 = vmatpush1.bf16.msra.mxu0 0
        %669 = vmatprep.subr.bf16.mxu0 0
        %670 = vmatpush1.bf16.msra.mxu0 0
        %671 = vmatprep.subr.bf16.mxu0 0
        %672 = vmatpush1.bf16.msra.mxu0 0
        %673 = vmatprep.subr.bf16.mxu0 0
        %674 = vmatpush1.bf16.msra.mxu0 0
        %675 = vmatprep.subr.bf16.mxu0 0
        %676 = vmatpush1.bf16.msra.mxu0 0
        %677 = vmatprep.subr.bf16.mxu0 0
        %678 = vmatpush1.bf16.msra.mxu0 0
        %679 = vmatprep.mubr.bf16.mxu0 0
        %680 = vmatmul.mubr.bf16.gmra.mrb[0].mxu0 %v642
        %v681 = vpop.f32.mrb[0].mxu0
        %v682 = vadd.f32 0.0, %v681
        %v683 = vpop.f32.mrb[0].mxu0
        %v684 = vadd.f32 0.0, %v683
        %v685 = vpop.f32.mrb[0].mxu0
        %v686 = vadd.f32 0.0, %v685
        %v687 = vpop.f32.mrb[0].mxu0
        %v688 = vadd.f32 0.0, %v687
        %689 = vmatprep.mubr.bf16.mxu0 0
        %690 = vmatmul.mubr.bf16.gmra.mrb[0].mxu0 %v645
        %v691 = vpop.f32.mrb[0].mxu0
        %v692 = vadd.f32 0.0, %v691
        %v693 = vpop.f32.mrb[0].mxu0
        %v694 = vadd.f32 0.0, %v693
        %v695 = vpop.f32.mrb[0].mxu0
        %v696 = vadd.f32 0.0, %v695
        %v697 = vpop.f32.mrb[0].mxu0
        %v698 = vadd.f32 0.0, %v697
        %699 = vdwg.mxu0
        %v700 = vstv %s530
        %v701 = vmul.f32 %v700, %v682
        %v702 = vmul.f32 %v700, %v684
        %v703 = vmul.f32 %v700, %v686
        %v704 = vmul.f32 %v700, %v688
        %v705 = vmul.f32 %v700, %v692
        %v706 = vmul.f32 %v700, %v694
        %v707 = vmul.f32 %v700, %v696
        %v708 = vmul.f32 %v700, %v698
        %v709 = vadd.f32 %v701, %v533
        %v710 = vadd.f32 %v702, %v534
        %v711 = vadd.f32 %v703, %v535
        %v712 = vadd.f32 %v704, %v536
        %v713 = vadd.f32 %v705, %v537
        %v714 = vadd.f32 %v706, %v538
        %v715 = vadd.f32 %v707, %v539
        %v716 = vadd.f32 %v708, %v540
        %v717 = vpack.c.bf16 %v711, %v709
        %v718 = vpack.c.bf16 %v712, %v710
        %v719 = vpack.c.bf16 %v715, %v713
        %v720 = vpack.c.bf16 %v716, %v714
        %v721 = vld [vmem:[#allocation8] sm:$0xf]
        %v722 = vpack.c.bf16 %v721, %v721
        %v723 = vld [vmem:[#allocation10] sm:$0xf]
        %725 = vset.pattern.permute.xlu0 0
        %726 = vperm.xlu0 %725, %v723
        %v727 = vpop.permute.xlu0 %726
        %v730 = vsel %vm594, %v722, 0
        %732 = vmatprep.subr.bf16.mxu0 %v718
        %733 = vmatpush1.bf16.msra.mxu0 %v717
        %734 = vmatprep.subr.bf16.mxu0 %v720
        %735 = vmatpush1.bf16.msra.mxu0 %v719
        %736 = vmatprep.subr.bf16.mxu0 0
        %737 = vmatpush1.bf16.msra.mxu0 0
        %738 = vmatprep.subr.bf16.mxu0 0
        %739 = vmatpush1.bf16.msra.mxu0 0
        %740 = vmatprep.subr.bf16.mxu0 0
        %741 = vmatpush1.bf16.msra.mxu0 0
        %742 = vmatprep.subr.bf16.mxu0 0
        %743 = vmatpush1.bf16.msra.mxu0 0
        %744 = vmatprep.subr.bf16.mxu0 0
        %745 = vmatpush1.bf16.msra.mxu0 0
        %746 = vmatprep.subr.bf16.mxu0 0
        %747 = vmatpush1.bf16.msra.mxu0 0
        %748 = vmatprep.subr.bf16.mxu0 0
        %749 = vmatpush1.bf16.msra.mxu0 0
        %750 = vmatprep.subr.bf16.mxu0 0
        %751 = vmatpush1.bf16.msra.mxu0 0
        %752 = vmatprep.subr.bf16.mxu0 0
        %753 = vmatpush1.bf16.msra.mxu0 0
        %754 = vmatprep.subr.bf16.mxu0 0
        %755 = vmatpush1.bf16.msra.mxu0 0
        %756 = vmatprep.subr.bf16.mxu0 0
        %757 = vmatpush1.bf16.msra.mxu0 0
        %758 = vmatprep.subr.bf16.mxu0 0
        %759 = vmatpush1.bf16.msra.mxu0 0
        %760 = vmatprep.subr.bf16.mxu0 0
        %761 = vmatpush1.bf16.msra.mxu0 0
        %762 = vmatprep.subr.bf16.mxu0 0
        %763 = vmatpush1.bf16.msra.mxu0 0
        %764 = vmatprep.mubr.bf16.mxu0 0
        %765 = vmatmul.mubr.bf16.gmra.mrb[0].mxu0 %v730
        %v766 = vpop.f32.mrb[0].mxu0
        %v767 = vadd.f32 %v727, %v766
        %v768 = vpop.f32.mrb[0].mxu0
        %v769 = vadd.f32 %v727, %v768
        %v770 = vpop.f32.mrb[0].mxu0
        %v771 = vpop.f32.mrb[0].mxu0
        %772 = vdwg.mxu0
        %v773 = vld [vmem:[#allocation11] sm:$0xf]
        %v774 = vpack.c.bf16 %v773, %v773
        %v775 = vld [vmem:[#allocation13] sm:$0xf]
        %777 = vset.pattern.permute.xlu0 0
        %778 = vperm.xlu0 %777, %v775
        %v779 = vpop.permute.xlu0 %778
        %v782 = vsel %vm594, %v774, 0
        %784 = vmatprep.subr.bf16.mxu0 %v718
        %785 = vmatpush1.bf16.msra.mxu0 %v717
        %786 = vmatprep.subr.bf16.mxu0 %v720
        %787 = vmatpush1.bf16.msra.mxu0 %v719
        %788 = vmatprep.subr.bf16.mxu0 0
        %789 = vmatpush1.bf16.msra.mxu0 0
        %790 = vmatprep.subr.bf16.mxu0 0
        %791 = vmatpush1.bf16.msra.mxu0 0
        %792 = vmatprep.subr.bf16.mxu0 0
        %793 = vmatpush1.bf16.msra.mxu0 0
        %794 = vmatprep.subr.bf16.mxu0 0
        %795 = vmatpush1.bf16.msra.mxu0 0
        %796 = vmatprep.subr.bf16.mxu0 0
        %797 = vmatpush1.bf16.msra.mxu0 0
        %798 = vmatprep.subr.bf16.mxu0 0
        %799 = vmatpush1.bf16.msra.mxu0 0
        %800 = vmatprep.subr.bf16.mxu0 0
        %801 = vmatpush1.bf16.msra.mxu0 0
        %802 = vmatprep.subr.bf16.mxu0 0
        %803 = vmatpush1.bf16.msra.mxu0 0
        %804 = vmatprep.subr.bf16.mxu0 0
        %805 = vmatpush1.bf16.msra.mxu0 0
        %806 = vmatprep.subr.bf16.mxu0 0
        %807 = vmatpush1.bf16.msra.mxu0 0
        %808 = vmatprep.subr.bf16.mxu0 0
        %809 = vmatpush1.bf16.msra.mxu0 0
        %810 = vmatprep.subr.bf16.mxu0 0
        %811 = vmatpush1.bf16.msra.mxu0 0
        %812 = vmatprep.subr.bf16.mxu0 0
        %813 = vmatpush1.bf16.msra.mxu0 0
        %814 = vmatprep.subr.bf16.mxu0 0
        %815 = vmatpush1.bf16.msra.mxu0 0
        %816 = vmatprep.mubr.bf16.mxu0 0
        %817 = vmatmul.mubr.bf16.gmra.mrb[0].mxu0 %v782
        %v818 = vpop.f32.mrb[0].mxu0
        %v819 = vadd.f32 %v779, %v818
        %v820 = vpop.f32.mrb[0].mxu0
        %v821 = vadd.f32 %v779, %v820
        %v822 = vpop.f32.mrb[0].mxu0
        %v823 = vpop.f32.mrb[0].mxu0
        %824 = vdwg.mxu0
        %v825 = vld [vmem:[#allocation14] sm:$0xff]
        %v826 = vld [vmem:[#allocation14 + $0x8] sm:$0xff]
        %v827 = vld [vmem:[#allocation14 + $0x10] sm:$0xff]
        %v828 = vld [vmem:[#allocation14 + $0x18] sm:$0xff]
        %v829 = vpack.c.bf16 %v826, %v825
        %v830 = vpack.c.bf16 %v828, %v827
        %v831 = vld [vmem:[#allocation16] sm:$0xff]
        %v832 = vld [vmem:[#allocation16 + $0x8] sm:$0xff]
        %v833 = vld [vmem:[#allocation16 + $0x10] sm:$0xff]
        %v834 = vld [vmem:[#allocation16 + $0x18] sm:$0xff]
        %836 = vset.pattern.permute.xlu0 0
        %837 = vperm.xlu0 %836, %v831
        %v838 = vpop.permute.xlu0 %837
        %841 = vset.pattern.permute.xlu0 0
        %842 = vperm.xlu0 %841, %v832
        %v843 = vpop.permute.xlu0 %842
        %846 = vset.pattern.permute.xlu0 0
        %847 = vperm.xlu0 %846, %v833
        %v848 = vpop.permute.xlu0 %847
        %851 = vset.pattern.permute.xlu0 0
        %852 = vperm.xlu0 %851, %v834
        %v853 = vpop.permute.xlu0 %852
        %v856 = vsel %vm594, %v829, 0
        %v859 = vsel %vm594, %v830, 0
        %861 = vmatprep.subr.bf16.mxu0 %v718
        %862 = vmatpush1.bf16.msra.mxu0 %v717
        %863 = vmatprep.subr.bf16.mxu0 %v720
        %864 = vmatpush1.bf16.msra.mxu0 %v719
        %865 = vmatprep.subr.bf16.mxu0 0
        %866 = vmatpush1.bf16.msra.mxu0 0
        %867 = vmatprep.subr.bf16.mxu0 0
        %868 = vmatpush1.bf16.msra.mxu0 0
        %869 = vmatprep.subr.bf16.mxu0 0
        %870 = vmatpush1.bf16.msra.mxu0 0
        %871 = vmatprep.subr.bf16.mxu0 0
        %872 = vmatpush1.bf16.msra.mxu0 0
        %873 = vmatprep.subr.bf16.mxu0 0
        %874 = vmatpush1.bf16.msra.mxu0 0
        %875 = vmatprep.subr.bf16.mxu0 0
        %876 = vmatpush1.bf16.msra.mxu0 0
        %877 = vmatprep.subr.bf16.mxu0 0
        %878 = vmatpush1.bf16.msra.mxu0 0
        %879 = vmatprep.subr.bf16.mxu0 0
        %880 = vmatpush1.bf16.msra.mxu0 0
        %881 = vmatprep.subr.bf16.mxu0 0
        %882 = vmatpush1.bf16.msra.mxu0 0
        %883 = vmatprep.subr.bf16.mxu0 0
        %884 = vmatpush1.bf16.msra.mxu0 0
        %885 = vmatprep.subr.bf16.mxu0 0
        %886 = vmatpush1.bf16.msra.mxu0 0
        %887 = vmatprep.subr.bf16.mxu0 0
        %888 = vmatpush1.bf16.msra.mxu0 0
        %889 = vmatprep.subr.bf16.mxu0 0
        %890 = vmatpush1.bf16.msra.mxu0 0
        %891 = vmatprep.subr.bf16.mxu0 0
        %892 = vmatpush1.bf16.msra.mxu0 0
        %893 = vmatprep.mubr.bf16.mxu0 0
        %894 = vmatmul.mubr.bf16.gmra.mrb[0].mxu0 %v856
        %v895 = vpop.f32.mrb[0].mxu0
        %v896 = vadd.f32 %v838, %v895
        %v897 = vpop.f32.mrb[0].mxu0
        %v898 = vadd.f32 %v838, %v897
        %v899 = vpop.f32.mrb[0].mxu0
        %v900 = vadd.f32 %v843, %v899
        %v901 = vpop.f32.mrb[0].mxu0
        %v902 = vadd.f32 %v843, %v901
        %903 = vmatprep.mubr.bf16.mxu0 0
        %904 = vmatmul.mubr.bf16.gmra.mrb[0].mxu0 %v859
        %v905 = vpop.f32.mrb[0].mxu0
        %v906 = vadd.f32 %v848, %v905
        %v907 = vpop.f32.mrb[0].mxu0
        %v908 = vadd.f32 %v848, %v907
        %v909 = vpop.f32.mrb[0].mxu0
        %v910 = vadd.f32 %v853, %v909
        %v911 = vpop.f32.mrb[0].mxu0
        %v912 = vadd.f32 %v853, %v911
        %913 = vdwg.mxu0
        %v914 = vpack.c.bf16 %v767, %v767
        %v915 = vpack.c.bf16 %v769, %v769
        %v916 = vpack.c.bf16 %v819, %v819
        %v917 = vpack.c.bf16 %v821, %v821
        %918 = vxpose.xlu0.c.b16.start [1/8] %v914, 128
        %919 = vxpose.xlu0.c.b16.cont [2/8] 0, 128
        %920 = vxpose.xlu0.c.b16.cont [3/8] 0, 128
        %921 = vxpose.xlu0.c.b16.cont [4/8] 0, 128
        %922 = vxpose.xlu0.c.b16.cont [5/8] 0, 128
        %923 = vxpose.xlu0.c.b16.cont [6/8] 0, 128
        %924 = vxpose.xlu0.c.b16.cont [7/8] 0, 128
        %925 = vxpose.xlu0.c.b16.end [8/8] 0, 128
        %v926 = vpop.trf.xlu0
        %v927 = vpop.trf.xlu0
        %v928 = vpop.trf.xlu0
        %v929 = vpop.trf.xlu0
        %v930 = vpop.trf.xlu0
        %v931 = vpop.trf.xlu0
        %v932 = vpop.trf.xlu0
        %v933 = vpop.trf.xlu0
        %934 = vxpose.xlu0.c.b16.start [1/8] %v915, 128
        %935 = vxpose.xlu0.c.b16.cont [2/8] 0, 128
        %936 = vxpose.xlu0.c.b16.cont [3/8] 0, 128
        %937 = vxpose.xlu0.c.b16.cont [4/8] 0, 128
        %938 = vxpose.xlu0.c.b16.cont [5/8] 0, 128
        %939 = vxpose.xlu0.c.b16.cont [6/8] 0, 128
        %940 = vxpose.xlu0.c.b16.cont [7/8] 0, 128
        %941 = vxpose.xlu0.c.b16.end [8/8] 0, 128
        %v942 = vpop.trf.xlu0
        %v943 = vpop.trf.xlu0
        %v944 = vpop.trf.xlu0
        %v945 = vpop.trf.xlu0
        %v946 = vpop.trf.xlu0
        %v947 = vpop.trf.xlu0
        %v948 = vpop.trf.xlu0
        %v949 = vpop.trf.xlu0
        %vm950 = vcmask 31744
        %v952 = vsel %vm950, %v926, 0
        %v955 = vsel %vm950, %v927, 0
        %v958 = vsel %vm950, %v928, 0
        %v961 = vsel %vm950, %v929, 0
        %v964 = vsel %vm950, %v930, 0
        %v967 = vsel %vm950, %v931, 0
        %v970 = vsel %vm950, %v932, 0
        %v973 = vsel %vm950, %v933, 0
        %v976 = vsel %vm950, %v942, 0
        %v979 = vsel %vm950, %v943, 0
        %v982 = vsel %vm950, %v944, 0
        %v985 = vsel %vm950, %v945, 0
        %v988 = vsel %vm950, %v946, 0
        %v991 = vsel %vm950, %v947, 0
        %v994 = vsel %vm950, %v948, 0
        %v997 = vsel %vm950, %v949, 0
        %vm999 = vcmask 1041408
        %v1001 = vsel %vm999, %v916, 0
        %v1004 = vsel %vm999, %v917, 0
        %1006 = vmatprep.subr.bf16.mxu0 %v1004
        %1007 = vmatpush1.bf16.msra.mxu0 %v1001
        %1008 = vmatprep.subr.bf16.mxu0 0
        %1009 = vmatpush1.bf16.msra.mxu0 0
        %1010 = vmatprep.subr.bf16.mxu0 0
        %1011 = vmatpush1.bf16.msra.mxu0 0
        %1012 = vmatprep.subr.bf16.mxu0 0
        %1013 = vmatpush1.bf16.msra.mxu0 0
        %1014 = vmatprep.subr.bf16.mxu0 0
        %1015 = vmatpush1.bf16.msra.mxu0 0
        %1016 = vmatprep.subr.bf16.mxu0 0
        %1017 = vmatpush1.bf16.msra.mxu0 0
        %1018 = vmatprep.subr.bf16.mxu0 0
        %1019 = vmatpush1.bf16.msra.mxu0 0
        %1020 = vmatprep.subr.bf16.mxu0 0
        %1021 = vmatpush1.bf16.msra.mxu0 0
        %1022 = vmatprep.subr.bf16.mxu0 0
        %1023 = vmatpush1.bf16.msra.mxu0 0
        %1024 = vmatprep.subr.bf16.mxu0 0
        %1025 = vmatpush1.bf16.msra.mxu0 0
        %1026 = vmatprep.subr.bf16.mxu0 0
        %1027 = vmatpush1.bf16.msra.mxu0 0
        %1028 = vmatprep.subr.bf16.mxu0 0
        %1029 = vmatpush1.bf16.msra.mxu0 0
        %1030 = vmatprep.subr.bf16.mxu0 0
        %1031 = vmatpush1.bf16.msra.mxu0 0
        %1032 = vmatprep.subr.bf16.mxu0 0
        %1033 = vmatpush1.bf16.msra.mxu0 0
        %1034 = vmatprep.subr.bf16.mxu0 0
        %1035 = vmatpush1.bf16.msra.mxu0 0
        %1036 = vmatprep.subr.bf16.mxu0 0
        %1037 = vmatpush1.bf16.msra.mxu0 0
        %1038 = vmatprep.mubr.bf16.mxu0 0
        %1039 = vmatmul.mubr.bf16.gmra.mrb[0].mxu0 %v952
        %v1040 = vpop.f32.mrb[0].mxu0
        %v1041 = vadd.f32 0.0, %v1040
        %v1042 = vpop.f32.mrb[0].mxu0
        %v1043 = vadd.f32 0.0, %v1042
        %v1044 = vpop.f32.mrb[0].mxu0
        %v1045 = vadd.f32 0.0, %v1044
        %v1046 = vpop.f32.mrb[0].mxu0
        %v1047 = vadd.f32 0.0, %v1046
        %1048 = vmatprep.mubr.bf16.mxu0 0
        %1049 = vmatmul.mubr.bf16.gmra.mrb[0].mxu0 %v955
        %v1050 = vpop.f32.mrb[0].mxu0
        %v1051 = vadd.f32 0.0, %v1050
        %v1052 = vpop.f32.mrb[0].mxu0
        %v1053 = vadd.f32 0.0, %v1052
        %v1054 = vpop.f32.mrb[0].mxu0
        %v1055 = vadd.f32 0.0, %v1054
        %v1056 = vpop.f32.mrb[0].mxu0
        %v1057 = vadd.f32 0.0, %v1056
        %1058 = vmatprep.mubr.bf16.mxu0 0
        %1059 = vmatmul.mubr.bf16.gmra.mrb[0].mxu0 %v958
        %v1060 = vpop.f32.mrb[0].mxu0
        %v1061 = vadd.f32 0.0, %v1060
        %v1062 = vpop.f32.mrb[0].mxu0
        %v1063 = vadd.f32 0.0, %v1062
        %v1064 = vpop.f32.mrb[0].mxu0
        %v1065 = vadd.f32 0.0, %v1064
        %v1066 = vpop.f32.mrb[0].mxu0
        %v1067 = vadd.f32 0.0, %v1066
        %1068 = vmatprep.mubr.bf16.mxu0 0
        %1069 = vmatmul.mubr.bf16.gmra.mrb[0].mxu0 %v961
        %v1070 = vpop.f32.mrb[0].mxu0
        %v1071 = vadd.f32 0.0, %v1070
        %v1072 = vpop.f32.mrb[0].mxu0
        %v1073 = vadd.f32 0.0, %v1072
        %v1074 = vpop.f32.mrb[0].mxu0
        %v1075 = vadd.f32 0.0, %v1074
        %v1076 = vpop.f32.mrb[0].mxu0
        %v1077 = vadd.f32 0.0, %v1076
        %1078 = vmatprep.mubr.bf16.mxu0 0
        %1079 = vmatmul.mubr.bf16.gmra.mrb[0].mxu0 %v964
        %v1080 = vpop.f32.mrb[0].mxu0
        %v1081 = vadd.f32 0.0, %v1080
        %v1082 = vpop.f32.mrb[0].mxu0
        %v1083 = vadd.f32 0.0, %v1082
        %v1084 = vpop.f32.mrb[0].mxu0
        %v1085 = vadd.f32 0.0, %v1084
        %v1086 = vpop.f32.mrb[0].mxu0
        %v1087 = vadd.f32 0.0, %v1086
        %1088 = vmatprep.mubr.bf16.mxu0 0
        %1089 = vmatmul.mubr.bf16.gmra.mrb[0].mxu0 %v967
        %v1090 = vpop.f32.mrb[0].mxu0
        %v1091 = vadd.f32 0.0, %v1090
        %v1092 = vpop.f32.mrb[0].mxu0
        %v1093 = vadd.f32 0.0, %v1092
        %v1094 = vpop.f32.mrb[0].mxu0
        %v1095 = vadd.f32 0.0, %v1094
        %v1096 = vpop.f32.mrb[0].mxu0
        %v1097 = vadd.f32 0.0, %v1096
        %1098 = vmatprep.mubr.bf16.mxu0 0
        %1099 = vmatmul.mubr.bf16.gmra.mrb[0].mxu0 %v970
        %v1100 = vpop.f32.mrb[0].mxu0
        %v1101 = vadd.f32 0.0, %v1100
        %v1102 = vpop.f32.mrb[0].mxu0
        %v1103 = vadd.f32 0.0, %v1102
        %v1104 = vpop.f32.mrb[0].mxu0
        %v1105 = vadd.f32 0.0, %v1104
        %v1106 = vpop.f32.mrb[0].mxu0
        %v1107 = vadd.f32 0.0, %v1106
        %1108 = vmatprep.mubr.bf16.mxu0 0
        %1109 = vmatmul.mubr.bf16.gmra.mrb[0].mxu0 %v973
        %v1110 = vpop.f32.mrb[0].mxu0
        %v1111 = vadd.f32 0.0, %v1110
        %v1112 = vpop.f32.mrb[0].mxu0
        %v1113 = vadd.f32 0.0, %v1112
        %v1114 = vpop.f32.mrb[0].mxu0
        %v1115 = vadd.f32 0.0, %v1114
        %v1116 = vpop.f32.mrb[0].mxu0
        %v1117 = vadd.f32 0.0, %v1116
        %1118 = vmatprep.mubr.bf16.mxu0 0
        %1119 = vmatmul.mubr.bf16.gmra.mrb[0].mxu0 %v976
        %v1120 = vpop.f32.mrb[0].mxu0
        %v1121 = vadd.f32 0.0, %v1120
        %v1122 = vpop.f32.mrb[0].mxu0
        %v1123 = vadd.f32 0.0, %v1122
        %v1124 = vpop.f32.mrb[0].mxu0
        %v1125 = vadd.f32 0.0, %v1124
        %v1126 = vpop.f32.mrb[0].mxu0
        %v1127 = vadd.f32 0.0, %v1126
        %1128 = vmatprep.mubr.bf16.mxu0 0
        %1129 = vmatmul.mubr.bf16.gmra.mrb[0].mxu0 %v979
        %v1130 = vpop.f32.mrb[0].mxu0
        %v1131 = vadd.f32 0.0, %v1130
        %v1132 = vpop.f32.mrb[0].mxu0
        %v1133 = vadd.f32 0.0, %v1132
        %v1134 = vpop.f32.mrb[0].mxu0
        %v1135 = vadd.f32 0.0, %v1134
        %v1136 = vpop.f32.mrb[0].mxu0
        %v1137 = vadd.f32 0.0, %v1136
        %1138 = vmatprep.mubr.bf16.mxu0 0
        %1139 = vmatmul.mubr.bf16.gmra.mrb[0].mxu0 %v982
        %v1140 = vpop.f32.mrb[0].mxu0
        %v1141 = vadd.f32 0.0, %v1140
        %v1142 = vpop.f32.mrb[0].mxu0
        %v1143 = vadd.f32 0.0, %v1142
        %v1144 = vpop.f32.mrb[0].mxu0
        %v1145 = vadd.f32 0.0, %v1144
        %v1146 = vpop.f32.mrb[0].mxu0
        %v1147 = vadd.f32 0.0, %v1146
        %1148 = vmatprep.mubr.bf16.mxu0 0
        %1149 = vmatmul.mubr.bf16.gmra.mrb[0].mxu0 %v985
        %v1150 = vpop.f32.mrb[0].mxu0
        %v1151 = vadd.f32 0.0, %v1150
        %v1152 = vpop.f32.mrb[0].mxu0
        %v1153 = vadd.f32 0.0, %v1152
        %v1154 = vpop.f32.mrb[0].mxu0
        %v1155 = vadd.f32 0.0, %v1154
        %v1156 = vpop.f32.mrb[0].mxu0
        %v1157 = vadd.f32 0.0, %v1156
        %1158 = vmatprep.mubr.bf16.mxu0 0
        %1159 = vmatmul.mubr.bf16.gmra.mrb[0].mxu0 %v988
        %v1160 = vpop.f32.mrb[0].mxu0
        %v1161 = vadd.f32 0.0, %v1160
        %v1162 = vpop.f32.mrb[0].mxu0
        %v1163 = vadd.f32 0.0, %v1162
        %v1164 = vpop.f32.mrb[0].mxu0
        %v1165 = vadd.f32 0.0, %v1164
        %v1166 = vpop.f32.mrb[0].mxu0
        %v1167 = vadd.f32 0.0, %v1166
        %1168 = vmatprep.mubr.bf16.mxu0 0
        %1169 = vmatmul.mubr.bf16.gmra.mrb[0].mxu0 %v991
        %v1170 = vpop.f32.mrb[0].mxu0
        %v1171 = vadd.f32 0.0, %v1170
        %v1172 = vpop.f32.mrb[0].mxu0
        %v1173 = vadd.f32 0.0, %v1172
        %v1174 = vpop.f32.mrb[0].mxu0
        %v1175 = vadd.f32 0.0, %v1174
        %v1176 = vpop.f32.mrb[0].mxu0
        %v1177 = vadd.f32 0.0, %v1176
        %1178 = vmatprep.mubr.bf16.mxu0 0
        %1179 = vmatmul.mubr.bf16.gmra.mrb[0].mxu0 %v994
        %v1180 = vpop.f32.mrb[0].mxu0
        %v1181 = vadd.f32 0.0, %v1180
        %v1182 = vpop.f32.mrb[0].mxu0
        %v1183 = vadd.f32 0.0, %v1182
        %v1184 = vpop.f32.mrb[0].mxu0
        %v1185 = vadd.f32 0.0, %v1184
        %v1186 = vpop.f32.mrb[0].mxu0
        %v1187 = vadd.f32 0.0, %v1186
        %1188 = vmatprep.mubr.bf16.mxu0 0
        %1189 = vmatmul.mubr.bf16.gmra.mrb[0].mxu0 %v997
        %v1190 = vpop.f32.mrb[0].mxu0
        %v1191 = vadd.f32 0.0, %v1190
        %v1192 = vpop.f32.mrb[0].mxu0
        %v1193 = vadd.f32 0.0, %v1192
        %v1194 = vpop.f32.mrb[0].mxu0
        %v1195 = vadd.f32 0.0, %v1194
        %v1196 = vpop.f32.mrb[0].mxu0
        %v1197 = vadd.f32 0.0, %v1196
        %1198 = vdwg.mxu0
        %v1199 = vmax.f32 %v1041, %v1043
        %1200 = vmax.xlane.f32.xlu0 %v1199
        %v1201 = vpop.xlane.xlu0 %1200
        %v1202 = vmax.f32 %v1045, %v1047
        %1203 = vmax.xlane.f32.xlu0 %v1202
        %v1204 = vpop.xlane.xlu0 %1203
        %v1205 = vmax.f32 %v1051, %v1053
        %1206 = vmax.xlane.f32.xlu0 %v1205
        %v1207 = vpop.xlane.xlu0 %1206
        %v1208 = vmax.f32 %v1055, %v1057
        %1209 = vmax.xlane.f32.xlu0 %v1208
        %v1210 = vpop.xlane.xlu0 %1209
        %v1211 = vmax.f32 %v1061, %v1063
        %1212 = vmax.xlane.f32.xlu0 %v1211
        %v1213 = vpop.xlane.xlu0 %1212
        %v1214 = vmax.f32 %v1065, %v1067
        %1215 = vmax.xlane.f32.xlu0 %v1214
        %v1216 = vpop.xlane.xlu0 %1215
        %v1217 = vmax.f32 %v1071, %v1073
        %1218 = vmax.xlane.f32.xlu0 %v1217
        %v1219 = vpop.xlane.xlu0 %1218
        %v1220 = vmax.f32 %v1075, %v1077
        %1221 = vmax.xlane.f32.xlu0 %v1220
        %v1222 = vpop.xlane.xlu0 %1221
        %v1223 = vmax.f32 %v1081, %v1083
        %1224 = vmax.xlane.f32.xlu0 %v1223
        %v1225 = vpop.xlane.xlu0 %1224
        %v1226 = vmax.f32 %v1085, %v1087
        %1227 = vmax.xlane.f32.xlu0 %v1226
        %v1228 = vpop.xlane.xlu0 %1227
        %v1229 = vmax.f32 %v1091, %v1093
        %1230 = vmax.xlane.f32.xlu0 %v1229
        %v1231 = vpop.xlane.xlu0 %1230
        %v1232 = vmax.f32 %v1095, %v1097
        %1233 = vmax.xlane.f32.xlu0 %v1232
        %v1234 = vpop.xlane.xlu0 %1233
        %v1235 = vmax.f32 %v1101, %v1103
        %1236 = vmax.xlane.f32.xlu0 %v1235
        %v1237 = vpop.xlane.xlu0 %1236
        %v1238 = vmax.f32 %v1105, %v1107
        %1239 = vmax.xlane.f32.xlu0 %v1238
        %v1240 = vpop.xlane.xlu0 %1239
        %v1241 = vmax.f32 %v1111, %v1113
        %1242 = vmax.xlane.f32.xlu0 %v1241
        %v1243 = vpop.xlane.xlu0 %1242
        %v1244 = vmax.f32 %v1115, %v1117
        %1245 = vmax.xlane.f32.xlu0 %v1244
        %v1246 = vpop.xlane.xlu0 %1245
        %v1247 = vmax.f32 %v1121, %v1123
        %1248 = vmax.xlane.f32.xlu0 %v1247
        %v1249 = vpop.xlane.xlu0 %1248
        %v1250 = vmax.f32 %v1125, %v1127
        %1251 = vmax.xlane.f32.xlu0 %v1250
        %v1252 = vpop.xlane.xlu0 %1251
        %v1253 = vmax.f32 %v1131, %v1133
        %1254 = vmax.xlane.f32.xlu0 %v1253
        %v1255 = vpop.xlane.xlu0 %1254
        %v1256 = vmax.f32 %v1135, %v1137
        %1257 = vmax.xlane.f32.xlu0 %v1256
        %v1258 = vpop.xlane.xlu0 %1257
        %v1259 = vmax.f32 %v1141, %v1143
        %1260 = vmax.xlane.f32.xlu0 %v1259
        %v1261 = vpop.xlane.xlu0 %1260
        %v1262 = vmax.f32 %v1145, %v1147
        %1263 = vmax.xlane.f32.xlu0 %v1262
        %v1264 = vpop.xlane.xlu0 %1263
        %v1265 = vmax.f32 %v1151, %v1153
        %1266 = vmax.xlane.f32.xlu0 %v1265
        %v1267 = vpop.xlane.xlu0 %1266
        %v1268 = vmax.f32 %v1155, %v1157
        %1269 = vmax.xlane.f32.xlu0 %v1268
        %v1270 = vpop.xlane.xlu0 %1269
        %v1271 = vmax.f32 %v1161, %v1163
        %1272 = vmax.xlane.f32.xlu0 %v1271
        %v1273 = vpop.xlane.xlu0 %1272
        %v1274 = vmax.f32 %v1165, %v1167
        %1275 = vmax.xlane.f32.xlu0 %v1274
        %v1276 = vpop.xlane.xlu0 %1275
        %v1277 = vmax.f32 %v1171, %v1173
        %1278 = vmax.xlane.f32.xlu0 %v1277
        %v1279 = vpop.xlane.xlu0 %1278
        %v1280 = vmax.f32 %v1175, %v1177
        %1281 = vmax.xlane.f32.xlu0 %v1280
        %v1282 = vpop.xlane.xlu0 %1281
        %v1283 = vmax.f32 %v1181, %v1183
        %1284 = vmax.xlane.f32.xlu0 %v1283
        %v1285 = vpop.xlane.xlu0 %1284
        %v1286 = vmax.f32 %v1185, %v1187
        %1287 = vmax.xlane.f32.xlu0 %v1286
        %v1288 = vpop.xlane.xlu0 %1287
        %v1289 = vmax.f32 %v1191, %v1193
        %1290 = vmax.xlane.f32.xlu0 %v1289
        %v1291 = vpop.xlane.xlu0 %1290
        %v1292 = vmax.f32 %v1195, %v1197
        %1293 = vmax.xlane.f32.xlu0 %v1292
        %v1294 = vpop.xlane.xlu0 %1293
        %v1295 = vsub.f32 %v1041, %v1201
        %v1296 = vsub.f32 %v1043, %v1201
        %v1297 = vsub.f32 %v1045, %v1204
        %v1298 = vsub.f32 %v1047, %v1204
        %v1299 = vsub.f32 %v1051, %v1207
        %v1300 = vsub.f32 %v1053, %v1207
        %v1301 = vsub.f32 %v1055, %v1210
        %v1302 = vsub.f32 %v1057, %v1210
        %v1303 = vsub.f32 %v1061, %v1213
        %v1304 = vsub.f32 %v1063, %v1213
        %v1305 = vsub.f32 %v1065, %v1216
        %v1306 = vsub.f32 %v1067, %v1216
        %v1307 = vsub.f32 %v1071, %v1219
        %v1308 = vsub.f32 %v1073, %v1219
        %v1309 = vsub.f32 %v1075, %v1222
        %v1310 = vsub.f32 %v1077, %v1222
        %v1311 = vsub.f32 %v1081, %v1225
        %v1312 = vsub.f32 %v1083, %v1225
        %v1313 = vsub.f32 %v1085, %v1228
        %v1314 = vsub.f32 %v1087, %v1228
        %v1315 = vsub.f32 %v1091, %v1231
        %v1316 = vsub.f32 %v1093, %v1231
        %v1317 = vsub.f32 %v1095, %v1234
        %v1318 = vsub.f32 %v1097, %v1234
        %v1319 = vsub.f32 %v1101, %v1237
        %v1320 = vsub.f32 %v1103, %v1237
        %v1321 = vsub.f32 %v1105, %v1240
        %v1322 = vsub.f32 %v1107, %v1240
        %v1323 = vsub.f32 %v1111, %v1243
        %v1324 = vsub.f32 %v1113, %v1243
        %v1325 = vsub.f32 %v1115, %v1246
        %v1326 = vsub.f32 %v1117, %v1246
        %v1327 = vsub.f32 %v1121, %v1249
        %v1328 = vsub.f32 %v1123, %v1249
        %v1329 = vsub.f32 %v1125, %v1252
        %v1330 = vsub.f32 %v1127, %v1252
        %v1331 = vsub.f32 %v1131, %v1255
        %v1332 = vsub.f32 %v1133, %v1255
        %v1333 = vsub.f32 %v1135, %v1258
        %v1334 = vsub.f32 %v1137, %v1258
        %v1335 = vsub.f32 %v1141, %v1261
        %v1336 = vsub.f32 %v1143, %v1261
        %v1337 = vsub.f32 %v1145, %v1264
        %v1338 = vsub.f32 %v1147, %v1264
        %v1339 = vsub.f32 %v1151, %v1267
        %v1340 = vsub.f32 %v1153, %v1267
        %v1341 = vsub.f32 %v1155, %v1270
        %v1342 = vsub.f32 %v1157, %v1270
        %v1343 = vsub.f32 %v1161, %v1273
        %v1344 = vsub.f32 %v1163, %v1273
        %v1345 = vsub.f32 %v1165, %v1276
        %v1346 = vsub.f32 %v1167, %v1276
        %v1347 = vsub.f32 %v1171, %v1279
        %v1348 = vsub.f32 %v1173, %v1279
        %v1349 = vsub.f32 %v1175, %v1282
        %v1350 = vsub.f32 %v1177, %v1282
        %v1351 = vsub.f32 %v1181, %v1285
        %v1352 = vsub.f32 %v1183, %v1285
        %v1353 = vsub.f32 %v1185, %v1288
        %v1354 = vsub.f32 %v1187, %v1288
        %v1355 = vsub.f32 %v1191, %v1291
        %v1356 = vsub.f32 %v1193, %v1291
        %v1357 = vsub.f32 %v1195, %v1294
        %v1358 = vsub.f32 %v1197, %v1294
        %v1359 = vmul.f32 %v1295, 1.442695
        %v1360 = vpow.pop %v1359
        %v1361 = vmul.f32 %v1296, 1.442695
        %v1362 = vpow.pop %v1361
        %v1363 = vmul.f32 %v1297, 1.442695
        %v1364 = vpow.pop %v1363
        %v1365 = vmul.f32 %v1298, 1.442695
        %v1366 = vpow.pop %v1365
        %v1367 = vmul.f32 %v1299, 1.442695
        %v1368 = vpow.pop %v1367
        %v1369 = vmul.f32 %v1300, 1.442695
        %v1370 = vpow.pop %v1369
        %v1371 = vmul.f32 %v1301, 1.442695
        %v1372 = vpow.pop %v1371
        %v1373 = vmul.f32 %v1302, 1.442695
        %v1374 = vpow.pop %v1373
        %v1375 = vmul.f32 %v1303, 1.442695
        %v1376 = vpow.pop %v1375
        %v1377 = vmul.f32 %v1304, 1.442695
        %v1378 = vpow.pop %v1377
        %v1379 = vmul.f32 %v1305, 1.442695
        %v1380 = vpow.pop %v1379
        %v1381 = vmul.f32 %v1306, 1.442695
        %v1382 = vpow.pop %v1381
        %v1383 = vmul.f32 %v1307, 1.442695
        %v1384 = vpow.pop %v1383
        %v1385 = vmul.f32 %v1308, 1.442695
        %v1386 = vpow.pop %v1385
        %v1387 = vmul.f32 %v1309, 1.442695
        %v1388 = vpow.pop %v1387
        %v1389 = vmul.f32 %v1310, 1.442695
        %v1390 = vpow.pop %v1389
        %v1391 = vmul.f32 %v1311, 1.442695
        %v1392 = vpow.pop %v1391
        %v1393 = vmul.f32 %v1312, 1.442695
        %v1394 = vpow.pop %v1393
        %v1395 = vmul.f32 %v1313, 1.442695
        %v1396 = vpow.pop %v1395
        %v1397 = vmul.f32 %v1314, 1.442695
        %v1398 = vpow.pop %v1397
        %v1399 = vmul.f32 %v1315, 1.442695
        %v1400 = vpow.pop %v1399
        %v1401 = vmul.f32 %v1316, 1.442695
        %v1402 = vpow.pop %v1401
        %v1403 = vmul.f32 %v1317, 1.442695
        %v1404 = vpow.pop %v1403
        %v1405 = vmul.f32 %v1318, 1.442695
        %v1406 = vpow.pop %v1405
        %v1407 = vmul.f32 %v1319, 1.442695
        %v1408 = vpow.pop %v1407
        %v1409 = vmul.f32 %v1320, 1.442695
        %v1410 = vpow.pop %v1409
        %v1411 = vmul.f32 %v1321, 1.442695
        %v1412 = vpow.pop %v1411
        %v1413 = vmul.f32 %v1322, 1.442695
        %v1414 = vpow.pop %v1413
        %v1415 = vmul.f32 %v1323, 1.442695
        %v1416 = vpow.pop %v1415
        %v1417 = vmul.f32 %v1324, 1.442695
        %v1418 = vpow.pop %v1417
        %v1419 = vmul.f32 %v1325, 1.442695
        %v1420 = vpow.pop %v1419
        %v1421 = vmul.f32 %v1326, 1.442695
        %v1422 = vpow.pop %v1421
        %v1423 = vmul.f32 %v1327, 1.442695
        %v1424 = vpow.pop %v1423
        %v1425 = vmul.f32 %v1328, 1.442695
        %v1426 = vpow.pop %v1425
        %v1427 = vmul.f32 %v1329, 1.442695
        %v1428 = vpow.pop %v1427
        %v1429 = vmul.f32 %v1330, 1.442695
        %v1430 = vpow.pop %v1429
        %v1431 = vmul.f32 %v1331, 1.442695
        %v1432 = vpow.pop %v1431
        %v1433 = vmul.f32 %v1332, 1.442695
        %v1434 = vpow.pop %v1433
        %v1435 = vmul.f32 %v1333, 1.442695
        %v1436 = vpow.pop %v1435
        %v1437 = vmul.f32 %v1334, 1.442695
        %v1438 = vpow.pop %v1437
        %v1439 = vmul.f32 %v1335, 1.442695
        %v1440 = vpow.pop %v1439
        %v1441 = vmul.f32 %v1336, 1.442695
        %v1442 = vpow.pop %v1441
        %v1443 = vmul.f32 %v1337, 1.442695
        %v1444 = vpow.pop %v1443
        %v1445 = vmul.f32 %v1338, 1.442695
        %v1446 = vpow.pop %v1445
        %v1447 = vmul.f32 %v1339, 1.442695
        %v1448 = vpow.pop %v1447
        %v1449 = vmul.f32 %v1340, 1.442695
        %v1450 = vpow.pop %v1449
        %v1451 = vmul.f32 %v1341, 1.442695
        %v1452 = vpow.pop %v1451
        %v1453 = vmul.f32 %v1342, 1.442695
        %v1454 = vpow.pop %v1453
        %v1455 = vmul.f32 %v1343, 1.442695
        %v1456 = vpow.pop %v1455
        %v1457 = vmul.f32 %v1344, 1.442695
        %v1458 = vpow.pop %v1457
        %v1459 = vmul.f32 %v1345, 1.442695
        %v1460 = vpow.pop %v1459
        %v1461 = vmul.f32 %v1346, 1.442695
        %v1462 = vpow.pop %v1461
        %v1463 = vmul.f32 %v1347, 1.442695
        %v1464 = vpow.pop %v1463
        %v1465 = vmul.f32 %v1348, 1.442695
        %v1466 = vpow.pop %v1465
        %v1467 = vmul.f32 %v1349, 1.442695
        %v1468 = vpow.pop %v1467
        %v1469 = vmul.f32 %v1350, 1.442695
        %v1470 = vpow.pop %v1469
        %v1471 = vmul.f32 %v1351, 1.442695
        %v1472 = vpow.pop %v1471
        %v1473 = vmul.f32 %v1352, 1.442695
        %v1474 = vpow.pop %v1473
        %v1475 = vmul.f32 %v1353, 1.442695
        %v1476 = vpow.pop %v1475
        %v1477 = vmul.f32 %v1354, 1.442695
        %v1478 = vpow.pop %v1477
        %v1479 = vmul.f32 %v1355, 1.442695
        %v1480 = vpow.pop %v1479
        %v1481 = vmul.f32 %v1356, 1.442695
        %v1482 = vpow.pop %v1481
        %v1483 = vmul.f32 %v1357, 1.442695
        %v1484 = vpow.pop %v1483
        %v1485 = vmul.f32 %v1358, 1.442695
        %v1486 = vpow.pop %v1485
        %v1487 = vadd.f32 %v1360, %v1362
        %1488 = vadd.xlane.f32.xlu0 %v1487
        %v1489 = vpop.xlane.xlu0 %1488
        %v1490 = vadd.f32 %v1364, %v1366
        %1491 = vadd.xlane.f32.xlu0 %v1490
        %v1492 = vpop.xlane.xlu0 %1491
        %v1493 = vadd.f32 %v1368, %v1370
        %1494 = vadd.xlane.f32.xlu0 %v1493
        %v1495 = vpop.xlane.xlu0 %1494
        %v1496 = vadd.f32 %v1372, %v1374
        %1497 = vadd.xlane.f32.xlu0 %v1496
        %v1498 = vpop.xlane.xlu0 %1497
        %v1499 = vadd.f32 %v1376, %v1378
        %1500 = vadd.xlane.f32.xlu0 %v1499
        %v1501 = vpop.xlane.xlu0 %1500
        %v1502 = vadd.f32 %v1380, %v1382
        %1503 = vadd.xlane.f32.xlu0 %v1502
        %v1504 = vpop.xlane.xlu0 %1503
        %v1505 = vadd.f32 %v1384, %v1386
        %1506 = vadd.xlane.f32.xlu0 %v1505
        %v1507 = vpop.xlane.xlu0 %1506
        %v1508 = vadd.f32 %v1388, %v1390
        %1509 = vadd.xlane.f32.xlu0 %v1508
        %v1510 = vpop.xlane.xlu0 %1509
        %v1511 = vadd.f32 %v1392, %v1394
        %1512 = vadd.xlane.f32.xlu0 %v1511
        %v1513 = vpop.xlane.xlu0 %1512
        %v1514 = vadd.f32 %v1396, %v1398
        %1515 = vadd.xlane.f32.xlu0 %v1514
        %v1516 = vpop.xlane.xlu0 %1515
        %v1517 = vadd.f32 %v1400, %v1402
        %1518 = vadd.xlane.f32.xlu0 %v1517
        %v1519 = vpop.xlane.xlu0 %1518
        %v1520 = vadd.f32 %v1404, %v1406
        %1521 = vadd.xlane.f32.xlu0 %v1520
        %v1522 = vpop.xlane.xlu0 %1521
        %v1523 = vadd.f32 %v1408, %v1410
        %1524 = vadd.xlane.f32.xlu0 %v1523
        %v1525 = vpop.xlane.xlu0 %1524
        %v1526 = vadd.f32 %v1412, %v1414
        %1527 = vadd.xlane.f32.xlu0 %v1526
        %v1528 = vpop.xlane.xlu0 %1527
        %v1529 = vadd.f32 %v1416, %v1418
        %1530 = vadd.xlane.f32.xlu0 %v1529
        %v1531 = vpop.xlane.xlu0 %1530
        %v1532 = vadd.f32 %v1420, %v1422
        %1533 = vadd.xlane.f32.xlu0 %v1532
        %v1534 = vpop.xlane.xlu0 %1533
        %v1535 = vadd.f32 %v1424, %v1426
        %1536 = vadd.xlane.f32.xlu0 %v1535
        %v1537 = vpop.xlane.xlu0 %1536
        %v1538 = vadd.f32 %v1428, %v1430
        %1539 = vadd.xlane.f32.xlu0 %v1538
        %v1540 = vpop.xlane.xlu0 %1539
        %v1541 = vadd.f32 %v1432, %v1434
        %1542 = vadd.xlane.f32.xlu0 %v1541
        %v1543 = vpop.xlane.xlu0 %1542
        %v1544 = vadd.f32 %v1436, %v1438
        %1545 = vadd.xlane.f32.xlu0 %v1544
        %v1546 = vpop.xlane.xlu0 %1545
        %v1547 = vadd.f32 %v1440, %v1442
        %1548 = vadd.xlane.f32.xlu0 %v1547
        %v1549 = vpop.xlane.xlu0 %1548
        %v1550 = vadd.f32 %v1444, %v1446
        %1551 = vadd.xlane.f32.xlu0 %v1550
        %v1552 = vpop.xlane.xlu0 %1551
        %v1553 = vadd.f32 %v1448, %v1450
        %1554 = vadd.xlane.f32.xlu0 %v1553
        %v1555 = vpop.xlane.xlu0 %1554
        %v1556 = vadd.f32 %v1452, %v1454
        %1557 = vadd.xlane.f32.xlu0 %v1556
        %v1558 = vpop.xlane.xlu0 %1557
        %v1559 = vadd.f32 %v1456, %v1458
        %1560 = vadd.xlane.f32.xlu0 %v1559
        %v1561 = vpop.xlane.xlu0 %1560
        %v1562 = vadd.f32 %v1460, %v1462
        %1563 = vadd.xlane.f32.xlu0 %v1562
        %v1564 = vpop.xlane.xlu0 %1563
        %v1565 = vadd.f32 %v1464, %v1466
        %1566 = vadd.xlane.f32.xlu0 %v1565
        %v1567 = vpop.xlane.xlu0 %1566
        %v1568 = vadd.f32 %v1468, %v1470
        %1569 = vadd.xlane.f32.xlu0 %v1568
        %v1570 = vpop.xlane.xlu0 %1569
        %v1571 = vadd.f32 %v1472, %v1474
        %1572 = vadd.xlane.f32.xlu0 %v1571
        %v1573 = vpop.xlane.xlu0 %1572
        %v1574 = vadd.f32 %v1476, %v1478
        %1575 = vadd.xlane.f32.xlu0 %v1574
        %v1576 = vpop.xlane.xlu0 %1575
        %v1577 = vadd.f32 %v1480, %v1482
        %1578 = vadd.xlane.f32.xlu0 %v1577
        %v1579 = vpop.xlane.xlu0 %1578
        %v1580 = vadd.f32 %v1484, %v1486
        %1581 = vadd.xlane.f32.xlu0 %v1580
        %v1582 = vpop.xlane.xlu0 %1581
        %v1583 = vrcp.pop %v1489
        %v1584 = vrcp.pop %v1492
        %v1585 = vrcp.pop %v1495
        %v1586 = vrcp.pop %v1498
        %v1587 = vrcp.pop %v1501
        %v1588 = vrcp.pop %v1504
        %v1589 = vrcp.pop %v1507
        %v1590 = vrcp.pop %v1510
        %v1591 = vrcp.pop %v1513
        %v1592 = vrcp.pop %v1516
        %v1593 = vrcp.pop %v1519
        %v1594 = vrcp.pop %v1522
        %v1595 = vrcp.pop %v1525
        %v1596 = vrcp.pop %v1528
        %v1597 = vrcp.pop %v1531
        %v1598 = vrcp.pop %v1534
        %v1599 = vrcp.pop %v1537
        %v1600 = vrcp.pop %v1540
        %v1601 = vrcp.pop %v1543
        %v1602 = vrcp.pop %v1546
        %v1603 = vrcp.pop %v1549
        %v1604 = vrcp.pop %v1552
        %v1605 = vrcp.pop %v1555
        %v1606 = vrcp.pop %v1558
        %v1607 = vrcp.pop %v1561
        %v1608 = vrcp.pop %v1564
        %v1609 = vrcp.pop %v1567
        %v1610 = vrcp.pop %v1570
        %v1611 = vrcp.pop %v1573
        %v1612 = vrcp.pop %v1576
        %v1613 = vrcp.pop %v1579
        %v1614 = vrcp.pop %v1582
        %v1615 = vmul.f32 %v1360, %v1583
        %v1616 = vmul.f32 %v1362, %v1583
        %v1617 = vmul.f32 %v1364, %v1584
        %v1618 = vmul.f32 %v1366, %v1584
        %v1619 = vmul.f32 %v1368, %v1585
        %v1620 = vmul.f32 %v1370, %v1585
        %v1621 = vmul.f32 %v1372, %v1586
        %v1622 = vmul.f32 %v1374, %v1586
        %v1623 = vmul.f32 %v1376, %v1587
        %v1624 = vmul.f32 %v1378, %v1587
        %v1625 = vmul.f32 %v1380, %v1588
        %v1626 = vmul.f32 %v1382, %v1588
        %v1627 = vmul.f32 %v1384, %v1589
        %v1628 = vmul.f32 %v1386, %v1589
        %v1629 = vmul.f32 %v1388, %v1590
        %v1630 = vmul.f32 %v1390, %v1590
        %v1631 = vmul.f32 %v1392, %v1591
        %v1632 = vmul.f32 %v1394, %v1591
        %v1633 = vmul.f32 %v1396, %v1592
        %v1634 = vmul.f32 %v1398, %v1592
        %v1635 = vmul.f32 %v1400, %v1593
        %v1636 = vmul.f32 %v1402, %v1593
        %v1637 = vmul.f32 %v1404, %v1594
        %v1638 = vmul.f32 %v1406, %v1594
        %v1639 = vmul.f32 %v1408, %v1595
        %v1640 = vmul.f32 %v1410, %v1595
        %v1641 = vmul.f32 %v1412, %v1596
        %v1642 = vmul.f32 %v1414, %v1596
        %v1643 = vmul.f32 %v1416, %v1597
        %v1644 = vmul.f32 %v1418, %v1597
        %v1645 = vmul.f32 %v1420, %v1598
        %v1646 = vmul.f32 %v1422, %v1598
        %v1647 = vmul.f32 %v1424, %v1599
        %v1648 = vmul.f32 %v1426, %v1599
        %v1649 = vmul.f32 %v1428, %v1600
        %v1650 = vmul.f32 %v1430, %v1600
        %v1651 = vmul.f32 %v1432, %v1601
        %v1652 = vmul.f32 %v1434, %v1601
        %v1653 = vmul.f32 %v1436, %v1602
        %v1654 = vmul.f32 %v1438, %v1602
        %v1655 = vmul.f32 %v1440, %v1603
        %v1656 = vmul.f32 %v1442, %v1603
        %v1657 = vmul.f32 %v1444, %v1604
        %v1658 = vmul.f32 %v1446, %v1604
        %v1659 = vmul.f32 %v1448, %v1605
        %v1660 = vmul.f32 %v1450, %v1605
        %v1661 = vmul.f32 %v1452, %v1606
        %v1662 = vmul.f32 %v1454, %v1606
        %v1663 = vmul.f32 %v1456, %v1607
        %v1664 = vmul.f32 %v1458, %v1607
        %v1665 = vmul.f32 %v1460, %v1608
        %v1666 = vmul.f32 %v1462, %v1608
        %v1667 = vmul.f32 %v1464, %v1609
        %v1668 = vmul.f32 %v1466, %v1609
        %v1669 = vmul.f32 %v1468, %v1610
        %v1670 = vmul.f32 %v1470, %v1610
        %v1671 = vmul.f32 %v1472, %v1611
        %v1672 = vmul.f32 %v1474, %v1611
        %v1673 = vmul.f32 %v1476, %v1612
        %v1674 = vmul.f32 %v1478, %v1612
        %v1675 = vmul.f32 %v1480, %v1613
        %v1676 = vmul.f32 %v1482, %v1613
        %v1677 = vmul.f32 %v1484, %v1614
        %v1678 = vmul.f32 %v1486, %v1614
        %v1679 = vpack.c.bf16 %v900, %v896
        %v1680 = vpack.c.bf16 %v902, %v898
        %v1681 = vpack.c.bf16 %v910, %v906
        %v1682 = vpack.c.bf16 %v912, %v908
        %v1683 = vpack.c.bf16 %v1617, %v1615
        %v1684 = vpack.c.bf16 %v1618, %v1616
        %v1685 = vpack.c.bf16 %v1621, %v1619
        %v1686 = vpack.c.bf16 %v1622, %v1620
        %v1687 = vpack.c.bf16 %v1625, %v1623
        %v1688 = vpack.c.bf16 %v1626, %v1624
        %v1689 = vpack.c.bf16 %v1629, %v1627
        %v1690 = vpack.c.bf16 %v1630, %v1628
        %v1691 = vpack.c.bf16 %v1633, %v1631
        %v1692 = vpack.c.bf16 %v1634, %v1632
        %v1693 = vpack.c.bf16 %v1637, %v1635
        %v1694 = vpack.c.bf16 %v1638, %v1636
        %v1695 = vpack.c.bf16 %v1641, %v1639
        %v1696 = vpack.c.bf16 %v1642, %v1640
        %v1697 = vpack.c.bf16 %v1645, %v1643
        %v1698 = vpack.c.bf16 %v1646, %v1644
        %v1699 = vpack.c.bf16 %v1649, %v1647
        %v1700 = vpack.c.bf16 %v1650, %v1648
        %v1701 = vpack.c.bf16 %v1653, %v1651
        %v1702 = vpack.c.bf16 %v1654, %v1652
        %v1703 = vpack.c.bf16 %v1657, %v1655
        %v1704 = vpack.c.bf16 %v1658, %v1656
        %v1705 = vpack.c.bf16 %v1661, %v1659
        %v1706 = vpack.c.bf16 %v1662, %v1660
        %v1707 = vpack.c.bf16 %v1665, %v1663
        %v1708 = vpack.c.bf16 %v1666, %v1664
        %v1709 = vpack.c.bf16 %v1669, %v1667
        %v1710 = vpack.c.bf16 %v1670, %v1668
        %v1711 = vpack.c.bf16 %v1673, %v1671
        %v1712 = vpack.c.bf16 %v1674, %v1672
        %v1713 = vpack.c.bf16 %v1677, %v1675
        %v1714 = vpack.c.bf16 %v1678, %v1676
        %1715 = vmatprep.subr.bf16.mxu0 %v1684
        %1716 = vmatpush1.bf16.xpose.msra.mxu0 %v1683
        %1717 = vmatprep.subr.bf16.mxu0 %v1686
        %1718 = vmatpush1.bf16.xpose.msra.mxu0 %v1685
        %1719 = vmatprep.subr.bf16.mxu0 %v1688
        %1720 = vmatpush1.bf16.xpose.msra.mxu0 %v1687
        %1721 = vmatprep.subr.bf16.mxu0 %v1690
        %1722 = vmatpush1.bf16.xpose.msra.mxu0 %v1689
        %1723 = vmatprep.subr.bf16.mxu0 %v1692
        %1724 = vmatpush1.bf16.xpose.msra.mxu0 %v1691
        %1725 = vmatprep.subr.bf16.mxu0 %v1694
        %1726 = vmatpush1.bf16.xpose.msra.mxu0 %v1693
        %1727 = vmatprep.subr.bf16.mxu0 %v1696
        %1728 = vmatpush1.bf16.xpose.msra.mxu0 %v1695
        %1729 = vmatprep.subr.bf16.mxu0 %v1698
        %1730 = vmatpush1.bf16.xpose.msra.mxu0 %v1697
        %1731 = vmatprep.subr.bf16.mxu0 %v1700
        %1732 = vmatpush1.bf16.xpose.msra.mxu0 %v1699
        %1733 = vmatprep.subr.bf16.mxu0 %v1702
        %1734 = vmatpush1.bf16.xpose.msra.mxu0 %v1701
        %1735 = vmatprep.subr.bf16.mxu0 %v1704
        %1736 = vmatpush1.bf16.xpose.msra.mxu0 %v1703
        %1737 = vmatprep.subr.bf16.mxu0 %v1706
        %1738 = vmatpush1.bf16.xpose.msra.mxu0 %v1705
        %1739 = vmatprep.subr.bf16.mxu0 %v1708
        %1740 = vmatpush1.bf16.xpose.msra.mxu0 %v1707
        %1741 = vmatprep.subr.bf16.mxu0 %v1710
        %1742 = vmatpush1.bf16.xpose.msra.mxu0 %v1709
        %1743 = vmatprep.subr.bf16.mxu0 %v1712
        %1744 = vmatpush1.bf16.xpose.msra.mxu0 %v1711
        %1745 = vmatprep.subr.bf16.mxu0 %v1714
        %1746 = vmatpush1.bf16.xpose.msra.mxu0 %v1713
        %1747 = vmatprep.mubr.bf16.mxu0 %v1680
        %1748 = vmatmul.mubr.bf16.gmra.mrb[0].mxu0 %v1679
        %v1749 = vpop.f32.mrb[0].mxu0
        %v1750 = vadd.f32 0.0, %v1749
        %v1751 = vpop.f32.mrb[0].mxu0
        %v1752 = vadd.f32 0.0, %v1751
        %v1753 = vpop.f32.mrb[0].mxu0
        %v1754 = vadd.f32 0.0, %v1753
        %v1755 = vpop.f32.mrb[0].mxu0
        %v1756 = vadd.f32 0.0, %v1755
        %1757 = vmatprep.mubr.bf16.mxu0 %v1682
        %1758 = vmatmul.mubr.bf16.gmra.mrb[0].mxu0 %v1681
        %v1759 = vpop.f32.mrb[0].mxu0
        %v1760 = vadd.f32 0.0, %v1759
        %v1761 = vpop.f32.mrb[0].mxu0
        %v1762 = vadd.f32 0.0, %v1761
        %v1763 = vpop.f32.mrb[0].mxu0
        %v1764 = vadd.f32 0.0, %v1763
        %v1765 = vpop.f32.mrb[0].mxu0
        %v1766 = vadd.f32 0.0, %v1765
        %1767 = vdwg.mxu0
        %v1768 = vstv %s531
        %v1769 = vmul.f32 %v1768, %v1750
        %v1770 = vmul.f32 %v1768, %v1752
        %v1771 = vmul.f32 %v1768, %v1754
        %v1772 = vmul.f32 %v1768, %v1756
        %v1773 = vmul.f32 %v1768, %v1760
        %v1774 = vmul.f32 %v1768, %v1762
        %v1775 = vmul.f32 %v1768, %v1764
        %v1776 = vmul.f32 %v1768, %v1766
        %v1777 = vadd.f32 %v1769, %v709
        %v1778 = vadd.f32 %v1770, %v710
        %v1779 = vadd.f32 %v1771, %v711
        %v1780 = vadd.f32 %v1772, %v712
        %v1781 = vadd.f32 %v1773, %v713
        %v1782 = vadd.f32 %v1774, %v714
        %v1783 = vadd.f32 %v1775, %v715
        %v1784 = vadd.f32 %v1776, %v716
        %1785 = vst [vmem:[%s514] sm:$0xff] %v1777
        %1786 = vst [vmem:[%s514 + $0x8] sm:$0xff] %v1778
        %1787 = vst [vmem:[%s514 + $0x10] sm:$0xff] %v1779
        %1788 = vst [vmem:[%s514 + $0x18] sm:$0xff] %v1780
        %1789 = vst [vmem:[%s514 + $0x20] sm:$0xff] %v1781
        %1790 = vst [vmem:[%s514 + $0x28] sm:$0xff] %v1782
        %1791 = vst [vmem:[%s514 + $0x30] sm:$0xff] %v1783
        %1792 = vst [vmem:[%s514 + $0x38] sm:$0xff] %v1784
        %v1793 = vld [vmem:[#allocation17] sm:$0xff]
        %v1794 = vld [vmem:[#allocation17 + $0x8] sm:$0xff]
        %v1795 = vld [vmem:[#allocation17 + $0x10] sm:$0xff]
        %v1796 = vld [vmem:[#allocation17 + $0x18] sm:$0xff]
        %v1797 = vld [vmem:[#allocation17 + $0x20] sm:$0xff]
        %v1798 = vld [vmem:[#allocation17 + $0x28] sm:$0xff]
        %v1799 = vld [vmem:[#allocation17 + $0x30] sm:$0xff]
        %v1800 = vld [vmem:[#allocation17 + $0x38] sm:$0xff]
        %v1801 = vld [vmem:[#allocation17 + $0x40] sm:$0xff]
        %v1802 = vld [vmem:[#allocation17 + $0x48] sm:$0xff]
        %v1803 = vld [vmem:[#allocation17 + $0x50] sm:$0xff]
        %v1804 = vld [vmem:[#allocation17 + $0x58] sm:$0xff]
        %v1805 = vld [vmem:[#allocation17 + $0x60] sm:$0xff]
        %v1806 = vld [vmem:[#allocation17 + $0x68] sm:$0xff]
        %v1807 = vld [vmem:[#allocation17 + $0x70] sm:$0xff]
        %v1808 = vld [vmem:[#allocation17 + $0x78] sm:$0x1]
        %v1809 = vpack.c.bf16 %v1794, %v1793
        %v1810 = vpack.c.bf16 %v1796, %v1795
        %v1811 = vpack.c.bf16 %v1798, %v1797
        %v1812 = vpack.c.bf16 %v1800, %v1799
        %v1813 = vpack.c.bf16 %v1802, %v1801
        %v1814 = vpack.c.bf16 %v1804, %v1803
        %v1815 = vpack.c.bf16 %v1806, %v1805
        %v1816 = vpack.c.bf16 %v1808, %v1807
        %v1817 = vpack.c.bf16 %v1779, %v1777
        %v1818 = vpack.c.bf16 %v1780, %v1778
        %v1819 = vpack.c.bf16 %v1783, %v1781
        %v1820 = vpack.c.bf16 %v1784, %v1782
        %v1822 = vsel %vm594, %v1809, 0
        %v1825 = vsel %vm594, %v1810, 0
        %v1828 = vsel %vm594, %v1811, 0
        %v1831 = vsel %vm594, %v1812, 0
        %v1834 = vsel %vm594, %v1813, 0
        %v1837 = vsel %vm594, %v1814, 0
        %v1840 = vsel %vm594, %v1815, 0
        %v1843 = vsel %vm594, %v1816, 0
        %1845 = vmatprep.subr.bf16.mxu0 %v1818
        %1846 = vmatpush1.bf16.msra.mxu0 %v1817
        %1847 = vmatprep.subr.bf16.mxu0 %v1820
        %1848 = vmatpush1.bf16.msra.mxu0 %v1819
        %1849 = vmatprep.subr.bf16.mxu0 0
        %1850 = vmatpush1.bf16.msra.mxu0 0
        %1851 = vmatprep.subr.bf16.mxu0 0
        %1852 = vmatpush1.bf16.msra.mxu0 0
        %1853 = vmatprep.subr.bf16.mxu0 0
        %1854 = vmatpush1.bf16.msra.mxu0 0
        %1855 = vmatprep.subr.bf16.mxu0 0
        %1856 = vmatpush1.bf16.msra.mxu0 0
        %1857 = vmatprep.subr.bf16.mxu0 0
        %1858 = vmatpush1.bf16.msra.mxu0 0
        %1859 = vmatprep.subr.bf16.mxu0 0
        %1860 = vmatpush1.bf16.msra.mxu0 0
        %1861 = vmatprep.subr.bf16.mxu0 0
        %1862 = vmatpush1.bf16.msra.mxu0 0
        %1863 = vmatprep.subr.bf16.mxu0 0
        %1864 = vmatpush1.bf16.msra.mxu0 0
        %1865 = vmatprep.subr.bf16.mxu0 0
        %1866 = vmatpush1.bf16.msra.mxu0 0
        %1867 = vmatprep.subr.bf16.mxu0 0
        %1868 = vmatpush1.bf16.msra.mxu0 0
        %1869 = vmatprep.subr.bf16.mxu0 0
        %1870 = vmatpush1.bf16.msra.mxu0 0
        %1871 = vmatprep.subr.bf16.mxu0 0
        %1872 = vmatpush1.bf16.msra.mxu0 0
        %1873 = vmatprep.subr.bf16.mxu0 0
        %1874 = vmatpush1.bf16.msra.mxu0 0
        %1875 = vmatprep.subr.bf16.mxu0 0
        %1876 = vmatpush1.bf16.msra.mxu0 0
        %1877 = vmatprep.mubr.bf16.mxu0 0
        %1878 = vmatmul.mubr.bf16.gmra.mrb[0].mxu0 %v1822
        %v1879 = vpop.f32.mrb[0].mxu0
        %v1880 = vadd.f32 0.0, %v1879
        %v1881 = vpop.f32.mrb[0].mxu0
        %v1882 = vadd.f32 0.0, %v1881
        %v1883 = vpop.f32.mrb[0].mxu0
        %v1884 = vadd.f32 0.0, %v1883
        %v1885 = vpop.f32.mrb[0].mxu0
        %v1886 = vadd.f32 0.0, %v1885
        %1887 = vmatprep.mubr.bf16.mxu0 0
        %1888 = vmatmul.mubr.bf16.gmra.mrb[0].mxu0 %v1825
        %v1889 = vpop.f32.mrb[0].mxu0
        %v1890 = vadd.f32 0.0, %v1889
        %v1891 = vpop.f32.mrb[0].mxu0
        %v1892 = vadd.f32 0.0, %v1891
        %v1893 = vpop.f32.mrb[0].mxu0
        %v1894 = vadd.f32 0.0, %v1893
        %v1895 = vpop.f32.mrb[0].mxu0
        %v1896 = vadd.f32 0.0, %v1895
        %1897 = vmatprep.mubr.bf16.mxu0 0
        %1898 = vmatmul.mubr.bf16.gmra.mrb[0].mxu0 %v1828
        %v1899 = vpop.f32.mrb[0].mxu0
        %v1900 = vadd.f32 0.0, %v1899
        %v1901 = vpop.f32.mrb[0].mxu0
        %v1902 = vadd.f32 0.0, %v1901
        %v1903 = vpop.f32.mrb[0].mxu0
        %v1904 = vadd.f32 0.0, %v1903
        %v1905 = vpop.f32.mrb[0].mxu0
        %v1906 = vadd.f32 0.0, %v1905
        %1907 = vmatprep.mubr.bf16.mxu0 0
        %1908 = vmatmul.mubr.bf16.gmra.mrb[0].mxu0 %v1831
        %v1909 = vpop.f32.mrb[0].mxu0
        %v1910 = vadd.f32 0.0, %v1909
        %v1911 = vpop.f32.mrb[0].mxu0
        %v1912 = vadd.f32 0.0, %v1911
        %v1913 = vpop.f32.mrb[0].mxu0
        %v1914 = vadd.f32 0.0, %v1913
        %v1915 = vpop.f32.mrb[0].mxu0
        %v1916 = vadd.f32 0.0, %v1915
        %1917 = vmatprep.mubr.bf16.mxu0 0
        %1918 = vmatmul.mubr.bf16.gmra.mrb[0].mxu0 %v1834
        %v1919 = vpop.f32.mrb[0].mxu0
        %v1920 = vadd.f32 0.0, %v1919
        %v1921 = vpop.f32.mrb[0].mxu0
        %v1922 = vadd.f32 0.0, %v1921
        %v1923 = vpop.f32.mrb[0].mxu0
        %v1924 = vadd.f32 0.0, %v1923
        %v1925 = vpop.f32.mrb[0].mxu0
        %v1926 = vadd.f32 0.0, %v1925
        %1927 = vmatprep.mubr.bf16.mxu0 0
        %1928 = vmatmul.mubr.bf16.gmra.mrb[0].mxu0 %v1837
        %v1929 = vpop.f32.mrb[0].mxu0
        %v1930 = vadd.f32 0.0, %v1929
        %v1931 = vpop.f32.mrb[0].mxu0
        %v1932 = vadd.f32 0.0, %v1931
        %v1933 = vpop.f32.mrb[0].mxu0
        %v1934 = vadd.f32 0.0, %v1933
        %v1935 = vpop.f32.mrb[0].mxu0
        %v1936 = vadd.f32 0.0, %v1935
        %1937 = vmatprep.mubr.bf16.mxu0 0
        %1938 = vmatmul.mubr.bf16.gmra.mrb[0].mxu0 %v1840
        %v1939 = vpop.f32.mrb[0].mxu0
        %v1940 = vadd.f32 0.0, %v1939
        %v1941 = vpop.f32.mrb[0].mxu0
        %v1942 = vadd.f32 0.0, %v1941
        %v1943 = vpop.f32.mrb[0].mxu0
        %v1944 = vadd.f32 0.0, %v1943
        %v1945 = vpop.f32.mrb[0].mxu0
        %v1946 = vadd.f32 0.0, %v1945
        %1947 = vmatprep.mubr.bf16.mxu0 0
        %1948 = vmatmul.mubr.bf16.gmra.mrb[0].mxu0 %v1843
        %v1949 = vpop.f32.mrb[0].mxu0
        %v1950 = vadd.f32 0.0, %v1949
        %v1951 = vpop.f32.mrb[0].mxu0
        %v1952 = vadd.f32 0.0, %v1951
        %v1953 = vpop.f32.mrb[0].mxu0
        %v1954 = vadd.f32 0.0, %v1953
        %v1955 = vpop.f32.mrb[0].mxu0
        %v1956 = vadd.f32 0.0, %v1955
        %1957 = vdwg.mxu0
        %1958 = vst [vmem:[#allocation2] sm:$0xff] 0.0
        %1959 = vst [vmem:[#allocation2 + $0x8] sm:$0xff] 0.0
        %1960 = vst [vmem:[#allocation2 + $0x10] sm:$0xff] 0.0
        %1961 = vst [vmem:[#allocation2 + $0x18] sm:$0xff] 0.0
        %1962 = vst [vmem:[#allocation2 + $0x20] sm:$0xff] 0.0
        %1963 = vst [vmem:[#allocation2 + $0x28] sm:$0xff] 0.0
        %1964 = vst [vmem:[#allocation2 + $0x30] sm:$0xff] 0.0
        %1965 = vst [vmem:[#allocation2 + $0x38] sm:$0xff] 0.0
        %1966 = vst [vmem:[#allocation2 + $0x40] sm:$0xff] 0.0
        %1967 = vst [vmem:[#allocation2 + $0x48] sm:$0xff] 0.0
        %1968 = vst [vmem:[#allocation2 + $0x50] sm:$0xff] 0.0
        %1969 = vst [vmem:[#allocation2 + $0x58] sm:$0xff] 0.0
        %1970 = vst [vmem:[#allocation2 + $0x60] sm:$0xff] 0.0
        %1971 = vst [vmem:[#allocation2 + $0x68] sm:$0xff] 0.0
        %1972 = vst [vmem:[#allocation2 + $0x70] sm:$0xff] 0.0
        %1973 = vst [vmem:[#allocation2 + $0x78] sm:$0xff] 0.0
        %1974 = vst [vmem:[#allocation2 + $0x80] sm:$0xff] 0.0
        %1975 = vst [vmem:[#allocation2 + $0x88] sm:$0xff] 0.0
        %1976 = vst [vmem:[#allocation2 + $0x90] sm:$0xff] 0.0
        %1977 = vst [vmem:[#allocation2 + $0x98] sm:$0xff] 0.0
        %1978 = vst [vmem:[#allocation2 + $0xa0] sm:$0xff] 0.0
        %1979 = vst [vmem:[#allocation2 + $0xa8] sm:$0xff] 0.0
        %1980 = vst [vmem:[#allocation2 + $0xb0] sm:$0xff] 0.0
        %1981 = vst [vmem:[#allocation2 + $0xb8] sm:$0xff] 0.0
        %1982 = vst [vmem:[#allocation2 + $0xc0] sm:$0xff] 0.0
        %1983 = vst [vmem:[#allocation2 + $0xc8] sm:$0xff] 0.0
        %1984 = vst [vmem:[#allocation2 + $0xd0] sm:$0xff] 0.0
        %1985 = vst [vmem:[#allocation2 + $0xd8] sm:$0xff] 0.0
        %1986 = vst [vmem:[#allocation2 + $0xe0] sm:$0xff] 0.0
        %1987 = vst [vmem:[#allocation2 + $0xe8] sm:$0xff] 0.0
        %1988 = vst [vmem:[#allocation2 + $0xf0] sm:$0xff] 0.0
        %1989 = vst [vmem:[#allocation2 + $0xf8] sm:$0xff] 0.0
        %1990 = vst [vmem:[#allocation2 + $0x100] sm:$0xff] 0.0
        %1991 = vst [vmem:[#allocation2 + $0x108] sm:$0xff] 0.0
        %1992 = vst [vmem:[#allocation2 + $0x110] sm:$0xff] 0.0
        %1993 = vst [vmem:[#allocation2 + $0x118] sm:$0xff] 0.0
        %1994 = vst [vmem:[#allocation2 + $0x120] sm:$0xff] 0.0
        %1995 = vst [vmem:[#allocation2 + $0x128] sm:$0xff] 0.0
        %1996 = vst [vmem:[#allocation2 + $0x130] sm:$0xff] 0.0
        %1997 = vst [vmem:[#allocation2 + $0x138] sm:$0xff] 0.0
        %1998 = vst [vmem:[#allocation2 + $0x140] sm:$0xff] 0.0
        %1999 = vst [vmem:[#allocation2 + $0x148] sm:$0xff] 0.0
        %2000 = vst [vmem:[#allocation2 + $0x150] sm:$0xff] 0.0
        %2001 = vst [vmem:[#allocation2 + $0x158] sm:$0xff] 0.0
        %2002 = vst [vmem:[#allocation2 + $0x160] sm:$0xff] 0.0
        %2003 = vst [vmem:[#allocation2 + $0x168] sm:$0xff] 0.0
        %2004 = vst [vmem:[#allocation2 + $0x170] sm:$0xff] 0.0
        %2005 = vst [vmem:[#allocation2 + $0x178] sm:$0xff] 0.0
        %2006 = vst [vmem:[#allocation2 + $0x180] sm:$0xff] 0.0
        %2007 = vst [vmem:[#allocation2 + $0x188] sm:$0xff] 0.0
        %2008 = vst [vmem:[#allocation2 + $0x190] sm:$0xff] 0.0
        %2009 = vst [vmem:[#allocation2 + $0x198] sm:$0xff] 0.0
        %2010 = vst [vmem:[#allocation2 + $0x1a0] sm:$0xff] 0.0
        %2011 = vst [vmem:[#allocation2 + $0x1a8] sm:$0xff] 0.0
        %2012 = vst [vmem:[#allocation2 + $0x1b0] sm:$0xff] 0.0
        %2013 = vst [vmem:[#allocation2 + $0x1b8] sm:$0xff] 0.0
        %2014 = vst [vmem:[#allocation2 + $0x1c0] sm:$0xff] 0.0
        %2015 = vst [vmem:[#allocation2 + $0x1c8] sm:$0xff] 0.0
        %2016 = vst [vmem:[#allocation2 + $0x1d0] sm:$0xff] 0.0
        %2017 = vst [vmem:[#allocation2 + $0x1d8] sm:$0xff] 0.0
        %2018 = vst [vmem:[#allocation2 + $0x1e0] sm:$0x1] 0.0
        %2019 = vst [vmem:[#allocation2 + $0x1e8] sm:$0x1] 0.0
        %2020 = vst [vmem:[#allocation2 + $0x1f0] sm:$0x1] 0.0
        %2021 = vst [vmem:[#allocation2 + $0x1f8] sm:$0x1] 0.0
        %2022 = vst [vmem:[#allocation2 + $0x8] sm:$0xff] %v1880
        %2023 = vst [vmem:[#allocation2 + $0x10] sm:$0xff] %v1882
        %2024 = vst [vmem:[#allocation2 + $0x28] sm:$0xff] %v1884
        %2025 = vst [vmem:[#allocation2 + $0x30] sm:$0xff] %v1886
        %2026 = vst [vmem:[#allocation2 + $0x48] sm:$0xff] %v1890
        %2027 = vst [vmem:[#allocation2 + $0x50] sm:$0xff] %v1892
        %2028 = vst [vmem:[#allocation2 + $0x68] sm:$0xff] %v1894
        %2029 = vst [vmem:[#allocation2 + $0x70] sm:$0xff] %v1896
        %2030 = vst [vmem:[#allocation2 + $0x88] sm:$0xff] %v1900
        %2031 = vst [vmem:[#allocation2 + $0x90] sm:$0xff] %v1902
        %2032 = vst [vmem:[#allocation2 + $0xa8] sm:$0xff] %v1904
        %2033 = vst [vmem:[#allocation2 + $0xb0] sm:$0xff] %v1906
        %2034 = vst [vmem:[#allocation2 + $0xc8] sm:$0xff] %v1910
        %2035 = vst [vmem:[#allocation2 + $0xd0] sm:$0xff] %v1912
        %2036 = vst [vmem:[#allocation2 + $0xe8] sm:$0xff] %v1914
        %2037 = vst [vmem:[#allocation2 + $0xf0] sm:$0xff] %v1916
        %2038 = vst [vmem:[#allocation2 + $0x108] sm:$0xff] %v1920
        %2039 = vst [vmem:[#allocation2 + $0x110] sm:$0xff] %v1922
        %2040 = vst [vmem:[#allocation2 + $0x128] sm:$0xff] %v1924
        %2041 = vst [vmem:[#allocation2 + $0x130] sm:$0xff] %v1926
        %2042 = vst [vmem:[#allocation2 + $0x148] sm:$0xff] %v1930
        %2043 = vst [vmem:[#allocation2 + $0x150] sm:$0xff] %v1932
        %2044 = vst [vmem:[#allocation2 + $0x168] sm:$0xff] %v1934
        %2045 = vst [vmem:[#allocation2 + $0x170] sm:$0xff] %v1936
        %2046 = vst [vmem:[#allocation2 + $0x188] sm:$0xff] %v1940
        %2047 = vst [vmem:[#allocation2 + $0x190] sm:$0xff] %v1942
        %2048 = vst [vmem:[#allocation2 + $0x1a8] sm:$0xff] %v1944
        %2049 = vst [vmem:[#allocation2 + $0x1b0] sm:$0xff] %v1946
        %2050 = vst [vmem:[#allocation2 + $0x1c8] sm:$0xff] %v1950
        %2051 = vst [vmem:[#allocation2 + $0x1d0] sm:$0xff] %v1952
        %2052 = vst [vmem:[#allocation2 + $0x1e8] sm:$0x1] %v1954
        %2053 = vst [vmem:[#allocation2 + $0x1f0] sm:$0x1] %v1956
        %v2054 = vlaneseq
        %v2055 = vand.u32 %v2054, 127
        %v2056 = vadd.s32 %v2055, 128
        %vm2057 = vcmp.lt.s32.totalorder %v2055, 0
        %v2058 = vsub.s32 0, %v2055
        %v2059 = vsel %vm2057, %v2058, %v2055
        %v2060 = vshrl.u32 %v2059, 4
        %v2061 = vand.u32 %v2059, 15
        %v2062 = vsub.s32 0, %v2061
        %v2063 = vsel %vm2057, %v2062, %v2061
        %vm2064 = vcmp.lt.s32.totalorder %v2056, 0
        %v2065 = vsub.s32 0, %v2056
        %v2066 = vsel %vm2064, %v2065, %v2056
        %v2067 = vshrl.u32 %v2066, 4
        %v2068 = vand.u32 %v2066, 15
        %v2069 = vsub.s32 0, %v2068
        %v2070 = vsel %vm2064, %v2069, %v2068
        %vm2071 = vcmp.ne.s32.totalorder %v2063, 0
        %vm2072 = vcmp.ne.s32.totalorder %v2070, 0
        %vm2073 = vcmp.lt.s32.totalorder %v2063, 0
        %vm2074 = vcmp.lt.s32.totalorder %v2070, 0
        %vm2075 = vmand %vm2073, %vm2071
        %vm2076 = vmand %vm2074, %vm2072
        %v2077 = vadd.s32 %v2063, 16
        %v2078 = vadd.s32 %v2070, 16
        %v2079 = vsel %vm2075, %v2077, %v2063
        %v2080 = vsel %vm2076, %v2078, %v2070
        %v2081 = vadd.s32 %v2079, 4294967291
        %v2082 = vadd.s32 %v2080, 4294967291
        %vm2083 = vcmp.ge.s32.totalorder %v2081, 0
        %vm2084 = vcmp.ge.s32.totalorder %v2082, 0
        %vm2085 = vcmp.lt.s32.totalorder %v2081, 16
        %vm2086 = vcmp.lt.s32.totalorder %v2082, 16
        %vm2087 = vmand %vm2083, %vm2085
        %vm2088 = vmand %vm2084, %vm2086
        %v2089 = vadd.s32 %v2079, 4294967292
        %v2090 = vadd.s32 %v2080, 4294967292
        %vm2091 = vcmp.ge.s32.totalorder %v2089, 0
        %vm2092 = vcmp.ge.s32.totalorder %v2090, 0
        %vm2093 = vcmp.lt.s32.totalorder %v2089, 16
        %vm2094 = vcmp.lt.s32.totalorder %v2090, 16
        %vm2095 = vmand %vm2091, %vm2093
        %vm2096 = vmand %vm2092, %vm2094
        %v2097 = vadd.s32 %v2079, 4294967293
        %v2098 = vadd.s32 %v2080, 4294967293
        %vm2099 = vcmp.ge.s32.totalorder %v2097, 0
        %vm2100 = vcmp.ge.s32.totalorder %v2098, 0
        %vm2101 = vcmp.lt.s32.totalorder %v2097, 16
        %vm2102 = vcmp.lt.s32.totalorder %v2098, 16
        %vm2103 = vmand %vm2099, %vm2101
        %vm2104 = vmand %vm2100, %vm2102
        %v2105 = vadd.s32 %v2079, 4294967294
        %v2106 = vadd.s32 %v2080, 4294967294
        %vm2107 = vcmp.ge.s32.totalorder %v2105, 0
        %vm2108 = vcmp.ge.s32.totalorder %v2106, 0
        %vm2109 = vcmp.lt.s32.totalorder %v2105, 16
        %vm2110 = vcmp.lt.s32.totalorder %v2106, 16
        %vm2111 = vmand %vm2107, %vm2109
        %vm2112 = vmand %vm2108, %vm2110
        %v2113 = vadd.s32 %v2079, 4294967295
        %v2114 = vadd.s32 %v2080, 4294967295
        %vm2115 = vcmp.ge.s32.totalorder %v2113, 0
        %vm2116 = vcmp.ge.s32.totalorder %v2114, 0
        %vm2117 = vcmp.lt.s32.totalorder %v2113, 16
        %vm2118 = vcmp.lt.s32.totalorder %v2114, 16
        %vm2119 = vmand %vm2115, %vm2117
        %vm2120 = vmand %vm2116, %vm2118
        %vm2121 = vcmp.ge.s32.totalorder %v2079, 0
        %vm2122 = vcmp.ge.s32.totalorder %v2080, 0
        %vm2123 = vcmp.lt.s32.totalorder %v2079, 16
        %vm2124 = vcmp.lt.s32.totalorder %v2080, 16
        %vm2125 = vmand %vm2121, %vm2123
        %vm2126 = vmand %vm2122, %vm2124
        %v2127 = vadd.s32 %v2079, 1
        %v2128 = vadd.s32 %v2080, 1
        %vm2129 = vcmp.ge.s32.totalorder %v2127, 0
        %vm2130 = vcmp.ge.s32.totalorder %v2128, 0
        %vm2131 = vcmp.lt.s32.totalorder %v2127, 16
        %vm2132 = vcmp.lt.s32.totalorder %v2128, 16
        %vm2133 = vmand %vm2129, %vm2131
        %vm2134 = vmand %vm2130, %vm2132
        %v2135 = vadd.s32 %v2079, 2
        %v2136 = vadd.s32 %v2080, 2
        %vm2137 = vcmp.ge.s32.totalorder %v2135, 0
        %vm2138 = vcmp.ge.s32.totalorder %v2136, 0
        %vm2139 = vcmp.lt.s32.totalorder %v2135, 16
        %vm2140 = vcmp.lt.s32.totalorder %v2136, 16
        %vm2141 = vmand %vm2137, %vm2139
        %vm2142 = vmand %vm2138, %vm2140
        %v2143 = vadd.s32 %v2079, 3
        %v2144 = vadd.s32 %v2080, 3
        %vm2145 = vcmp.ge.s32.totalorder %v2143, 0
        %vm2146 = vcmp.ge.s32.totalorder %v2144, 0
        %vm2147 = vcmp.lt.s32.totalorder %v2143, 16
        %vm2148 = vcmp.lt.s32.totalorder %v2144, 16
        %vm2149 = vmand %vm2145, %vm2147
        %vm2150 = vmand %vm2146, %vm2148
        %v2151 = vadd.s32 %v2079, 4
        %v2152 = vadd.s32 %v2080, 4
        %vm2153 = vcmp.ge.s32.totalorder %v2151, 0
        %vm2154 = vcmp.ge.s32.totalorder %v2152, 0
        %vm2155 = vcmp.lt.s32.totalorder %v2151, 16
        %vm2156 = vcmp.lt.s32.totalorder %v2152, 16
        %vm2157 = vmand %vm2153, %vm2155
        %vm2158 = vmand %vm2154, %vm2156
        %v2159 = vadd.s32 %v2079, 5
        %v2160 = vadd.s32 %v2080, 5
        %vm2161 = vcmp.ge.s32.totalorder %v2159, 0
        %vm2162 = vcmp.ge.s32.totalorder %v2160, 0
        %vm2163 = vcmp.lt.s32.totalorder %v2159, 16
        %vm2164 = vcmp.lt.s32.totalorder %v2160, 16
        %vm2165 = vmand %vm2161, %vm2163
        %vm2166 = vmand %vm2162, %vm2164
        %v2167 = vstv %s532
        %v2168 = vld [vmem:[#allocation2] ss:$8 sm:$0x7]
        %v2170 = vlaneseq
        %v2171 = vshrl.u32 %v2170, 7
        %v2172 = vsub.s32 0, %v2171
        %v2173 = vrot.slane %v2168, %v2172
        %v2174 = vlaneseq
        %v2175 = vshrl.u32 %v2174, 7
        %v2176 = vsub.s32 1, %v2175
        %v2177 = vrot.slane %v2168, %v2176
        %v2178 = vlaneseq
        %v2179 = vshrl.u32 %v2178, 7
        %v2180 = vsub.s32 2, %v2179
        %v2181 = vrot.slane %v2168, %v2180
        %2182 = vrot.lane.b32.xlu0 %v2173, 85
        %v2183 = vpop.permute.xlu0 %2182
        %2184 = vrot.lane.b32.xlu0 %v2177, 85
        %v2185 = vpop.permute.xlu0 %2184
        %2186 = vrot.lane.b32.xlu0 %v2181, 85
        %v2187 = vpop.permute.xlu0 %2186
        %vm2188 = vcmask 695296
        %v2189 = vsel %vm2188, %v2183, %v2185
        %v2190 = vsel %vm2188, %v2185, %v2187
        %v2193 = vsel %vm2087, %v2189, 0.0
        %v2194 = vsel %vm2088, %v2190, 0.0
        %v2195 = vadd.f32 %v2167, %v2193
        %v2196 = vadd.f32 %v2167, %v2194
        %s2197 = scalar_lea.vmem [#allocation2], 1
        %v2198 = vld [vmem:[%s2197] ss:$8 sm:$0x7]
        %v2200 = vlaneseq
        %v2201 = vshrl.u32 %v2200, 7
        %v2202 = vsub.s32 0, %v2201
        %v2203 = vrot.slane %v2198, %v2202
        %v2204 = vlaneseq
        %v2205 = vshrl.u32 %v2204, 7
        %v2206 = vsub.s32 1, %v2205
        %v2207 = vrot.slane %v2198, %v2206
        %v2208 = vlaneseq
        %v2209 = vshrl.u32 %v2208, 7
        %v2210 = vsub.s32 2, %v2209
        %v2211 = vrot.slane %v2198, %v2210
        %2212 = vrot.lane.b32.xlu0 %v2203, 84
        %v2213 = vpop.permute.xlu0 %2212
        %2214 = vrot.lane.b32.xlu0 %v2207, 84
        %v2215 = vpop.permute.xlu0 %2214
        %2216 = vrot.lane.b32.xlu0 %v2211, 84
        %v2217 = vpop.permute.xlu0 %2216
        %vm2218 = vcmask 687104
        %v2219 = vsel %vm2218, %v2213, %v2215
        %v2220 = vsel %vm2218, %v2215, %v2217
        %v2223 = vsel %vm2095, %v2219, 0.0
        %v2224 = vsel %vm2096, %v2220, 0.0
        %v2225 = vadd.f32 %v2195, %v2223
        %v2226 = vadd.f32 %v2196, %v2224
        %s2227 = scalar_lea.vmem [#allocation2], 2
        %v2228 = vld [vmem:[%s2227] ss:$8 sm:$0x7]
        %v2230 = vlaneseq
        %v2231 = vshrl.u32 %v2230, 7
        %v2232 = vsub.s32 0, %v2231
        %v2233 = vrot.slane %v2228, %v2232
        %v2234 = vlaneseq
        %v2235 = vshrl.u32 %v2234, 7
        %v2236 = vsub.s32 1, %v2235
        %v2237 = vrot.slane %v2228, %v2236
        %v2238 = vlaneseq
        %v2239 = vshrl.u32 %v2238, 7
        %v2240 = vsub.s32 2, %v2239
        %v2241 = vrot.slane %v2228, %v2240
        %2242 = vrot.lane.b32.xlu0 %v2233, 83
        %v2243 = vpop.permute.xlu0 %2242
        %2244 = vrot.lane.b32.xlu0 %v2237, 83
        %v2245 = vpop.permute.xlu0 %2244
        %2246 = vrot.lane.b32.xlu0 %v2241, 83
        %v2247 = vpop.permute.xlu0 %2246
        %vm2248 = vcmask 678912
        %v2249 = vsel %vm2248, %v2243, %v2245
        %v2250 = vsel %vm2248, %v2245, %v2247
        %v2253 = vsel %vm2103, %v2249, 0.0
        %v2254 = vsel %vm2104, %v2250, 0.0
        %v2255 = vadd.f32 %v2225, %v2253
        %v2256 = vadd.f32 %v2226, %v2254
        %s2257 = scalar_lea.vmem [#allocation2], 3
        %v2258 = vld [vmem:[%s2257] ss:$8 sm:$0x7]
        %v2260 = vlaneseq
        %v2261 = vshrl.u32 %v2260, 7
        %v2262 = vsub.s32 0, %v2261
        %v2263 = vrot.slane %v2258, %v2262
        %v2264 = vlaneseq
        %v2265 = vshrl.u32 %v2264, 7
        %v2266 = vsub.s32 1, %v2265
        %v2267 = vrot.slane %v2258, %v2266
        %v2268 = vlaneseq
        %v2269 = vshrl.u32 %v2268, 7
        %v2270 = vsub.s32 2, %v2269
        %v2271 = vrot.slane %v2258, %v2270
        %2272 = vrot.lane.b32.xlu0 %v2263, 82
        %v2273 = vpop.permute.xlu0 %2272
        %2274 = vrot.lane.b32.xlu0 %v2267, 82
        %v2275 = vpop.permute.xlu0 %2274
        %2276 = vrot.lane.b32.xlu0 %v2271, 82
        %v2277 = vpop.permute.xlu0 %2276
        %vm2278 = vcmask 670720
        %v2279 = vsel %vm2278, %v2273, %v2275
        %v2280 = vsel %vm2278, %v2275, %v2277
        %v2283 = vsel %vm2111, %v2279, 0.0
        %v2284 = vsel %vm2112, %v2280, 0.0
        %v2285 = vadd.f32 %v2255, %v2283
        %v2286 = vadd.f32 %v2256, %v2284
        %s2287 = scalar_lea.vmem [#allocation2], 4
        %v2288 = vld [vmem:[%s2287] ss:$8 sm:$0x7]
        %v2290 = vlaneseq
        %v2291 = vshrl.u32 %v2290, 7
        %v2292 = vsub.s32 0, %v2291
        %v2293 = vrot.slane %v2288, %v2292
        %v2294 = vlaneseq
        %v2295 = vshrl.u32 %v2294, 7
        %v2296 = vsub.s32 1, %v2295
        %v2297 = vrot.slane %v2288, %v2296
        %v2298 = vlaneseq
        %v2299 = vshrl.u32 %v2298, 7
        %v2300 = vsub.s32 2, %v2299
        %v2301 = vrot.slane %v2288, %v2300
        %2302 = vrot.lane.b32.xlu0 %v2293, 81
        %v2303 = vpop.permute.xlu0 %2302
        %2304 = vrot.lane.b32.xlu0 %v2297, 81
        %v2305 = vpop.permute.xlu0 %2304
        %2306 = vrot.lane.b32.xlu0 %v2301, 81
        %v2307 = vpop.permute.xlu0 %2306
        %vm2308 = vcmask 662528
        %v2309 = vsel %vm2308, %v2303, %v2305
        %v2310 = vsel %vm2308, %v2305, %v2307
        %v2313 = vsel %vm2119, %v2309, 0.0
        %v2314 = vsel %vm2120, %v2310, 0.0
        %v2315 = vadd.f32 %v2285, %v2313
        %v2316 = vadd.f32 %v2286, %v2314
        %s2317 = scalar_lea.vmem [#allocation2], 5
        %v2318 = vld [vmem:[%s2317] ss:$8 sm:$0x7]
        %v2320 = vlaneseq
        %v2321 = vshrl.u32 %v2320, 7
        %v2322 = vsub.s32 0, %v2321
        %v2323 = vrot.slane %v2318, %v2322
        %v2324 = vlaneseq
        %v2325 = vshrl.u32 %v2324, 7
        %v2326 = vsub.s32 1, %v2325
        %v2327 = vrot.slane %v2318, %v2326
        %v2328 = vlaneseq
        %v2329 = vshrl.u32 %v2328, 7
        %v2330 = vsub.s32 2, %v2329
        %v2331 = vrot.slane %v2318, %v2330
        %2332 = vrot.lane.b32.xlu0 %v2323, 80
        %v2333 = vpop.permute.xlu0 %2332
        %2334 = vrot.lane.b32.xlu0 %v2327, 80
        %v2335 = vpop.permute.xlu0 %2334
        %2336 = vrot.lane.b32.xlu0 %v2331, 80
        %v2337 = vpop.permute.xlu0 %2336
        %vm2338 = vcmask 654336
        %v2339 = vsel %vm2338, %v2333, %v2335
        %v2340 = vsel %vm2338, %v2335, %v2337
        %v2343 = vsel %vm2125, %v2339, 0.0
        %v2344 = vsel %vm2126, %v2340, 0.0
        %v2345 = vadd.f32 %v2315, %v2343
        %v2346 = vadd.f32 %v2316, %v2344
        %s2347 = scalar_lea.vmem [#allocation2], 6
        %v2348 = vld [vmem:[%s2347] ss:$8 sm:$0x7]
        %v2350 = vlaneseq
        %v2351 = vshrl.u32 %v2350, 7
        %v2352 = vsub.s32 0, %v2351
        %v2353 = vrot.slane %v2348, %v2352
        %v2354 = vlaneseq
        %v2355 = vshrl.u32 %v2354, 7
        %v2356 = vsub.s32 1, %v2355
        %v2357 = vrot.slane %v2348, %v2356
        %v2358 = vlaneseq
        %v2359 = vshrl.u32 %v2358, 7
        %v2360 = vsub.s32 2, %v2359
        %v2361 = vrot.slane %v2348, %v2360
        %2362 = vrot.lane.b32.xlu0 %v2353, 79
        %v2363 = vpop.permute.xlu0 %2362
        %2364 = vrot.lane.b32.xlu0 %v2357, 79
        %v2365 = vpop.permute.xlu0 %2364
        %2366 = vrot.lane.b32.xlu0 %v2361, 79
        %v2367 = vpop.permute.xlu0 %2366
        %vm2368 = vcmask 646144
        %v2369 = vsel %vm2368, %v2363, %v2365
        %v2370 = vsel %vm2368, %v2365, %v2367
        %v2373 = vsel %vm2133, %v2369, 0.0
        %v2374 = vsel %vm2134, %v2370, 0.0
        %v2375 = vadd.f32 %v2345, %v2373
        %v2376 = vadd.f32 %v2346, %v2374
        %s2377 = scalar_lea.vmem [#allocation2], 7
        %v2378 = vld [vmem:[%s2377] ss:$8 sm:$0x7]
        %v2380 = vlaneseq
        %v2381 = vshrl.u32 %v2380, 7
        %v2382 = vsub.s32 0, %v2381
        %v2383 = vrot.slane %v2378, %v2382
        %v2384 = vlaneseq
        %v2385 = vshrl.u32 %v2384, 7
        %v2386 = vsub.s32 1, %v2385
        %v2387 = vrot.slane %v2378, %v2386
        %v2388 = vlaneseq
        %v2389 = vshrl.u32 %v2388, 7
        %v2390 = vsub.s32 2, %v2389
        %v2391 = vrot.slane %v2378, %v2390
        %2392 = vrot.lane.b32.xlu0 %v2383, 78
        %v2393 = vpop.permute.xlu0 %2392
        %2394 = vrot.lane.b32.xlu0 %v2387, 78
        %v2395 = vpop.permute.xlu0 %2394
        %2396 = vrot.lane.b32.xlu0 %v2391, 78
        %v2397 = vpop.permute.xlu0 %2396
        %vm2398 = vcmask 637952
        %v2399 = vsel %vm2398, %v2393, %v2395
        %v2400 = vsel %vm2398, %v2395, %v2397
        %v2403 = vsel %vm2141, %v2399, 0.0
        %v2404 = vsel %vm2142, %v2400, 0.0
        %v2405 = vadd.f32 %v2375, %v2403
        %v2406 = vadd.f32 %v2376, %v2404
        %s2407 = scalar_lea.vmem [#allocation2], 32
        %v2408 = vld [vmem:[%s2407] ss:$8 sm:$0x7]
        %v2410 = vlaneseq
        %v2411 = vshrl.u32 %v2410, 7
        %v2412 = vsub.s32 0, %v2411
        %v2413 = vrot.slane %v2408, %v2412
        %v2414 = vlaneseq
        %v2415 = vshrl.u32 %v2414, 7
        %v2416 = vsub.s32 1, %v2415
        %v2417 = vrot.slane %v2408, %v2416
        %v2418 = vlaneseq
        %v2419 = vshrl.u32 %v2418, 7
        %v2420 = vsub.s32 2, %v2419
        %v2421 = vrot.slane %v2408, %v2420
        %2422 = vrot.lane.b32.xlu0 %v2413, 77
        %v2423 = vpop.permute.xlu0 %2422
        %2424 = vrot.lane.b32.xlu0 %v2417, 77
        %v2425 = vpop.permute.xlu0 %2424
        %2426 = vrot.lane.b32.xlu0 %v2421, 77
        %v2427 = vpop.permute.xlu0 %2426
        %vm2428 = vcmask 629760
        %v2429 = vsel %vm2428, %v2423, %v2425
        %v2430 = vsel %vm2428, %v2425, %v2427
        %v2433 = vsel %vm2149, %v2429, 0.0
        %v2434 = vsel %vm2150, %v2430, 0.0
        %v2435 = vadd.f32 %v2405, %v2433
        %v2436 = vadd.f32 %v2406, %v2434
        %s2437 = scalar_lea.vmem [#allocation2], 33
        %v2438 = vld [vmem:[%s2437] ss:$8 sm:$0x7]
        %v2440 = vlaneseq
        %v2441 = vshrl.u32 %v2440, 7
        %v2442 = vsub.s32 0, %v2441
        %v2443 = vrot.slane %v2438, %v2442
        %v2444 = vlaneseq
        %v2445 = vshrl.u32 %v2444, 7
        %v2446 = vsub.s32 1, %v2445
        %v2447 = vrot.slane %v2438, %v2446
        %v2448 = vlaneseq
        %v2449 = vshrl.u32 %v2448, 7
        %v2450 = vsub.s32 2, %v2449
        %v2451 = vrot.slane %v2438, %v2450
        %2452 = vrot.lane.b32.xlu0 %v2443, 76
        %v2453 = vpop.permute.xlu0 %2452
        %2454 = vrot.lane.b32.xlu0 %v2447, 76
        %v2455 = vpop.permute.xlu0 %2454
        %2456 = vrot.lane.b32.xlu0 %v2451, 76
        %v2457 = vpop.permute.xlu0 %2456
        %vm2458 = vcmask 621568
        %v2459 = vsel %vm2458, %v2453, %v2455
        %v2460 = vsel %vm2458, %v2455, %v2457
        %v2463 = vsel %vm2157, %v2459, 0.0
        %v2464 = vsel %vm2158, %v2460, 0.0
        %v2465 = vadd.f32 %v2435, %v2463
        %v2466 = vadd.f32 %v2436, %v2464
        %s2467 = scalar_lea.vmem [#allocation2], 34
        %v2468 = vld [vmem:[%s2467] ss:$8 sm:$0x7]
        %v2470 = vlaneseq
        %v2471 = vshrl.u32 %v2470, 7
        %v2472 = vsub.s32 0, %v2471
        %v2473 = vrot.slane %v2468, %v2472
        %v2474 = vlaneseq
        %v2475 = vshrl.u32 %v2474, 7
        %v2476 = vsub.s32 1, %v2475
        %v2477 = vrot.slane %v2468, %v2476
        %v2478 = vlaneseq
        %v2479 = vshrl.u32 %v2478, 7
        %v2480 = vsub.s32 2, %v2479
        %v2481 = vrot.slane %v2468, %v2480
        %2482 = vrot.lane.b32.xlu0 %v2473, 75
        %v2483 = vpop.permute.xlu0 %2482
        %2484 = vrot.lane.b32.xlu0 %v2477, 75
        %v2485 = vpop.permute.xlu0 %2484
        %2486 = vrot.lane.b32.xlu0 %v2481, 75
        %v2487 = vpop.permute.xlu0 %2486
        %vm2488 = vcmask 613376
        %v2489 = vsel %vm2488, %v2483, %v2485
        %v2490 = vsel %vm2488, %v2485, %v2487
        %v2493 = vsel %vm2165, %v2489, 0.0
        %v2494 = vsel %vm2166, %v2490, 0.0
        %v2495 = vadd.f32 %v2465, %v2493
        %v2496 = vadd.f32 %v2466, %v2494
        %s2497 = scalar_lea.vmem [#allocation2], 35
        %v2498 = vld [vmem:[%s2497] ss:$8 sm:$0x7]
        %v2500 = vlaneseq
        %v2501 = vshrl.u32 %v2500, 7
        %v2502 = vsub.s32 0, %v2501
        %v2503 = vrot.slane %v2498, %v2502
        %v2504 = vlaneseq
        %v2505 = vshrl.u32 %v2504, 7
        %v2506 = vsub.s32 1, %v2505
        %v2507 = vrot.slane %v2498, %v2506
        %v2508 = vlaneseq
        %v2509 = vshrl.u32 %v2508, 7
        %v2510 = vsub.s32 2, %v2509
        %v2511 = vrot.slane %v2498, %v2510
        %2512 = vrot.lane.b32.xlu0 %v2503, 69
        %v2513 = vpop.permute.xlu0 %2512
        %2514 = vrot.lane.b32.xlu0 %v2507, 69
        %v2515 = vpop.permute.xlu0 %2514
        %2516 = vrot.lane.b32.xlu0 %v2511, 69
        %v2517 = vpop.permute.xlu0 %2516
        %vm2518 = vcmask 564224
        %v2519 = vsel %vm2518, %v2513, %v2515
        %v2520 = vsel %vm2518, %v2515, %v2517
        %v2523 = vsel %vm2087, %v2519, 0.0
        %v2524 = vsel %vm2088, %v2520, 0.0
        %v2525 = vadd.f32 %v2495, %v2523
        %v2526 = vadd.f32 %v2496, %v2524
        %s2527 = scalar_lea.vmem [#allocation2], 36
        %v2528 = vld [vmem:[%s2527] ss:$8 sm:$0x7]
        %v2530 = vlaneseq
        %v2531 = vshrl.u32 %v2530, 7
        %v2532 = vsub.s32 0, %v2531
        %v2533 = vrot.slane %v2528, %v2532
        %v2534 = vlaneseq
        %v2535 = vshrl.u32 %v2534, 7
        %v2536 = vsub.s32 1, %v2535
        %v2537 = vrot.slane %v2528, %v2536
        %v2538 = vlaneseq
        %v2539 = vshrl.u32 %v2538, 7
        %v2540 = vsub.s32 2, %v2539
        %v2541 = vrot.slane %v2528, %v2540
        %2542 = vrot.lane.b32.xlu0 %v2533, 68
        %v2543 = vpop.permute.xlu0 %2542
        %2544 = vrot.lane.b32.xlu0 %v2537, 68
        %v2545 = vpop.permute.xlu0 %2544
        %2546 = vrot.lane.b32.xlu0 %v2541, 68
        %v2547 = vpop.permute.xlu0 %2546
        %vm2548 = vcmask 556032
        %v2549 = vsel %vm2548, %v2543, %v2545
        %v2550 = vsel %vm2548, %v2545, %v2547
        %v2553 = vsel %vm2095, %v2549, 0.0
        %v2554 = vsel %vm2096, %v2550, 0.0
        %v2555 = vadd.f32 %v2525, %v2553
        %v2556 = vadd.f32 %v2526, %v2554
        %s2557 = scalar_lea.vmem [#allocation2], 37
        %v2558 = vld [vmem:[%s2557] ss:$8 sm:$0x7]
        %v2560 = vlaneseq
        %v2561 = vshrl.u32 %v2560, 7
        %v2562 = vsub.s32 0, %v2561
        %v2563 = vrot.slane %v2558, %v2562
        %v2564 = vlaneseq
        %v2565 = vshrl.u32 %v2564, 7
        %v2566 = vsub.s32 1, %v2565
        %v2567 = vrot.slane %v2558, %v2566
        %v2568 = vlaneseq
        %v2569 = vshrl.u32 %v2568, 7
        %v2570 = vsub.s32 2, %v2569
        %v2571 = vrot.slane %v2558, %v2570
        %2572 = vrot.lane.b32.xlu0 %v2563, 67
        %v2573 = vpop.permute.xlu0 %2572
        %2574 = vrot.lane.b32.xlu0 %v2567, 67
        %v2575 = vpop.permute.xlu0 %2574
        %2576 = vrot.lane.b32.xlu0 %v2571, 67
        %v2577 = vpop.permute.xlu0 %2576
        %vm2578 = vcmask 547840
        %v2579 = vsel %vm2578, %v2573, %v2575
        %v2580 = vsel %vm2578, %v2575, %v2577
        %v2583 = vsel %vm2103, %v2579, 0.0
        %v2584 = vsel %vm2104, %v2580, 0.0
        %v2585 = vadd.f32 %v2555, %v2583
        %v2586 = vadd.f32 %v2556, %v2584
        %s2587 = scalar_lea.vmem [#allocation2], 38
        %v2588 = vld [vmem:[%s2587] ss:$8 sm:$0x7]
        %v2590 = vlaneseq
        %v2591 = vshrl.u32 %v2590, 7
        %v2592 = vsub.s32 0, %v2591
        %v2593 = vrot.slane %v2588, %v2592
        %v2594 = vlaneseq
        %v2595 = vshrl.u32 %v2594, 7
        %v2596 = vsub.s32 1, %v2595
        %v2597 = vrot.slane %v2588, %v2596
        %v2598 = vlaneseq
        %v2599 = vshrl.u32 %v2598, 7
        %v2600 = vsub.s32 2, %v2599
        %v2601 = vrot.slane %v2588, %v2600
        %2602 = vrot.lane.b32.xlu0 %v2593, 66
        %v2603 = vpop.permute.xlu0 %2602
        %2604 = vrot.lane.b32.xlu0 %v2597, 66
        %v2605 = vpop.permute.xlu0 %2604
        %2606 = vrot.lane.b32.xlu0 %v2601, 66
        %v2607 = vpop.permute.xlu0 %2606
        %vm2608 = vcmask 539648
        %v2609 = vsel %vm2608, %v2603, %v2605
        %v2610 = vsel %vm2608, %v2605, %v2607
        %v2613 = vsel %vm2111, %v2609, 0.0
        %v2614 = vsel %vm2112, %v2610, 0.0
        %v2615 = vadd.f32 %v2585, %v2613
        %v2616 = vadd.f32 %v2586, %v2614
        %s2617 = scalar_lea.vmem [#allocation2], 39
        %v2618 = vld [vmem:[%s2617] ss:$8 sm:$0x7]
        %v2620 = vlaneseq
        %v2621 = vshrl.u32 %v2620, 7
        %v2622 = vsub.s32 0, %v2621
        %v2623 = vrot.slane %v2618, %v2622
        %v2624 = vlaneseq
        %v2625 = vshrl.u32 %v2624, 7
        %v2626 = vsub.s32 1, %v2625
        %v2627 = vrot.slane %v2618, %v2626
        %v2628 = vlaneseq
        %v2629 = vshrl.u32 %v2628, 7
        %v2630 = vsub.s32 2, %v2629
        %v2631 = vrot.slane %v2618, %v2630
        %2632 = vrot.lane.b32.xlu0 %v2623, 65
        %v2633 = vpop.permute.xlu0 %2632
        %2634 = vrot.lane.b32.xlu0 %v2627, 65
        %v2635 = vpop.permute.xlu0 %2634
        %2636 = vrot.lane.b32.xlu0 %v2631, 65
        %v2637 = vpop.permute.xlu0 %2636
        %vm2638 = vcmask 531456
        %v2639 = vsel %vm2638, %v2633, %v2635
        %v2640 = vsel %vm2638, %v2635, %v2637
        %v2643 = vsel %vm2119, %v2639, 0.0
        %v2644 = vsel %vm2120, %v2640, 0.0
        %v2645 = vadd.f32 %v2615, %v2643
        %v2646 = vadd.f32 %v2616, %v2644
        %s2647 = scalar_lea.vmem [#allocation2], 64
        %v2648 = vld [vmem:[%s2647] ss:$8 sm:$0x7]
        %v2650 = vlaneseq
        %v2651 = vshrl.u32 %v2650, 7
        %v2652 = vsub.s32 0, %v2651
        %v2653 = vrot.slane %v2648, %v2652
        %v2654 = vlaneseq
        %v2655 = vshrl.u32 %v2654, 7
        %v2656 = vsub.s32 1, %v2655
        %v2657 = vrot.slane %v2648, %v2656
        %v2658 = vlaneseq
        %v2659 = vshrl.u32 %v2658, 7
        %v2660 = vsub.s32 2, %v2659
        %v2661 = vrot.slane %v2648, %v2660
        %2662 = vrot.lane.b32.xlu0 %v2653, 64
        %v2663 = vpop.permute.xlu0 %2662
        %2664 = vrot.lane.b32.xlu0 %v2657, 64
        %v2665 = vpop.permute.xlu0 %2664
        %2666 = vrot.lane.b32.xlu0 %v2661, 64
        %v2667 = vpop.permute.xlu0 %2666
        %vm2668 = vcmask 523264
        %v2669 = vsel %vm2668, %v2663, %v2665
        %v2670 = vsel %vm2668, %v2665, %v2667
        %v2673 = vsel %vm2125, %v2669, 0.0
        %v2674 = vsel %vm2126, %v2670, 0.0
        %v2675 = vadd.f32 %v2645, %v2673
        %v2676 = vadd.f32 %v2646, %v2674
        %s2677 = scalar_lea.vmem [#allocation2], 65
        %v2678 = vld [vmem:[%s2677] ss:$8 sm:$0x7]
        %v2680 = vlaneseq
        %v2681 = vshrl.u32 %v2680, 7
        %v2682 = vsub.s32 0, %v2681
        %v2683 = vrot.slane %v2678, %v2682
        %v2684 = vlaneseq
        %v2685 = vshrl.u32 %v2684, 7
        %v2686 = vsub.s32 1, %v2685
        %v2687 = vrot.slane %v2678, %v2686
        %v2688 = vlaneseq
        %v2689 = vshrl.u32 %v2688, 7
        %v2690 = vsub.s32 2, %v2689
        %v2691 = vrot.slane %v2678, %v2690
        %2692 = vrot.lane.b32.xlu0 %v2683, 63
        %v2693 = vpop.permute.xlu0 %2692
        %2694 = vrot.lane.b32.xlu0 %v2687, 63
        %v2695 = vpop.permute.xlu0 %2694
        %2696 = vrot.lane.b32.xlu0 %v2691, 63
        %v2697 = vpop.permute.xlu0 %2696
        %vm2698 = vcmask 515072
        %v2699 = vsel %vm2698, %v2693, %v2695
        %v2700 = vsel %vm2698, %v2695, %v2697
        %v2703 = vsel %vm2133, %v2699, 0.0
        %v2704 = vsel %vm2134, %v2700, 0.0
        %v2705 = vadd.f32 %v2675, %v2703
        %v2706 = vadd.f32 %v2676, %v2704
        %s2707 = scalar_lea.vmem [#allocation2], 66
        %v2708 = vld [vmem:[%s2707] ss:$8 sm:$0x7]
        %v2710 = vlaneseq
        %v2711 = vshrl.u32 %v2710, 7
        %v2712 = vsub.s32 0, %v2711
        %v2713 = vrot.slane %v2708, %v2712
        %v2714 = vlaneseq
        %v2715 = vshrl.u32 %v2714, 7
        %v2716 = vsub.s32 1, %v2715
        %v2717 = vrot.slane %v2708, %v2716
        %v2718 = vlaneseq
        %v2719 = vshrl.u32 %v2718, 7
        %v2720 = vsub.s32 2, %v2719
        %v2721 = vrot.slane %v2708, %v2720
        %2722 = vrot.lane.b32.xlu0 %v2713, 62
        %v2723 = vpop.permute.xlu0 %2722
        %2724 = vrot.lane.b32.xlu0 %v2717, 62
        %v2725 = vpop.permute.xlu0 %2724
        %2726 = vrot.lane.b32.xlu0 %v2721, 62
        %v2727 = vpop.permute.xlu0 %2726
        %vm2728 = vcmask 506880
        %v2729 = vsel %vm2728, %v2723, %v2725
        %v2730 = vsel %vm2728, %v2725, %v2727
        %v2733 = vsel %vm2141, %v2729, 0.0
        %v2734 = vsel %vm2142, %v2730, 0.0
        %v2735 = vadd.f32 %v2705, %v2733
        %v2736 = vadd.f32 %v2706, %v2734
        %s2737 = scalar_lea.vmem [#allocation2], 67
        %v2738 = vld [vmem:[%s2737] ss:$8 sm:$0x7]
        %v2740 = vlaneseq
        %v2741 = vshrl.u32 %v2740, 7
        %v2742 = vsub.s32 0, %v2741
        %v2743 = vrot.slane %v2738, %v2742
        %v2744 = vlaneseq
        %v2745 = vshrl.u32 %v2744, 7
        %v2746 = vsub.s32 1, %v2745
        %v2747 = vrot.slane %v2738, %v2746
        %v2748 = vlaneseq
        %v2749 = vshrl.u32 %v2748, 7
        %v2750 = vsub.s32 2, %v2749
        %v2751 = vrot.slane %v2738, %v2750
        %2752 = vrot.lane.b32.xlu0 %v2743, 61
        %v2753 = vpop.permute.xlu0 %2752
        %2754 = vrot.lane.b32.xlu0 %v2747, 61
        %v2755 = vpop.permute.xlu0 %2754
        %2756 = vrot.lane.b32.xlu0 %v2751, 61
        %v2757 = vpop.permute.xlu0 %2756
        %vm2758 = vcmask 498688
        %v2759 = vsel %vm2758, %v2753, %v2755
        %v2760 = vsel %vm2758, %v2755, %v2757
        %v2763 = vsel %vm2149, %v2759, 0.0
        %v2764 = vsel %vm2150, %v2760, 0.0
        %v2765 = vadd.f32 %v2735, %v2763
        %v2766 = vadd.f32 %v2736, %v2764
        %s2767 = scalar_lea.vmem [#allocation2], 68
        %v2768 = vld [vmem:[%s2767] ss:$8 sm:$0x7]
        %v2770 = vlaneseq
        %v2771 = vshrl.u32 %v2770, 7
        %v2772 = vsub.s32 0, %v2771
        %v2773 = vrot.slane %v2768, %v2772
        %v2774 = vlaneseq
        %v2775 = vshrl.u32 %v2774, 7
        %v2776 = vsub.s32 1, %v2775
        %v2777 = vrot.slane %v2768, %v2776
        %v2778 = vlaneseq
        %v2779 = vshrl.u32 %v2778, 7
        %v2780 = vsub.s32 2, %v2779
        %v2781 = vrot.slane %v2768, %v2780
        %2782 = vrot.lane.b32.xlu0 %v2773, 60
        %v2783 = vpop.permute.xlu0 %2782
        %2784 = vrot.lane.b32.xlu0 %v2777, 60
        %v2785 = vpop.permute.xlu0 %2784
        %2786 = vrot.lane.b32.xlu0 %v2781, 60
        %v2787 = vpop.permute.xlu0 %2786
        %vm2788 = vcmask 490496
        %v2789 = vsel %vm2788, %v2783, %v2785
        %v2790 = vsel %vm2788, %v2785, %v2787
        %v2793 = vsel %vm2157, %v2789, 0.0
        %v2794 = vsel %vm2158, %v2790, 0.0
        %v2795 = vadd.f32 %v2765, %v2793
        %v2796 = vadd.f32 %v2766, %v2794
        %s2797 = scalar_lea.vmem [#allocation2], 69
        %v2798 = vld [vmem:[%s2797] ss:$8 sm:$0x7]
        %v2800 = vlaneseq
        %v2801 = vshrl.u32 %v2800, 7
        %v2802 = vsub.s32 0, %v2801
        %v2803 = vrot.slane %v2798, %v2802
        %v2804 = vlaneseq
        %v2805 = vshrl.u32 %v2804, 7
        %v2806 = vsub.s32 1, %v2805
        %v2807 = vrot.slane %v2798, %v2806
        %v2808 = vlaneseq
        %v2809 = vshrl.u32 %v2808, 7
        %v2810 = vsub.s32 2, %v2809
        %v2811 = vrot.slane %v2798, %v2810
        %2812 = vrot.lane.b32.xlu0 %v2803, 59
        %v2813 = vpop.permute.xlu0 %2812
        %2814 = vrot.lane.b32.xlu0 %v2807, 59
        %v2815 = vpop.permute.xlu0 %2814
        %2816 = vrot.lane.b32.xlu0 %v2811, 59
        %v2817 = vpop.permute.xlu0 %2816
        %vm2818 = vcmask 482304
        %v2819 = vsel %vm2818, %v2813, %v2815
        %v2820 = vsel %vm2818, %v2815, %v2817
        %v2823 = vsel %vm2165, %v2819, 0.0
        %v2824 = vsel %vm2166, %v2820, 0.0
        %v2825 = vadd.f32 %v2795, %v2823
        %v2826 = vadd.f32 %v2796, %v2824
        %s2827 = scalar_lea.vmem [#allocation2], 70
        %v2828 = vld [vmem:[%s2827] ss:$8 sm:$0x7]
        %v2830 = vlaneseq
        %v2831 = vshrl.u32 %v2830, 7
        %v2832 = vsub.s32 0, %v2831
        %v2833 = vrot.slane %v2828, %v2832
        %v2834 = vlaneseq
        %v2835 = vshrl.u32 %v2834, 7
        %v2836 = vsub.s32 1, %v2835
        %v2837 = vrot.slane %v2828, %v2836
        %v2838 = vlaneseq
        %v2839 = vshrl.u32 %v2838, 7
        %v2840 = vsub.s32 2, %v2839
        %v2841 = vrot.slane %v2828, %v2840
        %2842 = vrot.lane.b32.xlu0 %v2833, 53
        %v2843 = vpop.permute.xlu0 %2842
        %2844 = vrot.lane.b32.xlu0 %v2837, 53
        %v2845 = vpop.permute.xlu0 %2844
        %2846 = vrot.lane.b32.xlu0 %v2841, 53
        %v2847 = vpop.permute.xlu0 %2846
        %vm2848 = vcmask 433152
        %v2849 = vsel %vm2848, %v2843, %v2845
        %v2850 = vsel %vm2848, %v2845, %v2847
        %v2853 = vsel %vm2087, %v2849, 0.0
        %v2854 = vsel %vm2088, %v2850, 0.0
        %v2855 = vadd.f32 %v2825, %v2853
        %v2856 = vadd.f32 %v2826, %v2854
        %s2857 = scalar_lea.vmem [#allocation2], 71
        %v2858 = vld [vmem:[%s2857] ss:$8 sm:$0x7]
        %v2860 = vlaneseq
        %v2861 = vshrl.u32 %v2860, 7
        %v2862 = vsub.s32 0, %v2861
        %v2863 = vrot.slane %v2858, %v2862
        %v2864 = vlaneseq
        %v2865 = vshrl.u32 %v2864, 7
        %v2866 = vsub.s32 1, %v2865
        %v2867 = vrot.slane %v2858, %v2866
        %v2868 = vlaneseq
        %v2869 = vshrl.u32 %v2868, 7
        %v2870 = vsub.s32 2, %v2869
        %v2871 = vrot.slane %v2858, %v2870
        %2872 = vrot.lane.b32.xlu0 %v2863, 52
        %v2873 = vpop.permute.xlu0 %2872
        %2874 = vrot.lane.b32.xlu0 %v2867, 52
        %v2875 = vpop.permute.xlu0 %2874
        %2876 = vrot.lane.b32.xlu0 %v2871, 52
        %v2877 = vpop.permute.xlu0 %2876
        %vm2878 = vcmask 424960
        %v2879 = vsel %vm2878, %v2873, %v2875
        %v2880 = vsel %vm2878, %v2875, %v2877
        %v2883 = vsel %vm2095, %v2879, 0.0
        %v2884 = vsel %vm2096, %v2880, 0.0
        %v2885 = vadd.f32 %v2855, %v2883
        %v2886 = vadd.f32 %v2856, %v2884
        %s2887 = scalar_lea.vmem [#allocation2], 96
        %v2888 = vld [vmem:[%s2887] ss:$8 sm:$0x7]
        %v2890 = vlaneseq
        %v2891 = vshrl.u32 %v2890, 7
        %v2892 = vsub.s32 0, %v2891
        %v2893 = vrot.slane %v2888, %v2892
        %v2894 = vlaneseq
        %v2895 = vshrl.u32 %v2894, 7
        %v2896 = vsub.s32 1, %v2895
        %v2897 = vrot.slane %v2888, %v2896
        %v2898 = vlaneseq
        %v2899 = vshrl.u32 %v2898, 7
        %v2900 = vsub.s32 2, %v2899
        %v2901 = vrot.slane %v2888, %v2900
        %2902 = vrot.lane.b32.xlu0 %v2893, 51
        %v2903 = vpop.permute.xlu0 %2902
        %2904 = vrot.lane.b32.xlu0 %v2897, 51
        %v2905 = vpop.permute.xlu0 %2904
        %2906 = vrot.lane.b32.xlu0 %v2901, 51
        %v2907 = vpop.permute.xlu0 %2906
        %vm2908 = vcmask 416768
        %v2909 = vsel %vm2908, %v2903, %v2905
        %v2910 = vsel %vm2908, %v2905, %v2907
        %v2913 = vsel %vm2103, %v2909, 0.0
        %v2914 = vsel %vm2104, %v2910, 0.0
        %v2915 = vadd.f32 %v2885, %v2913
        %v2916 = vadd.f32 %v2886, %v2914
        %s2917 = scalar_lea.vmem [#allocation2], 97
        %v2918 = vld [vmem:[%s2917] ss:$8 sm:$0x7]
        %v2920 = vlaneseq
        %v2921 = vshrl.u32 %v2920, 7
        %v2922 = vsub.s32 0, %v2921
        %v2923 = vrot.slane %v2918, %v2922
        %v2924 = vlaneseq
        %v2925 = vshrl.u32 %v2924, 7
        %v2926 = vsub.s32 1, %v2925
        %v2927 = vrot.slane %v2918, %v2926
        %v2928 = vlaneseq
        %v2929 = vshrl.u32 %v2928, 7
        %v2930 = vsub.s32 2, %v2929
        %v2931 = vrot.slane %v2918, %v2930
        %2932 = vrot.lane.b32.xlu0 %v2923, 50
        %v2933 = vpop.permute.xlu0 %2932
        %2934 = vrot.lane.b32.xlu0 %v2927, 50
        %v2935 = vpop.permute.xlu0 %2934
        %2936 = vrot.lane.b32.xlu0 %v2931, 50
        %v2937 = vpop.permute.xlu0 %2936
        %vm2938 = vcmask 408576
        %v2939 = vsel %vm2938, %v2933, %v2935
        %v2940 = vsel %vm2938, %v2935, %v2937
        %v2943 = vsel %vm2111, %v2939, 0.0
        %v2944 = vsel %vm2112, %v2940, 0.0
        %v2945 = vadd.f32 %v2915, %v2943
        %v2946 = vadd.f32 %v2916, %v2944
        %s2947 = scalar_lea.vmem [#allocation2], 98
        %v2948 = vld [vmem:[%s2947] ss:$8 sm:$0x7]
        %v2950 = vlaneseq
        %v2951 = vshrl.u32 %v2950, 7
        %v2952 = vsub.s32 0, %v2951
        %v2953 = vrot.slane %v2948, %v2952
        %v2954 = vlaneseq
        %v2955 = vshrl.u32 %v2954, 7
        %v2956 = vsub.s32 1, %v2955
        %v2957 = vrot.slane %v2948, %v2956
        %v2958 = vlaneseq
        %v2959 = vshrl.u32 %v2958, 7
        %v2960 = vsub.s32 2, %v2959
        %v2961 = vrot.slane %v2948, %v2960
        %2962 = vrot.lane.b32.xlu0 %v2953, 49
        %v2963 = vpop.permute.xlu0 %2962
        %2964 = vrot.lane.b32.xlu0 %v2957, 49
        %v2965 = vpop.permute.xlu0 %2964
        %2966 = vrot.lane.b32.xlu0 %v2961, 49
        %v2967 = vpop.permute.xlu0 %2966
        %vm2968 = vcmask 400384
        %v2969 = vsel %vm2968, %v2963, %v2965
        %v2970 = vsel %vm2968, %v2965, %v2967
        %v2973 = vsel %vm2119, %v2969, 0.0
        %v2974 = vsel %vm2120, %v2970, 0.0
        %v2975 = vadd.f32 %v2945, %v2973
        %v2976 = vadd.f32 %v2946, %v2974
        %s2977 = scalar_lea.vmem [#allocation2], 99
        %v2978 = vld [vmem:[%s2977] ss:$8 sm:$0x7]
        %v2980 = vlaneseq
        %v2981 = vshrl.u32 %v2980, 7
        %v2982 = vsub.s32 0, %v2981
        %v2983 = vrot.slane %v2978, %v2982
        %v2984 = vlaneseq
        %v2985 = vshrl.u32 %v2984, 7
        %v2986 = vsub.s32 1, %v2985
        %v2987 = vrot.slane %v2978, %v2986
        %v2988 = vlaneseq
        %v2989 = vshrl.u32 %v2988, 7
        %v2990 = vsub.s32 2, %v2989
        %v2991 = vrot.slane %v2978, %v2990
        %2992 = vrot.lane.b32.xlu0 %v2983, 48
        %v2993 = vpop.permute.xlu0 %2992
        %2994 = vrot.lane.b32.xlu0 %v2987, 48
        %v2995 = vpop.permute.xlu0 %2994
        %2996 = vrot.lane.b32.xlu0 %v2991, 48
        %v2997 = vpop.permute.xlu0 %2996
        %vm2998 = vcmask 392192
        %v2999 = vsel %vm2998, %v2993, %v2995
        %v3000 = vsel %vm2998, %v2995, %v2997
        %v3003 = vsel %vm2125, %v2999, 0.0
        %v3004 = vsel %vm2126, %v3000, 0.0
        %v3005 = vadd.f32 %v2975, %v3003
        %v3006 = vadd.f32 %v2976, %v3004
        %s3007 = scalar_lea.vmem [#allocation2], 100
        %v3008 = vld [vmem:[%s3007] ss:$8 sm:$0x7]
        %v3010 = vlaneseq
        %v3011 = vshrl.u32 %v3010, 7
        %v3012 = vsub.s32 0, %v3011
        %v3013 = vrot.slane %v3008, %v3012
        %v3014 = vlaneseq
        %v3015 = vshrl.u32 %v3014, 7
        %v3016 = vsub.s32 1, %v3015
        %v3017 = vrot.slane %v3008, %v3016
        %v3018 = vlaneseq
        %v3019 = vshrl.u32 %v3018, 7
        %v3020 = vsub.s32 2, %v3019
        %v3021 = vrot.slane %v3008, %v3020
        %3022 = vrot.lane.b32.xlu0 %v3013, 47
        %v3023 = vpop.permute.xlu0 %3022
        %3024 = vrot.lane.b32.xlu0 %v3017, 47
        %v3025 = vpop.permute.xlu0 %3024
        %3026 = vrot.lane.b32.xlu0 %v3021, 47
        %v3027 = vpop.permute.xlu0 %3026
        %vm3028 = vcmask 384000
        %v3029 = vsel %vm3028, %v3023, %v3025
        %v3030 = vsel %vm3028, %v3025, %v3027
        %v3033 = vsel %vm2133, %v3029, 0.0
        %v3034 = vsel %vm2134, %v3030, 0.0
        %v3035 = vadd.f32 %v3005, %v3033
        %v3036 = vadd.f32 %v3006, %v3034
        %s3037 = scalar_lea.vmem [#allocation2], 101
        %v3038 = vld [vmem:[%s3037] ss:$8 sm:$0x7]
        %v3040 = vlaneseq
        %v3041 = vshrl.u32 %v3040, 7
        %v3042 = vsub.s32 0, %v3041
        %v3043 = vrot.slane %v3038, %v3042
        %v3044 = vlaneseq
        %v3045 = vshrl.u32 %v3044, 7
        %v3046 = vsub.s32 1, %v3045
        %v3047 = vrot.slane %v3038, %v3046
        %v3048 = vlaneseq
        %v3049 = vshrl.u32 %v3048, 7
        %v3050 = vsub.s32 2, %v3049
        %v3051 = vrot.slane %v3038, %v3050
        %3052 = vrot.lane.b32.xlu0 %v3043, 46
        %v3053 = vpop.permute.xlu0 %3052
        %3054 = vrot.lane.b32.xlu0 %v3047, 46
        %v3055 = vpop.permute.xlu0 %3054
        %3056 = vrot.lane.b32.xlu0 %v3051, 46
        %v3057 = vpop.permute.xlu0 %3056
        %vm3058 = vcmask 375808
        %v3059 = vsel %vm3058, %v3053, %v3055
        %v3060 = vsel %vm3058, %v3055, %v3057
        %v3063 = vsel %vm2141, %v3059, 0.0
        %v3064 = vsel %vm2142, %v3060, 0.0
        %v3065 = vadd.f32 %v3035, %v3063
        %v3066 = vadd.f32 %v3036, %v3064
        %s3067 = scalar_lea.vmem [#allocation2], 102
        %v3068 = vld [vmem:[%s3067] ss:$8 sm:$0x7]
        %v3070 = vlaneseq
        %v3071 = vshrl.u32 %v3070, 7
        %v3072 = vsub.s32 0, %v3071
        %v3073 = vrot.slane %v3068, %v3072
        %v3074 = vlaneseq
        %v3075 = vshrl.u32 %v3074, 7
        %v3076 = vsub.s32 1, %v3075
        %v3077 = vrot.slane %v3068, %v3076
        %v3078 = vlaneseq
        %v3079 = vshrl.u32 %v3078, 7
        %v3080 = vsub.s32 2, %v3079
        %v3081 = vrot.slane %v3068, %v3080
        %3082 = vrot.lane.b32.xlu0 %v3073, 45
        %v3083 = vpop.permute.xlu0 %3082
        %3084 = vrot.lane.b32.xlu0 %v3077, 45
        %v3085 = vpop.permute.xlu0 %3084
        %3086 = vrot.lane.b32.xlu0 %v3081, 45
        %v3087 = vpop.permute.xlu0 %3086
        %vm3088 = vcmask 367616
        %v3089 = vsel %vm3088, %v3083, %v3085
        %v3090 = vsel %vm3088, %v3085, %v3087
        %v3093 = vsel %vm2149, %v3089, 0.0
        %v3094 = vsel %vm2150, %v3090, 0.0
        %v3095 = vadd.f32 %v3065, %v3093
        %v3096 = vadd.f32 %v3066, %v3094
        %s3097 = scalar_lea.vmem [#allocation2], 103
        %v3098 = vld [vmem:[%s3097] ss:$8 sm:$0x7]
        %v3100 = vlaneseq
        %v3101 = vshrl.u32 %v3100, 7
        %v3102 = vsub.s32 0, %v3101
        %v3103 = vrot.slane %v3098, %v3102
        %v3104 = vlaneseq
        %v3105 = vshrl.u32 %v3104, 7
        %v3106 = vsub.s32 1, %v3105
        %v3107 = vrot.slane %v3098, %v3106
        %v3108 = vlaneseq
        %v3109 = vshrl.u32 %v3108, 7
        %v3110 = vsub.s32 2, %v3109
        %v3111 = vrot.slane %v3098, %v3110
        %3112 = vrot.lane.b32.xlu0 %v3103, 44
        %v3113 = vpop.permute.xlu0 %3112
        %3114 = vrot.lane.b32.xlu0 %v3107, 44
        %v3115 = vpop.permute.xlu0 %3114
        %3116 = vrot.lane.b32.xlu0 %v3111, 44
        %v3117 = vpop.permute.xlu0 %3116
        %vm3118 = vcmask 359424
        %v3119 = vsel %vm3118, %v3113, %v3115
        %v3120 = vsel %vm3118, %v3115, %v3117
        %v3123 = vsel %vm2157, %v3119, 0.0
        %v3124 = vsel %vm2158, %v3120, 0.0
        %v3125 = vadd.f32 %v3095, %v3123
        %v3126 = vadd.f32 %v3096, %v3124
        %s3127 = scalar_lea.vmem [#allocation2], 128
        %v3128 = vld [vmem:[%s3127] ss:$8 sm:$0x7]
        %v3130 = vlaneseq
        %v3131 = vshrl.u32 %v3130, 7
        %v3132 = vsub.s32 0, %v3131
        %v3133 = vrot.slane %v3128, %v3132
        %v3134 = vlaneseq
        %v3135 = vshrl.u32 %v3134, 7
        %v3136 = vsub.s32 1, %v3135
        %v3137 = vrot.slane %v3128, %v3136
        %v3138 = vlaneseq
        %v3139 = vshrl.u32 %v3138, 7
        %v3140 = vsub.s32 2, %v3139
        %v3141 = vrot.slane %v3128, %v3140
        %3142 = vrot.lane.b32.xlu0 %v3133, 43
        %v3143 = vpop.permute.xlu0 %3142
        %3144 = vrot.lane.b32.xlu0 %v3137, 43
        %v3145 = vpop.permute.xlu0 %3144
        %3146 = vrot.lane.b32.xlu0 %v3141, 43
        %v3147 = vpop.permute.xlu0 %3146
        %vm3148 = vcmask 351232
        %v3149 = vsel %vm3148, %v3143, %v3145
        %v3150 = vsel %vm3148, %v3145, %v3147
        %v3153 = vsel %vm2165, %v3149, 0.0
        %v3154 = vsel %vm2166, %v3150, 0.0
        %v3155 = vadd.f32 %v3125, %v3153
        %v3156 = vadd.f32 %v3126, %v3154
        %s3157 = scalar_lea.vmem [#allocation2], 129
        %v3158 = vld [vmem:[%s3157] ss:$8 sm:$0x7]
        %v3160 = vlaneseq
        %v3161 = vshrl.u32 %v3160, 7
        %v3162 = vsub.s32 0, %v3161
        %v3163 = vrot.slane %v3158, %v3162
        %v3164 = vlaneseq
        %v3165 = vshrl.u32 %v3164, 7
        %v3166 = vsub.s32 1, %v3165
        %v3167 = vrot.slane %v3158, %v3166
        %v3168 = vlaneseq
        %v3169 = vshrl.u32 %v3168, 7
        %v3170 = vsub.s32 2, %v3169
        %v3171 = vrot.slane %v3158, %v3170
        %3172 = vrot.lane.b32.xlu0 %v3163, 37
        %v3173 = vpop.permute.xlu0 %3172
        %3174 = vrot.lane.b32.xlu0 %v3167, 37
        %v3175 = vpop.permute.xlu0 %3174
        %3176 = vrot.lane.b32.xlu0 %v3171, 37
        %v3177 = vpop.permute.xlu0 %3176
        %vm3178 = vcmask 302080
        %v3179 = vsel %vm3178, %v3173, %v3175
        %v3180 = vsel %vm3178, %v3175, %v3177
        %v3183 = vsel %vm2087, %v3179, 0.0
        %v3184 = vsel %vm2088, %v3180, 0.0
        %v3185 = vadd.f32 %v3155, %v3183
        %v3186 = vadd.f32 %v3156, %v3184
        %s3187 = scalar_lea.vmem [#allocation2], 130
        %v3188 = vld [vmem:[%s3187] ss:$8 sm:$0x7]
        %v3190 = vlaneseq
        %v3191 = vshrl.u32 %v3190, 7
        %v3192 = vsub.s32 0, %v3191
        %v3193 = vrot.slane %v3188, %v3192
        %v3194 = vlaneseq
        %v3195 = vshrl.u32 %v3194, 7
        %v3196 = vsub.s32 1, %v3195
        %v3197 = vrot.slane %v3188, %v3196
        %v3198 = vlaneseq
        %v3199 = vshrl.u32 %v3198, 7
        %v3200 = vsub.s32 2, %v3199
        %v3201 = vrot.slane %v3188, %v3200
        %3202 = vrot.lane.b32.xlu0 %v3193, 36
        %v3203 = vpop.permute.xlu0 %3202
        %3204 = vrot.lane.b32.xlu0 %v3197, 36
        %v3205 = vpop.permute.xlu0 %3204
        %3206 = vrot.lane.b32.xlu0 %v3201, 36
        %v3207 = vpop.permute.xlu0 %3206
        %vm3208 = vcmask 293888
        %v3209 = vsel %vm3208, %v3203, %v3205
        %v3210 = vsel %vm3208, %v3205, %v3207
        %v3213 = vsel %vm2095, %v3209, 0.0
        %v3214 = vsel %vm2096, %v3210, 0.0
        %v3215 = vadd.f32 %v3185, %v3213
        %v3216 = vadd.f32 %v3186, %v3214
        %s3217 = scalar_lea.vmem [#allocation2], 131
        %v3218 = vld [vmem:[%s3217] ss:$8 sm:$0x7]
        %v3220 = vlaneseq
        %v3221 = vshrl.u32 %v3220, 7
        %v3222 = vsub.s32 0, %v3221
        %v3223 = vrot.slane %v3218, %v3222
        %v3224 = vlaneseq
        %v3225 = vshrl.u32 %v3224, 7
        %v3226 = vsub.s32 1, %v3225
        %v3227 = vrot.slane %v3218, %v3226
        %v3228 = vlaneseq
        %v3229 = vshrl.u32 %v3228, 7
        %v3230 = vsub.s32 2, %v3229
        %v3231 = vrot.slane %v3218, %v3230
        %3232 = vrot.lane.b32.xlu0 %v3223, 35
        %v3233 = vpop.permute.xlu0 %3232
        %3234 = vrot.lane.b32.xlu0 %v3227, 35
        %v3235 = vpop.permute.xlu0 %3234
        %3236 = vrot.lane.b32.xlu0 %v3231, 35
        %v3237 = vpop.permute.xlu0 %3236
        %vm3238 = vcmask 285696
        %v3239 = vsel %vm3238, %v3233, %v3235
        %v3240 = vsel %vm3238, %v3235, %v3237
        %v3243 = vsel %vm2103, %v3239, 0.0
        %v3244 = vsel %vm2104, %v3240, 0.0
        %v3245 = vadd.f32 %v3215, %v3243
        %v3246 = vadd.f32 %v3216, %v3244
        %s3247 = scalar_lea.vmem [#allocation2], 132
        %v3248 = vld [vmem:[%s3247] ss:$8 sm:$0x7]
        %v3250 = vlaneseq
        %v3251 = vshrl.u32 %v3250, 7
        %v3252 = vsub.s32 0, %v3251
        %v3253 = vrot.slane %v3248, %v3252
        %v3254 = vlaneseq
        %v3255 = vshrl.u32 %v3254, 7
        %v3256 = vsub.s32 1, %v3255
        %v3257 = vrot.slane %v3248, %v3256
        %v3258 = vlaneseq
        %v3259 = vshrl.u32 %v3258, 7
        %v3260 = vsub.s32 2, %v3259
        %v3261 = vrot.slane %v3248, %v3260
        %3262 = vrot.lane.b32.xlu0 %v3253, 34
        %v3263 = vpop.permute.xlu0 %3262
        %3264 = vrot.lane.b32.xlu0 %v3257, 34
        %v3265 = vpop.permute.xlu0 %3264
        %3266 = vrot.lane.b32.xlu0 %v3261, 34
        %v3267 = vpop.permute.xlu0 %3266
        %vm3268 = vcmask 277504
        %v3269 = vsel %vm3268, %v3263, %v3265
        %v3270 = vsel %vm3268, %v3265, %v3267
        %v3273 = vsel %vm2111, %v3269, 0.0
        %v3274 = vsel %vm2112, %v3270, 0.0
        %v3275 = vadd.f32 %v3245, %v3273
        %v3276 = vadd.f32 %v3246, %v3274
        %s3277 = scalar_lea.vmem [#allocation2], 133
        %v3278 = vld [vmem:[%s3277] ss:$8 sm:$0x7]
        %v3280 = vlaneseq
        %v3281 = vshrl.u32 %v3280, 7
        %v3282 = vsub.s32 0, %v3281
        %v3283 = vrot.slane %v3278, %v3282
        %v3284 = vlaneseq
        %v3285 = vshrl.u32 %v3284, 7
        %v3286 = vsub.s32 1, %v3285
        %v3287 = vrot.slane %v3278, %v3286
        %v3288 = vlaneseq
        %v3289 = vshrl.u32 %v3288, 7
        %v3290 = vsub.s32 2, %v3289
        %v3291 = vrot.slane %v3278, %v3290
        %3292 = vrot.lane.b32.xlu0 %v3283, 33
        %v3293 = vpop.permute.xlu0 %3292
        %3294 = vrot.lane.b32.xlu0 %v3287, 33
        %v3295 = vpop.permute.xlu0 %3294
        %3296 = vrot.lane.b32.xlu0 %v3291, 33
        %v3297 = vpop.permute.xlu0 %3296
        %vm3298 = vcmask 269312
        %v3299 = vsel %vm3298, %v3293, %v3295
        %v3300 = vsel %vm3298, %v3295, %v3297
        %v3303 = vsel %vm2119, %v3299, 0.0
        %v3304 = vsel %vm2120, %v3300, 0.0
        %v3305 = vadd.f32 %v3275, %v3303
        %v3306 = vadd.f32 %v3276, %v3304
        %s3307 = scalar_lea.vmem [#allocation2], 134
        %v3308 = vld [vmem:[%s3307] ss:$8 sm:$0x7]
        %v3310 = vlaneseq
        %v3311 = vshrl.u32 %v3310, 7
        %v3312 = vsub.s32 0, %v3311
        %v3313 = vrot.slane %v3308, %v3312
        %v3314 = vlaneseq
        %v3315 = vshrl.u32 %v3314, 7
        %v3316 = vsub.s32 1, %v3315
        %v3317 = vrot.slane %v3308, %v3316
        %v3318 = vlaneseq
        %v3319 = vshrl.u32 %v3318, 7
        %v3320 = vsub.s32 2, %v3319
        %v3321 = vrot.slane %v3308, %v3320
        %3322 = vrot.lane.b32.xlu0 %v3313, 32
        %v3323 = vpop.permute.xlu0 %3322
        %3324 = vrot.lane.b32.xlu0 %v3317, 32
        %v3325 = vpop.permute.xlu0 %3324
        %3326 = vrot.lane.b32.xlu0 %v3321, 32
        %v3327 = vpop.permute.xlu0 %3326
        %v3328 = vsel %vm594, %v3323, %v3325
        %v3329 = vsel %vm594, %v3325, %v3327
        %v3332 = vsel %vm2125, %v3328, 0.0
        %v3333 = vsel %vm2126, %v3329, 0.0
        %v3334 = vadd.f32 %v3305, %v3332
        %v3335 = vadd.f32 %v3306, %v3333
        %s3336 = scalar_lea.vmem [#allocation2], 135
        %v3337 = vld [vmem:[%s3336] ss:$8 sm:$0x7]
        %v3339 = vlaneseq
        %v3340 = vshrl.u32 %v3339, 7
        %v3341 = vsub.s32 0, %v3340
        %v3342 = vrot.slane %v3337, %v3341
        %v3343 = vlaneseq
        %v3344 = vshrl.u32 %v3343, 7
        %v3345 = vsub.s32 1, %v3344
        %v3346 = vrot.slane %v3337, %v3345
        %v3347 = vlaneseq
        %v3348 = vshrl.u32 %v3347, 7
        %v3349 = vsub.s32 2, %v3348
        %v3350 = vrot.slane %v3337, %v3349
        %3351 = vrot.lane.b32.xlu0 %v3342, 31
        %v3352 = vpop.permute.xlu0 %3351
        %3353 = vrot.lane.b32.xlu0 %v3346, 31
        %v3354 = vpop.permute.xlu0 %3353
        %3355 = vrot.lane.b32.xlu0 %v3350, 31
        %v3356 = vpop.permute.xlu0 %3355
        %vm3357 = vcmask 252928
        %v3358 = vsel %vm3357, %v3352, %v3354
        %v3359 = vsel %vm3357, %v3354, %v3356
        %v3362 = vsel %vm2133, %v3358, 0.0
        %v3363 = vsel %vm2134, %v3359, 0.0
        %v3364 = vadd.f32 %v3334, %v3362
        %v3365 = vadd.f32 %v3335, %v3363
        %s3366 = scalar_lea.vmem [#allocation2], 160
        %v3367 = vld [vmem:[%s3366] ss:$8 sm:$0x7]
        %v3369 = vlaneseq
        %v3370 = vshrl.u32 %v3369, 7
        %v3371 = vsub.s32 0, %v3370
        %v3372 = vrot.slane %v3367, %v3371
        %v3373 = vlaneseq
        %v3374 = vshrl.u32 %v3373, 7
        %v3375 = vsub.s32 1, %v3374
        %v3376 = vrot.slane %v3367, %v3375
        %v3377 = vlaneseq
        %v3378 = vshrl.u32 %v3377, 7
        %v3379 = vsub.s32 2, %v3378
        %v3380 = vrot.slane %v3367, %v3379
        %3381 = vrot.lane.b32.xlu0 %v3372, 30
        %v3382 = vpop.permute.xlu0 %3381
        %3383 = vrot.lane.b32.xlu0 %v3376, 30
        %v3384 = vpop.permute.xlu0 %3383
        %3385 = vrot.lane.b32.xlu0 %v3380, 30
        %v3386 = vpop.permute.xlu0 %3385
        %vm3387 = vcmask 244736
        %v3388 = vsel %vm3387, %v3382, %v3384
        %v3389 = vsel %vm3387, %v3384, %v3386
        %v3392 = vsel %vm2141, %v3388, 0.0
        %v3393 = vsel %vm2142, %v3389, 0.0
        %v3394 = vadd.f32 %v3364, %v3392
        %v3395 = vadd.f32 %v3365, %v3393
        %s3396 = scalar_lea.vmem [#allocation2], 161
        %v3397 = vld [vmem:[%s3396] ss:$8 sm:$0x7]
        %v3399 = vlaneseq
        %v3400 = vshrl.u32 %v3399, 7
        %v3401 = vsub.s32 0, %v3400
        %v3402 = vrot.slane %v3397, %v3401
        %v3403 = vlaneseq
        %v3404 = vshrl.u32 %v3403, 7
        %v3405 = vsub.s32 1, %v3404
        %v3406 = vrot.slane %v3397, %v3405
        %v3407 = vlaneseq
        %v3408 = vshrl.u32 %v3407, 7
        %v3409 = vsub.s32 2, %v3408
        %v3410 = vrot.slane %v3397, %v3409
        %3411 = vrot.lane.b32.xlu0 %v3402, 29
        %v3412 = vpop.permute.xlu0 %3411
        %3413 = vrot.lane.b32.xlu0 %v3406, 29
        %v3414 = vpop.permute.xlu0 %3413
        %3415 = vrot.lane.b32.xlu0 %v3410, 29
        %v3416 = vpop.permute.xlu0 %3415
        %vm3417 = vcmask 236544
        %v3418 = vsel %vm3417, %v3412, %v3414
        %v3419 = vsel %vm3417, %v3414, %v3416
        %v3422 = vsel %vm2149, %v3418, 0.0
        %v3423 = vsel %vm2150, %v3419, 0.0
        %v3424 = vadd.f32 %v3394, %v3422
        %v3425 = vadd.f32 %v3395, %v3423
        %s3426 = scalar_lea.vmem [#allocation2], 162
        %v3427 = vld [vmem:[%s3426] ss:$8 sm:$0x7]
        %v3429 = vlaneseq
        %v3430 = vshrl.u32 %v3429, 7
        %v3431 = vsub.s32 0, %v3430
        %v3432 = vrot.slane %v3427, %v3431
        %v3433 = vlaneseq
        %v3434 = vshrl.u32 %v3433, 7
        %v3435 = vsub.s32 1, %v3434
        %v3436 = vrot.slane %v3427, %v3435
        %v3437 = vlaneseq
        %v3438 = vshrl.u32 %v3437, 7
        %v3439 = vsub.s32 2, %v3438
        %v3440 = vrot.slane %v3427, %v3439
        %3441 = vrot.lane.b32.xlu0 %v3432, 28
        %v3442 = vpop.permute.xlu0 %3441
        %3443 = vrot.lane.b32.xlu0 %v3436, 28
        %v3444 = vpop.permute.xlu0 %3443
        %3445 = vrot.lane.b32.xlu0 %v3440, 28
        %v3446 = vpop.permute.xlu0 %3445
        %vm3447 = vcmask 228352
        %v3448 = vsel %vm3447, %v3442, %v3444
        %v3449 = vsel %vm3447, %v3444, %v3446
        %v3452 = vsel %vm2157, %v3448, 0.0
        %v3453 = vsel %vm2158, %v3449, 0.0
        %v3454 = vadd.f32 %v3424, %v3452
        %v3455 = vadd.f32 %v3425, %v3453
        %s3456 = scalar_lea.vmem [#allocation2], 163
        %v3457 = vld [vmem:[%s3456] ss:$8 sm:$0x7]
        %v3459 = vlaneseq
        %v3460 = vshrl.u32 %v3459, 7
        %v3461 = vsub.s32 0, %v3460
        %v3462 = vrot.slane %v3457, %v3461
        %v3463 = vlaneseq
        %v3464 = vshrl.u32 %v3463, 7
        %v3465 = vsub.s32 1, %v3464
        %v3466 = vrot.slane %v3457, %v3465
        %v3467 = vlaneseq
        %v3468 = vshrl.u32 %v3467, 7
        %v3469 = vsub.s32 2, %v3468
        %v3470 = vrot.slane %v3457, %v3469
        %3471 = vrot.lane.b32.xlu0 %v3462, 27
        %v3472 = vpop.permute.xlu0 %3471
        %3473 = vrot.lane.b32.xlu0 %v3466, 27
        %v3474 = vpop.permute.xlu0 %3473
        %3475 = vrot.lane.b32.xlu0 %v3470, 27
        %v3476 = vpop.permute.xlu0 %3475
        %vm3477 = vcmask 220160
        %v3478 = vsel %vm3477, %v3472, %v3474
        %v3479 = vsel %vm3477, %v3474, %v3476
        %v3482 = vsel %vm2165, %v3478, 0.0
        %v3483 = vsel %vm2166, %v3479, 0.0
        %v3484 = vadd.f32 %v3454, %v3482
        %v3485 = vadd.f32 %v3455, %v3483
        %s3486 = scalar_lea.vmem [#allocation2], 164
        %v3487 = vld [vmem:[%s3486] ss:$8 sm:$0x7]
        %v3489 = vlaneseq
        %v3490 = vshrl.u32 %v3489, 7
        %v3491 = vsub.s32 0, %v3490
        %v3492 = vrot.slane %v3487, %v3491
        %v3493 = vlaneseq
        %v3494 = vshrl.u32 %v3493, 7
        %v3495 = vsub.s32 1, %v3494
        %v3496 = vrot.slane %v3487, %v3495
        %v3497 = vlaneseq
        %v3498 = vshrl.u32 %v3497, 7
        %v3499 = vsub.s32 2, %v3498
        %v3500 = vrot.slane %v3487, %v3499
        %3501 = vrot.lane.b32.xlu0 %v3492, 21
        %v3502 = vpop.permute.xlu0 %3501
        %3503 = vrot.lane.b32.xlu0 %v3496, 21
        %v3504 = vpop.permute.xlu0 %3503
        %3505 = vrot.lane.b32.xlu0 %v3500, 21
        %v3506 = vpop.permute.xlu0 %3505
        %vm3507 = vcmask 171008
        %v3508 = vsel %vm3507, %v3502, %v3504
        %v3509 = vsel %vm3507, %v3504, %v3506
        %v3512 = vsel %vm2087, %v3508, 0.0
        %v3513 = vsel %vm2088, %v3509, 0.0
        %v3514 = vadd.f32 %v3484, %v3512
        %v3515 = vadd.f32 %v3485, %v3513
        %s3516 = scalar_lea.vmem [#allocation2], 165
        %v3517 = vld [vmem:[%s3516] ss:$8 sm:$0x7]
        %v3519 = vlaneseq
        %v3520 = vshrl.u32 %v3519, 7
        %v3521 = vsub.s32 0, %v3520
        %v3522 = vrot.slane %v3517, %v3521
        %v3523 = vlaneseq
        %v3524 = vshrl.u32 %v3523, 7
        %v3525 = vsub.s32 1, %v3524
        %v3526 = vrot.slane %v3517, %v3525
        %v3527 = vlaneseq
        %v3528 = vshrl.u32 %v3527, 7
        %v3529 = vsub.s32 2, %v3528
        %v3530 = vrot.slane %v3517, %v3529
        %3531 = vrot.lane.b32.xlu0 %v3522, 20
        %v3532 = vpop.permute.xlu0 %3531
        %3533 = vrot.lane.b32.xlu0 %v3526, 20
        %v3534 = vpop.permute.xlu0 %3533
        %3535 = vrot.lane.b32.xlu0 %v3530, 20
        %v3536 = vpop.permute.xlu0 %3535
        %vm3537 = vcmask 162816
        %v3538 = vsel %vm3537, %v3532, %v3534
        %v3539 = vsel %vm3537, %v3534, %v3536
        %v3542 = vsel %vm2095, %v3538, 0.0
        %v3543 = vsel %vm2096, %v3539, 0.0
        %v3544 = vadd.f32 %v3514, %v3542
        %v3545 = vadd.f32 %v3515, %v3543
        %s3546 = scalar_lea.vmem [#allocation2], 166
        %v3547 = vld [vmem:[%s3546] ss:$8 sm:$0x7]
        %v3549 = vlaneseq
        %v3550 = vshrl.u32 %v3549, 7
        %v3551 = vsub.s32 0, %v3550
        %v3552 = vrot.slane %v3547, %v3551
        %v3553 = vlaneseq
        %v3554 = vshrl.u32 %v3553, 7
        %v3555 = vsub.s32 1, %v3554
        %v3556 = vrot.slane %v3547, %v3555
        %v3557 = vlaneseq
        %v3558 = vshrl.u32 %v3557, 7
        %v3559 = vsub.s32 2, %v3558
        %v3560 = vrot.slane %v3547, %v3559
        %3561 = vrot.lane.b32.xlu0 %v3552, 19
        %v3562 = vpop.permute.xlu0 %3561
        %3563 = vrot.lane.b32.xlu0 %v3556, 19
        %v3564 = vpop.permute.xlu0 %3563
        %3565 = vrot.lane.b32.xlu0 %v3560, 19
        %v3566 = vpop.permute.xlu0 %3565
        %vm3567 = vcmask 154624
        %v3568 = vsel %vm3567, %v3562, %v3564
        %v3569 = vsel %vm3567, %v3564, %v3566
        %v3572 = vsel %vm2103, %v3568, 0.0
        %v3573 = vsel %vm2104, %v3569, 0.0
        %v3574 = vadd.f32 %v3544, %v3572
        %v3575 = vadd.f32 %v3545, %v3573
        %s3576 = scalar_lea.vmem [#allocation2], 167
        %v3577 = vld [vmem:[%s3576] ss:$8 sm:$0x7]
        %v3579 = vlaneseq
        %v3580 = vshrl.u32 %v3579, 7
        %v3581 = vsub.s32 0, %v3580
        %v3582 = vrot.slane %v3577, %v3581
        %v3583 = vlaneseq
        %v3584 = vshrl.u32 %v3583, 7
        %v3585 = vsub.s32 1, %v3584
        %v3586 = vrot.slane %v3577, %v3585
        %v3587 = vlaneseq
        %v3588 = vshrl.u32 %v3587, 7
        %v3589 = vsub.s32 2, %v3588
        %v3590 = vrot.slane %v3577, %v3589
        %3591 = vrot.lane.b32.xlu0 %v3582, 18
        %v3592 = vpop.permute.xlu0 %3591
        %3593 = vrot.lane.b32.xlu0 %v3586, 18
        %v3594 = vpop.permute.xlu0 %3593
        %3595 = vrot.lane.b32.xlu0 %v3590, 18
        %v3596 = vpop.permute.xlu0 %3595
        %vm3597 = vcmask 146432
        %v3598 = vsel %vm3597, %v3592, %v3594
        %v3599 = vsel %vm3597, %v3594, %v3596
        %v3602 = vsel %vm2111, %v3598, 0.0
        %v3603 = vsel %vm2112, %v3599, 0.0
        %v3604 = vadd.f32 %v3574, %v3602
        %v3605 = vadd.f32 %v3575, %v3603
        %s3606 = scalar_lea.vmem [#allocation2], 192
        %v3607 = vld [vmem:[%s3606] ss:$8 sm:$0x7]
        %v3609 = vlaneseq
        %v3610 = vshrl.u32 %v3609, 7
        %v3611 = vsub.s32 0, %v3610
        %v3612 = vrot.slane %v3607, %v3611
        %v3613 = vlaneseq
        %v3614 = vshrl.u32 %v3613, 7
        %v3615 = vsub.s32 1, %v3614
        %v3616 = vrot.slane %v3607, %v3615
        %v3617 = vlaneseq
        %v3618 = vshrl.u32 %v3617, 7
        %v3619 = vsub.s32 2, %v3618
        %v3620 = vrot.slane %v3607, %v3619
        %3621 = vrot.lane.b32.xlu0 %v3612, 17
        %v3622 = vpop.permute.xlu0 %3621
        %3623 = vrot.lane.b32.xlu0 %v3616, 17
        %v3624 = vpop.permute.xlu0 %3623
        %3625 = vrot.lane.b32.xlu0 %v3620, 17
        %v3626 = vpop.permute.xlu0 %3625
        %vm3627 = vcmask 138240
        %v3628 = vsel %vm3627, %v3622, %v3624
        %v3629 = vsel %vm3627, %v3624, %v3626
        %v3632 = vsel %vm2119, %v3628, 0.0
        %v3633 = vsel %vm2120, %v3629, 0.0
        %v3634 = vadd.f32 %v3604, %v3632
        %v3635 = vadd.f32 %v3605, %v3633
        %s3636 = scalar_lea.vmem [#allocation2], 193
        %v3637 = vld [vmem:[%s3636] ss:$8 sm:$0x7]
        %v3639 = vlaneseq
        %v3640 = vshrl.u32 %v3639, 7
        %v3641 = vsub.s32 0, %v3640
        %v3642 = vrot.slane %v3637, %v3641
        %v3643 = vlaneseq
        %v3644 = vshrl.u32 %v3643, 7
        %v3645 = vsub.s32 1, %v3644
        %v3646 = vrot.slane %v3637, %v3645
        %v3647 = vlaneseq
        %v3648 = vshrl.u32 %v3647, 7
        %v3649 = vsub.s32 2, %v3648
        %v3650 = vrot.slane %v3637, %v3649
        %3651 = vrot.lane.b32.xlu0 %v3642, 16
        %v3652 = vpop.permute.xlu0 %3651
        %3653 = vrot.lane.b32.xlu0 %v3646, 16
        %v3654 = vpop.permute.xlu0 %3653
        %3655 = vrot.lane.b32.xlu0 %v3650, 16
        %v3656 = vpop.permute.xlu0 %3655
        %vm3657 = vcmask 130048
        %v3658 = vsel %vm3657, %v3652, %v3654
        %v3659 = vsel %vm3657, %v3654, %v3656
        %v3662 = vsel %vm2125, %v3658, 0.0
        %v3663 = vsel %vm2126, %v3659, 0.0
        %v3664 = vadd.f32 %v3634, %v3662
        %v3665 = vadd.f32 %v3635, %v3663
        %s3666 = scalar_lea.vmem [#allocation2], 194
        %v3667 = vld [vmem:[%s3666] ss:$8 sm:$0x7]
        %v3669 = vlaneseq
        %v3670 = vshrl.u32 %v3669, 7
        %v3671 = vsub.s32 0, %v3670
        %v3672 = vrot.slane %v3667, %v3671
        %v3673 = vlaneseq
        %v3674 = vshrl.u32 %v3673, 7
        %v3675 = vsub.s32 1, %v3674
        %v3676 = vrot.slane %v3667, %v3675
        %v3677 = vlaneseq
        %v3678 = vshrl.u32 %v3677, 7
        %v3679 = vsub.s32 2, %v3678
        %v3680 = vrot.slane %v3667, %v3679
        %3681 = vrot.lane.b32.xlu0 %v3672, 15
        %v3682 = vpop.permute.xlu0 %3681
        %3683 = vrot.lane.b32.xlu0 %v3676, 15
        %v3684 = vpop.permute.xlu0 %3683
        %3685 = vrot.lane.b32.xlu0 %v3680, 15
        %v3686 = vpop.permute.xlu0 %3685
        %vm3687 = vcmask 121856
        %v3688 = vsel %vm3687, %v3682, %v3684
        %v3689 = vsel %vm3687, %v3684, %v3686
        %v3692 = vsel %vm2133, %v3688, 0.0
        %v3693 = vsel %vm2134, %v3689, 0.0
        %v3694 = vadd.f32 %v3664, %v3692
        %v3695 = vadd.f32 %v3665, %v3693
        %s3696 = scalar_lea.vmem [#allocation2], 195
        %v3697 = vld [vmem:[%s3696] ss:$8 sm:$0x7]
        %v3699 = vlaneseq
        %v3700 = vshrl.u32 %v3699, 7
        %v3701 = vsub.s32 0, %v3700
        %v3702 = vrot.slane %v3697, %v3701
        %v3703 = vlaneseq
        %v3704 = vshrl.u32 %v3703, 7
        %v3705 = vsub.s32 1, %v3704
        %v3706 = vrot.slane %v3697, %v3705
        %v3707 = vlaneseq
        %v3708 = vshrl.u32 %v3707, 7
        %v3709 = vsub.s32 2, %v3708
        %v3710 = vrot.slane %v3697, %v3709
        %3711 = vrot.lane.b32.xlu0 %v3702, 14
        %v3712 = vpop.permute.xlu0 %3711
        %3713 = vrot.lane.b32.xlu0 %v3706, 14
        %v3714 = vpop.permute.xlu0 %3713
        %3715 = vrot.lane.b32.xlu0 %v3710, 14
        %v3716 = vpop.permute.xlu0 %3715
        %vm3717 = vcmask 113664
        %v3718 = vsel %vm3717, %v3712, %v3714
        %v3719 = vsel %vm3717, %v3714, %v3716
        %v3722 = vsel %vm2141, %v3718, 0.0
        %v3723 = vsel %vm2142, %v3719, 0.0
        %v3724 = vadd.f32 %v3694, %v3722
        %v3725 = vadd.f32 %v3695, %v3723
        %s3726 = scalar_lea.vmem [#allocation2], 196
        %v3727 = vld [vmem:[%s3726] ss:$8 sm:$0x7]
        %v3729 = vlaneseq
        %v3730 = vshrl.u32 %v3729, 7
        %v3731 = vsub.s32 0, %v3730
        %v3732 = vrot.slane %v3727, %v3731
        %v3733 = vlaneseq
        %v3734 = vshrl.u32 %v3733, 7
        %v3735 = vsub.s32 1, %v3734
        %v3736 = vrot.slane %v3727, %v3735
        %v3737 = vlaneseq
        %v3738 = vshrl.u32 %v3737, 7
        %v3739 = vsub.s32 2, %v3738
        %v3740 = vrot.slane %v3727, %v3739
        %3741 = vrot.lane.b32.xlu0 %v3732, 13
        %v3742 = vpop.permute.xlu0 %3741
        %3743 = vrot.lane.b32.xlu0 %v3736, 13
        %v3744 = vpop.permute.xlu0 %3743
        %3745 = vrot.lane.b32.xlu0 %v3740, 13
        %v3746 = vpop.permute.xlu0 %3745
        %vm3747 = vcmask 105472
        %v3748 = vsel %vm3747, %v3742, %v3744
        %v3749 = vsel %vm3747, %v3744, %v3746
        %v3752 = vsel %vm2149, %v3748, 0.0
        %v3753 = vsel %vm2150, %v3749, 0.0
        %v3754 = vadd.f32 %v3724, %v3752
        %v3755 = vadd.f32 %v3725, %v3753
        %s3756 = scalar_lea.vmem [#allocation2], 197
        %v3757 = vld [vmem:[%s3756] ss:$8 sm:$0x7]
        %v3759 = vlaneseq
        %v3760 = vshrl.u32 %v3759, 7
        %v3761 = vsub.s32 0, %v3760
        %v3762 = vrot.slane %v3757, %v3761
        %v3763 = vlaneseq
        %v3764 = vshrl.u32 %v3763, 7
        %v3765 = vsub.s32 1, %v3764
        %v3766 = vrot.slane %v3757, %v3765
        %v3767 = vlaneseq
        %v3768 = vshrl.u32 %v3767, 7
        %v3769 = vsub.s32 2, %v3768
        %v3770 = vrot.slane %v3757, %v3769
        %3771 = vrot.lane.b32.xlu0 %v3762, 12
        %v3772 = vpop.permute.xlu0 %3771
        %3773 = vrot.lane.b32.xlu0 %v3766, 12
        %v3774 = vpop.permute.xlu0 %3773
        %3775 = vrot.lane.b32.xlu0 %v3770, 12
        %v3776 = vpop.permute.xlu0 %3775
        %vm3777 = vcmask 97280
        %v3778 = vsel %vm3777, %v3772, %v3774
        %v3779 = vsel %vm3777, %v3774, %v3776
        %v3782 = vsel %vm2157, %v3778, 0.0
        %v3783 = vsel %vm2158, %v3779, 0.0
        %v3784 = vadd.f32 %v3754, %v3782
        %v3785 = vadd.f32 %v3755, %v3783
        %s3786 = scalar_lea.vmem [#allocation2], 198
        %v3787 = vld [vmem:[%s3786] ss:$8 sm:$0x7]
        %v3789 = vlaneseq
        %v3790 = vshrl.u32 %v3789, 7
        %v3791 = vsub.s32 0, %v3790
        %v3792 = vrot.slane %v3787, %v3791
        %v3793 = vlaneseq
        %v3794 = vshrl.u32 %v3793, 7
        %v3795 = vsub.s32 1, %v3794
        %v3796 = vrot.slane %v3787, %v3795
        %v3797 = vlaneseq
        %v3798 = vshrl.u32 %v3797, 7
        %v3799 = vsub.s32 2, %v3798
        %v3800 = vrot.slane %v3787, %v3799
        %3801 = vrot.lane.b32.xlu0 %v3792, 11
        %v3802 = vpop.permute.xlu0 %3801
        %3803 = vrot.lane.b32.xlu0 %v3796, 11
        %v3804 = vpop.permute.xlu0 %3803
        %3805 = vrot.lane.b32.xlu0 %v3800, 11
        %v3806 = vpop.permute.xlu0 %3805
        %vm3807 = vcmask 89088
        %v3808 = vsel %vm3807, %v3802, %v3804
        %v3809 = vsel %vm3807, %v3804, %v3806
        %v3812 = vsel %vm2165, %v3808, 0.0
        %v3813 = vsel %vm2166, %v3809, 0.0
        %v3814 = vadd.f32 %v3784, %v3812
        %v3815 = vadd.f32 %v3785, %v3813
        %s3816 = scalar_lea.vmem [#allocation2], 199
        %v3817 = vld [vmem:[%s3816] ss:$8 sm:$0x7]
        %v3819 = vlaneseq
        %v3820 = vshrl.u32 %v3819, 7
        %v3821 = vsub.s32 0, %v3820
        %v3822 = vrot.slane %v3817, %v3821
        %v3823 = vlaneseq
        %v3824 = vshrl.u32 %v3823, 7
        %v3825 = vsub.s32 1, %v3824
        %v3826 = vrot.slane %v3817, %v3825
        %v3827 = vlaneseq
        %v3828 = vshrl.u32 %v3827, 7
        %v3829 = vsub.s32 2, %v3828
        %v3830 = vrot.slane %v3817, %v3829
        %3831 = vrot.lane.b32.xlu0 %v3822, 5
        %v3832 = vpop.permute.xlu0 %3831
        %3833 = vrot.lane.b32.xlu0 %v3826, 5
        %v3834 = vpop.permute.xlu0 %3833
        %3835 = vrot.lane.b32.xlu0 %v3830, 5
        %v3836 = vpop.permute.xlu0 %3835
        %vm3837 = vcmask 39936
        %v3838 = vsel %vm3837, %v3832, %v3834
        %v3839 = vsel %vm3837, %v3834, %v3836
        %v3842 = vsel %vm2087, %v3838, 0.0
        %v3843 = vsel %vm2088, %v3839, 0.0
        %v3844 = vadd.f32 %v3814, %v3842
        %v3845 = vadd.f32 %v3815, %v3843
        %s3846 = scalar_lea.vmem [#allocation2], 224
        %v3847 = vld [vmem:[%s3846] ss:$8 sm:$0x7]
        %v3849 = vlaneseq
        %v3850 = vshrl.u32 %v3849, 7
        %v3851 = vsub.s32 0, %v3850
        %v3852 = vrot.slane %v3847, %v3851
        %v3853 = vlaneseq
        %v3854 = vshrl.u32 %v3853, 7
        %v3855 = vsub.s32 1, %v3854
        %v3856 = vrot.slane %v3847, %v3855
        %v3857 = vlaneseq
        %v3858 = vshrl.u32 %v3857, 7
        %v3859 = vsub.s32 2, %v3858
        %v3860 = vrot.slane %v3847, %v3859
        %3861 = vrot.lane.b32.xlu0 %v3852, 4
        %v3862 = vpop.permute.xlu0 %3861
        %3863 = vrot.lane.b32.xlu0 %v3856, 4
        %v3864 = vpop.permute.xlu0 %3863
        %3865 = vrot.lane.b32.xlu0 %v3860, 4
        %v3866 = vpop.permute.xlu0 %3865
        %v3867 = vsel %vm950, %v3862, %v3864
        %v3868 = vsel %vm950, %v3864, %v3866
        %v3871 = vsel %vm2095, %v3867, 0.0
        %v3872 = vsel %vm2096, %v3868, 0.0
        %v3873 = vadd.f32 %v3844, %v3871
        %v3874 = vadd.f32 %v3845, %v3872
        %s3875 = scalar_lea.vmem [#allocation2], 225
        %v3876 = vld [vmem:[%s3875] ss:$8 sm:$0x7]
        %v3878 = vlaneseq
        %v3879 = vshrl.u32 %v3878, 7
        %v3880 = vsub.s32 0, %v3879
        %v3881 = vrot.slane %v3876, %v3880
        %v3882 = vlaneseq
        %v3883 = vshrl.u32 %v3882, 7
        %v3884 = vsub.s32 1, %v3883
        %v3885 = vrot.slane %v3876, %v3884
        %v3886 = vlaneseq
        %v3887 = vshrl.u32 %v3886, 7
        %v3888 = vsub.s32 2, %v3887
        %v3889 = vrot.slane %v3876, %v3888
        %3890 = vrot.lane.b32.xlu0 %v3881, 3
        %v3891 = vpop.permute.xlu0 %3890
        %3892 = vrot.lane.b32.xlu0 %v3885, 3
        %v3893 = vpop.permute.xlu0 %3892
        %3894 = vrot.lane.b32.xlu0 %v3889, 3
        %v3895 = vpop.permute.xlu0 %3894
        %vm3896 = vcmask 23552
        %v3897 = vsel %vm3896, %v3891, %v3893
        %v3898 = vsel %vm3896, %v3893, %v3895
        %v3901 = vsel %vm2103, %v3897, 0.0
        %v3902 = vsel %vm2104, %v3898, 0.0
        %v3903 = vadd.f32 %v3873, %v3901
        %v3904 = vadd.f32 %v3874, %v3902
        %s3905 = scalar_lea.vmem [#allocation2], 226
        %v3906 = vld [vmem:[%s3905] ss:$8 sm:$0x7]
        %v3908 = vlaneseq
        %v3909 = vshrl.u32 %v3908, 7
        %v3910 = vsub.s32 0, %v3909
        %v3911 = vrot.slane %v3906, %v3910
        %v3912 = vlaneseq
        %v3913 = vshrl.u32 %v3912, 7
        %v3914 = vsub.s32 1, %v3913
        %v3915 = vrot.slane %v3906, %v3914
        %v3916 = vlaneseq
        %v3917 = vshrl.u32 %v3916, 7
        %v3918 = vsub.s32 2, %v3917
        %v3919 = vrot.slane %v3906, %v3918
        %3920 = vrot.lane.b32.xlu0 %v3911, 2
        %v3921 = vpop.permute.xlu0 %3920
        %3922 = vrot.lane.b32.xlu0 %v3915, 2
        %v3923 = vpop.permute.xlu0 %3922
        %3924 = vrot.lane.b32.xlu0 %v3919, 2
        %v3925 = vpop.permute.xlu0 %3924
        %vm3926 = vcmask 15360
        %v3927 = vsel %vm3926, %v3921, %v3923
        %v3928 = vsel %vm3926, %v3923, %v3925
        %v3931 = vsel %vm2111, %v3927, 0.0
        %v3932 = vsel %vm2112, %v3928, 0.0
        %v3933 = vadd.f32 %v3903, %v3931
        %v3934 = vadd.f32 %v3904, %v3932
        %s3935 = scalar_lea.vmem [#allocation2], 227
        %v3936 = vld [vmem:[%s3935] ss:$8 sm:$0x7]
        %v3938 = vlaneseq
        %v3939 = vshrl.u32 %v3938, 7
        %v3940 = vsub.s32 0, %v3939
        %v3941 = vrot.slane %v3936, %v3940
        %v3942 = vlaneseq
        %v3943 = vshrl.u32 %v3942, 7
        %v3944 = vsub.s32 1, %v3943
        %v3945 = vrot.slane %v3936, %v3944
        %v3946 = vlaneseq
        %v3947 = vshrl.u32 %v3946, 7
        %v3948 = vsub.s32 2, %v3947
        %v3949 = vrot.slane %v3936, %v3948
        %3950 = vrot.lane.b32.xlu0 %v3941, 1
        %v3951 = vpop.permute.xlu0 %3950
        %3952 = vrot.lane.b32.xlu0 %v3945, 1
        %v3953 = vpop.permute.xlu0 %3952
        %3954 = vrot.lane.b32.xlu0 %v3949, 1
        %v3955 = vpop.permute.xlu0 %3954
        %vm3956 = vcmask 7168
        %v3957 = vsel %vm3956, %v3951, %v3953
        %v3958 = vsel %vm3956, %v3953, %v3955
        %v3961 = vsel %vm2119, %v3957, 0.0
        %v3962 = vsel %vm2120, %v3958, 0.0
        %v3963 = vadd.f32 %v3933, %v3961
        %v3964 = vadd.f32 %v3934, %v3962
        %s3965 = scalar_lea.vmem [#allocation2], 236
        %v3966 = vld [vmem:[%s3965] ss:$8 sm:$0x3]
        %v3968 = vlaneseq
        %v3969 = vshrl.u32 %v3968, 7
        %v3970 = vsub.s32 0, %v3969
        %v3971 = vrot.slane %v3966, %v3970
        %v3972 = vlaneseq
        %v3973 = vshrl.u32 %v3972, 7
        %v3974 = vsub.s32 1, %v3973
        %v3975 = vrot.slane %v3966, %v3974
        %v3978 = vsel %vm2125, %v3971, 0.0
        %v3979 = vsel %vm2126, %v3975, 0.0
        %v3980 = vadd.f32 %v3963, %v3978
        %v3981 = vadd.f32 %v3964, %v3979
        %s3982 = scalar_lea.vmem [#allocation2], 237
        %v3983 = vld [vmem:[%s3982] ss:$8 sm:$0x7]
        %v3985 = vlaneseq
        %v3986 = vshrl.u32 %v3985, 7
        %v3987 = vsub.s32 0, %v3986
        %v3988 = vrot.slane %v3983, %v3987
        %v3989 = vlaneseq
        %v3990 = vshrl.u32 %v3989, 7
        %v3991 = vsub.s32 1, %v3990
        %v3992 = vrot.slane %v3983, %v3991
        %v3993 = vlaneseq
        %v3994 = vshrl.u32 %v3993, 7
        %v3995 = vsub.s32 2, %v3994
        %v3996 = vrot.slane %v3983, %v3995
        %3997 = vrot.lane.b32.xlu0 %v3988, 127
        %v3998 = vpop.permute.xlu0 %3997
        %3999 = vrot.lane.b32.xlu0 %v3992, 127
        %v4000 = vpop.permute.xlu0 %3999
        %4001 = vrot.lane.b32.xlu0 %v3996, 127
        %v4002 = vpop.permute.xlu0 %4001
        %vm4003 = vcmask 1039360
        %v4004 = vsel %vm4003, %v3998, %v4000
        %v4005 = vsel %vm4003, %v4000, %v4002
        %v4008 = vsel %vm2133, %v4004, 0.0
        %v4009 = vsel %vm2134, %v4005, 0.0
        %v4010 = vadd.f32 %v3980, %v4008
        %v4011 = vadd.f32 %v3981, %v4009
        %s4012 = scalar_lea.vmem [#allocation2], 238
        %v4013 = vld [vmem:[%s4012] ss:$8 sm:$0x7]
        %v4015 = vlaneseq
        %v4016 = vshrl.u32 %v4015, 7
        %v4017 = vsub.s32 0, %v4016
        %v4018 = vrot.slane %v4013, %v4017
        %v4019 = vlaneseq
        %v4020 = vshrl.u32 %v4019, 7
        %v4021 = vsub.s32 1, %v4020
        %v4022 = vrot.slane %v4013, %v4021
        %v4023 = vlaneseq
        %v4024 = vshrl.u32 %v4023, 7
        %v4025 = vsub.s32 2, %v4024
        %v4026 = vrot.slane %v4013, %v4025
        %4027 = vrot.lane.b32.xlu0 %v4018, 126
        %v4028 = vpop.permute.xlu0 %4027
        %4029 = vrot.lane.b32.xlu0 %v4022, 126
        %v4030 = vpop.permute.xlu0 %4029
        %4031 = vrot.lane.b32.xlu0 %v4026, 126
        %v4032 = vpop.permute.xlu0 %4031
        %vm4033 = vcmask 1031168
        %v4034 = vsel %vm4033, %v4028, %v4030
        %v4035 = vsel %vm4033, %v4030, %v4032
        %v4038 = vsel %vm2141, %v4034, 0.0
        %v4039 = vsel %vm2142, %v4035, 0.0
        %v4040 = vadd.f32 %v4010, %v4038
        %v4041 = vadd.f32 %v4011, %v4039
        %s4042 = scalar_lea.vmem [#allocation2], 239
        %v4043 = vld [vmem:[%s4042] ss:$8 sm:$0x7]
        %v4045 = vlaneseq
        %v4046 = vshrl.u32 %v4045, 7
        %v4047 = vsub.s32 0, %v4046
        %v4048 = vrot.slane %v4043, %v4047
        %v4049 = vlaneseq
        %v4050 = vshrl.u32 %v4049, 7
        %v4051 = vsub.s32 1, %v4050
        %v4052 = vrot.slane %v4043, %v4051
        %v4053 = vlaneseq
        %v4054 = vshrl.u32 %v4053, 7
        %v4055 = vsub.s32 2, %v4054
        %v4056 = vrot.slane %v4043, %v4055
        %4057 = vrot.lane.b32.xlu0 %v4048, 125
        %v4058 = vpop.permute.xlu0 %4057
        %4059 = vrot.lane.b32.xlu0 %v4052, 125
        %v4060 = vpop.permute.xlu0 %4059
        %4061 = vrot.lane.b32.xlu0 %v4056, 125
        %v4062 = vpop.permute.xlu0 %4061
        %vm4063 = vcmask 1022976
        %v4064 = vsel %vm4063, %v4058, %v4060
        %v4065 = vsel %vm4063, %v4060, %v4062
        %v4068 = vsel %vm2149, %v4064, 0.0
        %v4069 = vsel %vm2150, %v4065, 0.0
        %v4070 = vadd.f32 %v4040, %v4068
        %v4071 = vadd.f32 %v4041, %v4069
        %s4072 = scalar_lea.vmem [#allocation2], 264
        %v4073 = vld [vmem:[%s4072] ss:$8 sm:$0x7]
        %v4075 = vlaneseq
        %v4076 = vshrl.u32 %v4075, 7
        %v4077 = vsub.s32 0, %v4076
        %v4078 = vrot.slane %v4073, %v4077
        %v4079 = vlaneseq
        %v4080 = vshrl.u32 %v4079, 7
        %v4081 = vsub.s32 1, %v4080
        %v4082 = vrot.slane %v4073, %v4081
        %v4083 = vlaneseq
        %v4084 = vshrl.u32 %v4083, 7
        %v4085 = vsub.s32 2, %v4084
        %v4086 = vrot.slane %v4073, %v4085
        %4087 = vrot.lane.b32.xlu0 %v4078, 124
        %v4088 = vpop.permute.xlu0 %4087
        %4089 = vrot.lane.b32.xlu0 %v4082, 124
        %v4090 = vpop.permute.xlu0 %4089
        %4091 = vrot.lane.b32.xlu0 %v4086, 124
        %v4092 = vpop.permute.xlu0 %4091
        %vm4093 = vcmask 1014784
        %v4094 = vsel %vm4093, %v4088, %v4090
        %v4095 = vsel %vm4093, %v4090, %v4092
        %v4098 = vsel %vm2157, %v4094, 0.0
        %v4099 = vsel %vm2158, %v4095, 0.0
        %v4100 = vadd.f32 %v4070, %v4098
        %v4101 = vadd.f32 %v4071, %v4099
        %s4102 = scalar_lea.vmem [#allocation2], 265
        %v4103 = vld [vmem:[%s4102] ss:$8 sm:$0x7]
        %v4105 = vlaneseq
        %v4106 = vshrl.u32 %v4105, 7
        %v4107 = vsub.s32 0, %v4106
        %v4108 = vrot.slane %v4103, %v4107
        %v4109 = vlaneseq
        %v4110 = vshrl.u32 %v4109, 7
        %v4111 = vsub.s32 1, %v4110
        %v4112 = vrot.slane %v4103, %v4111
        %v4113 = vlaneseq
        %v4114 = vshrl.u32 %v4113, 7
        %v4115 = vsub.s32 2, %v4114
        %v4116 = vrot.slane %v4103, %v4115
        %4117 = vrot.lane.b32.xlu0 %v4108, 123
        %v4118 = vpop.permute.xlu0 %4117
        %4119 = vrot.lane.b32.xlu0 %v4112, 123
        %v4120 = vpop.permute.xlu0 %4119
        %4121 = vrot.lane.b32.xlu0 %v4116, 123
        %v4122 = vpop.permute.xlu0 %4121
        %vm4123 = vcmask 1006592
        %v4124 = vsel %vm4123, %v4118, %v4120
        %v4125 = vsel %vm4123, %v4120, %v4122
        %v4128 = vsel %vm2165, %v4124, 0.0
        %v4129 = vsel %vm2166, %v4125, 0.0
        %v4130 = vadd.f32 %v4100, %v4128
        %v4131 = vadd.f32 %v4101, %v4129
        %s4132 = scalar_lea.vmem [#allocation2], 266
        %v4133 = vld [vmem:[%s4132] ss:$8 sm:$0x7]
        %v4135 = vlaneseq
        %v4136 = vshrl.u32 %v4135, 7
        %v4137 = vsub.s32 0, %v4136
        %v4138 = vrot.slane %v4133, %v4137
        %v4139 = vlaneseq
        %v4140 = vshrl.u32 %v4139, 7
        %v4141 = vsub.s32 1, %v4140
        %v4142 = vrot.slane %v4133, %v4141
        %v4143 = vlaneseq
        %v4144 = vshrl.u32 %v4143, 7
        %v4145 = vsub.s32 2, %v4144
        %v4146 = vrot.slane %v4133, %v4145
        %4147 = vrot.lane.b32.xlu0 %v4138, 117
        %v4148 = vpop.permute.xlu0 %4147
        %4149 = vrot.lane.b32.xlu0 %v4142, 117
        %v4150 = vpop.permute.xlu0 %4149
        %4151 = vrot.lane.b32.xlu0 %v4146, 117
        %v4152 = vpop.permute.xlu0 %4151
        %vm4153 = vcmask 957440
        %v4154 = vsel %vm4153, %v4148, %v4150
        %v4155 = vsel %vm4153, %v4150, %v4152
        %v4158 = vsel %vm2087, %v4154, 0.0
        %v4159 = vsel %vm2088, %v4155, 0.0
        %v4160 = vadd.f32 %v4130, %v4158
        %v4161 = vadd.f32 %v4131, %v4159
        %s4162 = scalar_lea.vmem [#allocation2], 267
        %v4163 = vld [vmem:[%s4162] ss:$8 sm:$0x7]
        %v4165 = vlaneseq
        %v4166 = vshrl.u32 %v4165, 7
        %v4167 = vsub.s32 0, %v4166
        %v4168 = vrot.slane %v4163, %v4167
        %v4169 = vlaneseq
        %v4170 = vshrl.u32 %v4169, 7
        %v4171 = vsub.s32 1, %v4170
        %v4172 = vrot.slane %v4163, %v4171
        %v4173 = vlaneseq
        %v4174 = vshrl.u32 %v4173, 7
        %v4175 = vsub.s32 2, %v4174
        %v4176 = vrot.slane %v4163, %v4175
        %4177 = vrot.lane.b32.xlu0 %v4168, 116
        %v4178 = vpop.permute.xlu0 %4177
        %4179 = vrot.lane.b32.xlu0 %v4172, 116
        %v4180 = vpop.permute.xlu0 %4179
        %4181 = vrot.lane.b32.xlu0 %v4176, 116
        %v4182 = vpop.permute.xlu0 %4181
        %vm4183 = vcmask 949248
        %v4184 = vsel %vm4183, %v4178, %v4180
        %v4185 = vsel %vm4183, %v4180, %v4182
        %v4188 = vsel %vm2095, %v4184, 0.0
        %v4189 = vsel %vm2096, %v4185, 0.0
        %v4190 = vadd.f32 %v4160, %v4188
        %v4191 = vadd.f32 %v4161, %v4189
        %s4192 = scalar_lea.vmem [#allocation2], 268
        %v4193 = vld [vmem:[%s4192] ss:$8 sm:$0x7]
        %v4195 = vlaneseq
        %v4196 = vshrl.u32 %v4195, 7
        %v4197 = vsub.s32 0, %v4196
        %v4198 = vrot.slane %v4193, %v4197
        %v4199 = vlaneseq
        %v4200 = vshrl.u32 %v4199, 7
        %v4201 = vsub.s32 1, %v4200
        %v4202 = vrot.slane %v4193, %v4201
        %v4203 = vlaneseq
        %v4204 = vshrl.u32 %v4203, 7
        %v4205 = vsub.s32 2, %v4204
        %v4206 = vrot.slane %v4193, %v4205
        %4207 = vrot.lane.b32.xlu0 %v4198, 115
        %v4208 = vpop.permute.xlu0 %4207
        %4209 = vrot.lane.b32.xlu0 %v4202, 115
        %v4210 = vpop.permute.xlu0 %4209
        %4211 = vrot.lane.b32.xlu0 %v4206, 115
        %v4212 = vpop.permute.xlu0 %4211
        %vm4213 = vcmask 941056
        %v4214 = vsel %vm4213, %v4208, %v4210
        %v4215 = vsel %vm4213, %v4210, %v4212
        %v4218 = vsel %vm2103, %v4214, 0.0
        %v4219 = vsel %vm2104, %v4215, 0.0
        %v4220 = vadd.f32 %v4190, %v4218
        %v4221 = vadd.f32 %v4191, %v4219
        %s4222 = scalar_lea.vmem [#allocation2], 269
        %v4223 = vld [vmem:[%s4222] ss:$8 sm:$0x7]
        %v4225 = vlaneseq
        %v4226 = vshrl.u32 %v4225, 7
        %v4227 = vsub.s32 0, %v4226
        %v4228 = vrot.slane %v4223, %v4227
        %v4229 = vlaneseq
        %v4230 = vshrl.u32 %v4229, 7
        %v4231 = vsub.s32 1, %v4230
        %v4232 = vrot.slane %v4223, %v4231
        %v4233 = vlaneseq
        %v4234 = vshrl.u32 %v4233, 7
        %v4235 = vsub.s32 2, %v4234
        %v4236 = vrot.slane %v4223, %v4235
        %4237 = vrot.lane.b32.xlu0 %v4228, 114
        %v4238 = vpop.permute.xlu0 %4237
        %4239 = vrot.lane.b32.xlu0 %v4232, 114
        %v4240 = vpop.permute.xlu0 %4239
        %4241 = vrot.lane.b32.xlu0 %v4236, 114
        %v4242 = vpop.permute.xlu0 %4241
        %vm4243 = vcmask 932864
        %v4244 = vsel %vm4243, %v4238, %v4240
        %v4245 = vsel %vm4243, %v4240, %v4242
        %v4248 = vsel %vm2111, %v4244, 0.0
        %v4249 = vsel %vm2112, %v4245, 0.0
        %v4250 = vadd.f32 %v4220, %v4248
        %v4251 = vadd.f32 %v4221, %v4249
        %s4252 = scalar_lea.vmem [#allocation2], 270
        %v4253 = vld [vmem:[%s4252] ss:$8 sm:$0x7]
        %v4255 = vlaneseq
        %v4256 = vshrl.u32 %v4255, 7
        %v4257 = vsub.s32 0, %v4256
        %v4258 = vrot.slane %v4253, %v4257
        %v4259 = vlaneseq
        %v4260 = vshrl.u32 %v4259, 7
        %v4261 = vsub.s32 1, %v4260
        %v4262 = vrot.slane %v4253, %v4261
        %v4263 = vlaneseq
        %v4264 = vshrl.u32 %v4263, 7
        %v4265 = vsub.s32 2, %v4264
        %v4266 = vrot.slane %v4253, %v4265
        %4267 = vrot.lane.b32.xlu0 %v4258, 113
        %v4268 = vpop.permute.xlu0 %4267
        %4269 = vrot.lane.b32.xlu0 %v4262, 113
        %v4270 = vpop.permute.xlu0 %4269
        %4271 = vrot.lane.b32.xlu0 %v4266, 113
        %v4272 = vpop.permute.xlu0 %4271
        %vm4273 = vcmask 924672
        %v4274 = vsel %vm4273, %v4268, %v4270
        %v4275 = vsel %vm4273, %v4270, %v4272
        %v4278 = vsel %vm2119, %v4274, 0.0
        %v4279 = vsel %vm2120, %v4275, 0.0
        %v4280 = vadd.f32 %v4250, %v4278
        %v4281 = vadd.f32 %v4251, %v4279
        %s4282 = scalar_lea.vmem [#allocation2], 271
        %v4283 = vld [vmem:[%s4282] ss:$8 sm:$0x7]
        %v4285 = vlaneseq
        %v4286 = vshrl.u32 %v4285, 7
        %v4287 = vsub.s32 0, %v4286
        %v4288 = vrot.slane %v4283, %v4287
        %v4289 = vlaneseq
        %v4290 = vshrl.u32 %v4289, 7
        %v4291 = vsub.s32 1, %v4290
        %v4292 = vrot.slane %v4283, %v4291
        %v4293 = vlaneseq
        %v4294 = vshrl.u32 %v4293, 7
        %v4295 = vsub.s32 2, %v4294
        %v4296 = vrot.slane %v4283, %v4295
        %4297 = vrot.lane.b32.xlu0 %v4288, 112
        %v4298 = vpop.permute.xlu0 %4297
        %4299 = vrot.lane.b32.xlu0 %v4292, 112
        %v4300 = vpop.permute.xlu0 %4299
        %4301 = vrot.lane.b32.xlu0 %v4296, 112
        %v4302 = vpop.permute.xlu0 %4301
        %vm4303 = vcmask 916480
        %v4304 = vsel %vm4303, %v4298, %v4300
        %v4305 = vsel %vm4303, %v4300, %v4302
        %v4308 = vsel %vm2125, %v4304, 0.0
        %v4309 = vsel %vm2126, %v4305, 0.0
        %v4310 = vadd.f32 %v4280, %v4308
        %v4311 = vadd.f32 %v4281, %v4309
        %s4312 = scalar_lea.vmem [#allocation2], 296
        %v4313 = vld [vmem:[%s4312] ss:$8 sm:$0x7]
        %v4315 = vlaneseq
        %v4316 = vshrl.u32 %v4315, 7
        %v4317 = vsub.s32 0, %v4316
        %v4318 = vrot.slane %v4313, %v4317
        %v4319 = vlaneseq
        %v4320 = vshrl.u32 %v4319, 7
        %v4321 = vsub.s32 1, %v4320
        %v4322 = vrot.slane %v4313, %v4321
        %v4323 = vlaneseq
        %v4324 = vshrl.u32 %v4323, 7
        %v4325 = vsub.s32 2, %v4324
        %v4326 = vrot.slane %v4313, %v4325
        %4327 = vrot.lane.b32.xlu0 %v4318, 111
        %v4328 = vpop.permute.xlu0 %4327
        %4329 = vrot.lane.b32.xlu0 %v4322, 111
        %v4330 = vpop.permute.xlu0 %4329
        %4331 = vrot.lane.b32.xlu0 %v4326, 111
        %v4332 = vpop.permute.xlu0 %4331
        %vm4333 = vcmask 908288
        %v4334 = vsel %vm4333, %v4328, %v4330
        %v4335 = vsel %vm4333, %v4330, %v4332
        %v4338 = vsel %vm2133, %v4334, 0.0
        %v4339 = vsel %vm2134, %v4335, 0.0
        %v4340 = vadd.f32 %v4310, %v4338
        %v4341 = vadd.f32 %v4311, %v4339
        %s4342 = scalar_lea.vmem [#allocation2], 297
        %v4343 = vld [vmem:[%s4342] ss:$8 sm:$0x7]
        %v4345 = vlaneseq
        %v4346 = vshrl.u32 %v4345, 7
        %v4347 = vsub.s32 0, %v4346
        %v4348 = vrot.slane %v4343, %v4347
        %v4349 = vlaneseq
        %v4350 = vshrl.u32 %v4349, 7
        %v4351 = vsub.s32 1, %v4350
        %v4352 = vrot.slane %v4343, %v4351
        %v4353 = vlaneseq
        %v4354 = vshrl.u32 %v4353, 7
        %v4355 = vsub.s32 2, %v4354
        %v4356 = vrot.slane %v4343, %v4355
        %4357 = vrot.lane.b32.xlu0 %v4348, 110
        %v4358 = vpop.permute.xlu0 %4357
        %4359 = vrot.lane.b32.xlu0 %v4352, 110
        %v4360 = vpop.permute.xlu0 %4359
        %4361 = vrot.lane.b32.xlu0 %v4356, 110
        %v4362 = vpop.permute.xlu0 %4361
        %vm4363 = vcmask 900096
        %v4364 = vsel %vm4363, %v4358, %v4360
        %v4365 = vsel %vm4363, %v4360, %v4362
        %v4368 = vsel %vm2141, %v4364, 0.0
        %v4369 = vsel %vm2142, %v4365, 0.0
        %v4370 = vadd.f32 %v4340, %v4368
        %v4371 = vadd.f32 %v4341, %v4369
        %s4372 = scalar_lea.vmem [#allocation2], 298
        %v4373 = vld [vmem:[%s4372] ss:$8 sm:$0x7]
        %v4375 = vlaneseq
        %v4376 = vshrl.u32 %v4375, 7
        %v4377 = vsub.s32 0, %v4376
        %v4378 = vrot.slane %v4373, %v4377
        %v4379 = vlaneseq
        %v4380 = vshrl.u32 %v4379, 7
        %v4381 = vsub.s32 1, %v4380
        %v4382 = vrot.slane %v4373, %v4381
        %v4383 = vlaneseq
        %v4384 = vshrl.u32 %v4383, 7
        %v4385 = vsub.s32 2, %v4384
        %v4386 = vrot.slane %v4373, %v4385
        %4387 = vrot.lane.b32.xlu0 %v4378, 109
        %v4388 = vpop.permute.xlu0 %4387
        %4389 = vrot.lane.b32.xlu0 %v4382, 109
        %v4390 = vpop.permute.xlu0 %4389
        %4391 = vrot.lane.b32.xlu0 %v4386, 109
        %v4392 = vpop.permute.xlu0 %4391
        %vm4393 = vcmask 891904
        %v4394 = vsel %vm4393, %v4388, %v4390
        %v4395 = vsel %vm4393, %v4390, %v4392
        %v4398 = vsel %vm2149, %v4394, 0.0
        %v4399 = vsel %vm2150, %v4395, 0.0
        %v4400 = vadd.f32 %v4370, %v4398
        %v4401 = vadd.f32 %v4371, %v4399
        %s4402 = scalar_lea.vmem [#allocation2], 299
        %v4403 = vld [vmem:[%s4402] ss:$8 sm:$0x7]
        %v4405 = vlaneseq
        %v4406 = vshrl.u32 %v4405, 7
        %v4407 = vsub.s32 0, %v4406
        %v4408 = vrot.slane %v4403, %v4407
        %v4409 = vlaneseq
        %v4410 = vshrl.u32 %v4409, 7
        %v4411 = vsub.s32 1, %v4410
        %v4412 = vrot.slane %v4403, %v4411
        %v4413 = vlaneseq
        %v4414 = vshrl.u32 %v4413, 7
        %v4415 = vsub.s32 2, %v4414
        %v4416 = vrot.slane %v4403, %v4415
        %4417 = vrot.lane.b32.xlu0 %v4408, 108
        %v4418 = vpop.permute.xlu0 %4417
        %4419 = vrot.lane.b32.xlu0 %v4412, 108
        %v4420 = vpop.permute.xlu0 %4419
        %4421 = vrot.lane.b32.xlu0 %v4416, 108
        %v4422 = vpop.permute.xlu0 %4421
        %vm4423 = vcmask 883712
        %v4424 = vsel %vm4423, %v4418, %v4420
        %v4425 = vsel %vm4423, %v4420, %v4422
        %v4428 = vsel %vm2157, %v4424, 0.0
        %v4429 = vsel %vm2158, %v4425, 0.0
        %v4430 = vadd.f32 %v4400, %v4428
        %v4431 = vadd.f32 %v4401, %v4429
        %s4432 = scalar_lea.vmem [#allocation2], 300
        %v4433 = vld [vmem:[%s4432] ss:$8 sm:$0x7]
        %v4435 = vlaneseq
        %v4436 = vshrl.u32 %v4435, 7
        %v4437 = vsub.s32 0, %v4436
        %v4438 = vrot.slane %v4433, %v4437
        %v4439 = vlaneseq
        %v4440 = vshrl.u32 %v4439, 7
        %v4441 = vsub.s32 1, %v4440
        %v4442 = vrot.slane %v4433, %v4441
        %v4443 = vlaneseq
        %v4444 = vshrl.u32 %v4443, 7
        %v4445 = vsub.s32 2, %v4444
        %v4446 = vrot.slane %v4433, %v4445
        %4447 = vrot.lane.b32.xlu0 %v4438, 107
        %v4448 = vpop.permute.xlu0 %4447
        %4449 = vrot.lane.b32.xlu0 %v4442, 107
        %v4450 = vpop.permute.xlu0 %4449
        %4451 = vrot.lane.b32.xlu0 %v4446, 107
        %v4452 = vpop.permute.xlu0 %4451
        %vm4453 = vcmask 875520
        %v4454 = vsel %vm4453, %v4448, %v4450
        %v4455 = vsel %vm4453, %v4450, %v4452
        %v4458 = vsel %vm2165, %v4454, 0.0
        %v4459 = vsel %vm2166, %v4455, 0.0
        %v4460 = vadd.f32 %v4430, %v4458
        %v4461 = vadd.f32 %v4431, %v4459
        %s4462 = scalar_lea.vmem [#allocation2], 301
        %v4463 = vld [vmem:[%s4462] ss:$8 sm:$0x7]
        %v4465 = vlaneseq
        %v4466 = vshrl.u32 %v4465, 7
        %v4467 = vsub.s32 0, %v4466
        %v4468 = vrot.slane %v4463, %v4467
        %v4469 = vlaneseq
        %v4470 = vshrl.u32 %v4469, 7
        %v4471 = vsub.s32 1, %v4470
        %v4472 = vrot.slane %v4463, %v4471
        %v4473 = vlaneseq
        %v4474 = vshrl.u32 %v4473, 7
        %v4475 = vsub.s32 2, %v4474
        %v4476 = vrot.slane %v4463, %v4475
        %4477 = vrot.lane.b32.xlu0 %v4468, 101
        %v4478 = vpop.permute.xlu0 %4477
        %4479 = vrot.lane.b32.xlu0 %v4472, 101
        %v4480 = vpop.permute.xlu0 %4479
        %4481 = vrot.lane.b32.xlu0 %v4476, 101
        %v4482 = vpop.permute.xlu0 %4481
        %vm4483 = vcmask 826368
        %v4484 = vsel %vm4483, %v4478, %v4480
        %v4485 = vsel %vm4483, %v4480, %v4482
        %v4488 = vsel %vm2087, %v4484, 0.0
        %v4489 = vsel %vm2088, %v4485, 0.0
        %v4490 = vadd.f32 %v4460, %v4488
        %v4491 = vadd.f32 %v4461, %v4489
        %s4492 = scalar_lea.vmem [#allocation2], 302
        %v4493 = vld [vmem:[%s4492] ss:$8 sm:$0x7]
        %v4495 = vlaneseq
        %v4496 = vshrl.u32 %v4495, 7
        %v4497 = vsub.s32 0, %v4496
        %v4498 = vrot.slane %v4493, %v4497
        %v4499 = vlaneseq
        %v4500 = vshrl.u32 %v4499, 7
        %v4501 = vsub.s32 1, %v4500
        %v4502 = vrot.slane %v4493, %v4501
        %v4503 = vlaneseq
        %v4504 = vshrl.u32 %v4503, 7
        %v4505 = vsub.s32 2, %v4504
        %v4506 = vrot.slane %v4493, %v4505
        %4507 = vrot.lane.b32.xlu0 %v4498, 100
        %v4508 = vpop.permute.xlu0 %4507
        %4509 = vrot.lane.b32.xlu0 %v4502, 100
        %v4510 = vpop.permute.xlu0 %4509
        %4511 = vrot.lane.b32.xlu0 %v4506, 100
        %v4512 = vpop.permute.xlu0 %4511
        %vm4513 = vcmask 818176
        %v4514 = vsel %vm4513, %v4508, %v4510
        %v4515 = vsel %vm4513, %v4510, %v4512
        %v4518 = vsel %vm2095, %v4514, 0.0
        %v4519 = vsel %vm2096, %v4515, 0.0
        %v4520 = vadd.f32 %v4490, %v4518
        %v4521 = vadd.f32 %v4491, %v4519
        %s4522 = scalar_lea.vmem [#allocation2], 303
        %v4523 = vld [vmem:[%s4522] ss:$8 sm:$0x7]
        %v4525 = vlaneseq
        %v4526 = vshrl.u32 %v4525, 7
        %v4527 = vsub.s32 0, %v4526
        %v4528 = vrot.slane %v4523, %v4527
        %v4529 = vlaneseq
        %v4530 = vshrl.u32 %v4529, 7
        %v4531 = vsub.s32 1, %v4530
        %v4532 = vrot.slane %v4523, %v4531
        %v4533 = vlaneseq
        %v4534 = vshrl.u32 %v4533, 7
        %v4535 = vsub.s32 2, %v4534
        %v4536 = vrot.slane %v4523, %v4535
        %4537 = vrot.lane.b32.xlu0 %v4528, 99
        %v4538 = vpop.permute.xlu0 %4537
        %4539 = vrot.lane.b32.xlu0 %v4532, 99
        %v4540 = vpop.permute.xlu0 %4539
        %4541 = vrot.lane.b32.xlu0 %v4536, 99
        %v4542 = vpop.permute.xlu0 %4541
        %vm4543 = vcmask 809984
        %v4544 = vsel %vm4543, %v4538, %v4540
        %v4545 = vsel %vm4543, %v4540, %v4542
        %v4548 = vsel %vm2103, %v4544, 0.0
        %v4549 = vsel %vm2104, %v4545, 0.0
        %v4550 = vadd.f32 %v4520, %v4548
        %v4551 = vadd.f32 %v4521, %v4549
        %s4552 = scalar_lea.vmem [#allocation2], 328
        %v4553 = vld [vmem:[%s4552] ss:$8 sm:$0x7]
        %v4555 = vlaneseq
        %v4556 = vshrl.u32 %v4555, 7
        %v4557 = vsub.s32 0, %v4556
        %v4558 = vrot.slane %v4553, %v4557
        %v4559 = vlaneseq
        %v4560 = vshrl.u32 %v4559, 7
        %v4561 = vsub.s32 1, %v4560
        %v4562 = vrot.slane %v4553, %v4561
        %v4563 = vlaneseq
        %v4564 = vshrl.u32 %v4563, 7
        %v4565 = vsub.s32 2, %v4564
        %v4566 = vrot.slane %v4553, %v4565
        %4567 = vrot.lane.b32.xlu0 %v4558, 98
        %v4568 = vpop.permute.xlu0 %4567
        %4569 = vrot.lane.b32.xlu0 %v4562, 98
        %v4570 = vpop.permute.xlu0 %4569
        %4571 = vrot.lane.b32.xlu0 %v4566, 98
        %v4572 = vpop.permute.xlu0 %4571
        %vm4573 = vcmask 801792
        %v4574 = vsel %vm4573, %v4568, %v4570
        %v4575 = vsel %vm4573, %v4570, %v4572
        %v4578 = vsel %vm2111, %v4574, 0.0
        %v4579 = vsel %vm2112, %v4575, 0.0
        %v4580 = vadd.f32 %v4550, %v4578
        %v4581 = vadd.f32 %v4551, %v4579
        %s4582 = scalar_lea.vmem [#allocation2], 329
        %v4583 = vld [vmem:[%s4582] ss:$8 sm:$0x7]
        %v4585 = vlaneseq
        %v4586 = vshrl.u32 %v4585, 7
        %v4587 = vsub.s32 0, %v4586
        %v4588 = vrot.slane %v4583, %v4587
        %v4589 = vlaneseq
        %v4590 = vshrl.u32 %v4589, 7
        %v4591 = vsub.s32 1, %v4590
        %v4592 = vrot.slane %v4583, %v4591
        %v4593 = vlaneseq
        %v4594 = vshrl.u32 %v4593, 7
        %v4595 = vsub.s32 2, %v4594
        %v4596 = vrot.slane %v4583, %v4595
        %4597 = vrot.lane.b32.xlu0 %v4588, 97
        %v4598 = vpop.permute.xlu0 %4597
        %4599 = vrot.lane.b32.xlu0 %v4592, 97
        %v4600 = vpop.permute.xlu0 %4599
        %4601 = vrot.lane.b32.xlu0 %v4596, 97
        %v4602 = vpop.permute.xlu0 %4601
        %vm4603 = vcmask 793600
        %v4604 = vsel %vm4603, %v4598, %v4600
        %v4605 = vsel %vm4603, %v4600, %v4602
        %v4608 = vsel %vm2119, %v4604, 0.0
        %v4609 = vsel %vm2120, %v4605, 0.0
        %v4610 = vadd.f32 %v4580, %v4608
        %v4611 = vadd.f32 %v4581, %v4609
        %s4612 = scalar_lea.vmem [#allocation2], 330
        %v4613 = vld [vmem:[%s4612] ss:$8 sm:$0x7]
        %v4615 = vlaneseq
        %v4616 = vshrl.u32 %v4615, 7
        %v4617 = vsub.s32 0, %v4616
        %v4618 = vrot.slane %v4613, %v4617
        %v4619 = vlaneseq
        %v4620 = vshrl.u32 %v4619, 7
        %v4621 = vsub.s32 1, %v4620
        %v4622 = vrot.slane %v4613, %v4621
        %v4623 = vlaneseq
        %v4624 = vshrl.u32 %v4623, 7
        %v4625 = vsub.s32 2, %v4624
        %v4626 = vrot.slane %v4613, %v4625
        %4627 = vrot.lane.b32.xlu0 %v4618, 96
        %v4628 = vpop.permute.xlu0 %4627
        %4629 = vrot.lane.b32.xlu0 %v4622, 96
        %v4630 = vpop.permute.xlu0 %4629
        %4631 = vrot.lane.b32.xlu0 %v4626, 96
        %v4632 = vpop.permute.xlu0 %4631
        %vm4633 = vcmask 785408
        %v4634 = vsel %vm4633, %v4628, %v4630
        %v4635 = vsel %vm4633, %v4630, %v4632
        %v4638 = vsel %vm2125, %v4634, 0.0
        %v4639 = vsel %vm2126, %v4635, 0.0
        %v4640 = vadd.f32 %v4610, %v4638
        %v4641 = vadd.f32 %v4611, %v4639
        %s4642 = scalar_lea.vmem [#allocation2], 331
        %v4643 = vld [vmem:[%s4642] ss:$8 sm:$0x7]
        %v4645 = vlaneseq
        %v4646 = vshrl.u32 %v4645, 7
        %v4647 = vsub.s32 0, %v4646
        %v4648 = vrot.slane %v4643, %v4647
        %v4649 = vlaneseq
        %v4650 = vshrl.u32 %v4649, 7
        %v4651 = vsub.s32 1, %v4650
        %v4652 = vrot.slane %v4643, %v4651
        %v4653 = vlaneseq
        %v4654 = vshrl.u32 %v4653, 7
        %v4655 = vsub.s32 2, %v4654
        %v4656 = vrot.slane %v4643, %v4655
        %4657 = vrot.lane.b32.xlu0 %v4648, 95
        %v4658 = vpop.permute.xlu0 %4657
        %4659 = vrot.lane.b32.xlu0 %v4652, 95
        %v4660 = vpop.permute.xlu0 %4659
        %4661 = vrot.lane.b32.xlu0 %v4656, 95
        %v4662 = vpop.permute.xlu0 %4661
        %vm4663 = vcmask 777216
        %v4664 = vsel %vm4663, %v4658, %v4660
        %v4665 = vsel %vm4663, %v4660, %v4662
        %v4668 = vsel %vm2133, %v4664, 0.0
        %v4669 = vsel %vm2134, %v4665, 0.0
        %v4670 = vadd.f32 %v4640, %v4668
        %v4671 = vadd.f32 %v4641, %v4669
        %s4672 = scalar_lea.vmem [#allocation2], 332
        %v4673 = vld [vmem:[%s4672] ss:$8 sm:$0x7]
        %v4675 = vlaneseq
        %v4676 = vshrl.u32 %v4675, 7
        %v4677 = vsub.s32 0, %v4676
        %v4678 = vrot.slane %v4673, %v4677
        %v4679 = vlaneseq
        %v4680 = vshrl.u32 %v4679, 7
        %v4681 = vsub.s32 1, %v4680
        %v4682 = vrot.slane %v4673, %v4681
        %v4683 = vlaneseq
        %v4684 = vshrl.u32 %v4683, 7
        %v4685 = vsub.s32 2, %v4684
        %v4686 = vrot.slane %v4673, %v4685
        %4687 = vrot.lane.b32.xlu0 %v4678, 94
        %v4688 = vpop.permute.xlu0 %4687
        %4689 = vrot.lane.b32.xlu0 %v4682, 94
        %v4690 = vpop.permute.xlu0 %4689
        %4691 = vrot.lane.b32.xlu0 %v4686, 94
        %v4692 = vpop.permute.xlu0 %4691
        %vm4693 = vcmask 769024
        %v4694 = vsel %vm4693, %v4688, %v4690
        %v4695 = vsel %vm4693, %v4690, %v4692
        %v4698 = vsel %vm2141, %v4694, 0.0
        %v4699 = vsel %vm2142, %v4695, 0.0
        %v4700 = vadd.f32 %v4670, %v4698
        %v4701 = vadd.f32 %v4671, %v4699
        %s4702 = scalar_lea.vmem [#allocation2], 333
        %v4703 = vld [vmem:[%s4702] ss:$8 sm:$0x7]
        %v4705 = vlaneseq
        %v4706 = vshrl.u32 %v4705, 7
        %v4707 = vsub.s32 0, %v4706
        %v4708 = vrot.slane %v4703, %v4707
        %v4709 = vlaneseq
        %v4710 = vshrl.u32 %v4709, 7
        %v4711 = vsub.s32 1, %v4710
        %v4712 = vrot.slane %v4703, %v4711
        %v4713 = vlaneseq
        %v4714 = vshrl.u32 %v4713, 7
        %v4715 = vsub.s32 2, %v4714
        %v4716 = vrot.slane %v4703, %v4715
        %4717 = vrot.lane.b32.xlu0 %v4708, 93
        %v4718 = vpop.permute.xlu0 %4717
        %4719 = vrot.lane.b32.xlu0 %v4712, 93
        %v4720 = vpop.permute.xlu0 %4719
        %4721 = vrot.lane.b32.xlu0 %v4716, 93
        %v4722 = vpop.permute.xlu0 %4721
        %vm4723 = vcmask 760832
        %v4724 = vsel %vm4723, %v4718, %v4720
        %v4725 = vsel %vm4723, %v4720, %v4722
        %v4728 = vsel %vm2149, %v4724, 0.0
        %v4729 = vsel %vm2150, %v4725, 0.0
        %v4730 = vadd.f32 %v4700, %v4728
        %v4731 = vadd.f32 %v4701, %v4729
        %s4732 = scalar_lea.vmem [#allocation2], 334
        %v4733 = vld [vmem:[%s4732] ss:$8 sm:$0x7]
        %v4735 = vlaneseq
        %v4736 = vshrl.u32 %v4735, 7
        %v4737 = vsub.s32 0, %v4736
        %v4738 = vrot.slane %v4733, %v4737
        %v4739 = vlaneseq
        %v4740 = vshrl.u32 %v4739, 7
        %v4741 = vsub.s32 1, %v4740
        %v4742 = vrot.slane %v4733, %v4741
        %v4743 = vlaneseq
        %v4744 = vshrl.u32 %v4743, 7
        %v4745 = vsub.s32 2, %v4744
        %v4746 = vrot.slane %v4733, %v4745
        %4747 = vrot.lane.b32.xlu0 %v4738, 92
        %v4748 = vpop.permute.xlu0 %4747
        %4749 = vrot.lane.b32.xlu0 %v4742, 92
        %v4750 = vpop.permute.xlu0 %4749
        %4751 = vrot.lane.b32.xlu0 %v4746, 92
        %v4752 = vpop.permute.xlu0 %4751
        %vm4753 = vcmask 752640
        %v4754 = vsel %vm4753, %v4748, %v4750
        %v4755 = vsel %vm4753, %v4750, %v4752
        %v4758 = vsel %vm2157, %v4754, 0.0
        %v4759 = vsel %vm2158, %v4755, 0.0
        %v4760 = vadd.f32 %v4730, %v4758
        %v4761 = vadd.f32 %v4731, %v4759
        %s4762 = scalar_lea.vmem [#allocation2], 335
        %v4763 = vld [vmem:[%s4762] ss:$8 sm:$0x7]
        %v4765 = vlaneseq
        %v4766 = vshrl.u32 %v4765, 7
        %v4767 = vsub.s32 0, %v4766
        %v4768 = vrot.slane %v4763, %v4767
        %v4769 = vlaneseq
        %v4770 = vshrl.u32 %v4769, 7
        %v4771 = vsub.s32 1, %v4770
        %v4772 = vrot.slane %v4763, %v4771
        %v4773 = vlaneseq
        %v4774 = vshrl.u32 %v4773, 7
        %v4775 = vsub.s32 2, %v4774
        %v4776 = vrot.slane %v4763, %v4775
        %4777 = vrot.lane.b32.xlu0 %v4768, 91
        %v4778 = vpop.permute.xlu0 %4777
        %4779 = vrot.lane.b32.xlu0 %v4772, 91
        %v4780 = vpop.permute.xlu0 %4779
        %4781 = vrot.lane.b32.xlu0 %v4776, 91
        %v4782 = vpop.permute.xlu0 %4781
        %vm4783 = vcmask 744448
        %v4784 = vsel %vm4783, %v4778, %v4780
        %v4785 = vsel %vm4783, %v4780, %v4782
        %v4788 = vsel %vm2165, %v4784, 0.0
        %v4789 = vsel %vm2166, %v4785, 0.0
        %v4790 = vadd.f32 %v4760, %v4788
        %v4791 = vadd.f32 %v4761, %v4789
        %s4792 = scalar_lea.vmem [#allocation2], 360
        %v4793 = vld [vmem:[%s4792] ss:$8 sm:$0x7]
        %v4795 = vlaneseq
        %v4796 = vshrl.u32 %v4795, 7
        %v4797 = vsub.s32 0, %v4796
        %v4798 = vrot.slane %v4793, %v4797
        %v4799 = vlaneseq
        %v4800 = vshrl.u32 %v4799, 7
        %v4801 = vsub.s32 1, %v4800
        %v4802 = vrot.slane %v4793, %v4801
        %v4803 = vlaneseq
        %v4804 = vshrl.u32 %v4803, 7
        %v4805 = vsub.s32 2, %v4804
        %v4806 = vrot.slane %v4793, %v4805
        %4807 = vrot.lane.b32.xlu0 %v4798, 85
        %v4808 = vpop.permute.xlu0 %4807
        %4809 = vrot.lane.b32.xlu0 %v4802, 85
        %v4810 = vpop.permute.xlu0 %4809
        %4811 = vrot.lane.b32.xlu0 %v4806, 85
        %v4812 = vpop.permute.xlu0 %4811
        %v4813 = vsel %vm2188, %v4808, %v4810
        %v4814 = vsel %vm2188, %v4810, %v4812
        %v4817 = vsel %vm2087, %v4813, 0.0
        %v4818 = vsel %vm2088, %v4814, 0.0
        %v4819 = vadd.f32 %v4790, %v4817
        %v4820 = vadd.f32 %v4791, %v4818
        %s4821 = scalar_lea.vmem [#allocation2], 361
        %v4822 = vld [vmem:[%s4821] ss:$8 sm:$0x7]
        %v4824 = vlaneseq
        %v4825 = vshrl.u32 %v4824, 7
        %v4826 = vsub.s32 0, %v4825
        %v4827 = vrot.slane %v4822, %v4826
        %v4828 = vlaneseq
        %v4829 = vshrl.u32 %v4828, 7
        %v4830 = vsub.s32 1, %v4829
        %v4831 = vrot.slane %v4822, %v4830
        %v4832 = vlaneseq
        %v4833 = vshrl.u32 %v4832, 7
        %v4834 = vsub.s32 2, %v4833
        %v4835 = vrot.slane %v4822, %v4834
        %4836 = vrot.lane.b32.xlu0 %v4827, 84
        %v4837 = vpop.permute.xlu0 %4836
        %4838 = vrot.lane.b32.xlu0 %v4831, 84
        %v4839 = vpop.permute.xlu0 %4838
        %4840 = vrot.lane.b32.xlu0 %v4835, 84
        %v4841 = vpop.permute.xlu0 %4840
        %v4842 = vsel %vm2218, %v4837, %v4839
        %v4843 = vsel %vm2218, %v4839, %v4841
        %v4846 = vsel %vm2095, %v4842, 0.0
        %v4847 = vsel %vm2096, %v4843, 0.0
        %v4848 = vadd.f32 %v4819, %v4846
        %v4849 = vadd.f32 %v4820, %v4847
        %s4850 = scalar_lea.vmem [#allocation2], 362
        %v4851 = vld [vmem:[%s4850] ss:$8 sm:$0x7]
        %v4853 = vlaneseq
        %v4854 = vshrl.u32 %v4853, 7
        %v4855 = vsub.s32 0, %v4854
        %v4856 = vrot.slane %v4851, %v4855
        %v4857 = vlaneseq
        %v4858 = vshrl.u32 %v4857, 7
        %v4859 = vsub.s32 1, %v4858
        %v4860 = vrot.slane %v4851, %v4859
        %v4861 = vlaneseq
        %v4862 = vshrl.u32 %v4861, 7
        %v4863 = vsub.s32 2, %v4862
        %v4864 = vrot.slane %v4851, %v4863
        %4865 = vrot.lane.b32.xlu0 %v4856, 83
        %v4866 = vpop.permute.xlu0 %4865
        %4867 = vrot.lane.b32.xlu0 %v4860, 83
        %v4868 = vpop.permute.xlu0 %4867
        %4869 = vrot.lane.b32.xlu0 %v4864, 83
        %v4870 = vpop.permute.xlu0 %4869
        %v4871 = vsel %vm2248, %v4866, %v4868
        %v4872 = vsel %vm2248, %v4868, %v4870
        %v4875 = vsel %vm2103, %v4871, 0.0
        %v4876 = vsel %vm2104, %v4872, 0.0
        %v4877 = vadd.f32 %v4848, %v4875
        %v4878 = vadd.f32 %v4849, %v4876
        %s4879 = scalar_lea.vmem [#allocation2], 363
        %v4880 = vld [vmem:[%s4879] ss:$8 sm:$0x7]
        %v4882 = vlaneseq
        %v4883 = vshrl.u32 %v4882, 7
        %v4884 = vsub.s32 0, %v4883
        %v4885 = vrot.slane %v4880, %v4884
        %v4886 = vlaneseq
        %v4887 = vshrl.u32 %v4886, 7
        %v4888 = vsub.s32 1, %v4887
        %v4889 = vrot.slane %v4880, %v4888
        %v4890 = vlaneseq
        %v4891 = vshrl.u32 %v4890, 7
        %v4892 = vsub.s32 2, %v4891
        %v4893 = vrot.slane %v4880, %v4892
        %4894 = vrot.lane.b32.xlu0 %v4885, 82
        %v4895 = vpop.permute.xlu0 %4894
        %4896 = vrot.lane.b32.xlu0 %v4889, 82
        %v4897 = vpop.permute.xlu0 %4896
        %4898 = vrot.lane.b32.xlu0 %v4893, 82
        %v4899 = vpop.permute.xlu0 %4898
        %v4900 = vsel %vm2278, %v4895, %v4897
        %v4901 = vsel %vm2278, %v4897, %v4899
        %v4904 = vsel %vm2111, %v4900, 0.0
        %v4905 = vsel %vm2112, %v4901, 0.0
        %v4906 = vadd.f32 %v4877, %v4904
        %v4907 = vadd.f32 %v4878, %v4905
        %s4908 = scalar_lea.vmem [#allocation2], 364
        %v4909 = vld [vmem:[%s4908] ss:$8 sm:$0x7]
        %v4911 = vlaneseq
        %v4912 = vshrl.u32 %v4911, 7
        %v4913 = vsub.s32 0, %v4912
        %v4914 = vrot.slane %v4909, %v4913
        %v4915 = vlaneseq
        %v4916 = vshrl.u32 %v4915, 7
        %v4917 = vsub.s32 1, %v4916
        %v4918 = vrot.slane %v4909, %v4917
        %v4919 = vlaneseq
        %v4920 = vshrl.u32 %v4919, 7
        %v4921 = vsub.s32 2, %v4920
        %v4922 = vrot.slane %v4909, %v4921
        %4923 = vrot.lane.b32.xlu0 %v4914, 81
        %v4924 = vpop.permute.xlu0 %4923
        %4925 = vrot.lane.b32.xlu0 %v4918, 81
        %v4926 = vpop.permute.xlu0 %4925
        %4927 = vrot.lane.b32.xlu0 %v4922, 81
        %v4928 = vpop.permute.xlu0 %4927
        %v4929 = vsel %vm2308, %v4924, %v4926
        %v4930 = vsel %vm2308, %v4926, %v4928
        %v4933 = vsel %vm2119, %v4929, 0.0
        %v4934 = vsel %vm2120, %v4930, 0.0
        %v4935 = vadd.f32 %v4906, %v4933
        %v4936 = vadd.f32 %v4907, %v4934
        %s4937 = scalar_lea.vmem [#allocation2], 365
        %v4938 = vld [vmem:[%s4937] ss:$8 sm:$0x7]
        %v4940 = vlaneseq
        %v4941 = vshrl.u32 %v4940, 7
        %v4942 = vsub.s32 0, %v4941
        %v4943 = vrot.slane %v4938, %v4942
        %v4944 = vlaneseq
        %v4945 = vshrl.u32 %v4944, 7
        %v4946 = vsub.s32 1, %v4945
        %v4947 = vrot.slane %v4938, %v4946
        %v4948 = vlaneseq
        %v4949 = vshrl.u32 %v4948, 7
        %v4950 = vsub.s32 2, %v4949
        %v4951 = vrot.slane %v4938, %v4950
        %4952 = vrot.lane.b32.xlu0 %v4943, 80
        %v4953 = vpop.permute.xlu0 %4952
        %4954 = vrot.lane.b32.xlu0 %v4947, 80
        %v4955 = vpop.permute.xlu0 %4954
        %4956 = vrot.lane.b32.xlu0 %v4951, 80
        %v4957 = vpop.permute.xlu0 %4956
        %v4958 = vsel %vm2338, %v4953, %v4955
        %v4959 = vsel %vm2338, %v4955, %v4957
        %v4962 = vsel %vm2125, %v4958, 0.0
        %v4963 = vsel %vm2126, %v4959, 0.0
        %v4964 = vadd.f32 %v4935, %v4962
        %v4965 = vadd.f32 %v4936, %v4963
        %s4966 = scalar_lea.vmem [#allocation2], 366
        %v4967 = vld [vmem:[%s4966] ss:$8 sm:$0x7]
        %v4969 = vlaneseq
        %v4970 = vshrl.u32 %v4969, 7
        %v4971 = vsub.s32 0, %v4970
        %v4972 = vrot.slane %v4967, %v4971
        %v4973 = vlaneseq
        %v4974 = vshrl.u32 %v4973, 7
        %v4975 = vsub.s32 1, %v4974
        %v4976 = vrot.slane %v4967, %v4975
        %v4977 = vlaneseq
        %v4978 = vshrl.u32 %v4977, 7
        %v4979 = vsub.s32 2, %v4978
        %v4980 = vrot.slane %v4967, %v4979
        %4981 = vrot.lane.b32.xlu0 %v4972, 79
        %v4982 = vpop.permute.xlu0 %4981
        %4983 = vrot.lane.b32.xlu0 %v4976, 79
        %v4984 = vpop.permute.xlu0 %4983
        %4985 = vrot.lane.b32.xlu0 %v4980, 79
        %v4986 = vpop.permute.xlu0 %4985
        %v4987 = vsel %vm2368, %v4982, %v4984
        %v4988 = vsel %vm2368, %v4984, %v4986
        %v4991 = vsel %vm2133, %v4987, 0.0
        %v4992 = vsel %vm2134, %v4988, 0.0
        %v4993 = vadd.f32 %v4964, %v4991
        %v4994 = vadd.f32 %v4965, %v4992
        %s4995 = scalar_lea.vmem [#allocation2], 367
        %v4996 = vld [vmem:[%s4995] ss:$8 sm:$0x7]
        %v4998 = vlaneseq
        %v4999 = vshrl.u32 %v4998, 7
        %v5000 = vsub.s32 0, %v4999
        %v5001 = vrot.slane %v4996, %v5000
        %v5002 = vlaneseq
        %v5003 = vshrl.u32 %v5002, 7
        %v5004 = vsub.s32 1, %v5003
        %v5005 = vrot.slane %v4996, %v5004
        %v5006 = vlaneseq
        %v5007 = vshrl.u32 %v5006, 7
        %v5008 = vsub.s32 2, %v5007
        %v5009 = vrot.slane %v4996, %v5008
        %5010 = vrot.lane.b32.xlu0 %v5001, 78
        %v5011 = vpop.permute.xlu0 %5010
        %5012 = vrot.lane.b32.xlu0 %v5005, 78
        %v5013 = vpop.permute.xlu0 %5012
        %5014 = vrot.lane.b32.xlu0 %v5009, 78
        %v5015 = vpop.permute.xlu0 %5014
        %v5016 = vsel %vm2398, %v5011, %v5013
        %v5017 = vsel %vm2398, %v5013, %v5015
        %v5020 = vsel %vm2141, %v5016, 0.0
        %v5021 = vsel %vm2142, %v5017, 0.0
        %v5022 = vadd.f32 %v4993, %v5020
        %v5023 = vadd.f32 %v4994, %v5021
        %s5024 = scalar_lea.vmem [#allocation2], 392
        %v5025 = vld [vmem:[%s5024] ss:$8 sm:$0x7]
        %v5027 = vlaneseq
        %v5028 = vshrl.u32 %v5027, 7
        %v5029 = vsub.s32 0, %v5028
        %v5030 = vrot.slane %v5025, %v5029
        %v5031 = vlaneseq
        %v5032 = vshrl.u32 %v5031, 7
        %v5033 = vsub.s32 1, %v5032
        %v5034 = vrot.slane %v5025, %v5033
        %v5035 = vlaneseq
        %v5036 = vshrl.u32 %v5035, 7
        %v5037 = vsub.s32 2, %v5036
        %v5038 = vrot.slane %v5025, %v5037
        %5039 = vrot.lane.b32.xlu0 %v5030, 77
        %v5040 = vpop.permute.xlu0 %5039
        %5041 = vrot.lane.b32.xlu0 %v5034, 77
        %v5042 = vpop.permute.xlu0 %5041
        %5043 = vrot.lane.b32.xlu0 %v5038, 77
        %v5044 = vpop.permute.xlu0 %5043
        %v5045 = vsel %vm2428, %v5040, %v5042
        %v5046 = vsel %vm2428, %v5042, %v5044
        %v5049 = vsel %vm2149, %v5045, 0.0
        %v5050 = vsel %vm2150, %v5046, 0.0
        %v5051 = vadd.f32 %v5022, %v5049
        %v5052 = vadd.f32 %v5023, %v5050
        %s5053 = scalar_lea.vmem [#allocation2], 393
        %v5054 = vld [vmem:[%s5053] ss:$8 sm:$0x7]
        %v5056 = vlaneseq
        %v5057 = vshrl.u32 %v5056, 7
        %v5058 = vsub.s32 0, %v5057
        %v5059 = vrot.slane %v5054, %v5058
        %v5060 = vlaneseq
        %v5061 = vshrl.u32 %v5060, 7
        %v5062 = vsub.s32 1, %v5061
        %v5063 = vrot.slane %v5054, %v5062
        %v5064 = vlaneseq
        %v5065 = vshrl.u32 %v5064, 7
        %v5066 = vsub.s32 2, %v5065
        %v5067 = vrot.slane %v5054, %v5066
        %5068 = vrot.lane.b32.xlu0 %v5059, 76
        %v5069 = vpop.permute.xlu0 %5068
        %5070 = vrot.lane.b32.xlu0 %v5063, 76
        %v5071 = vpop.permute.xlu0 %5070
        %5072 = vrot.lane.b32.xlu0 %v5067, 76
        %v5073 = vpop.permute.xlu0 %5072
        %v5074 = vsel %vm2458, %v5069, %v5071
        %v5075 = vsel %vm2458, %v5071, %v5073
        %v5078 = vsel %vm2157, %v5074, 0.0
        %v5079 = vsel %vm2158, %v5075, 0.0
        %v5080 = vadd.f32 %v5051, %v5078
        %v5081 = vadd.f32 %v5052, %v5079
        %s5082 = scalar_lea.vmem [#allocation2], 394
        %v5083 = vld [vmem:[%s5082] ss:$8 sm:$0x7]
        %v5085 = vlaneseq
        %v5086 = vshrl.u32 %v5085, 7
        %v5087 = vsub.s32 0, %v5086
        %v5088 = vrot.slane %v5083, %v5087
        %v5089 = vlaneseq
        %v5090 = vshrl.u32 %v5089, 7
        %v5091 = vsub.s32 1, %v5090
        %v5092 = vrot.slane %v5083, %v5091
        %v5093 = vlaneseq
        %v5094 = vshrl.u32 %v5093, 7
        %v5095 = vsub.s32 2, %v5094
        %v5096 = vrot.slane %v5083, %v5095
        %5097 = vrot.lane.b32.xlu0 %v5088, 75
        %v5098 = vpop.permute.xlu0 %5097
        %5099 = vrot.lane.b32.xlu0 %v5092, 75
        %v5100 = vpop.permute.xlu0 %5099
        %5101 = vrot.lane.b32.xlu0 %v5096, 75
        %v5102 = vpop.permute.xlu0 %5101
        %v5103 = vsel %vm2488, %v5098, %v5100
        %v5104 = vsel %vm2488, %v5100, %v5102
        %v5107 = vsel %vm2165, %v5103, 0.0
        %v5108 = vsel %vm2166, %v5104, 0.0
        %v5109 = vadd.f32 %v5080, %v5107
        %v5110 = vadd.f32 %v5081, %v5108
        %s5111 = scalar_lea.vmem [#allocation2], 395
        %v5112 = vld [vmem:[%s5111] ss:$8 sm:$0x7]
        %v5114 = vlaneseq
        %v5115 = vshrl.u32 %v5114, 7
        %v5116 = vsub.s32 0, %v5115
        %v5117 = vrot.slane %v5112, %v5116
        %v5118 = vlaneseq
        %v5119 = vshrl.u32 %v5118, 7
        %v5120 = vsub.s32 1, %v5119
        %v5121 = vrot.slane %v5112, %v5120
        %v5122 = vlaneseq
        %v5123 = vshrl.u32 %v5122, 7
        %v5124 = vsub.s32 2, %v5123
        %v5125 = vrot.slane %v5112, %v5124
        %5126 = vrot.lane.b32.xlu0 %v5117, 69
        %v5127 = vpop.permute.xlu0 %5126
        %5128 = vrot.lane.b32.xlu0 %v5121, 69
        %v5129 = vpop.permute.xlu0 %5128
        %5130 = vrot.lane.b32.xlu0 %v5125, 69
        %v5131 = vpop.permute.xlu0 %5130
        %v5132 = vsel %vm2518, %v5127, %v5129
        %v5133 = vsel %vm2518, %v5129, %v5131
        %v5136 = vsel %vm2087, %v5132, 0.0
        %v5137 = vsel %vm2088, %v5133, 0.0
        %v5138 = vadd.f32 %v5109, %v5136
        %v5139 = vadd.f32 %v5110, %v5137
        %s5140 = scalar_lea.vmem [#allocation2], 396
        %v5141 = vld [vmem:[%s5140] ss:$8 sm:$0x7]
        %v5143 = vlaneseq
        %v5144 = vshrl.u32 %v5143, 7
        %v5145 = vsub.s32 0, %v5144
        %v5146 = vrot.slane %v5141, %v5145
        %v5147 = vlaneseq
        %v5148 = vshrl.u32 %v5147, 7
        %v5149 = vsub.s32 1, %v5148
        %v5150 = vrot.slane %v5141, %v5149
        %v5151 = vlaneseq
        %v5152 = vshrl.u32 %v5151, 7
        %v5153 = vsub.s32 2, %v5152
        %v5154 = vrot.slane %v5141, %v5153
        %5155 = vrot.lane.b32.xlu0 %v5146, 68
        %v5156 = vpop.permute.xlu0 %5155
        %5157 = vrot.lane.b32.xlu0 %v5150, 68
        %v5158 = vpop.permute.xlu0 %5157
        %5159 = vrot.lane.b32.xlu0 %v5154, 68
        %v5160 = vpop.permute.xlu0 %5159
        %v5161 = vsel %vm2548, %v5156, %v5158
        %v5162 = vsel %vm2548, %v5158, %v5160
        %v5165 = vsel %vm2095, %v5161, 0.0
        %v5166 = vsel %vm2096, %v5162, 0.0
        %v5167 = vadd.f32 %v5138, %v5165
        %v5168 = vadd.f32 %v5139, %v5166
        %s5169 = scalar_lea.vmem [#allocation2], 397
        %v5170 = vld [vmem:[%s5169] ss:$8 sm:$0x7]
        %v5172 = vlaneseq
        %v5173 = vshrl.u32 %v5172, 7
        %v5174 = vsub.s32 0, %v5173
        %v5175 = vrot.slane %v5170, %v5174
        %v5176 = vlaneseq
        %v5177 = vshrl.u32 %v5176, 7
        %v5178 = vsub.s32 1, %v5177
        %v5179 = vrot.slane %v5170, %v5178
        %v5180 = vlaneseq
        %v5181 = vshrl.u32 %v5180, 7
        %v5182 = vsub.s32 2, %v5181
        %v5183 = vrot.slane %v5170, %v5182
        %5184 = vrot.lane.b32.xlu0 %v5175, 67
        %v5185 = vpop.permute.xlu0 %5184
        %5186 = vrot.lane.b32.xlu0 %v5179, 67
        %v5187 = vpop.permute.xlu0 %5186
        %5188 = vrot.lane.b32.xlu0 %v5183, 67
        %v5189 = vpop.permute.xlu0 %5188
        %v5190 = vsel %vm2578, %v5185, %v5187
        %v5191 = vsel %vm2578, %v5187, %v5189
        %v5194 = vsel %vm2103, %v5190, 0.0
        %v5195 = vsel %vm2104, %v5191, 0.0
        %v5196 = vadd.f32 %v5167, %v5194
        %v5197 = vadd.f32 %v5168, %v5195
        %s5198 = scalar_lea.vmem [#allocation2], 398
        %v5199 = vld [vmem:[%s5198] ss:$8 sm:$0x7]
        %v5201 = vlaneseq
        %v5202 = vshrl.u32 %v5201, 7
        %v5203 = vsub.s32 0, %v5202
        %v5204 = vrot.slane %v5199, %v5203
        %v5205 = vlaneseq
        %v5206 = vshrl.u32 %v5205, 7
        %v5207 = vsub.s32 1, %v5206
        %v5208 = vrot.slane %v5199, %v5207
        %v5209 = vlaneseq
        %v5210 = vshrl.u32 %v5209, 7
        %v5211 = vsub.s32 2, %v5210
        %v5212 = vrot.slane %v5199, %v5211
        %5213 = vrot.lane.b32.xlu0 %v5204, 66
        %v5214 = vpop.permute.xlu0 %5213
        %5215 = vrot.lane.b32.xlu0 %v5208, 66
        %v5216 = vpop.permute.xlu0 %5215
        %5217 = vrot.lane.b32.xlu0 %v5212, 66
        %v5218 = vpop.permute.xlu0 %5217
        %v5219 = vsel %vm2608, %v5214, %v5216
        %v5220 = vsel %vm2608, %v5216, %v5218
        %v5223 = vsel %vm2111, %v5219, 0.0
        %v5224 = vsel %vm2112, %v5220, 0.0
        %v5225 = vadd.f32 %v5196, %v5223
        %v5226 = vadd.f32 %v5197, %v5224
        %s5227 = scalar_lea.vmem [#allocation2], 399
        %v5228 = vld [vmem:[%s5227] ss:$8 sm:$0x7]
        %v5230 = vlaneseq
        %v5231 = vshrl.u32 %v5230, 7
        %v5232 = vsub.s32 0, %v5231
        %v5233 = vrot.slane %v5228, %v5232
        %v5234 = vlaneseq
        %v5235 = vshrl.u32 %v5234, 7
        %v5236 = vsub.s32 1, %v5235
        %v5237 = vrot.slane %v5228, %v5236
        %v5238 = vlaneseq
        %v5239 = vshrl.u32 %v5238, 7
        %v5240 = vsub.s32 2, %v5239
        %v5241 = vrot.slane %v5228, %v5240
        %5242 = vrot.lane.b32.xlu0 %v5233, 65
        %v5243 = vpop.permute.xlu0 %5242
        %5244 = vrot.lane.b32.xlu0 %v5237, 65
        %v5245 = vpop.permute.xlu0 %5244
        %5246 = vrot.lane.b32.xlu0 %v5241, 65
        %v5247 = vpop.permute.xlu0 %5246
        %v5248 = vsel %vm2638, %v5243, %v5245
        %v5249 = vsel %vm2638, %v5245, %v5247
        %v5252 = vsel %vm2119, %v5248, 0.0
        %v5253 = vsel %vm2120, %v5249, 0.0
        %v5254 = vadd.f32 %v5225, %v5252
        %v5255 = vadd.f32 %v5226, %v5253
        %s5256 = scalar_lea.vmem [#allocation2], 424
        %v5257 = vld [vmem:[%s5256] ss:$8 sm:$0x7]
        %v5259 = vlaneseq
        %v5260 = vshrl.u32 %v5259, 7
        %v5261 = vsub.s32 0, %v5260
        %v5262 = vrot.slane %v5257, %v5261
        %v5263 = vlaneseq
        %v5264 = vshrl.u32 %v5263, 7
        %v5265 = vsub.s32 1, %v5264
        %v5266 = vrot.slane %v5257, %v5265
        %v5267 = vlaneseq
        %v5268 = vshrl.u32 %v5267, 7
        %v5269 = vsub.s32 2, %v5268
        %v5270 = vrot.slane %v5257, %v5269
        %5271 = vrot.lane.b32.xlu0 %v5262, 64
        %v5272 = vpop.permute.xlu0 %5271
        %5273 = vrot.lane.b32.xlu0 %v5266, 64
        %v5274 = vpop.permute.xlu0 %5273
        %5275 = vrot.lane.b32.xlu0 %v5270, 64
        %v5276 = vpop.permute.xlu0 %5275
        %v5277 = vsel %vm2668, %v5272, %v5274
        %v5278 = vsel %vm2668, %v5274, %v5276
        %v5281 = vsel %vm2125, %v5277, 0.0
        %v5282 = vsel %vm2126, %v5278, 0.0
        %v5283 = vadd.f32 %v5254, %v5281
        %v5284 = vadd.f32 %v5255, %v5282
        %s5285 = scalar_lea.vmem [#allocation2], 425
        %v5286 = vld [vmem:[%s5285] ss:$8 sm:$0x7]
        %v5288 = vlaneseq
        %v5289 = vshrl.u32 %v5288, 7
        %v5290 = vsub.s32 0, %v5289
        %v5291 = vrot.slane %v5286, %v5290
        %v5292 = vlaneseq
        %v5293 = vshrl.u32 %v5292, 7
        %v5294 = vsub.s32 1, %v5293
        %v5295 = vrot.slane %v5286, %v5294
        %v5296 = vlaneseq
        %v5297 = vshrl.u32 %v5296, 7
        %v5298 = vsub.s32 2, %v5297
        %v5299 = vrot.slane %v5286, %v5298
        %5300 = vrot.lane.b32.xlu0 %v5291, 63
        %v5301 = vpop.permute.xlu0 %5300
        %5302 = vrot.lane.b32.xlu0 %v5295, 63
        %v5303 = vpop.permute.xlu0 %5302
        %5304 = vrot.lane.b32.xlu0 %v5299, 63
        %v5305 = vpop.permute.xlu0 %5304
        %v5306 = vsel %vm2698, %v5301, %v5303
        %v5307 = vsel %vm2698, %v5303, %v5305
        %v5310 = vsel %vm2133, %v5306, 0.0
        %v5311 = vsel %vm2134, %v5307, 0.0
        %v5312 = vadd.f32 %v5283, %v5310
        %v5313 = vadd.f32 %v5284, %v5311
        %s5314 = scalar_lea.vmem [#allocation2], 426
        %v5315 = vld [vmem:[%s5314] ss:$8 sm:$0x7]
        %v5317 = vlaneseq
        %v5318 = vshrl.u32 %v5317, 7
        %v5319 = vsub.s32 0, %v5318
        %v5320 = vrot.slane %v5315, %v5319
        %v5321 = vlaneseq
        %v5322 = vshrl.u32 %v5321, 7
        %v5323 = vsub.s32 1, %v5322
        %v5324 = vrot.slane %v5315, %v5323
        %v5325 = vlaneseq
        %v5326 = vshrl.u32 %v5325, 7
        %v5327 = vsub.s32 2, %v5326
        %v5328 = vrot.slane %v5315, %v5327
        %5329 = vrot.lane.b32.xlu0 %v5320, 62
        %v5330 = vpop.permute.xlu0 %5329
        %5331 = vrot.lane.b32.xlu0 %v5324, 62
        %v5332 = vpop.permute.xlu0 %5331
        %5333 = vrot.lane.b32.xlu0 %v5328, 62
        %v5334 = vpop.permute.xlu0 %5333
        %v5335 = vsel %vm2728, %v5330, %v5332
        %v5336 = vsel %vm2728, %v5332, %v5334
        %v5339 = vsel %vm2141, %v5335, 0.0
        %v5340 = vsel %vm2142, %v5336, 0.0
        %v5341 = vadd.f32 %v5312, %v5339
        %v5342 = vadd.f32 %v5313, %v5340
        %s5343 = scalar_lea.vmem [#allocation2], 427
        %v5344 = vld [vmem:[%s5343] ss:$8 sm:$0x7]
        %v5346 = vlaneseq
        %v5347 = vshrl.u32 %v5346, 7
        %v5348 = vsub.s32 0, %v5347
        %v5349 = vrot.slane %v5344, %v5348
        %v5350 = vlaneseq
        %v5351 = vshrl.u32 %v5350, 7
        %v5352 = vsub.s32 1, %v5351
        %v5353 = vrot.slane %v5344, %v5352
        %v5354 = vlaneseq
        %v5355 = vshrl.u32 %v5354, 7
        %v5356 = vsub.s32 2, %v5355
        %v5357 = vrot.slane %v5344, %v5356
        %5358 = vrot.lane.b32.xlu0 %v5349, 61
        %v5359 = vpop.permute.xlu0 %5358
        %5360 = vrot.lane.b32.xlu0 %v5353, 61
        %v5361 = vpop.permute.xlu0 %5360
        %5362 = vrot.lane.b32.xlu0 %v5357, 61
        %v5363 = vpop.permute.xlu0 %5362
        %v5364 = vsel %vm2758, %v5359, %v5361
        %v5365 = vsel %vm2758, %v5361, %v5363
        %v5368 = vsel %vm2149, %v5364, 0.0
        %v5369 = vsel %vm2150, %v5365, 0.0
        %v5370 = vadd.f32 %v5341, %v5368
        %v5371 = vadd.f32 %v5342, %v5369
        %s5372 = scalar_lea.vmem [#allocation2], 428
        %v5373 = vld [vmem:[%s5372] ss:$8 sm:$0x7]
        %v5375 = vlaneseq
        %v5376 = vshrl.u32 %v5375, 7
        %v5377 = vsub.s32 0, %v5376
        %v5378 = vrot.slane %v5373, %v5377
        %v5379 = vlaneseq
        %v5380 = vshrl.u32 %v5379, 7
        %v5381 = vsub.s32 1, %v5380
        %v5382 = vrot.slane %v5373, %v5381
        %v5383 = vlaneseq
        %v5384 = vshrl.u32 %v5383, 7
        %v5385 = vsub.s32 2, %v5384
        %v5386 = vrot.slane %v5373, %v5385
        %5387 = vrot.lane.b32.xlu0 %v5378, 60
        %v5388 = vpop.permute.xlu0 %5387
        %5389 = vrot.lane.b32.xlu0 %v5382, 60
        %v5390 = vpop.permute.xlu0 %5389
        %5391 = vrot.lane.b32.xlu0 %v5386, 60
        %v5392 = vpop.permute.xlu0 %5391
        %v5393 = vsel %vm2788, %v5388, %v5390
        %v5394 = vsel %vm2788, %v5390, %v5392
        %v5397 = vsel %vm2157, %v5393, 0.0
        %v5398 = vsel %vm2158, %v5394, 0.0
        %v5399 = vadd.f32 %v5370, %v5397
        %v5400 = vadd.f32 %v5371, %v5398
        %s5401 = scalar_lea.vmem [#allocation2], 429
        %v5402 = vld [vmem:[%s5401] ss:$8 sm:$0x7]
        %v5404 = vlaneseq
        %v5405 = vshrl.u32 %v5404, 7
        %v5406 = vsub.s32 0, %v5405
        %v5407 = vrot.slane %v5402, %v5406
        %v5408 = vlaneseq
        %v5409 = vshrl.u32 %v5408, 7
        %v5410 = vsub.s32 1, %v5409
        %v5411 = vrot.slane %v5402, %v5410
        %v5412 = vlaneseq
        %v5413 = vshrl.u32 %v5412, 7
        %v5414 = vsub.s32 2, %v5413
        %v5415 = vrot.slane %v5402, %v5414
        %5416 = vrot.lane.b32.xlu0 %v5407, 59
        %v5417 = vpop.permute.xlu0 %5416
        %5418 = vrot.lane.b32.xlu0 %v5411, 59
        %v5419 = vpop.permute.xlu0 %5418
        %5420 = vrot.lane.b32.xlu0 %v5415, 59
        %v5421 = vpop.permute.xlu0 %5420
        %v5422 = vsel %vm2818, %v5417, %v5419
        %v5423 = vsel %vm2818, %v5419, %v5421
        %v5426 = vsel %vm2165, %v5422, 0.0
        %v5427 = vsel %vm2166, %v5423, 0.0
        %v5428 = vadd.f32 %v5399, %v5426
        %v5429 = vadd.f32 %v5400, %v5427
        %s5430 = scalar_lea.vmem [#allocation2], 430
        %v5431 = vld [vmem:[%s5430] ss:$8 sm:$0x7]
        %v5433 = vlaneseq
        %v5434 = vshrl.u32 %v5433, 7
        %v5435 = vsub.s32 0, %v5434
        %v5436 = vrot.slane %v5431, %v5435
        %v5437 = vlaneseq
        %v5438 = vshrl.u32 %v5437, 7
        %v5439 = vsub.s32 1, %v5438
        %v5440 = vrot.slane %v5431, %v5439
        %v5441 = vlaneseq
        %v5442 = vshrl.u32 %v5441, 7
        %v5443 = vsub.s32 2, %v5442
        %v5444 = vrot.slane %v5431, %v5443
        %5445 = vrot.lane.b32.xlu0 %v5436, 53
        %v5446 = vpop.permute.xlu0 %5445
        %5447 = vrot.lane.b32.xlu0 %v5440, 53
        %v5448 = vpop.permute.xlu0 %5447
        %5449 = vrot.lane.b32.xlu0 %v5444, 53
        %v5450 = vpop.permute.xlu0 %5449
        %v5451 = vsel %vm2848, %v5446, %v5448
        %v5452 = vsel %vm2848, %v5448, %v5450
        %v5455 = vsel %vm2087, %v5451, 0.0
        %v5456 = vsel %vm2088, %v5452, 0.0
        %v5457 = vadd.f32 %v5428, %v5455
        %v5458 = vadd.f32 %v5429, %v5456
        %s5459 = scalar_lea.vmem [#allocation2], 431
        %v5460 = vld [vmem:[%s5459] ss:$8 sm:$0x7]
        %v5462 = vlaneseq
        %v5463 = vshrl.u32 %v5462, 7
        %v5464 = vsub.s32 0, %v5463
        %v5465 = vrot.slane %v5460, %v5464
        %v5466 = vlaneseq
        %v5467 = vshrl.u32 %v5466, 7
        %v5468 = vsub.s32 1, %v5467
        %v5469 = vrot.slane %v5460, %v5468
        %v5470 = vlaneseq
        %v5471 = vshrl.u32 %v5470, 7
        %v5472 = vsub.s32 2, %v5471
        %v5473 = vrot.slane %v5460, %v5472
        %5474 = vrot.lane.b32.xlu0 %v5465, 52
        %v5475 = vpop.permute.xlu0 %5474
        %5476 = vrot.lane.b32.xlu0 %v5469, 52
        %v5477 = vpop.permute.xlu0 %5476
        %5478 = vrot.lane.b32.xlu0 %v5473, 52
        %v5479 = vpop.permute.xlu0 %5478
        %v5480 = vsel %vm2878, %v5475, %v5477
        %v5481 = vsel %vm2878, %v5477, %v5479
        %v5484 = vsel %vm2095, %v5480, 0.0
        %v5485 = vsel %vm2096, %v5481, 0.0
        %v5486 = vadd.f32 %v5457, %v5484
        %v5487 = vadd.f32 %v5458, %v5485
        %s5488 = scalar_lea.vmem [#allocation2], 456
        %v5489 = vld [vmem:[%s5488] ss:$8 sm:$0x7]
        %v5491 = vlaneseq
        %v5492 = vshrl.u32 %v5491, 7
        %v5493 = vsub.s32 0, %v5492
        %v5494 = vrot.slane %v5489, %v5493
        %v5495 = vlaneseq
        %v5496 = vshrl.u32 %v5495, 7
        %v5497 = vsub.s32 1, %v5496
        %v5498 = vrot.slane %v5489, %v5497
        %v5499 = vlaneseq
        %v5500 = vshrl.u32 %v5499, 7
        %v5501 = vsub.s32 2, %v5500
        %v5502 = vrot.slane %v5489, %v5501
        %5503 = vrot.lane.b32.xlu0 %v5494, 51
        %v5504 = vpop.permute.xlu0 %5503
        %5505 = vrot.lane.b32.xlu0 %v5498, 51
        %v5506 = vpop.permute.xlu0 %5505
        %5507 = vrot.lane.b32.xlu0 %v5502, 51
        %v5508 = vpop.permute.xlu0 %5507
        %v5509 = vsel %vm2908, %v5504, %v5506
        %v5510 = vsel %vm2908, %v5506, %v5508
        %v5513 = vsel %vm2103, %v5509, 0.0
        %v5514 = vsel %vm2104, %v5510, 0.0
        %v5515 = vadd.f32 %v5486, %v5513
        %v5516 = vadd.f32 %v5487, %v5514
        %s5517 = scalar_lea.vmem [#allocation2], 457
        %v5518 = vld [vmem:[%s5517] ss:$8 sm:$0x7]
        %v5520 = vlaneseq
        %v5521 = vshrl.u32 %v5520, 7
        %v5522 = vsub.s32 0, %v5521
        %v5523 = vrot.slane %v5518, %v5522
        %v5524 = vlaneseq
        %v5525 = vshrl.u32 %v5524, 7
        %v5526 = vsub.s32 1, %v5525
        %v5527 = vrot.slane %v5518, %v5526
        %v5528 = vlaneseq
        %v5529 = vshrl.u32 %v5528, 7
        %v5530 = vsub.s32 2, %v5529
        %v5531 = vrot.slane %v5518, %v5530
        %5532 = vrot.lane.b32.xlu0 %v5523, 50
        %v5533 = vpop.permute.xlu0 %5532
        %5534 = vrot.lane.b32.xlu0 %v5527, 50
        %v5535 = vpop.permute.xlu0 %5534
        %5536 = vrot.lane.b32.xlu0 %v5531, 50
        %v5537 = vpop.permute.xlu0 %5536
        %v5538 = vsel %vm2938, %v5533, %v5535
        %v5539 = vsel %vm2938, %v5535, %v5537
        %v5542 = vsel %vm2111, %v5538, 0.0
        %v5543 = vsel %vm2112, %v5539, 0.0
        %v5544 = vadd.f32 %v5515, %v5542
        %v5545 = vadd.f32 %v5516, %v5543
        %s5546 = scalar_lea.vmem [#allocation2], 458
        %v5547 = vld [vmem:[%s5546] ss:$8 sm:$0x7]
        %v5549 = vlaneseq
        %v5550 = vshrl.u32 %v5549, 7
        %v5551 = vsub.s32 0, %v5550
        %v5552 = vrot.slane %v5547, %v5551
        %v5553 = vlaneseq
        %v5554 = vshrl.u32 %v5553, 7
        %v5555 = vsub.s32 1, %v5554
        %v5556 = vrot.slane %v5547, %v5555
        %v5557 = vlaneseq
        %v5558 = vshrl.u32 %v5557, 7
        %v5559 = vsub.s32 2, %v5558
        %v5560 = vrot.slane %v5547, %v5559
        %5561 = vrot.lane.b32.xlu0 %v5552, 49
        %v5562 = vpop.permute.xlu0 %5561
        %5563 = vrot.lane.b32.xlu0 %v5556, 49
        %v5564 = vpop.permute.xlu0 %5563
        %5565 = vrot.lane.b32.xlu0 %v5560, 49
        %v5566 = vpop.permute.xlu0 %5565
        %v5567 = vsel %vm2968, %v5562, %v5564
        %v5568 = vsel %vm2968, %v5564, %v5566
        %v5571 = vsel %vm2119, %v5567, 0.0
        %v5572 = vsel %vm2120, %v5568, 0.0
        %v5573 = vadd.f32 %v5544, %v5571
        %v5574 = vadd.f32 %v5545, %v5572
        %s5575 = scalar_lea.vmem [#allocation2], 459
        %v5576 = vld [vmem:[%s5575] ss:$8 sm:$0x7]
        %v5578 = vlaneseq
        %v5579 = vshrl.u32 %v5578, 7
        %v5580 = vsub.s32 0, %v5579
        %v5581 = vrot.slane %v5576, %v5580
        %v5582 = vlaneseq
        %v5583 = vshrl.u32 %v5582, 7
        %v5584 = vsub.s32 1, %v5583
        %v5585 = vrot.slane %v5576, %v5584
        %v5586 = vlaneseq
        %v5587 = vshrl.u32 %v5586, 7
        %v5588 = vsub.s32 2, %v5587
        %v5589 = vrot.slane %v5576, %v5588
        %5590 = vrot.lane.b32.xlu0 %v5581, 48
        %v5591 = vpop.permute.xlu0 %5590
        %5592 = vrot.lane.b32.xlu0 %v5585, 48
        %v5593 = vpop.permute.xlu0 %5592
        %5594 = vrot.lane.b32.xlu0 %v5589, 48
        %v5595 = vpop.permute.xlu0 %5594
        %v5596 = vsel %vm2998, %v5591, %v5593
        %v5597 = vsel %vm2998, %v5593, %v5595
        %v5600 = vsel %vm2125, %v5596, 0.0
        %v5601 = vsel %vm2126, %v5597, 0.0
        %v5602 = vadd.f32 %v5573, %v5600
        %v5603 = vadd.f32 %v5574, %v5601
        %s5604 = scalar_lea.vmem [#allocation2], 460
        %v5605 = vld [vmem:[%s5604] ss:$8 sm:$0x7]
        %v5607 = vlaneseq
        %v5608 = vshrl.u32 %v5607, 7
        %v5609 = vsub.s32 0, %v5608
        %v5610 = vrot.slane %v5605, %v5609
        %v5611 = vlaneseq
        %v5612 = vshrl.u32 %v5611, 7
        %v5613 = vsub.s32 1, %v5612
        %v5614 = vrot.slane %v5605, %v5613
        %v5615 = vlaneseq
        %v5616 = vshrl.u32 %v5615, 7
        %v5617 = vsub.s32 2, %v5616
        %v5618 = vrot.slane %v5605, %v5617
        %5619 = vrot.lane.b32.xlu0 %v5610, 47
        %v5620 = vpop.permute.xlu0 %5619
        %5621 = vrot.lane.b32.xlu0 %v5614, 47
        %v5622 = vpop.permute.xlu0 %5621
        %5623 = vrot.lane.b32.xlu0 %v5618, 47
        %v5624 = vpop.permute.xlu0 %5623
        %v5625 = vsel %vm3028, %v5620, %v5622
        %v5626 = vsel %vm3028, %v5622, %v5624
        %v5629 = vsel %vm2133, %v5625, 0.0
        %v5630 = vsel %vm2134, %v5626, 0.0
        %v5631 = vadd.f32 %v5602, %v5629
        %v5632 = vadd.f32 %v5603, %v5630
        %s5633 = scalar_lea.vmem [#allocation2], 461
        %v5634 = vld [vmem:[%s5633] ss:$8 sm:$0x7]
        %v5636 = vlaneseq
        %v5637 = vshrl.u32 %v5636, 7
        %v5638 = vsub.s32 0, %v5637
        %v5639 = vrot.slane %v5634, %v5638
        %v5640 = vlaneseq
        %v5641 = vshrl.u32 %v5640, 7
        %v5642 = vsub.s32 1, %v5641
        %v5643 = vrot.slane %v5634, %v5642
        %v5644 = vlaneseq
        %v5645 = vshrl.u32 %v5644, 7
        %v5646 = vsub.s32 2, %v5645
        %v5647 = vrot.slane %v5634, %v5646
        %5648 = vrot.lane.b32.xlu0 %v5639, 46
        %v5649 = vpop.permute.xlu0 %5648
        %5650 = vrot.lane.b32.xlu0 %v5643, 46
        %v5651 = vpop.permute.xlu0 %5650
        %5652 = vrot.lane.b32.xlu0 %v5647, 46
        %v5653 = vpop.permute.xlu0 %5652
        %v5654 = vsel %vm3058, %v5649, %v5651
        %v5655 = vsel %vm3058, %v5651, %v5653
        %v5658 = vsel %vm2141, %v5654, 0.0
        %v5659 = vsel %vm2142, %v5655, 0.0
        %v5660 = vadd.f32 %v5631, %v5658
        %v5661 = vadd.f32 %v5632, %v5659
        %s5662 = scalar_lea.vmem [#allocation2], 462
        %v5663 = vld [vmem:[%s5662] ss:$8 sm:$0x7]
        %v5665 = vlaneseq
        %v5666 = vshrl.u32 %v5665, 7
        %v5667 = vsub.s32 0, %v5666
        %v5668 = vrot.slane %v5663, %v5667
        %v5669 = vlaneseq
        %v5670 = vshrl.u32 %v5669, 7
        %v5671 = vsub.s32 1, %v5670
        %v5672 = vrot.slane %v5663, %v5671
        %v5673 = vlaneseq
        %v5674 = vshrl.u32 %v5673, 7
        %v5675 = vsub.s32 2, %v5674
        %v5676 = vrot.slane %v5663, %v5675
        %5677 = vrot.lane.b32.xlu0 %v5668, 45
        %v5678 = vpop.permute.xlu0 %5677
        %5679 = vrot.lane.b32.xlu0 %v5672, 45
        %v5680 = vpop.permute.xlu0 %5679
        %5681 = vrot.lane.b32.xlu0 %v5676, 45
        %v5682 = vpop.permute.xlu0 %5681
        %v5683 = vsel %vm3088, %v5678, %v5680
        %v5684 = vsel %vm3088, %v5680, %v5682
        %v5687 = vsel %vm2149, %v5683, 0.0
        %v5688 = vsel %vm2150, %v5684, 0.0
        %v5689 = vadd.f32 %v5660, %v5687
        %v5690 = vadd.f32 %v5661, %v5688
        %s5691 = scalar_lea.vmem [#allocation2], 463
        %v5692 = vld [vmem:[%s5691] ss:$8 sm:$0x7]
        %v5694 = vlaneseq
        %v5695 = vshrl.u32 %v5694, 7
        %v5696 = vsub.s32 0, %v5695
        %v5697 = vrot.slane %v5692, %v5696
        %v5698 = vlaneseq
        %v5699 = vshrl.u32 %v5698, 7
        %v5700 = vsub.s32 1, %v5699
        %v5701 = vrot.slane %v5692, %v5700
        %v5702 = vlaneseq
        %v5703 = vshrl.u32 %v5702, 7
        %v5704 = vsub.s32 2, %v5703
        %v5705 = vrot.slane %v5692, %v5704
        %5706 = vrot.lane.b32.xlu0 %v5697, 44
        %v5707 = vpop.permute.xlu0 %5706
        %5708 = vrot.lane.b32.xlu0 %v5701, 44
        %v5709 = vpop.permute.xlu0 %5708
        %5710 = vrot.lane.b32.xlu0 %v5705, 44
        %v5711 = vpop.permute.xlu0 %5710
        %v5712 = vsel %vm3118, %v5707, %v5709
        %v5713 = vsel %vm3118, %v5709, %v5711
        %v5716 = vsel %vm2157, %v5712, 0.0
        %v5717 = vsel %vm2158, %v5713, 0.0
        %v5718 = vadd.f32 %v5689, %v5716
        %v5719 = vadd.f32 %v5690, %v5717
        %s5720 = scalar_lea.vmem [#allocation2], 488
        %v5721 = vld [vmem:[%s5720] ss:$8 sm:$0x7]
        %v5723 = vlaneseq
        %v5724 = vshrl.u32 %v5723, 7
        %v5725 = vsub.s32 0, %v5724
        %v5726 = vrot.slane %v5721, %v5725
        %v5727 = vlaneseq
        %v5728 = vshrl.u32 %v5727, 7
        %v5729 = vsub.s32 1, %v5728
        %v5730 = vrot.slane %v5721, %v5729
        %v5731 = vlaneseq
        %v5732 = vshrl.u32 %v5731, 7
        %v5733 = vsub.s32 2, %v5732
        %v5734 = vrot.slane %v5721, %v5733
        %5735 = vrot.lane.b32.xlu0 %v5726, 43
        %v5736 = vpop.permute.xlu0 %5735
        %5737 = vrot.lane.b32.xlu0 %v5730, 43
        %v5738 = vpop.permute.xlu0 %5737
        %5739 = vrot.lane.b32.xlu0 %v5734, 43
        %v5740 = vpop.permute.xlu0 %5739
        %v5741 = vsel %vm3148, %v5736, %v5738
        %v5742 = vsel %vm3148, %v5738, %v5740
        %v5745 = vsel %vm2165, %v5741, 0.0
        %v5746 = vsel %vm2166, %v5742, 0.0
        %v5747 = vadd.f32 %v5718, %v5745
        %v5748 = vadd.f32 %v5719, %v5746
        %v5751 = vcombine.low %v5747, %v5748
        %v5753 = vunpack.c.l.s4 1966171168
        %v5754 = vunpack.c.0.s8 %v5753
        %v5755 = vlaneseq
        %v5756 = vshrl.u32 %v5755, 7
        %v5757 = vsub.s32 %v5754, %v5756
        %v5758 = vrot.slane %v5751, %v5757
        %v5760 = vunpack.c.l.s4 1966171168
        %v5761 = vunpack.c.0.s8 %v5760
        %v5762 = vlaneseq
        %v5763 = vshrl.u32 %v5762, 7
        %v5764 = vsub.s32 %v5761, %v5763
        %v5765 = vrot.slane %v5758, %v5764
        %v5767 = vlaneseq
        %vm5768 = vcmp.ge.s32.totalorder %v5767, 0
        %vm5769 = vcmp.lt.s32.totalorder %v5767, 256
        %vm5770 = vmand %vm5768, %vm5769
        %5771 = vst.msk [vmem:[%s528] sm:$0x3] %vm5770, %v5765
        %v5772 = vlaneseq
        %v5773 = vshrl.u32 %v5772, 7
        %v5774 = vsub.s32 0, %v5773
        %v5775 = vrot.slane %v5747, %v5774
        %v5776 = vlaneseq
        %v5777 = vshrl.u32 %v5776, 7
        %v5778 = vsub.s32 0, %v5777
        %v5779 = vrot.slane %v5748, %v5778
        %v5780 = vadd.f32 %v1777, %v5775
        %v5781 = vadd.f32 %v1778, %v5779
        %v5782 = vadd.f32 %v1779, %v5775
        %v5783 = vadd.f32 %v1780, %v5779
        %v5784 = vadd.f32 %v1781, %v5775
        %v5785 = vadd.f32 %v1782, %v5779
        %v5786 = vadd.f32 %v1783, %v5775
        %v5787 = vadd.f32 %v1784, %v5779
        %5788 = vst [vmem:[%s521] sm:$0xff] %v5780
        %5789 = vst [vmem:[%s521 + $0x8] sm:$0xff] %v5781
        %5790 = vst [vmem:[%s521 + $0x10] sm:$0xff] %v5782
        %5791 = vst [vmem:[%s521 + $0x18] sm:$0xff] %v5783
        %5792 = vst [vmem:[%s521 + $0x20] sm:$0xff] %v5784
        %5793 = vst [vmem:[%s521 + $0x28] sm:$0xff] %v5785
        %5794 = vst [vmem:[%s521 + $0x30] sm:$0xff] %v5786
        %5795 = vst [vmem:[%s521 + $0x38] sm:$0xff] %v5787
        %s5796 = sand.u32 %s239, 1
        %s5797 = scalar_lea.sflag [#allocation5], %s5796
        %s5798 = sand.u32 %s239, 1
        %s5799 = smul.addr %s5798, 64
        %s5800 = scalar_lea.vmem [#allocation19], %s5799
        %s5801 = sand.u32 %s37, 1
        %s5802 = scalar_lea.sflag [#allocation21], %s5801
        %s5803 = sand.u32 %s265, 1
        %s5804 = smul.addr %s5803, 64
        %s5805 = scalar_lea.vmem [#allocation20], %s5804
        %s5806 = sand.u32 %s37, 1
        %s5807 = scalar_lea.sflag [#allocation21], %s5806
        %s5808 = sand.u32 %s291, 1
        %s5809 = smul.addr %s5808, 2
        %s5810 = scalar_lea.vmem [#allocation22], %s5809
        // Predicated region
        $region93: #{forward.1} parent=55 // pred_check
          %p5811 = pneg %p249
        $region94: #{forward.1} parent=55 // pred_check_branch
          %5813 = sbr.rel (%p5811) target = $region96
        $region95: #{forward.1} parent=55 // pred_region
          %s5815 = ssub.s32 1024, 1024
          %5816 = vsyncadd %s5797, %s5815
          %s5817 = smul.addr %s37, 8
          %s5818 = smul.addr %s5817, 128
          %s5819 = scalar_lea.hbm %s9, %s5818
          %s5820 = sshll.u32 %s5800, 4
          %s5821 = int_to_ptr.vmem [resolvable:$true] %s5820
          %5826 = dma.vmem_to_hbm [thread:$0]  %s5821, 1024, %s5819, %s5797, 256, 256, 16
        $region96: #{forward.1} parent=55 // pred_fallthru
          _
        // Predicated region
        $region97: #{forward.1} parent=55 // pred_check
          %p5827 = pneg %p275
        $region98: #{forward.1} parent=55 // pred_check_branch
          %5829 = sbr.rel (%p5827) target = $region100
        $region99: #{forward.1} parent=55 // pred_region
          %s5831 = ssub.s32 1024, 1024
          %5832 = vsyncadd %s5802, %s5831
          %s5833 = smul.addr %s37, 8
          %s5834 = smul.addr %s5833, 128
          %s5835 = scalar_lea.hbm %s10, %s5834
          %s5836 = sshll.u32 %s5805, 4
          %s5837 = int_to_ptr.vmem [resolvable:$true] %s5836
          %5842 = dma.vmem_to_hbm [thread:$0]  %s5837, 1024, %s5835, %s5802, 256, 256, 16
        $region100: #{forward.1} parent=55 // pred_fallthru
          _
        // Predicated region
        $region101: #{forward.1} parent=55 // pred_check
          %p5843 = pneg %p301
        $region102: #{forward.1} parent=55 // pred_check_branch
          %5845 = sbr.rel (%p5843) target = $region104
        $region103: #{forward.1} parent=55 // pred_region
          %s5847 = ssub.s32 32, 32
          %5848 = vsyncadd %s5807, %s5847
          %s5849 = smul.addr %s37, 2
          %s5850 = smul.addr %s5849, 16
          %s5851 = scalar_lea.hbm %s11, %s5850
          %s5853 = sshll.u32 %s5810, 4
          %s5854 = int_to_ptr.vmem [resolvable:$true] %s5853
          %5856 = dma.vmem_to_hbm [thread:$0]  %s5854, 32, %s5851, %s5807
        $region104: #{forward.1} parent=55 // pred_fallthru
          _
      $region56: #{forward.1} parent=5 // pred_fallthru
        _
      %p5857 = scmp.le.s32.totalorder 2, %s32
      // Predicated region
      $region105: #{forward.1} parent=5 // pred_check
        %p5858 = pneg %p5857
      $region106: #{forward.1} parent=5 // pred_check_branch
        %5860 = sbr.rel (%p5858) target = $region108
      $region107: #{forward.1} parent=5 // pred_region
        %s5861 = ssub.s32 %s32, 2
        // Predicated region
        $region109: #{forward.1} parent=107 // pred_check
          %p5862 = pneg %p255
        $region110: #{forward.1} parent=107 // pred_check_branch
          %5864 = sbr.rel (%p5862) target = $region112
        $region111: #{forward.1} parent=107 // pred_region
          %s5865 = sand.u32 %s240, 1
          %s5866 = scalar_lea.sflag [#allocation5], %s5865
          %s5867 = sand.u32 %s240, 1
          %s5868 = smul.addr %s5867, 64
          %s5869 = scalar_lea.vmem [#allocation19], %s5868
          %5870 = dma.done %s5866, 1024
        $region112: #{forward.1} parent=107 // pred_fallthru
          _
        // Predicated region
        $region113: #{forward.1} parent=107 // pred_check
          %p5871 = pneg %p281
        $region114: #{forward.1} parent=107 // pred_check_branch
          %5873 = sbr.rel (%p5871) target = $region116
        $region115: #{forward.1} parent=107 // pred_region
          %s5874 = sand.u32 %s38, 1
          %s5875 = scalar_lea.sflag [#allocation21], %s5874
          %s5876 = sand.u32 %s266, 1
          %s5877 = smul.addr %s5876, 64
          %s5878 = scalar_lea.vmem [#allocation20], %s5877
          %5879 = dma.done %s5875, 1024
        $region116: #{forward.1} parent=107 // pred_fallthru
          _
        // Predicated region
        $region117: #{forward.1} parent=107 // pred_check
          %p5880 = pneg %p307
        $region118: #{forward.1} parent=107 // pred_check_branch
          %5882 = sbr.rel (%p5880) target = $region120
        $region119: #{forward.1} parent=107 // pred_region
          %s5883 = sand.u32 %s38, 1
          %s5884 = scalar_lea.sflag [#allocation21], %s5883
          %s5885 = sand.u32 %s292, 1
          %s5886 = smul.addr %s5885, 2
          %s5887 = scalar_lea.vmem [#allocation22], %s5886
          %5888 = dma.done %s5884, 32
        $region120: #{forward.1} parent=107 // pred_fallthru
          _
      $region108: #{forward.1} parent=5 // pred_fallthru
        _
    $region6: #{forward.1} parent=1 // loop_footer
      %s36 = sadd.s32 1, %s32
    $region7: #{forward.1} parent=1 // loop_footer_branch
      %31 = sbr.rel target = $region3
    $region8: #{forward.1} parent=1 // loop_exit
      _
    %5889 = vsyncpa [#allocation4], 1
    %s5890 = scalar_lea.sflag [#allocation4], 1
    %5891 = vsyncpa %s5890, 1
    %5892 = vsyncpa [#allocation9], 1
    %5893 = vsyncpa [#allocation12], 1
    %5894 = vsyncpa [#allocation15], 1
    %5895 = vsyncpa [#allocation18], 1
    %5896 = vsyncpa [#allocation5], 1
    %s5897 = scalar_lea.sflag [#allocation5], 1
    %5898 = vsyncpa %s5897, 1
    %5899 = vsyncpa [#allocation21], 1
    %s5900 = scalar_lea.sflag [#allocation21], 1
    %5901 = vsyncpa %s5900, 1
    %5902 = vsyncpa [#allocation6], 1
    %s5903 = scalar_lea.sflag [#allocation6], 1
    %5904 = vsyncpa %s5903, 1

</llo_original>
